<compile_context>
chip_gen: v7x
topology: tpu7x:2x2x1
jax: 0.10.0
libtpu: 0.0.40
codegen_flags: <defaults>
</compile_context>

<pallas_src>
import jax
import jax.numpy as jnp
import numpy as np
from jax.experimental import pallas as pl
from jax.experimental.pallas import tpu as pltpu


def _round_up(x, m):
    return ((x + m - 1) // m) * m


# ------------------------------ fused kernel -------------------------------

def _lenet5_kernel(x_ref, w1_ref, b1_ref, w2_ref, b2_ref, pw2_ref,
                   f1_ref, bf1_ref, wf2_ref, bf2_ref, out_ref,
                   y1s_ref, y5s_ref):
    f32, bf16 = jnp.float32, jnp.bfloat16
    B = out_ref.shape[0]          # images in this block
    R0 = B * 40                   # merged rows (40 per image: 32 real + 8 pad)
    R1 = R0 - 8                   # conv1 rows computed
    R2 = R0 - 8                   # conv2 rows computed
    R3 = R2 - 8                   # pool2 rows computed
    R5 = R3 - 16                  # fc1 rows computed
    # Valid data lives at fixed per-image row offsets; trailing "garbage" rows
    # are never read by any valid output.

    # conv1 (1->6, 5x5) + bias + tanh: 5 row-tap matmuls, batch merged into M.
    acc1 = jnp.dot(x_ref[pl.ds(0, R1), :].astype(bf16), w1_ref[0],
                   preferred_element_type=f32)
    for kh in range(1, 5):
        acc1 = acc1 + jnp.dot(x_ref[pl.ds(kh, R1), :].astype(bf16), w1_ref[kh],
                              preferred_element_type=f32)
    y1s_ref[pl.ds(0, R1), :] = jnp.tanh(acc1 + b1_ref[...])
    y1s_ref[pl.ds(R1, 16), :] = jnp.zeros((16, 168), f32)   # zero tail rows

    # conv2 (6->16, 5x5) with AvgPool2d(2) #1 folded in: 10 row-tap matmuls.
    acc2 = jnp.dot(y1s_ref[pl.ds(0, R2), :].astype(bf16), w2_ref[0],
                   preferred_element_type=f32)
    for t in range(1, 10):
        acc2 = acc2 + jnp.dot(y1s_ref[pl.ds(t, R2), :].astype(bf16), w2_ref[t],
                              preferred_element_type=f32)
    y3 = jnp.tanh(acc2 + b2_ref[...])                        # (R2, 160)

    # pool2: row pairs via offset add, column pairs via constant matmul
    # (the 0.25 averaging factor is folded into pw2).
    y3r = (y3[0:R3, :] + y3[2:R3 + 2, :]).astype(bf16)
    y4 = jnp.dot(y3r, pw2_ref[...], preferred_element_type=f32)   # (R3, 80)

    # fc1: 5 row-tap matmuls; torch's NCHW view(-1, 400) is folded into f1.
    acc3 = jnp.dot(y4[0:R5, :].astype(bf16), f1_ref[0],
                   preferred_element_type=f32)
    for qh in range(1, 5):
        acc3 = acc3 + jnp.dot(y4[4 * qh:4 * qh + R5, :].astype(bf16),
                              f1_ref[qh], preferred_element_type=f32)

    # compact: one valid fc1 row per image (row b*40, always 8-aligned).
    for b in range(B):
        y5s_ref[pl.ds(b, 1), :] = acc3[b * 40:b * 40 + 1, :]

    y5 = jnp.tanh(y5s_ref[...] + bf1_ref[...]).astype(bf16)       # (B, 120)

    # fc2 (padded to 128 lanes -> lane-dense store) + exact softmax.
    logits = jnp.dot(y5, wf2_ref[...], preferred_element_type=f32) + bf2_ref[...]
    m = jnp.max(logits, axis=-1, keepdims=True)
    e = jnp.exp(logits - m)
    out_ref[...] = e / jnp.sum(e, axis=-1, keepdims=True)


# ------------------------------ forward wrapper -----------------------------

def lenet5_forward(x_nchw, kp, batch_tile=32):
    """x_nchw: (N, 1, 32, 32) float32 (PyTorch layout). kp: packed params."""
    N = x_nchw.shape[0]
    B = min(int(batch_tile), _round_up(N, 8))
    B = max(8, (B // 8) * 8)                    # block batch must be 8-aligned
    Npad = _round_up(N, B)

    x = x_nchw.reshape(N, 32, 32).astype(jnp.float32)
    xp = jnp.pad(x, ((0, Npad - N), (0, 8), (0, 0)))     # (Npad, 40, 32)
    xp = xp.reshape(Npad * 40, 32)                       # row-merged layout

    names = ("w1", "b1", "w2", "b2", "pw2", "f1", "bf1", "wf2", "bf2")
    ops = [kp[n] for n in names]

    def const_spec(a):                    # full-array block, resident in VMEM
        nd = a.ndim
        return pl.BlockSpec(a.shape, lambda i, _nd=nd: (0,) * _nd)

    in_specs = [pl.BlockSpec((B * 40, 32), lambda i: (i, 0))]
    in_specs += [const_spec(a) for a in ops]

    out = pl.pallas_call(
        _lenet5_kernel,
        out_shape=jax.ShapeDtypeStruct((Npad, 128), jnp.float32),
        grid=(Npad // B,),
        in_specs=in_specs,
        out_specs=pl.BlockSpec((B, 128), lambda i: (i, 0)),
        scratch_shapes=[pltpu.VMEM((B * 40 + 8, 168), jnp.float32),
                        pltpu.VMEM((B, 120), jnp.float32)],
        compiler_params=pltpu.CompilerParams(
            dimension_semantics=("parallel",),
            vmem_limit_bytes=40 * 1024 * 1024),
    )(xp, *ops)
    return out[:N, :84]


# ----------------------- one-time weight re-packing -------------------------

def init_params(key):
    # Same shapes as the PyTorch module's parameters (deterministic init).
    ks = jax.random.split(key, 8)
    scale = 0.1
    return dict(
        w1=scale * jax.random.normal(ks[0], (6, 1, 5, 5), jnp.float32),
        b1=scale * jax.random.normal(ks[1], (6,), jnp.float32),
        w2=scale * jax.random.normal(ks[2], (16, 6, 5, 5), jnp.float32),
        b2=scale * jax.random.normal(ks[3], (16,), jnp.float32),
        wf1=scale * jax.random.normal(ks[4], (120, 400), jnp.float32),
        bf1=scale * jax.random.normal(ks[5], (120,), jnp.float32),
        wf2=scale * jax.random.normal(ks[6], (84, 120), jnp.float32),
        bf2=scale * jax.random.normal(ks[7], (84,), jnp.float32),
    )


def pack_params(params):
    """Re-lay torch-shaped parameters into kernel-ready matrices (host, once)."""
    w1 = np.asarray(params["w1"], np.float32)     # (6, 1, 5, 5)
    b1 = np.asarray(params["b1"], np.float32)
    w2 = np.asarray(params["w2"], np.float32)     # (16, 6, 5, 5)
    b2 = np.asarray(params["b2"], np.float32)
    wf1 = np.asarray(params["wf1"], np.float32)   # (120, 400)
    bf1 = np.asarray(params["bf1"], np.float32)
    wf2 = np.asarray(params["wf2"], np.float32)   # (84, 120)
    bf2 = np.asarray(params["bf2"], np.float32)

    # conv1 row-tap band matrices; activation layout (row, ow*6 + c).
    W1 = np.zeros((5, 32, 28 * 6), np.float32)
    for kh in range(5):
        for kw in range(5):
            for ow in range(28):
                W1[kh, ow + kw, ow * 6:(ow + 1) * 6] = w1[:, 0, kh, kw]
    b1r = np.tile(b1, 28)[None, :]                              # (1, 168)

    # conv2 with AvgPool2d(2) #1 folded in: 10 row taps of (28*6, 10*16).
    W2 = np.zeros((10, 28 * 6, 10 * 16), np.float32)
    for t in range(10):
        kh = t // 2
        for ow2 in range(10):
            for s in range(10):
                ow1 = 2 * ow2 + s
                kw = s // 2
                W2[t, ow1 * 6:(ow1 + 1) * 6, ow2 * 16:(ow2 + 1) * 16] = \
                    0.25 * w2[:, :, kh, kw].T
    b2r = np.tile(b2, 10)[None, :]                              # (1, 160)

    # pool2 column-pair matrix (row-average 0.5 folded in -> 0.25).
    Pw2 = np.zeros((10 * 16, 5 * 16), np.float32)
    for qw in range(5):
        for dc in range(2):
            for o in range(16):
                Pw2[(2 * qw + dc) * 16 + o, qw * 16 + o] = 0.25

    # fc1 row taps; torch NCHW view(-1, 400) index is c*25 + qh*5 + qw.
    F1 = np.zeros((5, 80, 120), np.float32)
    for qh in range(5):
        for qw in range(5):
            for c in range(16):
                F1[qh, qw * 16 + c, :] = wf1[:, c * 25 + qh * 5 + qw]
    bf1r = bf1[None, :]                                         # (1, 120)

    # fc2 padded to 128 lanes; padded logits forced to -1e30 (exp -> 0).
    Wf2 = np.zeros((120, 128), np.float32)
    Wf2[:, :84] = wf2.T
    bf2r = np.full((1, 128), -1e30, np.float32)
    bf2r[0, :84] = bf2

    bf = lambda a: jnp.asarray(a, jnp.bfloat16)
    f = lambda a: jnp.asarray(a, jnp.float32)
    return dict(w1=bf(W1), b1=f(b1r), w2=bf(W2), b2=f(b2r), pw2=bf(Pw2),
                f1=bf(F1), bf1=f(bf1r), wf2=bf(Wf2), bf2=f(bf2r))


# --------------------------- pure-JAX reference -----------------------------

def lenet5_reference(x_nchw, params):
    def conv(x, w, b):
        N, Ci, H, W = x.shape
        Co, _, KH, KW = w.shape
        OH, OW = H - KH + 1, W - KW + 1
        out = jnp.broadcast_to(b[None, :, None, None],
                               (N, Co, OH, OW)).astype(jnp.float32)
        for i in range(KH):
            for jj in range(KW):
                out = out + jnp.einsum("nchw,oc->nohw",
                                       x[:, :, i:i + OH, jj:jj + OW],
                                       w[:, :, i, jj])
        return out

    def avgpool2(x):
        N, C, H, W = x.shape
        return x.reshape(N, C, H // 2, 2, W // 2, 2).mean(axis=(3, 5))

    y1 = jnp.tanh(conv(x_nchw, params["w1"], params["b1"]))
    y2 = avgpool2(y1)
    y3 = jnp.tanh(conv(y2, params["w2"], params["b2"]))
    y4 = avgpool2(y3).reshape(x_nchw.shape[0], -1)   # NCHW flatten == torch view
    y5 = jnp.tanh(y4 @ params["wf1"].T + params["bf1"])
    logits = y5 @ params["wf2"].T + params["bf2"]
    return jax.nn.softmax(logits, axis=1)


# ----------------------------------- main -----------------------------------

if __name__ == "__main__":
    key = jax.random.PRNGKey(0)
    k_x, k_p = jax.random.split(key)
    # LeNet5's fc1 (5*5*16 inputs) implies a 1x32x32 input image.
    x = jax.random.normal(k_x, (16, 1, 32, 32), jnp.float32)   # NCHW like PyTorch
    params = init_params(k_p)
    kparams = pack_params(params)                               # one-time re-layout

    fwd = jax.jit(lenet5_forward, static_argnames=("batch_tile",))
    out = jax.block_until_ready(fwd(x, kparams, batch_tile=8))  # grid of 2 steps
    assert out.shape == (16, 84)

    # Correctness self-check against a pure-JAX f32 reference (bf16 MXU operands
    # in the kernel => slightly looser tolerance).
    ref = jax.block_until_ready(lenet5_reference(x, params))
    np.testing.assert_allclose(np.asarray(out), np.asarray(ref),
                               rtol=1e-1, atol=5e-3)
    print("KERNEL_OK")
</pallas_src>

<mosaic_0001>
module attributes {stable_mosaic.version = 11 : i64} {
  func.func @_lenet5_kernel(%arg0: i32, %arg1: memref<320x32xf32, #tpu.memory_space<vmem>>, %arg2: memref<5x32x168xbf16, #tpu.memory_space<vmem>>, %arg3: memref<1x168xf32, #tpu.memory_space<vmem>>, %arg4: memref<10x168x160xbf16, #tpu.memory_space<vmem>>, %arg5: memref<1x160xf32, #tpu.memory_space<vmem>>, %arg6: memref<160x80xbf16, #tpu.memory_space<vmem>>, %arg7: memref<5x80x120xbf16, #tpu.memory_space<vmem>>, %arg8: memref<1x120xf32, #tpu.memory_space<vmem>>, %arg9: memref<120x128xbf16, #tpu.memory_space<vmem>>, %arg10: memref<1x128xf32, #tpu.memory_space<vmem>>, %arg11: memref<8x128xf32, #tpu.memory_space<vmem>>, %arg12: memref<328x168xf32, #tpu.memory_space<vmem>>, %arg13: memref<8x120xf32, #tpu.memory_space<vmem>>) attributes {dimension_semantics = [#tpu.dimension_semantics<parallel>], iteration_bounds = array<i64: 2>, scalar_prefetch = 0 : i64, scratch_operands = 2 : i64, tpu.core_type = #tpu.core_type<tc>, window_params = [{transform_indices = @transform_0, window_bounds = array<i64: 320, 32>}, {pipeline_mode = #tpu.pipeline_mode<synchronous>, transform_indices = @transform_1, window_bounds = array<i64: 5, 32, 168>}, {pipeline_mode = #tpu.pipeline_mode<synchronous>, transform_indices = @transform_2, window_bounds = array<i64: 1, 168>}, {pipeline_mode = #tpu.pipeline_mode<synchronous>, transform_indices = @transform_3, window_bounds = array<i64: 10, 168, 160>}, {pipeline_mode = #tpu.pipeline_mode<synchronous>, transform_indices = @transform_4, window_bounds = array<i64: 1, 160>}, {pipeline_mode = #tpu.pipeline_mode<synchronous>, transform_indices = @transform_5, window_bounds = array<i64: 160, 80>}, {pipeline_mode = #tpu.pipeline_mode<synchronous>, transform_indices = @transform_6, window_bounds = array<i64: 5, 80, 120>}, {pipeline_mode = #tpu.pipeline_mode<synchronous>, transform_indices = @transform_7, window_bounds = array<i64: 1, 120>}, {pipeline_mode = #tpu.pipeline_mode<synchronous>, transform_indices = @transform_8, window_bounds = array<i64: 120, 128>}, {pipeline_mode = #tpu.pipeline_mode<synchronous>, transform_indices = @transform_9, window_bounds = array<i64: 1, 128>}, {transform_indices = @transform_10, window_bounds = array<i64: 8, 128>}]} {
    %c0 = arith.constant 0 : index
    %c0_0 = arith.constant 0 : index
    %0 = vector.load %arg1[%c0, %c0_0] : memref<320x32xf32, #tpu.memory_space<vmem>>, vector<312x32xf32>
    %1 = arith.truncf %0 : vector<312x32xf32> to vector<312x32xbf16>
    %c0_1 = arith.constant 0 : index
    %c0_2 = arith.constant 0 : index
    %c0_3 = arith.constant 0 : index
    %2 = vector.load %arg2[%c0_1, %c0_2, %c0_3] : memref<5x32x168xbf16, #tpu.memory_space<vmem>>, vector<1x32x168xbf16>
    %3 = vector.shape_cast %2 : vector<1x32x168xbf16> to vector<32x168xbf16>
    %cst = arith.constant dense<0.000000e+00> : vector<312x168xf32>
    %4 = tpu.matmul %1, %3, %cst {dimension_numbers = #tpu.dot_dimension_numbers<[1], [0], [0], [1], [0, 0, 1, 1], [], []>} : vector<312x32xbf16>, vector<32x168xbf16>, vector<312x168xf32> -> vector<312x168xf32>
    %c1 = arith.constant 1 : index
    %c0_4 = arith.constant 0 : index
    %5 = vector.load %arg1[%c1, %c0_4] : memref<320x32xf32, #tpu.memory_space<vmem>>, vector<312x32xf32>
    %6 = arith.truncf %5 : vector<312x32xf32> to vector<312x32xbf16>
    %c1_5 = arith.constant 1 : index
    %c0_6 = arith.constant 0 : index
    %c0_7 = arith.constant 0 : index
    %7 = vector.load %arg2[%c1_5, %c0_6, %c0_7] : memref<5x32x168xbf16, #tpu.memory_space<vmem>>, vector<1x32x168xbf16>
    %8 = vector.shape_cast %7 : vector<1x32x168xbf16> to vector<32x168xbf16>
    %cst_8 = arith.constant dense<0.000000e+00> : vector<312x168xf32>
    %9 = tpu.matmul %6, %8, %cst_8 {dimension_numbers = #tpu.dot_dimension_numbers<[1], [0], [0], [1], [0, 0, 1, 1], [], []>} : vector<312x32xbf16>, vector<32x168xbf16>, vector<312x168xf32> -> vector<312x168xf32>
    %10 = arith.addf %4, %9 : vector<312x168xf32>
    %c2 = arith.constant 2 : index
    %c0_9 = arith.constant 0 : index
    %11 = vector.load %arg1[%c2, %c0_9] : memref<320x32xf32, #tpu.memory_space<vmem>>, vector<312x32xf32>
    %12 = arith.truncf %11 : vector<312x32xf32> to vector<312x32xbf16>
    %c2_10 = arith.constant 2 : index
    %c0_11 = arith.constant 0 : index
    %c0_12 = arith.constant 0 : index
    %13 = vector.load %arg2[%c2_10, %c0_11, %c0_12] : memref<5x32x168xbf16, #tpu.memory_space<vmem>>, vector<1x32x168xbf16>
    %14 = vector.shape_cast %13 : vector<1x32x168xbf16> to vector<32x168xbf16>
    %cst_13 = arith.constant dense<0.000000e+00> : vector<312x168xf32>
    %15 = tpu.matmul %12, %14, %cst_13 {dimension_numbers = #tpu.dot_dimension_numbers<[1], [0], [0], [1], [0, 0, 1, 1], [], []>} : vector<312x32xbf16>, vector<32x168xbf16>, vector<312x168xf32> -> vector<312x168xf32>
    %16 = arith.addf %10, %15 : vector<312x168xf32>
    %c3 = arith.constant 3 : index
    %c0_14 = arith.constant 0 : index
    %17 = vector.load %arg1[%c3, %c0_14] : memref<320x32xf32, #tpu.memory_space<vmem>>, vector<312x32xf32>
    %18 = arith.truncf %17 : vector<312x32xf32> to vector<312x32xbf16>
    %c3_15 = arith.constant 3 : index
    %c0_16 = arith.constant 0 : index
    %c0_17 = arith.constant 0 : index
    %19 = vector.load %arg2[%c3_15, %c0_16, %c0_17] : memref<5x32x168xbf16, #tpu.memory_space<vmem>>, vector<1x32x168xbf16>
    %20 = vector.shape_cast %19 : vector<1x32x168xbf16> to vector<32x168xbf16>
    %cst_18 = arith.constant dense<0.000000e+00> : vector<312x168xf32>
    %21 = tpu.matmul %18, %20, %cst_18 {dimension_numbers = #tpu.dot_dimension_numbers<[1], [0], [0], [1], [0, 0, 1, 1], [], []>} : vector<312x32xbf16>, vector<32x168xbf16>, vector<312x168xf32> -> vector<312x168xf32>
    %22 = arith.addf %16, %21 : vector<312x168xf32>
    %c4 = arith.constant 4 : index
    %c0_19 = arith.constant 0 : index
    %23 = vector.load %arg1[%c4, %c0_19] : memref<320x32xf32, #tpu.memory_space<vmem>>, vector<312x32xf32>
    %24 = arith.truncf %23 : vector<312x32xf32> to vector<312x32xbf16>
    %c4_20 = arith.constant 4 : index
    %c0_21 = arith.constant 0 : index
    %c0_22 = arith.constant 0 : index
    %25 = vector.load %arg2[%c4_20, %c0_21, %c0_22] : memref<5x32x168xbf16, #tpu.memory_space<vmem>>, vector<1x32x168xbf16>
    %26 = vector.shape_cast %25 : vector<1x32x168xbf16> to vector<32x168xbf16>
    %cst_23 = arith.constant dense<0.000000e+00> : vector<312x168xf32>
    %27 = tpu.matmul %24, %26, %cst_23 {dimension_numbers = #tpu.dot_dimension_numbers<[1], [0], [0], [1], [0, 0, 1, 1], [], []>} : vector<312x32xbf16>, vector<32x168xbf16>, vector<312x168xf32> -> vector<312x168xf32>
    %28 = arith.addf %22, %27 : vector<312x168xf32>
    %c0_24 = arith.constant 0 : index
    %c0_25 = arith.constant 0 : index
    %29 = vector.load %arg3[%c0_24, %c0_25] : memref<1x168xf32, #tpu.memory_space<vmem>>, vector<1x168xf32>
    %30 = vector.broadcast %29 : vector<1x168xf32> to vector<312x168xf32>
    %31 = arith.addf %28, %30 : vector<312x168xf32>
    %32 = math.tanh %31 : vector<312x168xf32>
    %c0_26 = arith.constant 0 : index
    %c0_27 = arith.constant 0 : index
    %33 = vector.load %arg12[%c0_26, %c0_27] : memref<328x168xf32, #tpu.memory_space<vmem>>, vector<312x168xf32>
    tpu.vector_store %arg12[%c0_26, %c0_27], %32 {strides = array<i32>} : memref<328x168xf32, #tpu.memory_space<vmem>>, vector<312x168xf32>,
    %cst_28 = arith.constant 0.000000e+00 : f32
    %34 = vector.broadcast %cst_28 : f32 to vector<16x168xf32>
    %c312 = arith.constant 312 : index
    %c0_29 = arith.constant 0 : index
    %35 = vector.load %arg12[%c312, %c0_29] : memref<328x168xf32, #tpu.memory_space<vmem>>, vector<16x168xf32>
    tpu.vector_store %arg12[%c312, %c0_29], %34 {strides = array<i32>} : memref<328x168xf32, #tpu.memory_space<vmem>>, vector<16x168xf32>,
    %c0_30 = arith.constant 0 : index
    %c0_31 = arith.constant 0 : index
    %36 = vector.load %arg12[%c0_30, %c0_31] : memref<328x168xf32, #tpu.memory_space<vmem>>, vector<312x168xf32>
    %37 = arith.truncf %36 : vector<312x168xf32> to vector<312x168xbf16>
    %c0_32 = arith.constant 0 : index
    %c0_33 = arith.constant 0 : index
    %c0_34 = arith.constant 0 : index
    %38 = vector.load %arg4[%c0_32, %c0_33, %c0_34] : memref<10x168x160xbf16, #tpu.memory_space<vmem>>, vector<1x168x160xbf16>
    %39 = vector.shape_cast %38 : vector<1x168x160xbf16> to vector<168x160xbf16>
    %cst_35 = arith.constant dense<0.000000e+00> : vector<312x160xf32>
    %40 = tpu.matmul %37, %39, %cst_35 {dimension_numbers = #tpu.dot_dimension_numbers<[1], [0], [0], [1], [0, 0, 1, 1], [], []>} : vector<312x168xbf16>, vector<168x160xbf16>, vector<312x160xf32> -> vector<312x160xf32>
    %c1_36 = arith.constant 1 : index
    %c0_37 = arith.constant 0 : index
    %41 = vector.load %arg12[%c1_36, %c0_37] : memref<328x168xf32, #tpu.memory_space<vmem>>, vector<312x168xf32>
    %42 = arith.truncf %41 : vector<312x168xf32> to vector<312x168xbf16>
    %c1_38 = arith.constant 1 : index
    %c0_39 = arith.constant 0 : index
    %c0_40 = arith.constant 0 : index
    %43 = vector.load %arg4[%c1_38, %c0_39, %c0_40] : memref<10x168x160xbf16, #tpu.memory_space<vmem>>, vector<1x168x160xbf16>
    %44 = vector.shape_cast %43 : vector<1x168x160xbf16> to vector<168x160xbf16>
    %cst_41 = arith.constant dense<0.000000e+00> : vector<312x160xf32>
    %45 = tpu.matmul %42, %44, %cst_41 {dimension_numbers = #tpu.dot_dimension_numbers<[1], [0], [0], [1], [0, 0, 1, 1], [], []>} : vector<312x168xbf16>, vector<168x160xbf16>, vector<312x160xf32> -> vector<312x160xf32>
    %46 = arith.addf %40, %45 : vector<312x160xf32>
    %c2_42 = arith.constant 2 : index
    %c0_43 = arith.constant 0 : index
    %47 = vector.load %arg12[%c2_42, %c0_43] : memref<328x168xf32, #tpu.memory_space<vmem>>, vector<312x168xf32>
    %48 = arith.truncf %47 : vector<312x168xf32> to vector<312x168xbf16>
    %c2_44 = arith.constant 2 : index
    %c0_45 = arith.constant 0 : index
    %c0_46 = arith.constant 0 : index
    %49 = vector.load %arg4[%c2_44, %c0_45, %c0_46] : memref<10x168x160xbf16, #tpu.memory_space<vmem>>, vector<1x168x160xbf16>
    %50 = vector.shape_cast %49 : vector<1x168x160xbf16> to vector<168x160xbf16>
    %cst_47 = arith.constant dense<0.000000e+00> : vector<312x160xf32>
    %51 = tpu.matmul %48, %50, %cst_47 {dimension_numbers = #tpu.dot_dimension_numbers<[1], [0], [0], [1], [0, 0, 1, 1], [], []>} : vector<312x168xbf16>, vector<168x160xbf16>, vector<312x160xf32> -> vector<312x160xf32>
    %52 = arith.addf %46, %51 : vector<312x160xf32>
    %c3_48 = arith.constant 3 : index
    %c0_49 = arith.constant 0 : index
    %53 = vector.load %arg12[%c3_48, %c0_49] : memref<328x168xf32, #tpu.memory_space<vmem>>, vector<312x168xf32>
    %54 = arith.truncf %53 : vector<312x168xf32> to vector<312x168xbf16>
    %c3_50 = arith.constant 3 : index
    %c0_51 = arith.constant 0 : index
    %c0_52 = arith.constant 0 : index
    %55 = vector.load %arg4[%c3_50, %c0_51, %c0_52] : memref<10x168x160xbf16, #tpu.memory_space<vmem>>, vector<1x168x160xbf16>
    %56 = vector.shape_cast %55 : vector<1x168x160xbf16> to vector<168x160xbf16>
    %cst_53 = arith.constant dense<0.000000e+00> : vector<312x160xf32>
    %57 = tpu.matmul %54, %56, %cst_53 {dimension_numbers = #tpu.dot_dimension_numbers<[1], [0], [0], [1], [0, 0, 1, 1], [], []>} : vector<312x168xbf16>, vector<168x160xbf16>, vector<312x160xf32> -> vector<312x160xf32>
    %58 = arith.addf %52, %57 : vector<312x160xf32>
    %c4_54 = arith.constant 4 : index
    %c0_55 = arith.constant 0 : index
    %59 = vector.load %arg12[%c4_54, %c0_55] : memref<328x168xf32, #tpu.memory_space<vmem>>, vector<312x168xf32>
    %60 = arith.truncf %59 : vector<312x168xf32> to vector<312x168xbf16>
    %c4_56 = arith.constant 4 : index
    %c0_57 = arith.constant 0 : index
    %c0_58 = arith.constant 0 : index
    %61 = vector.load %arg4[%c4_56, %c0_57, %c0_58] : memref<10x168x160xbf16, #tpu.memory_space<vmem>>, vector<1x168x160xbf16>
    %62 = vector.shape_cast %61 : vector<1x168x160xbf16> to vector<168x160xbf16>
    %cst_59 = arith.constant dense<0.000000e+00> : vector<312x160xf32>
    %63 = tpu.matmul %60, %62, %cst_59 {dimension_numbers = #tpu.dot_dimension_numbers<[1], [0], [0], [1], [0, 0, 1, 1], [], []>} : vector<312x168xbf16>, vector<168x160xbf16>, vector<312x160xf32> -> vector<312x160xf32>
    %64 = arith.addf %58, %63 : vector<312x160xf32>
    %c5 = arith.constant 5 : index
    %c0_60 = arith.constant 0 : index
    %65 = vector.load %arg12[%c5, %c0_60] : memref<328x168xf32, #tpu.memory_space<vmem>>, vector<312x168xf32>
    %66 = arith.truncf %65 : vector<312x168xf32> to vector<312x168xbf16>
    %c5_61 = arith.constant 5 : index
    %c0_62 = arith.constant 0 : index
    %c0_63 = arith.constant 0 : index
    %67 = vector.load %arg4[%c5_61, %c0_62, %c0_63] : memref<10x168x160xbf16, #tpu.memory_space<vmem>>, vector<1x168x160xbf16>
    %68 = vector.shape_cast %67 : vector<1x168x160xbf16> to vector<168x160xbf16>
    %cst_64 = arith.constant dense<0.000000e+00> : vector<312x160xf32>
    %69 = tpu.matmul %66, %68, %cst_64 {dimension_numbers = #tpu.dot_dimension_numbers<[1], [0], [0], [1], [0, 0, 1, 1], [], []>} : vector<312x168xbf16>, vector<168x160xbf16>, vector<312x160xf32> -> vector<312x160xf32>
    %70 = arith.addf %64, %69 : vector<312x160xf32>
    %c6 = arith.constant 6 : index
    %c0_65 = arith.constant 0 : index
    %71 = vector.load %arg12[%c6, %c0_65] : memref<328x168xf32, #tpu.memory_space<vmem>>, vector<312x168xf32>
    %72 = arith.truncf %71 : vector<312x168xf32> to vector<312x168xbf16>
    %c6_66 = arith.constant 6 : index
    %c0_67 = arith.constant 0 : index
    %c0_68 = arith.constant 0 : index
    %73 = vector.load %arg4[%c6_66, %c0_67, %c0_68] : memref<10x168x160xbf16, #tpu.memory_space<vmem>>, vector<1x168x160xbf16>
    %74 = vector.shape_cast %73 : vector<1x168x160xbf16> to vector<168x160xbf16>
    %cst_69 = arith.constant dense<0.000000e+00> : vector<312x160xf32>
    %75 = tpu.matmul %72, %74, %cst_69 {dimension_numbers = #tpu.dot_dimension_numbers<[1], [0], [0], [1], [0, 0, 1, 1], [], []>} : vector<312x168xbf16>, vector<168x160xbf16>, vector<312x160xf32> -> vector<312x160xf32>
    %76 = arith.addf %70, %75 : vector<312x160xf32>
    %c7 = arith.constant 7 : index
    %c0_70 = arith.constant 0 : index
    %77 = vector.load %arg12[%c7, %c0_70] : memref<328x168xf32, #tpu.memory_space<vmem>>, vector<312x168xf32>
    %78 = arith.truncf %77 : vector<312x168xf32> to vector<312x168xbf16>
    %c7_71 = arith.constant 7 : index
    %c0_72 = arith.constant 0 : index
    %c0_73 = arith.constant 0 : index
    %79 = vector.load %arg4[%c7_71, %c0_72, %c0_73] : memref<10x168x160xbf16, #tpu.memory_space<vmem>>, vector<1x168x160xbf16>
    %80 = vector.shape_cast %79 : vector<1x168x160xbf16> to vector<168x160xbf16>
    %cst_74 = arith.constant dense<0.000000e+00> : vector<312x160xf32>
    %81 = tpu.matmul %78, %80, %cst_74 {dimension_numbers = #tpu.dot_dimension_numbers<[1], [0], [0], [1], [0, 0, 1, 1], [], []>} : vector<312x168xbf16>, vector<168x160xbf16>, vector<312x160xf32> -> vector<312x160xf32>
    %82 = arith.addf %76, %81 : vector<312x160xf32>
    %c8 = arith.constant 8 : index
    %c0_75 = arith.constant 0 : index
    %83 = vector.load %arg12[%c8, %c0_75] : memref<328x168xf32, #tpu.memory_space<vmem>>, vector<312x168xf32>
    %84 = arith.truncf %83 : vector<312x168xf32> to vector<312x168xbf16>
    %c8_76 = arith.constant 8 : index
    %c0_77 = arith.constant 0 : index
    %c0_78 = arith.constant 0 : index
    %85 = vector.load %arg4[%c8_76, %c0_77, %c0_78] : memref<10x168x160xbf16, #tpu.memory_space<vmem>>, vector<1x168x160xbf16>
    %86 = vector.shape_cast %85 : vector<1x168x160xbf16> to vector<168x160xbf16>
    %cst_79 = arith.constant dense<0.000000e+00> : vector<312x160xf32>
    %87 = tpu.matmul %84, %86, %cst_79 {dimension_numbers = #tpu.dot_dimension_numbers<[1], [0], [0], [1], [0, 0, 1, 1], [], []>} : vector<312x168xbf16>, vector<168x160xbf16>, vector<312x160xf32> -> vector<312x160xf32>
    %88 = arith.addf %82, %87 : vector<312x160xf32>
    %c9 = arith.constant 9 : index
    %c0_80 = arith.constant 0 : index
    %89 = vector.load %arg12[%c9, %c0_80] : memref<328x168xf32, #tpu.memory_space<vmem>>, vector<312x168xf32>
    %90 = arith.truncf %89 : vector<312x168xf32> to vector<312x168xbf16>
    %c9_81 = arith.constant 9 : index
    %c0_82 = arith.constant 0 : index
    %c0_83 = arith.constant 0 : index
    %91 = vector.load %arg4[%c9_81, %c0_82, %c0_83] : memref<10x168x160xbf16, #tpu.memory_space<vmem>>, vector<1x168x160xbf16>
    %92 = vector.shape_cast %91 : vector<1x168x160xbf16> to vector<168x160xbf16>
    %cst_84 = arith.constant dense<0.000000e+00> : vector<312x160xf32>
    %93 = tpu.matmul %90, %92, %cst_84 {dimension_numbers = #tpu.dot_dimension_numbers<[1], [0], [0], [1], [0, 0, 1, 1], [], []>} : vector<312x168xbf16>, vector<168x160xbf16>, vector<312x160xf32> -> vector<312x160xf32>
    %94 = arith.addf %88, %93 : vector<312x160xf32>
    %c0_85 = arith.constant 0 : index
    %c0_86 = arith.constant 0 : index
    %95 = vector.load %arg5[%c0_85, %c0_86] : memref<1x160xf32, #tpu.memory_space<vmem>>, vector<1x160xf32>
    %96 = vector.broadcast %95 : vector<1x160xf32> to vector<312x160xf32>
    %97 = arith.addf %94, %96 : vector<312x160xf32>
    %98 = math.tanh %97 : vector<312x160xf32>
    %99 = vector.extract_strided_slice %98 {offsets = [0, 0], sizes = [304, 160], strides = [1, 1]} : vector<312x160xf32> to vector<304x160xf32>
    %100 = vector.extract_strided_slice %98 {offsets = [2, 0], sizes = [304, 160], strides = [1, 1]} : vector<312x160xf32> to vector<304x160xf32>
    %101 = arith.addf %99, %100 : vector<304x160xf32>
    %102 = arith.truncf %101 : vector<304x160xf32> to vector<304x160xbf16>
    %c0_87 = arith.constant 0 : index
    %c0_88 = arith.constant 0 : index
    %103 = vector.load %arg6[%c0_87, %c0_88] : memref<160x80xbf16, #tpu.memory_space<vmem>>, vector<160x80xbf16>
    %cst_89 = arith.constant dense<0.000000e+00> : vector<304x80xf32>
    %104 = tpu.matmul %102, %103, %cst_89 {dimension_numbers = #tpu.dot_dimension_numbers<[1], [0], [0], [1], [0, 0, 1, 1], [], []>} : vector<304x160xbf16>, vector<160x80xbf16>, vector<304x80xf32> -> vector<304x80xf32>
    %105 = vector.extract_strided_slice %104 {offsets = [0, 0], sizes = [288, 80], strides = [1, 1]} : vector<304x80xf32> to vector<288x80xf32>
    %106 = arith.truncf %105 : vector<288x80xf32> to vector<288x80xbf16>
    %c0_90 = arith.constant 0 : index
    %c0_91 = arith.constant 0 : index
    %c0_92 = arith.constant 0 : index
    %107 = vector.load %arg7[%c0_90, %c0_91, %c0_92] : memref<5x80x120xbf16, #tpu.memory_space<vmem>>, vector<1x80x120xbf16>
    %108 = vector.shape_cast %107 : vector<1x80x120xbf16> to vector<80x120xbf16>
    %cst_93 = arith.constant dense<0.000000e+00> : vector<288x120xf32>
    %109 = tpu.matmul %106, %108, %cst_93 {dimension_numbers = #tpu.dot_dimension_numbers<[1], [0], [0], [1], [0, 0, 1, 1], [], []>} : vector<288x80xbf16>, vector<80x120xbf16>, vector<288x120xf32> -> vector<288x120xf32>
    %110 = vector.extract_strided_slice %104 {offsets = [4, 0], sizes = [288, 80], strides = [1, 1]} : vector<304x80xf32> to vector<288x80xf32>
    %111 = arith.truncf %110 : vector<288x80xf32> to vector<288x80xbf16>
    %c1_94 = arith.constant 1 : index
    %c0_95 = arith.constant 0 : index
    %c0_96 = arith.constant 0 : index
    %112 = vector.load %arg7[%c1_94, %c0_95, %c0_96] : memref<5x80x120xbf16, #tpu.memory_space<vmem>>, vector<1x80x120xbf16>
    %113 = vector.shape_cast %112 : vector<1x80x120xbf16> to vector<80x120xbf16>
    %cst_97 = arith.constant dense<0.000000e+00> : vector<288x120xf32>
    %114 = tpu.matmul %111, %113, %cst_97 {dimension_numbers = #tpu.dot_dimension_numbers<[1], [0], [0], [1], [0, 0, 1, 1], [], []>} : vector<288x80xbf16>, vector<80x120xbf16>, vector<288x120xf32> -> vector<288x120xf32>
    %115 = arith.addf %109, %114 : vector<288x120xf32>
    %116 = vector.extract_strided_slice %104 {offsets = [8, 0], sizes = [288, 80], strides = [1, 1]} : vector<304x80xf32> to vector<288x80xf32>
    %117 = arith.truncf %116 : vector<288x80xf32> to vector<288x80xbf16>
    %c2_98 = arith.constant 2 : index
    %c0_99 = arith.constant 0 : index
    %c0_100 = arith.constant 0 : index
    %118 = vector.load %arg7[%c2_98, %c0_99, %c0_100] : memref<5x80x120xbf16, #tpu.memory_space<vmem>>, vector<1x80x120xbf16>
    %119 = vector.shape_cast %118 : vector<1x80x120xbf16> to vector<80x120xbf16>
    %cst_101 = arith.constant dense<0.000000e+00> : vector<288x120xf32>
    %120 = tpu.matmul %117, %119, %cst_101 {dimension_numbers = #tpu.dot_dimension_numbers<[1], [0], [0], [1], [0, 0, 1, 1], [], []>} : vector<288x80xbf16>, vector<80x120xbf16>, vector<288x120xf32> -> vector<288x120xf32>
    %121 = arith.addf %115, %120 : vector<288x120xf32>
    %122 = vector.extract_strided_slice %104 {offsets = [12, 0], sizes = [288, 80], strides = [1, 1]} : vector<304x80xf32> to vector<288x80xf32>
    %123 = arith.truncf %122 : vector<288x80xf32> to vector<288x80xbf16>
    %c3_102 = arith.constant 3 : index
    %c0_103 = arith.constant 0 : index
    %c0_104 = arith.constant 0 : index
    %124 = vector.load %arg7[%c3_102, %c0_103, %c0_104] : memref<5x80x120xbf16, #tpu.memory_space<vmem>>, vector<1x80x120xbf16>
    %125 = vector.shape_cast %124 : vector<1x80x120xbf16> to vector<80x120xbf16>
    %cst_105 = arith.constant dense<0.000000e+00> : vector<288x120xf32>
    %126 = tpu.matmul %123, %125, %cst_105 {dimension_numbers = #tpu.dot_dimension_numbers<[1], [0], [0], [1], [0, 0, 1, 1], [], []>} : vector<288x80xbf16>, vector<80x120xbf16>, vector<288x120xf32> -> vector<288x120xf32>
    %127 = arith.addf %121, %126 : vector<288x120xf32>
    %128 = vector.extract_strided_slice %104 {offsets = [16, 0], sizes = [288, 80], strides = [1, 1]} : vector<304x80xf32> to vector<288x80xf32>
    %129 = arith.truncf %128 : vector<288x80xf32> to vector<288x80xbf16>
    %c4_106 = arith.constant 4 : index
    %c0_107 = arith.constant 0 : index
    %c0_108 = arith.constant 0 : index
    %130 = vector.load %arg7[%c4_106, %c0_107, %c0_108] : memref<5x80x120xbf16, #tpu.memory_space<vmem>>, vector<1x80x120xbf16>
    %131 = vector.shape_cast %130 : vector<1x80x120xbf16> to vector<80x120xbf16>
    %cst_109 = arith.constant dense<0.000000e+00> : vector<288x120xf32>
    %132 = tpu.matmul %129, %131, %cst_109 {dimension_numbers = #tpu.dot_dimension_numbers<[1], [0], [0], [1], [0, 0, 1, 1], [], []>} : vector<288x80xbf16>, vector<80x120xbf16>, vector<288x120xf32> -> vector<288x120xf32>
    %133 = arith.addf %127, %132 : vector<288x120xf32>
    %134 = vector.extract_strided_slice %133 {offsets = [0, 0], sizes = [1, 120], strides = [1, 1]} : vector<288x120xf32> to vector<1x120xf32>
    %c0_110 = arith.constant 0 : index
    %c0_111 = arith.constant 0 : index
    %135 = vector.load %arg13[%c0_110, %c0_111] : memref<8x120xf32, #tpu.memory_space<vmem>>, vector<1x120xf32>
    tpu.vector_store %arg13[%c0_110, %c0_111], %134 {strides = array<i32>} : memref<8x120xf32, #tpu.memory_space<vmem>>, vector<1x120xf32>,
    %136 = vector.extract_strided_slice %133 {offsets = [40, 0], sizes = [1, 120], strides = [1, 1]} : vector<288x120xf32> to vector<1x120xf32>
    %c1_112 = arith.constant 1 : index
    %c0_113 = arith.constant 0 : index
    %137 = vector.load %arg13[%c1_112, %c0_113] : memref<8x120xf32, #tpu.memory_space<vmem>>, vector<1x120xf32>
    tpu.vector_store %arg13[%c1_112, %c0_113], %136 {strides = array<i32>} : memref<8x120xf32, #tpu.memory_space<vmem>>, vector<1x120xf32>,
    %138 = vector.extract_strided_slice %133 {offsets = [80, 0], sizes = [1, 120], strides = [1, 1]} : vector<288x120xf32> to vector<1x120xf32>
    %c2_114 = arith.constant 2 : index
    %c0_115 = arith.constant 0 : index
    %139 = vector.load %arg13[%c2_114, %c0_115] : memref<8x120xf32, #tpu.memory_space<vmem>>, vector<1x120xf32>
    tpu.vector_store %arg13[%c2_114, %c0_115], %138 {strides = array<i32>} : memref<8x120xf32, #tpu.memory_space<vmem>>, vector<1x120xf32>,
    %140 = vector.extract_strided_slice %133 {offsets = [120, 0], sizes = [1, 120], strides = [1, 1]} : vector<288x120xf32> to vector<1x120xf32>
    %c3_116 = arith.constant 3 : index
    %c0_117 = arith.constant 0 : index
    %141 = vector.load %arg13[%c3_116, %c0_117] : memref<8x120xf32, #tpu.memory_space<vmem>>, vector<1x120xf32>
    tpu.vector_store %arg13[%c3_116, %c0_117], %140 {strides = array<i32>} : memref<8x120xf32, #tpu.memory_space<vmem>>, vector<1x120xf32>,
    %142 = vector.extract_strided_slice %133 {offsets = [160, 0], sizes = [1, 120], strides = [1, 1]} : vector<288x120xf32> to vector<1x120xf32>
    %c4_118 = arith.constant 4 : index
    %c0_119 = arith.constant 0 : index
    %143 = vector.load %arg13[%c4_118, %c0_119] : memref<8x120xf32, #tpu.memory_space<vmem>>, vector<1x120xf32>
    tpu.vector_store %arg13[%c4_118, %c0_119], %142 {strides = array<i32>} : memref<8x120xf32, #tpu.memory_space<vmem>>, vector<1x120xf32>,
    %144 = vector.extract_strided_slice %133 {offsets = [200, 0], sizes = [1, 120], strides = [1, 1]} : vector<288x120xf32> to vector<1x120xf32>
    %c5_120 = arith.constant 5 : index
    %c0_121 = arith.constant 0 : index
    %145 = vector.load %arg13[%c5_120, %c0_121] : memref<8x120xf32, #tpu.memory_space<vmem>>, vector<1x120xf32>
    tpu.vector_store %arg13[%c5_120, %c0_121], %144 {strides = array<i32>} : memref<8x120xf32, #tpu.memory_space<vmem>>, vector<1x120xf32>,
    %146 = vector.extract_strided_slice %133 {offsets = [240, 0], sizes = [1, 120], strides = [1, 1]} : vector<288x120xf32> to vector<1x120xf32>
    %c6_122 = arith.constant 6 : index
    %c0_123 = arith.constant 0 : index
    %147 = vector.load %arg13[%c6_122, %c0_123] : memref<8x120xf32, #tpu.memory_space<vmem>>, vector<1x120xf32>
    tpu.vector_store %arg13[%c6_122, %c0_123], %146 {strides = array<i32>} : memref<8x120xf32, #tpu.memory_space<vmem>>, vector<1x120xf32>,
    %148 = vector.extract_strided_slice %133 {offsets = [280, 0], sizes = [1, 120], strides = [1, 1]} : vector<288x120xf32> to vector<1x120xf32>
    %c7_124 = arith.constant 7 : index
    %c0_125 = arith.constant 0 : index
    %149 = vector.load %arg13[%c7_124, %c0_125] : memref<8x120xf32, #tpu.memory_space<vmem>>, vector<1x120xf32>
    tpu.vector_store %arg13[%c7_124, %c0_125], %148 {strides = array<i32>} : memref<8x120xf32, #tpu.memory_space<vmem>>, vector<1x120xf32>,
    %c0_126 = arith.constant 0 : index
    %c0_127 = arith.constant 0 : index
    %150 = vector.load %arg13[%c0_126, %c0_127] : memref<8x120xf32, #tpu.memory_space<vmem>>, vector<8x120xf32>
    %c0_128 = arith.constant 0 : index
    %c0_129 = arith.constant 0 : index
    %151 = vector.load %arg8[%c0_128, %c0_129] : memref<1x120xf32, #tpu.memory_space<vmem>>, vector<1x120xf32>
    %152 = vector.broadcast %151 : vector<1x120xf32> to vector<8x120xf32>
    %153 = arith.addf %150, %152 : vector<8x120xf32>
    %154 = math.tanh %153 : vector<8x120xf32>
    %155 = arith.truncf %154 : vector<8x120xf32> to vector<8x120xbf16>
    %c0_130 = arith.constant 0 : index
    %c0_131 = arith.constant 0 : index
    %156 = vector.load %arg9[%c0_130, %c0_131] : memref<120x128xbf16, #tpu.memory_space<vmem>>, vector<120x128xbf16>
    %cst_132 = arith.constant dense<0.000000e+00> : vector<8x128xf32>
    %157 = tpu.matmul %155, %156, %cst_132 {dimension_numbers = #tpu.dot_dimension_numbers<[1], [0], [0], [1], [0, 0, 1, 1], [], []>} : vector<8x120xbf16>, vector<120x128xbf16>, vector<8x128xf32> -> vector<8x128xf32>
    %c0_133 = arith.constant 0 : index
    %c0_134 = arith.constant 0 : index
    %158 = vector.load %arg10[%c0_133, %c0_134] : memref<1x128xf32, #tpu.memory_space<vmem>>, vector<1x128xf32>
    %159 = vector.broadcast %158 : vector<1x128xf32> to vector<8x128xf32>
    %160 = arith.addf %157, %159 : vector<8x128xf32>
    %cst_135 = arith.constant dense<0xFF800000> : vector<8xf32>
    %161 = vector.multi_reduction <maximumf>, %160, %cst_135 [1] : vector<8x128xf32> to vector<8xf32>
    %162 = vector.shape_cast %161 : vector<8xf32> to vector<8x1xf32>
    %163 = vector.broadcast %162 : vector<8x1xf32> to vector<8x128xf32>
    %164 = arith.subf %160, %163 : vector<8x128xf32>
    %165 = math.exp %164 : vector<8x128xf32>
    %cst_136 = arith.constant dense<0.000000e+00> : vector<8xf32>
    %166 = vector.multi_reduction <add>, %165, %cst_136 [1] : vector<8x128xf32> to vector<8xf32>
    %167 = vector.shape_cast %166 : vector<8xf32> to vector<8x1xf32>
    %168 = vector.broadcast %167 : vector<8x1xf32> to vector<8x128xf32>
    %169 = arith.divf %165, %168 : vector<8x128xf32>
    %c0_137 = arith.constant 0 : index
    %c0_138 = arith.constant 0 : index
    %170 = vector.load %arg11[%c0_137, %c0_138] : memref<8x128xf32, #tpu.memory_space<vmem>>, vector<8x128xf32>
    tpu.vector_store %arg11[%c0_137, %c0_138], %169 {strides = array<i32>} : memref<8x128xf32, #tpu.memory_space<vmem>>, vector<8x128xf32>,
    return
  }
  func.func @transform_0(%arg0: i32) -> (i32, i32) {
    %c0_i32 = arith.constant 0 : i32
    %c0_i32_0 = arith.constant 0 : i32
    return %arg0, %c0_i32 : i32, i32
  }
  func.func @transform_1(%arg0: i32) -> (i32, i32, i32) {
    %c0_i32 = arith.constant 0 : i32
    %c0_i32_0 = arith.constant 0 : i32
    %c0_i32_1 = arith.constant 0 : i32
    %c0_i32_2 = arith.constant 0 : i32
    return %c0_i32, %c0_i32_0, %c0_i32_1 : i32, i32, i32
  }
  func.func @transform_2(%arg0: i32) -> (i32, i32) {
    %c0_i32 = arith.constant 0 : i32
    %c0_i32_0 = arith.constant 0 : i32
    %c0_i32_1 = arith.constant 0 : i32
    return %c0_i32, %c0_i32_0 : i32, i32
  }
  func.func @transform_3(%arg0: i32) -> (i32, i32, i32) {
    %c0_i32 = arith.constant 0 : i32
    %c0_i32_0 = arith.constant 0 : i32
    %c0_i32_1 = arith.constant 0 : i32
    %c0_i32_2 = arith.constant 0 : i32
    return %c0_i32, %c0_i32_0, %c0_i32_1 : i32, i32, i32
  }
  func.func @transform_4(%arg0: i32) -> (i32, i32) {
    %c0_i32 = arith.constant 0 : i32
    %c0_i32_0 = arith.constant 0 : i32
    %c0_i32_1 = arith.constant 0 : i32
    return %c0_i32, %c0_i32_0 : i32, i32
  }
  func.func @transform_5(%arg0: i32) -> (i32, i32) {
    %c0_i32 = arith.constant 0 : i32
    %c0_i32_0 = arith.constant 0 : i32
    %c0_i32_1 = arith.constant 0 : i32
    return %c0_i32, %c0_i32_0 : i32, i32
  }
  func.func @transform_6(%arg0: i32) -> (i32, i32, i32) {
    %c0_i32 = arith.constant 0 : i32
    %c0_i32_0 = arith.constant 0 : i32
    %c0_i32_1 = arith.constant 0 : i32
    %c0_i32_2 = arith.constant 0 : i32
    return %c0_i32, %c0_i32_0, %c0_i32_1 : i32, i32, i32
  }
  func.func @transform_7(%arg0: i32) -> (i32, i32) {
    %c0_i32 = arith.constant 0 : i32
    %c0_i32_0 = arith.constant 0 : i32
    %c0_i32_1 = arith.constant 0 : i32
    return %c0_i32, %c0_i32_0 : i32, i32
  }
  func.func @transform_8(%arg0: i32) -> (i32, i32) {
    %c0_i32 = arith.constant 0 : i32
    %c0_i32_0 = arith.constant 0 : i32
    %c0_i32_1 = arith.constant 0 : i32
    return %c0_i32, %c0_i32_0 : i32, i32
  }
  func.func @transform_9(%arg0: i32) -> (i32, i32) {
    %c0_i32 = arith.constant 0 : i32
    %c0_i32_0 = arith.constant 0 : i32
    %c0_i32_1 = arith.constant 0 : i32
    return %c0_i32, %c0_i32_0 : i32, i32
  }
  func.func @transform_10(%arg0: i32) -> (i32, i32) {
    %c0_i32 = arith.constant 0 : i32
    %c0_i32_0 = arith.constant 0 : i32
    return %arg0, %c0_i32 : i32, i32
  }
}

</mosaic_0001>

<llo_original>
// kernel: lenet5_forward.1
$region0: #{lenet5_forward.1}
  #allocation0 [shape = 'u32[]', space=smem, size = 0x4, offset = 0x4, fixed_abs, tag = 'smem constant byte address 0x4 - core index']
  #allocation1 [shape = 'u32[144,128]{1,0:T(1,128)}', space=vmem, size = 0x12000, scoped, tag = 'internal scratch']
  #allocation2 [shape = 'f32[328,168]{1,0:T(8,128)}', space=vmem, size = 0x52000, scoped, tag = 'scratch operand']
  #allocation3 [shape = 'f32[8,120]{1,0:T(8,128)}', space=vmem, size = 0x1000, scoped, tag = 'scratch operand']
  %s0 = inlined_call_operand.vmem [shape: f32[640,32], index: 0, kind: input, shape index: {}]
  %s1 = inlined_call_operand.vmem [shape: bf16[5,32,168], index: 1, kind: input, shape index: {}]
  %s2 = inlined_call_operand.vmem [shape: f32[1,168], index: 2, kind: input, shape index: {}]
  %s3 = inlined_call_operand.vmem [shape: bf16[10,168,160], index: 3, kind: input, shape index: {}]
  %s4 = inlined_call_operand.vmem [shape: f32[1,160], index: 4, kind: input, shape index: {}]
  %s5 = inlined_call_operand.vmem [shape: bf16[160,80], index: 5, kind: input, shape index: {}]
  %s6 = inlined_call_operand.vmem [shape: bf16[5,80,120], index: 6, kind: input, shape index: {}]
  %s7 = inlined_call_operand.vmem [shape: f32[1,120], index: 7, kind: input, shape index: {}]
  %s8 = inlined_call_operand.vmem [shape: bf16[120,128], index: 8, kind: input, shape index: {}]
  %s9 = inlined_call_operand.vmem [shape: f32[1,128], index: 9, kind: input, shape index: {}]
  %s10 = inlined_call_operand.hbm [shape: f32[16,128], index: 10, kind: output, shape index: {}]
  %s11 = sld [smem:[#allocation0]]
  $region73: #{lenet5_forward.1} parent=0
    _
  %s13 = ssub.s32 1, %s11
  %s14 = scalar_select 0, %s13, %s11
  $region1: #{lenet5_forward.1} parent=0
    #allocation4 [shape = 'u8[8192]{0}', space=vmem, size = 0x2000, scoped, tag = 'output window, operand 0']
    #allocation5 [shape = 's32[2]{0}', space=sflag, size = 0x8, scoped, tag = 'scoped memory for lenet5_forward.1']
    %15 = vsyncpa [#allocation5], 0
    %s16 = scalar_lea.sflag [#allocation5], 1
    %17 = vsyncpa %s16, 0
    loop: start=0, step=1, limit=4
    $region2: #{lenet5_forward.1} parent=1 // loop_pre_header
      _
    $region3: #{lenet5_forward.1} parent=1 // loop_header
      %s19 = sphi 0, %s23
      %p20 = scmp.ge.s32.totalorder %s19, 4
      %s29 = sphi 0, %s31
      %s32 = sphi 0, %s29
      %s33 = sphi 0, %s32
      %s49 = sphi 0, %s33
      %s53 = sphi 0, %s53
      %s55 = sphi 0, %s53
      %s56 = sphi 0, %s55
      %s70 = sphi 0, %s56
      %s74 = sphi 0, %s74
      %s76 = sphi 0, %s74
      %s77 = sphi 0, %s76
      %s91 = sphi 0, %s77
      %s95 = sphi 0, %s95
      %s97 = sphi 0, %s95
      %s98 = sphi 0, %s97
      %s112 = sphi 0, %s98
      %s116 = sphi 0, %s116
      %s118 = sphi 0, %s116
      %s119 = sphi 0, %s118
      %s133 = sphi 0, %s119
      %s137 = sphi 0, %s137
      %s139 = sphi 0, %s137
      %s140 = sphi 0, %s139
      %s154 = sphi 0, %s140
      %s158 = sphi 0, %s158
      %s160 = sphi 0, %s158
      %s161 = sphi 0, %s160
      %s175 = sphi 0, %s161
      %s179 = sphi 0, %s179
      %s181 = sphi 0, %s179
      %s182 = sphi 0, %s181
      %s196 = sphi 0, %s182
      %s200 = sphi 0, %s200
      %s202 = sphi 0, %s200
      %s203 = sphi 0, %s202
      %s217 = sphi 0, %s203
      %s221 = sphi 0, %s221
      %s223 = sphi 0, %s221
      %s224 = sphi 0, %s223
      %s238 = sphi 0, %s224
      %s244 = sphi 0, %s246
      %s247 = sphi 0, %s244
      %s248 = sphi 0, %s247
      %s264 = sphi 0, %s248
    $region4: #{lenet5_forward.1} parent=1 // loop_header_branch
      %22 = sbr.rel (%p20) target = $region8
    $region5: #{lenet5_forward.1} parent=1 // loop_body
      %s24 = ssub.s32 %s19, 1
      %s25 = ssub.s32 %s19, 2
      %s26 = sadd.s32 %s19, 1
      %s27 = ssub.s32 %s19, %s26
      %p28 = scmp.eq.s32.totalorder %s27, 0
      %s30 = sadd.s32 %s29, 1
      %s31 = scalar_select %p28, %s29, %s30
      %p34 = pneg %p28
      %p35 = scmp.eq.s32.totalorder %s19, 1
      %p36 = por %p34, %p35
      %p37 = scmp.ne.s32.totalorder %s29, %s32
      %p38 = scmp.eq.s32.totalorder %s19, 0
      %p39 = por %p37, %p38
      %p40 = scmp.ne.s32.totalorder %s29, %s32
      %p41 = scmp.eq.s32.totalorder %s24, 1
      %p42 = por %p40, %p41
      %p43 = scmp.ne.s32.totalorder %s32, %s33
      %p44 = scmp.eq.s32.totalorder %s24, 0
      %p45 = por %p43, %p44
      %p46 = scmp.ne.s32.totalorder %s32, %s33
      %p47 = scmp.eq.s32.totalorder %s25, 1
      %p48 = por %p46, %p47
      %p50 = scmp.ne.s32.totalorder %s33, %s49
      %p51 = scmp.eq.s32.totalorder %s25, 0
      %p52 = por %p50, %p51
      %s54 = sadd.s32 %s53, 1
      %p57 = scmp.eq.s32.totalorder %s19, 1
      %p58 = scmp.ne.s32.totalorder %s53, %s55
      %p59 = scmp.eq.s32.totalorder %s19, 0
      %p60 = por %p58, %p59
      %p61 = scmp.ne.s32.totalorder %s53, %s55
      %p62 = scmp.eq.s32.totalorder %s24, 1
      %p63 = por %p61, %p62
      %p64 = scmp.ne.s32.totalorder %s55, %s56
      %p65 = scmp.eq.s32.totalorder %s24, 0
      %p66 = por %p64, %p65
      %p67 = scmp.ne.s32.totalorder %s55, %s56
      %p68 = scmp.eq.s32.totalorder %s25, 1
      %p69 = por %p67, %p68
      %p71 = scmp.ne.s32.totalorder %s56, %s70
      %p72 = scmp.eq.s32.totalorder %s25, 0
      %p73 = por %p71, %p72
      %s75 = sadd.s32 %s74, 1
      %p78 = scmp.eq.s32.totalorder %s19, 1
      %p79 = scmp.ne.s32.totalorder %s74, %s76
      %p80 = scmp.eq.s32.totalorder %s19, 0
      %p81 = por %p79, %p80
      %p82 = scmp.ne.s32.totalorder %s74, %s76
      %p83 = scmp.eq.s32.totalorder %s24, 1
      %p84 = por %p82, %p83
      %p85 = scmp.ne.s32.totalorder %s76, %s77
      %p86 = scmp.eq.s32.totalorder %s24, 0
      %p87 = por %p85, %p86
      %p88 = scmp.ne.s32.totalorder %s76, %s77
      %p89 = scmp.eq.s32.totalorder %s25, 1
      %p90 = por %p88, %p89
      %p92 = scmp.ne.s32.totalorder %s77, %s91
      %p93 = scmp.eq.s32.totalorder %s25, 0
      %p94 = por %p92, %p93
      %s96 = sadd.s32 %s95, 1
      %p99 = scmp.eq.s32.totalorder %s19, 1
      %p100 = scmp.ne.s32.totalorder %s95, %s97
      %p101 = scmp.eq.s32.totalorder %s19, 0
      %p102 = por %p100, %p101
      %p103 = scmp.ne.s32.totalorder %s95, %s97
      %p104 = scmp.eq.s32.totalorder %s24, 1
      %p105 = por %p103, %p104
      %p106 = scmp.ne.s32.totalorder %s97, %s98
      %p107 = scmp.eq.s32.totalorder %s24, 0
      %p108 = por %p106, %p107
      %p109 = scmp.ne.s32.totalorder %s97, %s98
      %p110 = scmp.eq.s32.totalorder %s25, 1
      %p111 = por %p109, %p110
      %p113 = scmp.ne.s32.totalorder %s98, %s112
      %p114 = scmp.eq.s32.totalorder %s25, 0
      %p115 = por %p113, %p114
      %s117 = sadd.s32 %s116, 1
      %p120 = scmp.eq.s32.totalorder %s19, 1
      %p121 = scmp.ne.s32.totalorder %s116, %s118
      %p122 = scmp.eq.s32.totalorder %s19, 0
      %p123 = por %p121, %p122
      %p124 = scmp.ne.s32.totalorder %s116, %s118
      %p125 = scmp.eq.s32.totalorder %s24, 1
      %p126 = por %p124, %p125
      %p127 = scmp.ne.s32.totalorder %s118, %s119
      %p128 = scmp.eq.s32.totalorder %s24, 0
      %p129 = por %p127, %p128
      %p130 = scmp.ne.s32.totalorder %s118, %s119
      %p131 = scmp.eq.s32.totalorder %s25, 1
      %p132 = por %p130, %p131
      %p134 = scmp.ne.s32.totalorder %s119, %s133
      %p135 = scmp.eq.s32.totalorder %s25, 0
      %p136 = por %p134, %p135
      %s138 = sadd.s32 %s137, 1
      %p141 = scmp.eq.s32.totalorder %s19, 1
      %p142 = scmp.ne.s32.totalorder %s137, %s139
      %p143 = scmp.eq.s32.totalorder %s19, 0
      %p144 = por %p142, %p143
      %p145 = scmp.ne.s32.totalorder %s137, %s139
      %p146 = scmp.eq.s32.totalorder %s24, 1
      %p147 = por %p145, %p146
      %p148 = scmp.ne.s32.totalorder %s139, %s140
      %p149 = scmp.eq.s32.totalorder %s24, 0
      %p150 = por %p148, %p149
      %p151 = scmp.ne.s32.totalorder %s139, %s140
      %p152 = scmp.eq.s32.totalorder %s25, 1
      %p153 = por %p151, %p152
      %p155 = scmp.ne.s32.totalorder %s140, %s154
      %p156 = scmp.eq.s32.totalorder %s25, 0
      %p157 = por %p155, %p156
      %s159 = sadd.s32 %s158, 1
      %p162 = scmp.eq.s32.totalorder %s19, 1
      %p163 = scmp.ne.s32.totalorder %s158, %s160
      %p164 = scmp.eq.s32.totalorder %s19, 0
      %p165 = por %p163, %p164
      %p166 = scmp.ne.s32.totalorder %s158, %s160
      %p167 = scmp.eq.s32.totalorder %s24, 1
      %p168 = por %p166, %p167
      %p169 = scmp.ne.s32.totalorder %s160, %s161
      %p170 = scmp.eq.s32.totalorder %s24, 0
      %p171 = por %p169, %p170
      %p172 = scmp.ne.s32.totalorder %s160, %s161
      %p173 = scmp.eq.s32.totalorder %s25, 1
      %p174 = por %p172, %p173
      %p176 = scmp.ne.s32.totalorder %s161, %s175
      %p177 = scmp.eq.s32.totalorder %s25, 0
      %p178 = por %p176, %p177
      %s180 = sadd.s32 %s179, 1
      %p183 = scmp.eq.s32.totalorder %s19, 1
      %p184 = scmp.ne.s32.totalorder %s179, %s181
      %p185 = scmp.eq.s32.totalorder %s19, 0
      %p186 = por %p184, %p185
      %p187 = scmp.ne.s32.totalorder %s179, %s181
      %p188 = scmp.eq.s32.totalorder %s24, 1
      %p189 = por %p187, %p188
      %p190 = scmp.ne.s32.totalorder %s181, %s182
      %p191 = scmp.eq.s32.totalorder %s24, 0
      %p192 = por %p190, %p191
      %p193 = scmp.ne.s32.totalorder %s181, %s182
      %p194 = scmp.eq.s32.totalorder %s25, 1
      %p195 = por %p193, %p194
      %p197 = scmp.ne.s32.totalorder %s182, %s196
      %p198 = scmp.eq.s32.totalorder %s25, 0
      %p199 = por %p197, %p198
      %s201 = sadd.s32 %s200, 1
      %p204 = scmp.eq.s32.totalorder %s19, 1
      %p205 = scmp.ne.s32.totalorder %s200, %s202
      %p206 = scmp.eq.s32.totalorder %s19, 0
      %p207 = por %p205, %p206
      %p208 = scmp.ne.s32.totalorder %s200, %s202
      %p209 = scmp.eq.s32.totalorder %s24, 1
      %p210 = por %p208, %p209
      %p211 = scmp.ne.s32.totalorder %s202, %s203
      %p212 = scmp.eq.s32.totalorder %s24, 0
      %p213 = por %p211, %p212
      %p214 = scmp.ne.s32.totalorder %s202, %s203
      %p215 = scmp.eq.s32.totalorder %s25, 1
      %p216 = por %p214, %p215
      %p218 = scmp.ne.s32.totalorder %s203, %s217
      %p219 = scmp.eq.s32.totalorder %s25, 0
      %p220 = por %p218, %p219
      %s222 = sadd.s32 %s221, 1
      %p225 = scmp.eq.s32.totalorder %s19, 1
      %p226 = scmp.ne.s32.totalorder %s221, %s223
      %p227 = scmp.eq.s32.totalorder %s19, 0
      %p228 = por %p226, %p227
      %p229 = scmp.ne.s32.totalorder %s221, %s223
      %p230 = scmp.eq.s32.totalorder %s24, 1
      %p231 = por %p229, %p230
      %p232 = scmp.ne.s32.totalorder %s223, %s224
      %p233 = scmp.eq.s32.totalorder %s24, 0
      %p234 = por %p232, %p233
      %p235 = scmp.ne.s32.totalorder %s223, %s224
      %p236 = scmp.eq.s32.totalorder %s25, 1
      %p237 = por %p235, %p236
      %p239 = scmp.ne.s32.totalorder %s224, %s238
      %p240 = scmp.eq.s32.totalorder %s25, 0
      %p241 = por %p239, %p240
      %s242 = ssub.s32 %s19, %s26
      %p243 = scmp.eq.s32.totalorder %s242, 0
      %s245 = sadd.s32 %s244, 1
      %s246 = scalar_select %p243, %s244, %s245
      %p249 = pneg %p243
      %p250 = scmp.eq.s32.totalorder %s19, 1
      %p251 = por %p249, %p250
      %p252 = scmp.ne.s32.totalorder %s244, %s247
      %p253 = scmp.eq.s32.totalorder %s19, 0
      %p254 = por %p252, %p253
      %p255 = scmp.ne.s32.totalorder %s244, %s247
      %p256 = scmp.eq.s32.totalorder %s24, 1
      %p257 = por %p255, %p256
      %p258 = scmp.ne.s32.totalorder %s247, %s248
      %p259 = scmp.eq.s32.totalorder %s24, 0
      %p260 = por %p258, %p259
      %p261 = scmp.ne.s32.totalorder %s247, %s248
      %p262 = scmp.eq.s32.totalorder %s25, 1
      %p263 = por %p261, %p262
      %p265 = scmp.ne.s32.totalorder %s248, %s264
      %p266 = scmp.eq.s32.totalorder %s25, 0
      %p267 = por %p265, %p266
      %p268 = scmp.le.s32.totalorder 1, %s19
      %p269 = scmp.lt.s32.totalorder %s19, 3
      %p270 = pnand %p268, %p269
      %p271 = pneg %p270
      // Predicated region
      $region9: #{lenet5_forward.1} parent=5 // pred_check
        _
      $region10: #{lenet5_forward.1} parent=5 // pred_check_branch
        %273 = sbr.rel (%p270) target = $region12
      $region11: #{lenet5_forward.1} parent=5 // pred_region
        %s274 = ssub.s32 %s19, 1
        // Predicated region
        $region13: #{lenet5_forward.1} parent=11 // pred_check
          %p275 = pneg %p66
        $region14: #{lenet5_forward.1} parent=11 // pred_check_branch
          %277 = sbr.rel (%p275) target = $region16
        $region15: #{lenet5_forward.1} parent=11 // pred_region
          _
        $region16: #{lenet5_forward.1} parent=11 // pred_fallthru
          _
        // Predicated region
        $region17: #{lenet5_forward.1} parent=11 // pred_check
          %p278 = pneg %p87
        $region18: #{lenet5_forward.1} parent=11 // pred_check_branch
          %280 = sbr.rel (%p278) target = $region20
        $region19: #{lenet5_forward.1} parent=11 // pred_region
          _
        $region20: #{lenet5_forward.1} parent=11 // pred_fallthru
          _
        // Predicated region
        $region21: #{lenet5_forward.1} parent=11 // pred_check
          %p281 = pneg %p108
        $region22: #{lenet5_forward.1} parent=11 // pred_check_branch
          %283 = sbr.rel (%p281) target = $region24
        $region23: #{lenet5_forward.1} parent=11 // pred_region
          _
        $region24: #{lenet5_forward.1} parent=11 // pred_fallthru
          _
        // Predicated region
        $region25: #{lenet5_forward.1} parent=11 // pred_check
          %p284 = pneg %p129
        $region26: #{lenet5_forward.1} parent=11 // pred_check_branch
          %286 = sbr.rel (%p284) target = $region28
        $region27: #{lenet5_forward.1} parent=11 // pred_region
          _
        $region28: #{lenet5_forward.1} parent=11 // pred_fallthru
          _
        // Predicated region
        $region29: #{lenet5_forward.1} parent=11 // pred_check
          %p287 = pneg %p150
        $region30: #{lenet5_forward.1} parent=11 // pred_check_branch
          %289 = sbr.rel (%p287) target = $region32
        $region31: #{lenet5_forward.1} parent=11 // pred_region
          _
        $region32: #{lenet5_forward.1} parent=11 // pred_fallthru
          _
        // Predicated region
        $region33: #{lenet5_forward.1} parent=11 // pred_check
          %p290 = pneg %p171
        $region34: #{lenet5_forward.1} parent=11 // pred_check_branch
          %292 = sbr.rel (%p290) target = $region36
        $region35: #{lenet5_forward.1} parent=11 // pred_region
          _
        $region36: #{lenet5_forward.1} parent=11 // pred_fallthru
          _
        // Predicated region
        $region37: #{lenet5_forward.1} parent=11 // pred_check
          %p293 = pneg %p192
        $region38: #{lenet5_forward.1} parent=11 // pred_check_branch
          %295 = sbr.rel (%p293) target = $region40
        $region39: #{lenet5_forward.1} parent=11 // pred_region
          _
        $region40: #{lenet5_forward.1} parent=11 // pred_fallthru
          _
        // Predicated region
        $region41: #{lenet5_forward.1} parent=11 // pred_check
          %p296 = pneg %p213
        $region42: #{lenet5_forward.1} parent=11 // pred_check_branch
          %298 = sbr.rel (%p296) target = $region44
        $region43: #{lenet5_forward.1} parent=11 // pred_region
          _
        $region44: #{lenet5_forward.1} parent=11 // pred_fallthru
          _
        // Predicated region
        $region45: #{lenet5_forward.1} parent=11 // pred_check
          %p299 = pneg %p234
        $region46: #{lenet5_forward.1} parent=11 // pred_check_branch
          %301 = sbr.rel (%p299) target = $region48
        $region47: #{lenet5_forward.1} parent=11 // pred_region
          _
        $region48: #{lenet5_forward.1} parent=11 // pred_fallthru
          _
      $region12: #{lenet5_forward.1} parent=5 // pred_fallthru
        _
      %p302 = scmp.lt.s32.totalorder %s19, 2
      // Predicated region
      $region49: #{lenet5_forward.1} parent=5 // pred_check
        %p303 = pneg %p302
      $region50: #{lenet5_forward.1} parent=5 // pred_check_branch
        %305 = sbr.rel (%p303) target = $region52
      $region51: #{lenet5_forward.1} parent=5 // pred_region
        // Predicated region
        $region53: #{lenet5_forward.1} parent=51 // pred_check
          %p306 = pneg %p39
        $region54: #{lenet5_forward.1} parent=51 // pred_check_branch
          %308 = sbr.rel (%p306) target = $region56
        $region55: #{lenet5_forward.1} parent=51 // pred_region
          %s309 = smul.u32 40, %s19
          %p310 = scmp.lt.s32.totalorder %s309, 79
          %s311 = scalar_select %p310, %s309, 79
          %s312 = smul.addr %s311, 8
          %s313 = scalar_lea.vmem %s0, %s312
          %s314 = smul.u32 40, %s19
        $region56: #{lenet5_forward.1} parent=51 // pred_fallthru
          _
      $region52: #{lenet5_forward.1} parent=5 // pred_fallthru
        _
      %p315 = scmp.le.s32.totalorder 1, %s19
      %p316 = scmp.lt.s32.totalorder %s19, 3
      %p317 = pnand %p315, %p316
      %p318 = pneg %p317
      // Predicated region
      $region57: #{lenet5_forward.1} parent=5 // pred_check
        _
      $region58: #{lenet5_forward.1} parent=5 // pred_check_branch
        %320 = sbr.rel (%p317) target = $region60
      $region59: #{lenet5_forward.1} parent=5 // pred_region
        %s321 = ssub.s32 %s19, 1
        %s322 = smul.u32 40, %s24
        %p323 = scmp.lt.s32.totalorder %s322, 79
        %s324 = scalar_select %p323, %s322, 79
        %s325 = smul.addr %s324, 8
        %s326 = scalar_lea.vmem %s0, %s325
        %p327 = pneg %p45
        %p328 = pneg %p42
        %p329 = pneg %p66
        %p330 = pneg %p63
        %p331 = pneg %p87
        %p332 = pneg %p84
        %p333 = pneg %p108
        %p334 = pneg %p105
        %p335 = pneg %p129
        %p336 = pneg %p126
        %p337 = pneg %p150
        %p338 = pneg %p147
        %p339 = pneg %p171
        %p340 = pneg %p168
        %p341 = pneg %p192
        %p342 = pneg %p189
        %p343 = pneg %p213
        %p344 = pneg %p210
        %p345 = pneg %p234
        %p346 = pneg %p231
        %p347 = pneg %p260
        %p348 = pneg %p257
        %s349 = sand.u32 %s247, 1
        %s350 = scalar_lea.sflag [#allocation5], %s349
        %s351 = sand.u32 %s247, 1
        %s352 = smul.addr %s351, 8
        %s353 = scalar_lea.vmem [#allocation4], %s352
        %s354 = smul.u32 40, %s24
        %p355 = scmp.lt.s32.totalorder %s354, 79
        %s356 = scalar_select %p355, %s354, 79
        %s357 = smul.addr %s356, 8
        %s358 = scalar_lea.vmem %s0, %s357
        %s359 = smul.u32 40, %s24
        %v361 = vld [vmem:[%s358] sm:$0xff]
        %v362 = vld [vmem:[%s358 + $0x8] sm:$0xff]
        %v363 = vld [vmem:[%s358 + $0x10] sm:$0xff]
        %v364 = vld [vmem:[%s358 + $0x18] sm:$0xff]
        %v365 = vld [vmem:[%s358 + $0x20] sm:$0xff]
        %v366 = vld [vmem:[%s358 + $0x28] sm:$0xff]
        %v367 = vld [vmem:[%s358 + $0x30] sm:$0xff]
        %v368 = vld [vmem:[%s358 + $0x38] sm:$0xff]
        %v369 = vld [vmem:[%s358 + $0x40] sm:$0xff]
        %v370 = vld [vmem:[%s358 + $0x48] sm:$0xff]
        %v371 = vld [vmem:[%s358 + $0x50] sm:$0xff]
        %v372 = vld [vmem:[%s358 + $0x58] sm:$0xff]
        %v373 = vld [vmem:[%s358 + $0x60] sm:$0xff]
        %v374 = vld [vmem:[%s358 + $0x68] sm:$0xff]
        %v375 = vld [vmem:[%s358 + $0x70] sm:$0xff]
        %v376 = vld [vmem:[%s358 + $0x78] sm:$0xff]
        %v377 = vld [vmem:[%s358 + $0x80] sm:$0xff]
        %v378 = vld [vmem:[%s358 + $0x88] sm:$0xff]
        %v379 = vld [vmem:[%s358 + $0x90] sm:$0xff]
        %v380 = vld [vmem:[%s358 + $0x98] sm:$0xff]
        %v381 = vld [vmem:[%s358 + $0xa0] sm:$0xff]
        %v382 = vld [vmem:[%s358 + $0xa8] sm:$0xff]
        %v383 = vld [vmem:[%s358 + $0xb0] sm:$0xff]
        %v384 = vld [vmem:[%s358 + $0xb8] sm:$0xff]
        %v385 = vld [vmem:[%s358 + $0xc0] sm:$0xff]
        %v386 = vld [vmem:[%s358 + $0xc8] sm:$0xff]
        %v387 = vld [vmem:[%s358 + $0xd0] sm:$0xff]
        %v388 = vld [vmem:[%s358 + $0xd8] sm:$0xff]
        %v389 = vld [vmem:[%s358 + $0xe0] sm:$0xff]
        %v390 = vld [vmem:[%s358 + $0xe8] sm:$0xff]
        %v391 = vld [vmem:[%s358 + $0xf0] sm:$0xff]
        %v392 = vld [vmem:[%s358 + $0xf8] sm:$0xff]
        %v393 = vld [vmem:[%s358 + $0x100] sm:$0xff]
        %v394 = vld [vmem:[%s358 + $0x108] sm:$0xff]
        %v395 = vld [vmem:[%s358 + $0x110] sm:$0xff]
        %v396 = vld [vmem:[%s358 + $0x118] sm:$0xff]
        %v397 = vld [vmem:[%s358 + $0x120] sm:$0xff]
        %v398 = vld [vmem:[%s358 + $0x128] sm:$0xff]
        %v399 = vld [vmem:[%s358 + $0x130] sm:$0xff]
        %v400 = vpack.c.bf16 %v362, %v361
        %v401 = vpack.c.bf16 %v364, %v363
        %v402 = vpack.c.bf16 %v366, %v365
        %v403 = vpack.c.bf16 %v368, %v367
        %v404 = vpack.c.bf16 %v370, %v369
        %v405 = vpack.c.bf16 %v372, %v371
        %v406 = vpack.c.bf16 %v374, %v373
        %v407 = vpack.c.bf16 %v376, %v375
        %v408 = vpack.c.bf16 %v378, %v377
        %v409 = vpack.c.bf16 %v380, %v379
        %v410 = vpack.c.bf16 %v382, %v381
        %v411 = vpack.c.bf16 %v384, %v383
        %v412 = vpack.c.bf16 %v386, %v385
        %v413 = vpack.c.bf16 %v388, %v387
        %v414 = vpack.c.bf16 %v390, %v389
        %v415 = vpack.c.bf16 %v392, %v391
        %v416 = vpack.c.bf16 %v394, %v393
        %v417 = vpack.c.bf16 %v396, %v395
        %v418 = vpack.c.bf16 %v398, %v397
        %v419 = vpack.c.bf16 %v399, %v399
        %v420 = vld [vmem:[%s1] sm:$0xff]
        %v421 = vld [vmem:[%s1 + $0x8] sm:$0xff]
        %v422 = vld [vmem:[%s1 + $0x10] sm:$0xff]
        %v423 = vld [vmem:[%s1 + $0x18] sm:$0xff]
        %v424 = vld [vmem:[%s358 + $0x1] sm:$0xff]
        %v425 = vld [vmem:[%s358 + $0x9] sm:$0xff]
        %v426 = vld [vmem:[%s358 + $0x11] sm:$0xff]
        %v427 = vld [vmem:[%s358 + $0x19] sm:$0xff]
        %v428 = vld [vmem:[%s358 + $0x21] sm:$0xff]
        %v429 = vld [vmem:[%s358 + $0x29] sm:$0xff]
        %v430 = vld [vmem:[%s358 + $0x31] sm:$0xff]
        %v431 = vld [vmem:[%s358 + $0x39] sm:$0xff]
        %v432 = vld [vmem:[%s358 + $0x41] sm:$0xff]
        %v433 = vld [vmem:[%s358 + $0x49] sm:$0xff]
        %v434 = vld [vmem:[%s358 + $0x51] sm:$0xff]
        %v435 = vld [vmem:[%s358 + $0x59] sm:$0xff]
        %v436 = vld [vmem:[%s358 + $0x61] sm:$0xff]
        %v437 = vld [vmem:[%s358 + $0x69] sm:$0xff]
        %v438 = vld [vmem:[%s358 + $0x71] sm:$0xff]
        %v439 = vld [vmem:[%s358 + $0x79] sm:$0xff]
        %v440 = vld [vmem:[%s358 + $0x81] sm:$0xff]
        %v441 = vld [vmem:[%s358 + $0x89] sm:$0xff]
        %v442 = vld [vmem:[%s358 + $0x91] sm:$0xff]
        %v443 = vld [vmem:[%s358 + $0x99] sm:$0xff]
        %v444 = vld [vmem:[%s358 + $0xa1] sm:$0xff]
        %v445 = vld [vmem:[%s358 + $0xa9] sm:$0xff]
        %v446 = vld [vmem:[%s358 + $0xb1] sm:$0xff]
        %v447 = vld [vmem:[%s358 + $0xb9] sm:$0xff]
        %v448 = vld [vmem:[%s358 + $0xc1] sm:$0xff]
        %v449 = vld [vmem:[%s358 + $0xc9] sm:$0xff]
        %v450 = vld [vmem:[%s358 + $0xd1] sm:$0xff]
        %v451 = vld [vmem:[%s358 + $0xd9] sm:$0xff]
        %v452 = vld [vmem:[%s358 + $0xe1] sm:$0xff]
        %v453 = vld [vmem:[%s358 + $0xe9] sm:$0xff]
        %v454 = vld [vmem:[%s358 + $0xf1] sm:$0xff]
        %v455 = vld [vmem:[%s358 + $0xf9] sm:$0xff]
        %v456 = vld [vmem:[%s358 + $0x101] sm:$0xff]
        %v457 = vld [vmem:[%s358 + $0x109] sm:$0xff]
        %v458 = vld [vmem:[%s358 + $0x111] sm:$0xff]
        %v459 = vld [vmem:[%s358 + $0x119] sm:$0xff]
        %v460 = vld [vmem:[%s358 + $0x121] sm:$0xff]
        %v461 = vld [vmem:[%s358 + $0x129] sm:$0xff]
        %v462 = vld [vmem:[%s358 + $0x131] sm:$0xff]
        %v463 = vpack.c.bf16 %v425, %v424
        %v464 = vpack.c.bf16 %v427, %v426
        %v465 = vpack.c.bf16 %v429, %v428
        %v466 = vpack.c.bf16 %v431, %v430
        %v467 = vpack.c.bf16 %v433, %v432
        %v468 = vpack.c.bf16 %v435, %v434
        %v469 = vpack.c.bf16 %v437, %v436
        %v470 = vpack.c.bf16 %v439, %v438
        %v471 = vpack.c.bf16 %v441, %v440
        %v472 = vpack.c.bf16 %v443, %v442
        %v473 = vpack.c.bf16 %v445, %v444
        %v474 = vpack.c.bf16 %v447, %v446
        %v475 = vpack.c.bf16 %v449, %v448
        %v476 = vpack.c.bf16 %v451, %v450
        %v477 = vpack.c.bf16 %v453, %v452
        %v478 = vpack.c.bf16 %v455, %v454
        %v479 = vpack.c.bf16 %v457, %v456
        %v480 = vpack.c.bf16 %v459, %v458
        %v481 = vpack.c.bf16 %v461, %v460
        %v482 = vpack.c.bf16 %v462, %v462
        %s483 = scalar_lea.vmem %s1, 32
        %v484 = vld [vmem:[%s483] sm:$0xff]
        %v485 = vld [vmem:[%s483 + $0x8] sm:$0xff]
        %v486 = vld [vmem:[%s483 + $0x10] sm:$0xff]
        %v487 = vld [vmem:[%s483 + $0x18] sm:$0xff]
        %v492 = vunpack.c.l.b16 %v484
        %v493 = vunpack.c.h.b16 %v484
        %v494 = vunpack.c.l.b16 %v485
        %v495 = vunpack.c.h.b16 %v485
        %v496 = vunpack.c.l.b16 %v486
        %v497 = vunpack.c.h.b16 %v486
        %v498 = vunpack.c.l.b16 %v487
        %v499 = vunpack.c.h.b16 %v487
        %v500 = vpack.c.b16 %v494, %v492
        %v501 = vpack.c.b16 %v495, %v493
        %v502 = vpack.c.b16 %v498, %v496
        %v503 = vpack.c.b16 %v499, %v497
        %vm508 = vcmask 261120
        %v510 = vsel %vm508, %v463, 0
        %v513 = vsel %vm508, %v464, 0
        %v516 = vsel %vm508, %v465, 0
        %v519 = vsel %vm508, %v466, 0
        %v522 = vsel %vm508, %v467, 0
        %v525 = vsel %vm508, %v468, 0
        %v528 = vsel %vm508, %v469, 0
        %v531 = vsel %vm508, %v470, 0
        %v534 = vsel %vm508, %v471, 0
        %v537 = vsel %vm508, %v472, 0
        %v540 = vsel %vm508, %v473, 0
        %v543 = vsel %vm508, %v474, 0
        %v546 = vsel %vm508, %v475, 0
        %v549 = vsel %vm508, %v476, 0
        %v552 = vsel %vm508, %v477, 0
        %v555 = vsel %vm508, %v478, 0
        %v558 = vsel %vm508, %v479, 0
        %v561 = vsel %vm508, %v480, 0
        %v564 = vsel %vm508, %v481, 0
        %v567 = vsel %vm508, %v482, 0
        %569 = vmatprep.subr.bf16.mxu0 %v501
        %570 = vmatpush1.bf16.msra.mxu0 %v500
        %571 = vmatprep.subr.bf16.mxu0 %v503
        %572 = vmatpush1.bf16.msra.mxu0 %v502
        %573 = vmatprep.subr.bf16.mxu0 0
        %574 = vmatpush1.bf16.msra.mxu0 0
        %575 = vmatprep.subr.bf16.mxu0 0
        %576 = vmatpush1.bf16.msra.mxu0 0
        %577 = vmatprep.subr.bf16.mxu0 0
        %578 = vmatpush1.bf16.msra.mxu0 0
        %579 = vmatprep.subr.bf16.mxu0 0
        %580 = vmatpush1.bf16.msra.mxu0 0
        %581 = vmatprep.subr.bf16.mxu0 0
        %582 = vmatpush1.bf16.msra.mxu0 0
        %583 = vmatprep.subr.bf16.mxu0 0
        %584 = vmatpush1.bf16.msra.mxu0 0
        %585 = vmatprep.subr.bf16.mxu0 0
        %586 = vmatpush1.bf16.msra.mxu0 0
        %587 = vmatprep.subr.bf16.mxu0 0
        %588 = vmatpush1.bf16.msra.mxu0 0
        %589 = vmatprep.subr.bf16.mxu0 0
        %590 = vmatpush1.bf16.msra.mxu0 0
        %591 = vmatprep.subr.bf16.mxu0 0
        %592 = vmatpush1.bf16.msra.mxu0 0
        %593 = vmatprep.subr.bf16.mxu0 0
        %594 = vmatpush1.bf16.msra.mxu0 0
        %595 = vmatprep.subr.bf16.mxu0 0
        %596 = vmatpush1.bf16.msra.mxu0 0
        %597 = vmatprep.subr.bf16.mxu0 0
        %598 = vmatpush1.bf16.msra.mxu0 0
        %599 = vmatprep.subr.bf16.mxu0 0
        %600 = vmatpush1.bf16.msra.mxu0 0
        %601 = vmatprep.mubr.bf16.mxu0 0
        %602 = vmatmul.mubr.bf16.gmra.mrb[0].mxu0 %v510
        %v603 = vpop.f32.mrb[0].mxu0
        %v604 = vadd.f32 0.0, %v603
        %v605 = vpop.f32.mrb[0].mxu0
        %v606 = vadd.f32 0.0, %v605
        %v607 = vpop.f32.mrb[0].mxu0
        %v608 = vadd.f32 0.0, %v607
        %v609 = vpop.f32.mrb[0].mxu0
        %v610 = vadd.f32 0.0, %v609
        %611 = vmatprep.mubr.bf16.mxu0 0
        %612 = vmatmul.mubr.bf16.gmra.mrb[0].mxu0 %v513
        %v613 = vpop.f32.mrb[0].mxu0
        %v614 = vadd.f32 0.0, %v613
        %v615 = vpop.f32.mrb[0].mxu0
        %v616 = vadd.f32 0.0, %v615
        %v617 = vpop.f32.mrb[0].mxu0
        %v618 = vadd.f32 0.0, %v617
        %v619 = vpop.f32.mrb[0].mxu0
        %v620 = vadd.f32 0.0, %v619
        %621 = vmatprep.mubr.bf16.mxu0 0
        %622 = vmatmul.mubr.bf16.gmra.mrb[0].mxu0 %v516
        %v623 = vpop.f32.mrb[0].mxu0
        %v624 = vadd.f32 0.0, %v623
        %v625 = vpop.f32.mrb[0].mxu0
        %v626 = vadd.f32 0.0, %v625
        %v627 = vpop.f32.mrb[0].mxu0
        %v628 = vadd.f32 0.0, %v627
        %v629 = vpop.f32.mrb[0].mxu0
        %v630 = vadd.f32 0.0, %v629
        %631 = vmatprep.mubr.bf16.mxu0 0
        %632 = vmatmul.mubr.bf16.gmra.mrb[0].mxu0 %v519
        %v633 = vpop.f32.mrb[0].mxu0
        %v634 = vadd.f32 0.0, %v633
        %v635 = vpop.f32.mrb[0].mxu0
        %v636 = vadd.f32 0.0, %v635
        %v637 = vpop.f32.mrb[0].mxu0
        %v638 = vadd.f32 0.0, %v637
        %v639 = vpop.f32.mrb[0].mxu0
        %v640 = vadd.f32 0.0, %v639
        %641 = vmatprep.mubr.bf16.mxu0 0
        %642 = vmatmul.mubr.bf16.gmra.mrb[0].mxu0 %v522
        %v643 = vpop.f32.mrb[0].mxu0
        %v644 = vadd.f32 0.0, %v643
        %v645 = vpop.f32.mrb[0].mxu0
        %v646 = vadd.f32 0.0, %v645
        %v647 = vpop.f32.mrb[0].mxu0
        %v648 = vadd.f32 0.0, %v647
        %v649 = vpop.f32.mrb[0].mxu0
        %v650 = vadd.f32 0.0, %v649
        %651 = vmatprep.mubr.bf16.mxu0 0
        %652 = vmatmul.mubr.bf16.gmra.mrb[0].mxu0 %v525
        %v653 = vpop.f32.mrb[0].mxu0
        %v654 = vadd.f32 0.0, %v653
        %v655 = vpop.f32.mrb[0].mxu0
        %v656 = vadd.f32 0.0, %v655
        %v657 = vpop.f32.mrb[0].mxu0
        %v658 = vadd.f32 0.0, %v657
        %v659 = vpop.f32.mrb[0].mxu0
        %v660 = vadd.f32 0.0, %v659
        %661 = vmatprep.mubr.bf16.mxu0 0
        %662 = vmatmul.mubr.bf16.gmra.mrb[0].mxu0 %v528
        %v663 = vpop.f32.mrb[0].mxu0
        %v664 = vadd.f32 0.0, %v663
        %v665 = vpop.f32.mrb[0].mxu0
        %v666 = vadd.f32 0.0, %v665
        %v667 = vpop.f32.mrb[0].mxu0
        %v668 = vadd.f32 0.0, %v667
        %v669 = vpop.f32.mrb[0].mxu0
        %v670 = vadd.f32 0.0, %v669
        %671 = vmatprep.mubr.bf16.mxu0 0
        %672 = vmatmul.mubr.bf16.gmra.mrb[0].mxu0 %v531
        %v673 = vpop.f32.mrb[0].mxu0
        %v674 = vadd.f32 0.0, %v673
        %v675 = vpop.f32.mrb[0].mxu0
        %v676 = vadd.f32 0.0, %v675
        %v677 = vpop.f32.mrb[0].mxu0
        %v678 = vadd.f32 0.0, %v677
        %v679 = vpop.f32.mrb[0].mxu0
        %v680 = vadd.f32 0.0, %v679
        %681 = vmatprep.mubr.bf16.mxu0 0
        %682 = vmatmul.mubr.bf16.gmra.mrb[0].mxu0 %v534
        %v683 = vpop.f32.mrb[0].mxu0
        %v684 = vadd.f32 0.0, %v683
        %v685 = vpop.f32.mrb[0].mxu0
        %v686 = vadd.f32 0.0, %v685
        %v687 = vpop.f32.mrb[0].mxu0
        %v688 = vadd.f32 0.0, %v687
        %v689 = vpop.f32.mrb[0].mxu0
        %v690 = vadd.f32 0.0, %v689
        %691 = vmatprep.mubr.bf16.mxu0 0
        %692 = vmatmul.mubr.bf16.gmra.mrb[0].mxu0 %v537
        %v693 = vpop.f32.mrb[0].mxu0
        %v694 = vadd.f32 0.0, %v693
        %v695 = vpop.f32.mrb[0].mxu0
        %v696 = vadd.f32 0.0, %v695
        %v697 = vpop.f32.mrb[0].mxu0
        %v698 = vadd.f32 0.0, %v697
        %v699 = vpop.f32.mrb[0].mxu0
        %v700 = vadd.f32 0.0, %v699
        %701 = vmatprep.mubr.bf16.mxu0 0
        %702 = vmatmul.mubr.bf16.gmra.mrb[0].mxu0 %v540
        %v703 = vpop.f32.mrb[0].mxu0
        %v704 = vadd.f32 0.0, %v703
        %v705 = vpop.f32.mrb[0].mxu0
        %v706 = vadd.f32 0.0, %v705
        %v707 = vpop.f32.mrb[0].mxu0
        %v708 = vadd.f32 0.0, %v707
        %v709 = vpop.f32.mrb[0].mxu0
        %v710 = vadd.f32 0.0, %v709
        %711 = vmatprep.mubr.bf16.mxu0 0
        %712 = vmatmul.mubr.bf16.gmra.mrb[0].mxu0 %v543
        %v713 = vpop.f32.mrb[0].mxu0
        %v714 = vadd.f32 0.0, %v713
        %v715 = vpop.f32.mrb[0].mxu0
        %v716 = vadd.f32 0.0, %v715
        %v717 = vpop.f32.mrb[0].mxu0
        %v718 = vadd.f32 0.0, %v717
        %v719 = vpop.f32.mrb[0].mxu0
        %v720 = vadd.f32 0.0, %v719
        %721 = vmatprep.mubr.bf16.mxu0 0
        %722 = vmatmul.mubr.bf16.gmra.mrb[0].mxu0 %v546
        %v723 = vpop.f32.mrb[0].mxu0
        %v724 = vadd.f32 0.0, %v723
        %v725 = vpop.f32.mrb[0].mxu0
        %v726 = vadd.f32 0.0, %v725
        %v727 = vpop.f32.mrb[0].mxu0
        %v728 = vadd.f32 0.0, %v727
        %v729 = vpop.f32.mrb[0].mxu0
        %v730 = vadd.f32 0.0, %v729
        %731 = vmatprep.mubr.bf16.mxu0 0
        %732 = vmatmul.mubr.bf16.gmra.mrb[0].mxu0 %v549
        %v733 = vpop.f32.mrb[0].mxu0
        %v734 = vadd.f32 0.0, %v733
        %v735 = vpop.f32.mrb[0].mxu0
        %v736 = vadd.f32 0.0, %v735
        %v737 = vpop.f32.mrb[0].mxu0
        %v738 = vadd.f32 0.0, %v737
        %v739 = vpop.f32.mrb[0].mxu0
        %v740 = vadd.f32 0.0, %v739
        %741 = vmatprep.mubr.bf16.mxu0 0
        %742 = vmatmul.mubr.bf16.gmra.mrb[0].mxu0 %v552
        %v743 = vpop.f32.mrb[0].mxu0
        %v744 = vadd.f32 0.0, %v743
        %v745 = vpop.f32.mrb[0].mxu0
        %v746 = vadd.f32 0.0, %v745
        %v747 = vpop.f32.mrb[0].mxu0
        %v748 = vadd.f32 0.0, %v747
        %v749 = vpop.f32.mrb[0].mxu0
        %v750 = vadd.f32 0.0, %v749
        %751 = vmatprep.mubr.bf16.mxu0 0
        %752 = vmatmul.mubr.bf16.gmra.mrb[0].mxu0 %v555
        %v753 = vpop.f32.mrb[0].mxu0
        %v754 = vadd.f32 0.0, %v753
        %v755 = vpop.f32.mrb[0].mxu0
        %v756 = vadd.f32 0.0, %v755
        %v757 = vpop.f32.mrb[0].mxu0
        %v758 = vadd.f32 0.0, %v757
        %v759 = vpop.f32.mrb[0].mxu0
        %v760 = vadd.f32 0.0, %v759
        %761 = vmatprep.mubr.bf16.mxu0 0
        %762 = vmatmul.mubr.bf16.gmra.mrb[0].mxu0 %v558
        %v763 = vpop.f32.mrb[0].mxu0
        %v764 = vadd.f32 0.0, %v763
        %v765 = vpop.f32.mrb[0].mxu0
        %v766 = vadd.f32 0.0, %v765
        %v767 = vpop.f32.mrb[0].mxu0
        %v768 = vadd.f32 0.0, %v767
        %v769 = vpop.f32.mrb[0].mxu0
        %v770 = vadd.f32 0.0, %v769
        %771 = vmatprep.mubr.bf16.mxu0 0
        %772 = vmatmul.mubr.bf16.gmra.mrb[0].mxu0 %v561
        %v773 = vpop.f32.mrb[0].mxu0
        %v774 = vadd.f32 0.0, %v773
        %v775 = vpop.f32.mrb[0].mxu0
        %v776 = vadd.f32 0.0, %v775
        %v777 = vpop.f32.mrb[0].mxu0
        %v778 = vadd.f32 0.0, %v777
        %v779 = vpop.f32.mrb[0].mxu0
        %v780 = vadd.f32 0.0, %v779
        %781 = vmatprep.mubr.bf16.mxu0 0
        %782 = vmatmul.mubr.bf16.gmra.mrb[0].mxu0 %v564
        %v783 = vpop.f32.mrb[0].mxu0
        %v784 = vadd.f32 0.0, %v783
        %v785 = vpop.f32.mrb[0].mxu0
        %v786 = vadd.f32 0.0, %v785
        %v787 = vpop.f32.mrb[0].mxu0
        %v788 = vadd.f32 0.0, %v787
        %v789 = vpop.f32.mrb[0].mxu0
        %v790 = vadd.f32 0.0, %v789
        %791 = vmatprep.mubr.bf16.mxu0 0
        %792 = vmatmul.mubr.bf16.gmra.mrb[0].mxu0 %v567
        %v793 = vpop.f32.mrb[0].mxu0
        %v794 = vadd.f32 0.0, %v793
        %v795 = vpop.f32.mrb[0].mxu0
        %v796 = vadd.f32 0.0, %v795
        %v797 = vpop.f32.mrb[0].mxu0
        %v798 = vpop.f32.mrb[0].mxu0
        %799 = vdwg.mxu0
        %v804 = vunpack.c.l.b16 %v420
        %v805 = vunpack.c.h.b16 %v420
        %v806 = vunpack.c.l.b16 %v421
        %v807 = vunpack.c.h.b16 %v421
        %v808 = vunpack.c.l.b16 %v422
        %v809 = vunpack.c.h.b16 %v422
        %v810 = vunpack.c.l.b16 %v423
        %v811 = vunpack.c.h.b16 %v423
        %v812 = vpack.c.b16 %v806, %v804
        %v813 = vpack.c.b16 %v807, %v805
        %v814 = vpack.c.b16 %v810, %v808
        %v815 = vpack.c.b16 %v811, %v809
        %v821 = vsel %vm508, %v400, 0
        %v824 = vsel %vm508, %v401, 0
        %v827 = vsel %vm508, %v402, 0
        %v830 = vsel %vm508, %v403, 0
        %v833 = vsel %vm508, %v404, 0
        %v836 = vsel %vm508, %v405, 0
        %v839 = vsel %vm508, %v406, 0
        %v842 = vsel %vm508, %v407, 0
        %v845 = vsel %vm508, %v408, 0
        %v848 = vsel %vm508, %v409, 0
        %v851 = vsel %vm508, %v410, 0
        %v854 = vsel %vm508, %v411, 0
        %v857 = vsel %vm508, %v412, 0
        %v860 = vsel %vm508, %v413, 0
        %v863 = vsel %vm508, %v414, 0
        %v866 = vsel %vm508, %v415, 0
        %v869 = vsel %vm508, %v416, 0
        %v872 = vsel %vm508, %v417, 0
        %v875 = vsel %vm508, %v418, 0
        %v878 = vsel %vm508, %v419, 0
        %880 = vmatprep.subr.bf16.mxu0 %v813
        %881 = vmatpush1.bf16.msra.mxu0 %v812
        %882 = vmatprep.subr.bf16.mxu0 %v815
        %883 = vmatpush1.bf16.msra.mxu0 %v814
        %884 = vmatprep.subr.bf16.mxu0 0
        %885 = vmatpush1.bf16.msra.mxu0 0
        %886 = vmatprep.subr.bf16.mxu0 0
        %887 = vmatpush1.bf16.msra.mxu0 0
        %888 = vmatprep.subr.bf16.mxu0 0
        %889 = vmatpush1.bf16.msra.mxu0 0
        %890 = vmatprep.subr.bf16.mxu0 0
        %891 = vmatpush1.bf16.msra.mxu0 0
        %892 = vmatprep.subr.bf16.mxu0 0
        %893 = vmatpush1.bf16.msra.mxu0 0
        %894 = vmatprep.subr.bf16.mxu0 0
        %895 = vmatpush1.bf16.msra.mxu0 0
        %896 = vmatprep.subr.bf16.mxu0 0
        %897 = vmatpush1.bf16.msra.mxu0 0
        %898 = vmatprep.subr.bf16.mxu0 0
        %899 = vmatpush1.bf16.msra.mxu0 0
        %900 = vmatprep.subr.bf16.mxu0 0
        %901 = vmatpush1.bf16.msra.mxu0 0
        %902 = vmatprep.subr.bf16.mxu0 0
        %903 = vmatpush1.bf16.msra.mxu0 0
        %904 = vmatprep.subr.bf16.mxu0 0
        %905 = vmatpush1.bf16.msra.mxu0 0
        %906 = vmatprep.subr.bf16.mxu0 0
        %907 = vmatpush1.bf16.msra.mxu0 0
        %908 = vmatprep.subr.bf16.mxu0 0
        %909 = vmatpush1.bf16.msra.mxu0 0
        %910 = vmatprep.subr.bf16.mxu0 0
        %911 = vmatpush1.bf16.msra.mxu0 0
        %912 = vmatprep.mubr.bf16.mxu0 0
        %913 = vmatmul.mubr.bf16.gmra.mrb[0].mxu0 %v821
        %v914 = vpop.f32.mrb[0].mxu0
        %v915 = vadd.f32 %v604, %v914
        %v916 = vpop.f32.mrb[0].mxu0
        %v917 = vadd.f32 %v606, %v916
        %v918 = vpop.f32.mrb[0].mxu0
        %v919 = vadd.f32 %v608, %v918
        %v920 = vpop.f32.mrb[0].mxu0
        %v921 = vadd.f32 %v610, %v920
        %922 = vmatprep.mubr.bf16.mxu0 0
        %923 = vmatmul.mubr.bf16.gmra.mrb[0].mxu0 %v824
        %v924 = vpop.f32.mrb[0].mxu0
        %v925 = vadd.f32 %v614, %v924
        %v926 = vpop.f32.mrb[0].mxu0
        %v927 = vadd.f32 %v616, %v926
        %v928 = vpop.f32.mrb[0].mxu0
        %v929 = vadd.f32 %v618, %v928
        %v930 = vpop.f32.mrb[0].mxu0
        %v931 = vadd.f32 %v620, %v930
        %932 = vmatprep.mubr.bf16.mxu0 0
        %933 = vmatmul.mubr.bf16.gmra.mrb[0].mxu0 %v827
        %v934 = vpop.f32.mrb[0].mxu0
        %v935 = vadd.f32 %v624, %v934
        %v936 = vpop.f32.mrb[0].mxu0
        %v937 = vadd.f32 %v626, %v936
        %v938 = vpop.f32.mrb[0].mxu0
        %v939 = vadd.f32 %v628, %v938
        %v940 = vpop.f32.mrb[0].mxu0
        %v941 = vadd.f32 %v630, %v940
        %942 = vmatprep.mubr.bf16.mxu0 0
        %943 = vmatmul.mubr.bf16.gmra.mrb[0].mxu0 %v830
        %v944 = vpop.f32.mrb[0].mxu0
        %v945 = vadd.f32 %v634, %v944
        %v946 = vpop.f32.mrb[0].mxu0
        %v947 = vadd.f32 %v636, %v946
        %v948 = vpop.f32.mrb[0].mxu0
        %v949 = vadd.f32 %v638, %v948
        %v950 = vpop.f32.mrb[0].mxu0
        %v951 = vadd.f32 %v640, %v950
        %952 = vmatprep.mubr.bf16.mxu0 0
        %953 = vmatmul.mubr.bf16.gmra.mrb[0].mxu0 %v833
        %v954 = vpop.f32.mrb[0].mxu0
        %v955 = vadd.f32 %v644, %v954
        %v956 = vpop.f32.mrb[0].mxu0
        %v957 = vadd.f32 %v646, %v956
        %v958 = vpop.f32.mrb[0].mxu0
        %v959 = vadd.f32 %v648, %v958
        %v960 = vpop.f32.mrb[0].mxu0
        %v961 = vadd.f32 %v650, %v960
        %962 = vmatprep.mubr.bf16.mxu0 0
        %963 = vmatmul.mubr.bf16.gmra.mrb[0].mxu0 %v836
        %v964 = vpop.f32.mrb[0].mxu0
        %v965 = vadd.f32 %v654, %v964
        %v966 = vpop.f32.mrb[0].mxu0
        %v967 = vadd.f32 %v656, %v966
        %v968 = vpop.f32.mrb[0].mxu0
        %v969 = vadd.f32 %v658, %v968
        %v970 = vpop.f32.mrb[0].mxu0
        %v971 = vadd.f32 %v660, %v970
        %972 = vmatprep.mubr.bf16.mxu0 0
        %973 = vmatmul.mubr.bf16.gmra.mrb[0].mxu0 %v839
        %v974 = vpop.f32.mrb[0].mxu0
        %v975 = vadd.f32 %v664, %v974
        %v976 = vpop.f32.mrb[0].mxu0
        %v977 = vadd.f32 %v666, %v976
        %v978 = vpop.f32.mrb[0].mxu0
        %v979 = vadd.f32 %v668, %v978
        %v980 = vpop.f32.mrb[0].mxu0
        %v981 = vadd.f32 %v670, %v980
        %982 = vmatprep.mubr.bf16.mxu0 0
        %983 = vmatmul.mubr.bf16.gmra.mrb[0].mxu0 %v842
        %v984 = vpop.f32.mrb[0].mxu0
        %v985 = vadd.f32 %v674, %v984
        %v986 = vpop.f32.mrb[0].mxu0
        %v987 = vadd.f32 %v676, %v986
        %v988 = vpop.f32.mrb[0].mxu0
        %v989 = vadd.f32 %v678, %v988
        %v990 = vpop.f32.mrb[0].mxu0
        %v991 = vadd.f32 %v680, %v990
        %992 = vmatprep.mubr.bf16.mxu0 0
        %993 = vmatmul.mubr.bf16.gmra.mrb[0].mxu0 %v845
        %v994 = vpop.f32.mrb[0].mxu0
        %v995 = vadd.f32 %v684, %v994
        %v996 = vpop.f32.mrb[0].mxu0
        %v997 = vadd.f32 %v686, %v996
        %v998 = vpop.f32.mrb[0].mxu0
        %v999 = vadd.f32 %v688, %v998
        %v1000 = vpop.f32.mrb[0].mxu0
        %v1001 = vadd.f32 %v690, %v1000
        %1002 = vmatprep.mubr.bf16.mxu0 0
        %1003 = vmatmul.mubr.bf16.gmra.mrb[0].mxu0 %v848
        %v1004 = vpop.f32.mrb[0].mxu0
        %v1005 = vadd.f32 %v694, %v1004
        %v1006 = vpop.f32.mrb[0].mxu0
        %v1007 = vadd.f32 %v696, %v1006
        %v1008 = vpop.f32.mrb[0].mxu0
        %v1009 = vadd.f32 %v698, %v1008
        %v1010 = vpop.f32.mrb[0].mxu0
        %v1011 = vadd.f32 %v700, %v1010
        %1012 = vmatprep.mubr.bf16.mxu0 0
        %1013 = vmatmul.mubr.bf16.gmra.mrb[0].mxu0 %v851
        %v1014 = vpop.f32.mrb[0].mxu0
        %v1015 = vadd.f32 %v704, %v1014
        %v1016 = vpop.f32.mrb[0].mxu0
        %v1017 = vadd.f32 %v706, %v1016
        %v1018 = vpop.f32.mrb[0].mxu0
        %v1019 = vadd.f32 %v708, %v1018
        %v1020 = vpop.f32.mrb[0].mxu0
        %v1021 = vadd.f32 %v710, %v1020
        %1022 = vmatprep.mubr.bf16.mxu0 0
        %1023 = vmatmul.mubr.bf16.gmra.mrb[0].mxu0 %v854
        %v1024 = vpop.f32.mrb[0].mxu0
        %v1025 = vadd.f32 %v714, %v1024
        %v1026 = vpop.f32.mrb[0].mxu0
        %v1027 = vadd.f32 %v716, %v1026
        %v1028 = vpop.f32.mrb[0].mxu0
        %v1029 = vadd.f32 %v718, %v1028
        %v1030 = vpop.f32.mrb[0].mxu0
        %v1031 = vadd.f32 %v720, %v1030
        %1032 = vmatprep.mubr.bf16.mxu0 0
        %1033 = vmatmul.mubr.bf16.gmra.mrb[0].mxu0 %v857
        %v1034 = vpop.f32.mrb[0].mxu0
        %v1035 = vadd.f32 %v724, %v1034
        %v1036 = vpop.f32.mrb[0].mxu0
        %v1037 = vadd.f32 %v726, %v1036
        %v1038 = vpop.f32.mrb[0].mxu0
        %v1039 = vadd.f32 %v728, %v1038
        %v1040 = vpop.f32.mrb[0].mxu0
        %v1041 = vadd.f32 %v730, %v1040
        %1042 = vmatprep.mubr.bf16.mxu0 0
        %1043 = vmatmul.mubr.bf16.gmra.mrb[0].mxu0 %v860
        %v1044 = vpop.f32.mrb[0].mxu0
        %v1045 = vadd.f32 %v734, %v1044
        %v1046 = vpop.f32.mrb[0].mxu0
        %v1047 = vadd.f32 %v736, %v1046
        %v1048 = vpop.f32.mrb[0].mxu0
        %v1049 = vadd.f32 %v738, %v1048
        %v1050 = vpop.f32.mrb[0].mxu0
        %v1051 = vadd.f32 %v740, %v1050
        %1052 = vmatprep.mubr.bf16.mxu0 0
        %1053 = vmatmul.mubr.bf16.gmra.mrb[0].mxu0 %v863
        %v1054 = vpop.f32.mrb[0].mxu0
        %v1055 = vadd.f32 %v744, %v1054
        %v1056 = vpop.f32.mrb[0].mxu0
        %v1057 = vadd.f32 %v746, %v1056
        %v1058 = vpop.f32.mrb[0].mxu0
        %v1059 = vadd.f32 %v748, %v1058
        %v1060 = vpop.f32.mrb[0].mxu0
        %v1061 = vadd.f32 %v750, %v1060
        %1062 = vmatprep.mubr.bf16.mxu0 0
        %1063 = vmatmul.mubr.bf16.gmra.mrb[0].mxu0 %v866
        %v1064 = vpop.f32.mrb[0].mxu0
        %v1065 = vadd.f32 %v754, %v1064
        %v1066 = vpop.f32.mrb[0].mxu0
        %v1067 = vadd.f32 %v756, %v1066
        %v1068 = vpop.f32.mrb[0].mxu0
        %v1069 = vadd.f32 %v758, %v1068
        %v1070 = vpop.f32.mrb[0].mxu0
        %v1071 = vadd.f32 %v760, %v1070
        %1072 = vmatprep.mubr.bf16.mxu0 0
        %1073 = vmatmul.mubr.bf16.gmra.mrb[0].mxu0 %v869
        %v1074 = vpop.f32.mrb[0].mxu0
        %v1075 = vadd.f32 %v764, %v1074
        %v1076 = vpop.f32.mrb[0].mxu0
        %v1077 = vadd.f32 %v766, %v1076
        %v1078 = vpop.f32.mrb[0].mxu0
        %v1079 = vadd.f32 %v768, %v1078
        %v1080 = vpop.f32.mrb[0].mxu0
        %v1081 = vadd.f32 %v770, %v1080
        %1082 = vmatprep.mubr.bf16.mxu0 0
        %1083 = vmatmul.mubr.bf16.gmra.mrb[0].mxu0 %v872
        %v1084 = vpop.f32.mrb[0].mxu0
        %v1085 = vadd.f32 %v774, %v1084
        %v1086 = vpop.f32.mrb[0].mxu0
        %v1087 = vadd.f32 %v776, %v1086
        %v1088 = vpop.f32.mrb[0].mxu0
        %v1089 = vadd.f32 %v778, %v1088
        %v1090 = vpop.f32.mrb[0].mxu0
        %v1091 = vadd.f32 %v780, %v1090
        %1092 = vmatprep.mubr.bf16.mxu0 0
        %1093 = vmatmul.mubr.bf16.gmra.mrb[0].mxu0 %v875
        %v1094 = vpop.f32.mrb[0].mxu0
        %v1095 = vadd.f32 %v784, %v1094
        %v1096 = vpop.f32.mrb[0].mxu0
        %v1097 = vadd.f32 %v786, %v1096
        %v1098 = vpop.f32.mrb[0].mxu0
        %v1099 = vadd.f32 %v788, %v1098
        %v1100 = vpop.f32.mrb[0].mxu0
        %v1101 = vadd.f32 %v790, %v1100
        %1102 = vmatprep.mubr.bf16.mxu0 0
        %1103 = vmatmul.mubr.bf16.gmra.mrb[0].mxu0 %v878
        %v1104 = vpop.f32.mrb[0].mxu0
        %v1105 = vadd.f32 %v794, %v1104
        %v1106 = vpop.f32.mrb[0].mxu0
        %v1107 = vadd.f32 %v796, %v1106
        %v1108 = vpop.f32.mrb[0].mxu0
        %v1109 = vpop.f32.mrb[0].mxu0
        %1110 = vdwg.mxu0
        %v1111 = vld [vmem:[%s358 + $0x2] sm:$0xff]
        %v1112 = vld [vmem:[%s358 + $0xa] sm:$0xff]
        %v1113 = vld [vmem:[%s358 + $0x12] sm:$0xff]
        %v1114 = vld [vmem:[%s358 + $0x1a] sm:$0xff]
        %v1115 = vld [vmem:[%s358 + $0x22] sm:$0xff]
        %v1116 = vld [vmem:[%s358 + $0x2a] sm:$0xff]
        %v1117 = vld [vmem:[%s358 + $0x32] sm:$0xff]
        %v1118 = vld [vmem:[%s358 + $0x3a] sm:$0xff]
        %v1119 = vld [vmem:[%s358 + $0x42] sm:$0xff]
        %v1120 = vld [vmem:[%s358 + $0x4a] sm:$0xff]
        %v1121 = vld [vmem:[%s358 + $0x52] sm:$0xff]
        %v1122 = vld [vmem:[%s358 + $0x5a] sm:$0xff]
        %v1123 = vld [vmem:[%s358 + $0x62] sm:$0xff]
        %v1124 = vld [vmem:[%s358 + $0x6a] sm:$0xff]
        %v1125 = vld [vmem:[%s358 + $0x72] sm:$0xff]
        %v1126 = vld [vmem:[%s358 + $0x7a] sm:$0xff]
        %v1127 = vld [vmem:[%s358 + $0x82] sm:$0xff]
        %v1128 = vld [vmem:[%s358 + $0x8a] sm:$0xff]
        %v1129 = vld [vmem:[%s358 + $0x92] sm:$0xff]
        %v1130 = vld [vmem:[%s358 + $0x9a] sm:$0xff]
        %v1131 = vld [vmem:[%s358 + $0xa2] sm:$0xff]
        %v1132 = vld [vmem:[%s358 + $0xaa] sm:$0xff]
        %v1133 = vld [vmem:[%s358 + $0xb2] sm:$0xff]
        %v1134 = vld [vmem:[%s358 + $0xba] sm:$0xff]
        %v1135 = vld [vmem:[%s358 + $0xc2] sm:$0xff]
        %v1136 = vld [vmem:[%s358 + $0xca] sm:$0xff]
        %v1137 = vld [vmem:[%s358 + $0xd2] sm:$0xff]
        %v1138 = vld [vmem:[%s358 + $0xda] sm:$0xff]
        %v1139 = vld [vmem:[%s358 + $0xe2] sm:$0xff]
        %v1140 = vld [vmem:[%s358 + $0xea] sm:$0xff]
        %v1141 = vld [vmem:[%s358 + $0xf2] sm:$0xff]
        %v1142 = vld [vmem:[%s358 + $0xfa] sm:$0xff]
        %v1143 = vld [vmem:[%s358 + $0x102] sm:$0xff]
        %v1144 = vld [vmem:[%s358 + $0x10a] sm:$0xff]
        %v1145 = vld [vmem:[%s358 + $0x112] sm:$0xff]
        %v1146 = vld [vmem:[%s358 + $0x11a] sm:$0xff]
        %v1147 = vld [vmem:[%s358 + $0x122] sm:$0xff]
        %v1148 = vld [vmem:[%s358 + $0x12a] sm:$0xff]
        %v1149 = vld [vmem:[%s358 + $0x132] sm:$0xff]
        %v1150 = vpack.c.bf16 %v1112, %v1111
        %v1151 = vpack.c.bf16 %v1114, %v1113
        %v1152 = vpack.c.bf16 %v1116, %v1115
        %v1153 = vpack.c.bf16 %v1118, %v1117
        %v1154 = vpack.c.bf16 %v1120, %v1119
        %v1155 = vpack.c.bf16 %v1122, %v1121
        %v1156 = vpack.c.bf16 %v1124, %v1123
        %v1157 = vpack.c.bf16 %v1126, %v1125
        %v1158 = vpack.c.bf16 %v1128, %v1127
        %v1159 = vpack.c.bf16 %v1130, %v1129
        %v1160 = vpack.c.bf16 %v1132, %v1131
        %v1161 = vpack.c.bf16 %v1134, %v1133
        %v1162 = vpack.c.bf16 %v1136, %v1135
        %v1163 = vpack.c.bf16 %v1138, %v1137
        %v1164 = vpack.c.bf16 %v1140, %v1139
        %v1165 = vpack.c.bf16 %v1142, %v1141
        %v1166 = vpack.c.bf16 %v1144, %v1143
        %v1167 = vpack.c.bf16 %v1146, %v1145
        %v1168 = vpack.c.bf16 %v1148, %v1147
        %v1169 = vpack.c.bf16 %v1149, %v1149
        %s1170 = scalar_lea.vmem %s1, 64
        %v1171 = vld [vmem:[%s1170] sm:$0xff]
        %v1172 = vld [vmem:[%s1170 + $0x8] sm:$0xff]
        %v1173 = vld [vmem:[%s1170 + $0x10] sm:$0xff]
        %v1174 = vld [vmem:[%s1170 + $0x18] sm:$0xff]
        %v1179 = vunpack.c.l.b16 %v1171
        %v1180 = vunpack.c.h.b16 %v1171
        %v1181 = vunpack.c.l.b16 %v1172
        %v1182 = vunpack.c.h.b16 %v1172
        %v1183 = vunpack.c.l.b16 %v1173
        %v1184 = vunpack.c.h.b16 %v1173
        %v1185 = vunpack.c.l.b16 %v1174
        %v1186 = vunpack.c.h.b16 %v1174
        %v1187 = vpack.c.b16 %v1181, %v1179
        %v1188 = vpack.c.b16 %v1182, %v1180
        %v1189 = vpack.c.b16 %v1185, %v1183
        %v1190 = vpack.c.b16 %v1186, %v1184
        %v1196 = vsel %vm508, %v1150, 0
        %v1199 = vsel %vm508, %v1151, 0
        %v1202 = vsel %vm508, %v1152, 0
        %v1205 = vsel %vm508, %v1153, 0
        %v1208 = vsel %vm508, %v1154, 0
        %v1211 = vsel %vm508, %v1155, 0
        %v1214 = vsel %vm508, %v1156, 0
        %v1217 = vsel %vm508, %v1157, 0
        %v1220 = vsel %vm508, %v1158, 0
        %v1223 = vsel %vm508, %v1159, 0
        %v1226 = vsel %vm508, %v1160, 0
        %v1229 = vsel %vm508, %v1161, 0
        %v1232 = vsel %vm508, %v1162, 0
        %v1235 = vsel %vm508, %v1163, 0
        %v1238 = vsel %vm508, %v1164, 0
        %v1241 = vsel %vm508, %v1165, 0
        %v1244 = vsel %vm508, %v1166, 0
        %v1247 = vsel %vm508, %v1167, 0
        %v1250 = vsel %vm508, %v1168, 0
        %v1253 = vsel %vm508, %v1169, 0
        %1255 = vmatprep.subr.bf16.mxu0 %v1188
        %1256 = vmatpush1.bf16.msra.mxu0 %v1187
        %1257 = vmatprep.subr.bf16.mxu0 %v1190
        %1258 = vmatpush1.bf16.msra.mxu0 %v1189
        %1259 = vmatprep.subr.bf16.mxu0 0
        %1260 = vmatpush1.bf16.msra.mxu0 0
        %1261 = vmatprep.subr.bf16.mxu0 0
        %1262 = vmatpush1.bf16.msra.mxu0 0
        %1263 = vmatprep.subr.bf16.mxu0 0
        %1264 = vmatpush1.bf16.msra.mxu0 0
        %1265 = vmatprep.subr.bf16.mxu0 0
        %1266 = vmatpush1.bf16.msra.mxu0 0
        %1267 = vmatprep.subr.bf16.mxu0 0
        %1268 = vmatpush1.bf16.msra.mxu0 0
        %1269 = vmatprep.subr.bf16.mxu0 0
        %1270 = vmatpush1.bf16.msra.mxu0 0
        %1271 = vmatprep.subr.bf16.mxu0 0
        %1272 = vmatpush1.bf16.msra.mxu0 0
        %1273 = vmatprep.subr.bf16.mxu0 0
        %1274 = vmatpush1.bf16.msra.mxu0 0
        %1275 = vmatprep.subr.bf16.mxu0 0
        %1276 = vmatpush1.bf16.msra.mxu0 0
        %1277 = vmatprep.subr.bf16.mxu0 0
        %1278 = vmatpush1.bf16.msra.mxu0 0
        %1279 = vmatprep.subr.bf16.mxu0 0
        %1280 = vmatpush1.bf16.msra.mxu0 0
        %1281 = vmatprep.subr.bf16.mxu0 0
        %1282 = vmatpush1.bf16.msra.mxu0 0
        %1283 = vmatprep.subr.bf16.mxu0 0
        %1284 = vmatpush1.bf16.msra.mxu0 0
        %1285 = vmatprep.subr.bf16.mxu0 0
        %1286 = vmatpush1.bf16.msra.mxu0 0
        %1287 = vmatprep.mubr.bf16.mxu0 0
        %1288 = vmatmul.mubr.bf16.gmra.mrb[0].mxu0 %v1196
        %v1289 = vpop.f32.mrb[0].mxu0
        %v1290 = vadd.f32 0.0, %v1289
        %v1291 = vpop.f32.mrb[0].mxu0
        %v1292 = vadd.f32 0.0, %v1291
        %v1293 = vpop.f32.mrb[0].mxu0
        %v1294 = vadd.f32 0.0, %v1293
        %v1295 = vpop.f32.mrb[0].mxu0
        %v1296 = vadd.f32 0.0, %v1295
        %1297 = vmatprep.mubr.bf16.mxu0 0
        %1298 = vmatmul.mubr.bf16.gmra.mrb[0].mxu0 %v1199
        %v1299 = vpop.f32.mrb[0].mxu0
        %v1300 = vadd.f32 0.0, %v1299
        %v1301 = vpop.f32.mrb[0].mxu0
        %v1302 = vadd.f32 0.0, %v1301
        %v1303 = vpop.f32.mrb[0].mxu0
        %v1304 = vadd.f32 0.0, %v1303
        %v1305 = vpop.f32.mrb[0].mxu0
        %v1306 = vadd.f32 0.0, %v1305
        %1307 = vmatprep.mubr.bf16.mxu0 0
        %1308 = vmatmul.mubr.bf16.gmra.mrb[0].mxu0 %v1202
        %v1309 = vpop.f32.mrb[0].mxu0
        %v1310 = vadd.f32 0.0, %v1309
        %v1311 = vpop.f32.mrb[0].mxu0
        %v1312 = vadd.f32 0.0, %v1311
        %v1313 = vpop.f32.mrb[0].mxu0
        %v1314 = vadd.f32 0.0, %v1313
        %v1315 = vpop.f32.mrb[0].mxu0
        %v1316 = vadd.f32 0.0, %v1315
        %1317 = vmatprep.mubr.bf16.mxu0 0
        %1318 = vmatmul.mubr.bf16.gmra.mrb[0].mxu0 %v1205
        %v1319 = vpop.f32.mrb[0].mxu0
        %v1320 = vadd.f32 0.0, %v1319
        %v1321 = vpop.f32.mrb[0].mxu0
        %v1322 = vadd.f32 0.0, %v1321
        %v1323 = vpop.f32.mrb[0].mxu0
        %v1324 = vadd.f32 0.0, %v1323
        %v1325 = vpop.f32.mrb[0].mxu0
        %v1326 = vadd.f32 0.0, %v1325
        %1327 = vmatprep.mubr.bf16.mxu0 0
        %1328 = vmatmul.mubr.bf16.gmra.mrb[0].mxu0 %v1208
        %v1329 = vpop.f32.mrb[0].mxu0
        %v1330 = vadd.f32 0.0, %v1329
        %v1331 = vpop.f32.mrb[0].mxu0
        %v1332 = vadd.f32 0.0, %v1331
        %v1333 = vpop.f32.mrb[0].mxu0
        %v1334 = vadd.f32 0.0, %v1333
        %v1335 = vpop.f32.mrb[0].mxu0
        %v1336 = vadd.f32 0.0, %v1335
        %1337 = vmatprep.mubr.bf16.mxu0 0
        %1338 = vmatmul.mubr.bf16.gmra.mrb[0].mxu0 %v1211
        %v1339 = vpop.f32.mrb[0].mxu0
        %v1340 = vadd.f32 0.0, %v1339
        %v1341 = vpop.f32.mrb[0].mxu0
        %v1342 = vadd.f32 0.0, %v1341
        %v1343 = vpop.f32.mrb[0].mxu0
        %v1344 = vadd.f32 0.0, %v1343
        %v1345 = vpop.f32.mrb[0].mxu0
        %v1346 = vadd.f32 0.0, %v1345
        %1347 = vmatprep.mubr.bf16.mxu0 0
        %1348 = vmatmul.mubr.bf16.gmra.mrb[0].mxu0 %v1214
        %v1349 = vpop.f32.mrb[0].mxu0
        %v1350 = vadd.f32 0.0, %v1349
        %v1351 = vpop.f32.mrb[0].mxu0
        %v1352 = vadd.f32 0.0, %v1351
        %v1353 = vpop.f32.mrb[0].mxu0
        %v1354 = vadd.f32 0.0, %v1353
        %v1355 = vpop.f32.mrb[0].mxu0
        %v1356 = vadd.f32 0.0, %v1355
        %1357 = vmatprep.mubr.bf16.mxu0 0
        %1358 = vmatmul.mubr.bf16.gmra.mrb[0].mxu0 %v1217
        %v1359 = vpop.f32.mrb[0].mxu0
        %v1360 = vadd.f32 0.0, %v1359
        %v1361 = vpop.f32.mrb[0].mxu0
        %v1362 = vadd.f32 0.0, %v1361
        %v1363 = vpop.f32.mrb[0].mxu0
        %v1364 = vadd.f32 0.0, %v1363
        %v1365 = vpop.f32.mrb[0].mxu0
        %v1366 = vadd.f32 0.0, %v1365
        %1367 = vmatprep.mubr.bf16.mxu0 0
        %1368 = vmatmul.mubr.bf16.gmra.mrb[0].mxu0 %v1220
        %v1369 = vpop.f32.mrb[0].mxu0
        %v1370 = vadd.f32 0.0, %v1369
        %v1371 = vpop.f32.mrb[0].mxu0
        %v1372 = vadd.f32 0.0, %v1371
        %v1373 = vpop.f32.mrb[0].mxu0
        %v1374 = vadd.f32 0.0, %v1373
        %v1375 = vpop.f32.mrb[0].mxu0
        %v1376 = vadd.f32 0.0, %v1375
        %1377 = vmatprep.mubr.bf16.mxu0 0
        %1378 = vmatmul.mubr.bf16.gmra.mrb[0].mxu0 %v1223
        %v1379 = vpop.f32.mrb[0].mxu0
        %v1380 = vadd.f32 0.0, %v1379
        %v1381 = vpop.f32.mrb[0].mxu0
        %v1382 = vadd.f32 0.0, %v1381
        %v1383 = vpop.f32.mrb[0].mxu0
        %v1384 = vadd.f32 0.0, %v1383
        %v1385 = vpop.f32.mrb[0].mxu0
        %v1386 = vadd.f32 0.0, %v1385
        %1387 = vmatprep.mubr.bf16.mxu0 0
        %1388 = vmatmul.mubr.bf16.gmra.mrb[0].mxu0 %v1226
        %v1389 = vpop.f32.mrb[0].mxu0
        %v1390 = vadd.f32 0.0, %v1389
        %v1391 = vpop.f32.mrb[0].mxu0
        %v1392 = vadd.f32 0.0, %v1391
        %v1393 = vpop.f32.mrb[0].mxu0
        %v1394 = vadd.f32 0.0, %v1393
        %v1395 = vpop.f32.mrb[0].mxu0
        %v1396 = vadd.f32 0.0, %v1395
        %1397 = vmatprep.mubr.bf16.mxu0 0
        %1398 = vmatmul.mubr.bf16.gmra.mrb[0].mxu0 %v1229
        %v1399 = vpop.f32.mrb[0].mxu0
        %v1400 = vadd.f32 0.0, %v1399
        %v1401 = vpop.f32.mrb[0].mxu0
        %v1402 = vadd.f32 0.0, %v1401
        %v1403 = vpop.f32.mrb[0].mxu0
        %v1404 = vadd.f32 0.0, %v1403
        %v1405 = vpop.f32.mrb[0].mxu0
        %v1406 = vadd.f32 0.0, %v1405
        %1407 = vmatprep.mubr.bf16.mxu0 0
        %1408 = vmatmul.mubr.bf16.gmra.mrb[0].mxu0 %v1232
        %v1409 = vpop.f32.mrb[0].mxu0
        %v1410 = vadd.f32 0.0, %v1409
        %v1411 = vpop.f32.mrb[0].mxu0
        %v1412 = vadd.f32 0.0, %v1411
        %v1413 = vpop.f32.mrb[0].mxu0
        %v1414 = vadd.f32 0.0, %v1413
        %v1415 = vpop.f32.mrb[0].mxu0
        %v1416 = vadd.f32 0.0, %v1415
        %1417 = vmatprep.mubr.bf16.mxu0 0
        %1418 = vmatmul.mubr.bf16.gmra.mrb[0].mxu0 %v1235
        %v1419 = vpop.f32.mrb[0].mxu0
        %v1420 = vadd.f32 0.0, %v1419
        %v1421 = vpop.f32.mrb[0].mxu0
        %v1422 = vadd.f32 0.0, %v1421
        %v1423 = vpop.f32.mrb[0].mxu0
        %v1424 = vadd.f32 0.0, %v1423
        %v1425 = vpop.f32.mrb[0].mxu0
        %v1426 = vadd.f32 0.0, %v1425
        %1427 = vmatprep.mubr.bf16.mxu0 0
        %1428 = vmatmul.mubr.bf16.gmra.mrb[0].mxu0 %v1238
        %v1429 = vpop.f32.mrb[0].mxu0
        %v1430 = vadd.f32 0.0, %v1429
        %v1431 = vpop.f32.mrb[0].mxu0
        %v1432 = vadd.f32 0.0, %v1431
        %v1433 = vpop.f32.mrb[0].mxu0
        %v1434 = vadd.f32 0.0, %v1433
        %v1435 = vpop.f32.mrb[0].mxu0
        %v1436 = vadd.f32 0.0, %v1435
        %1437 = vmatprep.mubr.bf16.mxu0 0
        %1438 = vmatmul.mubr.bf16.gmra.mrb[0].mxu0 %v1241
        %v1439 = vpop.f32.mrb[0].mxu0
        %v1440 = vadd.f32 0.0, %v1439
        %v1441 = vpop.f32.mrb[0].mxu0
        %v1442 = vadd.f32 0.0, %v1441
        %v1443 = vpop.f32.mrb[0].mxu0
        %v1444 = vadd.f32 0.0, %v1443
        %v1445 = vpop.f32.mrb[0].mxu0
        %v1446 = vadd.f32 0.0, %v1445
        %1447 = vmatprep.mubr.bf16.mxu0 0
        %1448 = vmatmul.mubr.bf16.gmra.mrb[0].mxu0 %v1244
        %v1449 = vpop.f32.mrb[0].mxu0
        %v1450 = vadd.f32 0.0, %v1449
        %v1451 = vpop.f32.mrb[0].mxu0
        %v1452 = vadd.f32 0.0, %v1451
        %v1453 = vpop.f32.mrb[0].mxu0
        %v1454 = vadd.f32 0.0, %v1453
        %v1455 = vpop.f32.mrb[0].mxu0
        %v1456 = vadd.f32 0.0, %v1455
        %1457 = vmatprep.mubr.bf16.mxu0 0
        %1458 = vmatmul.mubr.bf16.gmra.mrb[0].mxu0 %v1247
        %v1459 = vpop.f32.mrb[0].mxu0
        %v1460 = vadd.f32 0.0, %v1459
        %v1461 = vpop.f32.mrb[0].mxu0
        %v1462 = vadd.f32 0.0, %v1461
        %v1463 = vpop.f32.mrb[0].mxu0
        %v1464 = vadd.f32 0.0, %v1463
        %v1465 = vpop.f32.mrb[0].mxu0
        %v1466 = vadd.f32 0.0, %v1465
        %1467 = vmatprep.mubr.bf16.mxu0 0
        %1468 = vmatmul.mubr.bf16.gmra.mrb[0].mxu0 %v1250
        %v1469 = vpop.f32.mrb[0].mxu0
        %v1470 = vadd.f32 0.0, %v1469
        %v1471 = vpop.f32.mrb[0].mxu0
        %v1472 = vadd.f32 0.0, %v1471
        %v1473 = vpop.f32.mrb[0].mxu0
        %v1474 = vadd.f32 0.0, %v1473
        %v1475 = vpop.f32.mrb[0].mxu0
        %v1476 = vadd.f32 0.0, %v1475
        %1477 = vmatprep.mubr.bf16.mxu0 0
        %1478 = vmatmul.mubr.bf16.gmra.mrb[0].mxu0 %v1253
        %v1479 = vpop.f32.mrb[0].mxu0
        %v1480 = vadd.f32 0.0, %v1479
        %v1481 = vpop.f32.mrb[0].mxu0
        %v1482 = vadd.f32 0.0, %v1481
        %v1483 = vpop.f32.mrb[0].mxu0
        %v1484 = vpop.f32.mrb[0].mxu0
        %1485 = vdwg.mxu0
        %v1486 = vadd.f32 %v915, %v1290
        %v1487 = vadd.f32 %v917, %v1292
        %v1488 = vadd.f32 %v919, %v1294
        %v1489 = vadd.f32 %v921, %v1296
        %v1490 = vadd.f32 %v925, %v1300
        %v1491 = vadd.f32 %v927, %v1302
        %v1492 = vadd.f32 %v929, %v1304
        %v1493 = vadd.f32 %v931, %v1306
        %v1494 = vadd.f32 %v935, %v1310
        %v1495 = vadd.f32 %v937, %v1312
        %v1496 = vadd.f32 %v939, %v1314
        %v1497 = vadd.f32 %v941, %v1316
        %v1498 = vadd.f32 %v945, %v1320
        %v1499 = vadd.f32 %v947, %v1322
        %v1500 = vadd.f32 %v949, %v1324
        %v1501 = vadd.f32 %v951, %v1326
        %v1502 = vadd.f32 %v955, %v1330
        %v1503 = vadd.f32 %v957, %v1332
        %v1504 = vadd.f32 %v959, %v1334
        %v1505 = vadd.f32 %v961, %v1336
        %v1506 = vadd.f32 %v965, %v1340
        %v1507 = vadd.f32 %v967, %v1342
        %v1508 = vadd.f32 %v969, %v1344
        %v1509 = vadd.f32 %v971, %v1346
        %v1510 = vadd.f32 %v975, %v1350
        %v1511 = vadd.f32 %v977, %v1352
        %v1512 = vadd.f32 %v979, %v1354
        %v1513 = vadd.f32 %v981, %v1356
        %v1514 = vadd.f32 %v985, %v1360
        %v1515 = vadd.f32 %v987, %v1362
        %v1516 = vadd.f32 %v989, %v1364
        %v1517 = vadd.f32 %v991, %v1366
        %v1518 = vadd.f32 %v995, %v1370
        %v1519 = vadd.f32 %v997, %v1372
        %v1520 = vadd.f32 %v999, %v1374
        %v1521 = vadd.f32 %v1001, %v1376
        %v1522 = vadd.f32 %v1005, %v1380
        %v1523 = vadd.f32 %v1007, %v1382
        %v1524 = vadd.f32 %v1009, %v1384
        %v1525 = vadd.f32 %v1011, %v1386
        %v1526 = vadd.f32 %v1015, %v1390
        %v1527 = vadd.f32 %v1017, %v1392
        %v1528 = vadd.f32 %v1019, %v1394
        %v1529 = vadd.f32 %v1021, %v1396
        %v1530 = vadd.f32 %v1025, %v1400
        %v1531 = vadd.f32 %v1027, %v1402
        %v1532 = vadd.f32 %v1029, %v1404
        %v1533 = vadd.f32 %v1031, %v1406
        %v1534 = vadd.f32 %v1035, %v1410
        %v1535 = vadd.f32 %v1037, %v1412
        %v1536 = vadd.f32 %v1039, %v1414
        %v1537 = vadd.f32 %v1041, %v1416
        %v1538 = vadd.f32 %v1045, %v1420
        %v1539 = vadd.f32 %v1047, %v1422
        %v1540 = vadd.f32 %v1049, %v1424
        %v1541 = vadd.f32 %v1051, %v1426
        %v1542 = vadd.f32 %v1055, %v1430
        %v1543 = vadd.f32 %v1057, %v1432
        %v1544 = vadd.f32 %v1059, %v1434
        %v1545 = vadd.f32 %v1061, %v1436
        %v1546 = vadd.f32 %v1065, %v1440
        %v1547 = vadd.f32 %v1067, %v1442
        %v1548 = vadd.f32 %v1069, %v1444
        %v1549 = vadd.f32 %v1071, %v1446
        %v1550 = vadd.f32 %v1075, %v1450
        %v1551 = vadd.f32 %v1077, %v1452
        %v1552 = vadd.f32 %v1079, %v1454
        %v1553 = vadd.f32 %v1081, %v1456
        %v1554 = vadd.f32 %v1085, %v1460
        %v1555 = vadd.f32 %v1087, %v1462
        %v1556 = vadd.f32 %v1089, %v1464
        %v1557 = vadd.f32 %v1091, %v1466
        %v1558 = vadd.f32 %v1095, %v1470
        %v1559 = vadd.f32 %v1097, %v1472
        %v1560 = vadd.f32 %v1099, %v1474
        %v1561 = vadd.f32 %v1101, %v1476
        %v1562 = vadd.f32 %v1105, %v1480
        %v1563 = vadd.f32 %v1107, %v1482
        %v1564 = vld [vmem:[%s358 + $0x3] sm:$0xff]
        %v1565 = vld [vmem:[%s358 + $0xb] sm:$0xff]
        %v1566 = vld [vmem:[%s358 + $0x13] sm:$0xff]
        %v1567 = vld [vmem:[%s358 + $0x1b] sm:$0xff]
        %v1568 = vld [vmem:[%s358 + $0x23] sm:$0xff]
        %v1569 = vld [vmem:[%s358 + $0x2b] sm:$0xff]
        %v1570 = vld [vmem:[%s358 + $0x33] sm:$0xff]
        %v1571 = vld [vmem:[%s358 + $0x3b] sm:$0xff]
        %v1572 = vld [vmem:[%s358 + $0x43] sm:$0xff]
        %v1573 = vld [vmem:[%s358 + $0x4b] sm:$0xff]
        %v1574 = vld [vmem:[%s358 + $0x53] sm:$0xff]
        %v1575 = vld [vmem:[%s358 + $0x5b] sm:$0xff]
        %v1576 = vld [vmem:[%s358 + $0x63] sm:$0xff]
        %v1577 = vld [vmem:[%s358 + $0x6b] sm:$0xff]
        %v1578 = vld [vmem:[%s358 + $0x73] sm:$0xff]
        %v1579 = vld [vmem:[%s358 + $0x7b] sm:$0xff]
        %v1580 = vld [vmem:[%s358 + $0x83] sm:$0xff]
        %v1581 = vld [vmem:[%s358 + $0x8b] sm:$0xff]
        %v1582 = vld [vmem:[%s358 + $0x93] sm:$0xff]
        %v1583 = vld [vmem:[%s358 + $0x9b] sm:$0xff]
        %v1584 = vld [vmem:[%s358 + $0xa3] sm:$0xff]
        %v1585 = vld [vmem:[%s358 + $0xab] sm:$0xff]
        %v1586 = vld [vmem:[%s358 + $0xb3] sm:$0xff]
        %v1587 = vld [vmem:[%s358 + $0xbb] sm:$0xff]
        %v1588 = vld [vmem:[%s358 + $0xc3] sm:$0xff]
        %v1589 = vld [vmem:[%s358 + $0xcb] sm:$0xff]
        %v1590 = vld [vmem:[%s358 + $0xd3] sm:$0xff]
        %v1591 = vld [vmem:[%s358 + $0xdb] sm:$0xff]
        %v1592 = vld [vmem:[%s358 + $0xe3] sm:$0xff]
        %v1593 = vld [vmem:[%s358 + $0xeb] sm:$0xff]
        %v1594 = vld [vmem:[%s358 + $0xf3] sm:$0xff]
        %v1595 = vld [vmem:[%s358 + $0xfb] sm:$0xff]
        %v1596 = vld [vmem:[%s358 + $0x103] sm:$0xff]
        %v1597 = vld [vmem:[%s358 + $0x10b] sm:$0xff]
        %v1598 = vld [vmem:[%s358 + $0x113] sm:$0xff]
        %v1599 = vld [vmem:[%s358 + $0x11b] sm:$0xff]
        %v1600 = vld [vmem:[%s358 + $0x123] sm:$0xff]
        %v1601 = vld [vmem:[%s358 + $0x12b] sm:$0xff]
        %v1602 = vld [vmem:[%s358 + $0x133] sm:$0xff]
        %v1603 = vpack.c.bf16 %v1565, %v1564
        %v1604 = vpack.c.bf16 %v1567, %v1566
        %v1605 = vpack.c.bf16 %v1569, %v1568
        %v1606 = vpack.c.bf16 %v1571, %v1570
        %v1607 = vpack.c.bf16 %v1573, %v1572
        %v1608 = vpack.c.bf16 %v1575, %v1574
        %v1609 = vpack.c.bf16 %v1577, %v1576
        %v1610 = vpack.c.bf16 %v1579, %v1578
        %v1611 = vpack.c.bf16 %v1581, %v1580
        %v1612 = vpack.c.bf16 %v1583, %v1582
        %v1613 = vpack.c.bf16 %v1585, %v1584
        %v1614 = vpack.c.bf16 %v1587, %v1586
        %v1615 = vpack.c.bf16 %v1589, %v1588
        %v1616 = vpack.c.bf16 %v1591, %v1590
        %v1617 = vpack.c.bf16 %v1593, %v1592
        %v1618 = vpack.c.bf16 %v1595, %v1594
        %v1619 = vpack.c.bf16 %v1597, %v1596
        %v1620 = vpack.c.bf16 %v1599, %v1598
        %v1621 = vpack.c.bf16 %v1601, %v1600
        %v1622 = vpack.c.bf16 %v1602, %v1602
        %s1623 = scalar_lea.vmem %s1, 96
        %v1624 = vld [vmem:[%s1623] sm:$0xff]
        %v1625 = vld [vmem:[%s1623 + $0x8] sm:$0xff]
        %v1626 = vld [vmem:[%s1623 + $0x10] sm:$0xff]
        %v1627 = vld [vmem:[%s1623 + $0x18] sm:$0xff]
        %v1632 = vunpack.c.l.b16 %v1624
        %v1633 = vunpack.c.h.b16 %v1624
        %v1634 = vunpack.c.l.b16 %v1625
        %v1635 = vunpack.c.h.b16 %v1625
        %v1636 = vunpack.c.l.b16 %v1626
        %v1637 = vunpack.c.h.b16 %v1626
        %v1638 = vunpack.c.l.b16 %v1627
        %v1639 = vunpack.c.h.b16 %v1627
        %v1640 = vpack.c.b16 %v1634, %v1632
        %v1641 = vpack.c.b16 %v1635, %v1633
        %v1642 = vpack.c.b16 %v1638, %v1636
        %v1643 = vpack.c.b16 %v1639, %v1637
        %v1649 = vsel %vm508, %v1603, 0
        %v1652 = vsel %vm508, %v1604, 0
        %v1655 = vsel %vm508, %v1605, 0
        %v1658 = vsel %vm508, %v1606, 0
        %v1661 = vsel %vm508, %v1607, 0
        %v1664 = vsel %vm508, %v1608, 0
        %v1667 = vsel %vm508, %v1609, 0
        %v1670 = vsel %vm508, %v1610, 0
        %v1673 = vsel %vm508, %v1611, 0
        %v1676 = vsel %vm508, %v1612, 0
        %v1679 = vsel %vm508, %v1613, 0
        %v1682 = vsel %vm508, %v1614, 0
        %v1685 = vsel %vm508, %v1615, 0
        %v1688 = vsel %vm508, %v1616, 0
        %v1691 = vsel %vm508, %v1617, 0
        %v1694 = vsel %vm508, %v1618, 0
        %v1697 = vsel %vm508, %v1619, 0
        %v1700 = vsel %vm508, %v1620, 0
        %v1703 = vsel %vm508, %v1621, 0
        %v1706 = vsel %vm508, %v1622, 0
        %1708 = vmatprep.subr.bf16.mxu0 %v1641
        %1709 = vmatpush1.bf16.msra.mxu0 %v1640
        %1710 = vmatprep.subr.bf16.mxu0 %v1643
        %1711 = vmatpush1.bf16.msra.mxu0 %v1642
        %1712 = vmatprep.subr.bf16.mxu0 0
        %1713 = vmatpush1.bf16.msra.mxu0 0
        %1714 = vmatprep.subr.bf16.mxu0 0
        %1715 = vmatpush1.bf16.msra.mxu0 0
        %1716 = vmatprep.subr.bf16.mxu0 0
        %1717 = vmatpush1.bf16.msra.mxu0 0
        %1718 = vmatprep.subr.bf16.mxu0 0
        %1719 = vmatpush1.bf16.msra.mxu0 0
        %1720 = vmatprep.subr.bf16.mxu0 0
        %1721 = vmatpush1.bf16.msra.mxu0 0
        %1722 = vmatprep.subr.bf16.mxu0 0
        %1723 = vmatpush1.bf16.msra.mxu0 0
        %1724 = vmatprep.subr.bf16.mxu0 0
        %1725 = vmatpush1.bf16.msra.mxu0 0
        %1726 = vmatprep.subr.bf16.mxu0 0
        %1727 = vmatpush1.bf16.msra.mxu0 0
        %1728 = vmatprep.subr.bf16.mxu0 0
        %1729 = vmatpush1.bf16.msra.mxu0 0
        %1730 = vmatprep.subr.bf16.mxu0 0
        %1731 = vmatpush1.bf16.msra.mxu0 0
        %1732 = vmatprep.subr.bf16.mxu0 0
        %1733 = vmatpush1.bf16.msra.mxu0 0
        %1734 = vmatprep.subr.bf16.mxu0 0
        %1735 = vmatpush1.bf16.msra.mxu0 0
        %1736 = vmatprep.subr.bf16.mxu0 0
        %1737 = vmatpush1.bf16.msra.mxu0 0
        %1738 = vmatprep.subr.bf16.mxu0 0
        %1739 = vmatpush1.bf16.msra.mxu0 0
        %1740 = vmatprep.mubr.bf16.mxu0 0
        %1741 = vmatmul.mubr.bf16.gmra.mrb[0].mxu0 %v1649
        %v1742 = vpop.f32.mrb[0].mxu0
        %v1743 = vadd.f32 0.0, %v1742
        %v1744 = vpop.f32.mrb[0].mxu0
        %v1745 = vadd.f32 0.0, %v1744
        %v1746 = vpop.f32.mrb[0].mxu0
        %v1747 = vadd.f32 0.0, %v1746
        %v1748 = vpop.f32.mrb[0].mxu0
        %v1749 = vadd.f32 0.0, %v1748
        %1750 = vmatprep.mubr.bf16.mxu0 0
        %1751 = vmatmul.mubr.bf16.gmra.mrb[0].mxu0 %v1652
        %v1752 = vpop.f32.mrb[0].mxu0
        %v1753 = vadd.f32 0.0, %v1752
        %v1754 = vpop.f32.mrb[0].mxu0
        %v1755 = vadd.f32 0.0, %v1754
        %v1756 = vpop.f32.mrb[0].mxu0
        %v1757 = vadd.f32 0.0, %v1756
        %v1758 = vpop.f32.mrb[0].mxu0
        %v1759 = vadd.f32 0.0, %v1758
        %1760 = vmatprep.mubr.bf16.mxu0 0
        %1761 = vmatmul.mubr.bf16.gmra.mrb[0].mxu0 %v1655
        %v1762 = vpop.f32.mrb[0].mxu0
        %v1763 = vadd.f32 0.0, %v1762
        %v1764 = vpop.f32.mrb[0].mxu0
        %v1765 = vadd.f32 0.0, %v1764
        %v1766 = vpop.f32.mrb[0].mxu0
        %v1767 = vadd.f32 0.0, %v1766
        %v1768 = vpop.f32.mrb[0].mxu0
        %v1769 = vadd.f32 0.0, %v1768
        %1770 = vmatprep.mubr.bf16.mxu0 0
        %1771 = vmatmul.mubr.bf16.gmra.mrb[0].mxu0 %v1658
        %v1772 = vpop.f32.mrb[0].mxu0
        %v1773 = vadd.f32 0.0, %v1772
        %v1774 = vpop.f32.mrb[0].mxu0
        %v1775 = vadd.f32 0.0, %v1774
        %v1776 = vpop.f32.mrb[0].mxu0
        %v1777 = vadd.f32 0.0, %v1776
        %v1778 = vpop.f32.mrb[0].mxu0
        %v1779 = vadd.f32 0.0, %v1778
        %1780 = vmatprep.mubr.bf16.mxu0 0
        %1781 = vmatmul.mubr.bf16.gmra.mrb[0].mxu0 %v1661
        %v1782 = vpop.f32.mrb[0].mxu0
        %v1783 = vadd.f32 0.0, %v1782
        %v1784 = vpop.f32.mrb[0].mxu0
        %v1785 = vadd.f32 0.0, %v1784
        %v1786 = vpop.f32.mrb[0].mxu0
        %v1787 = vadd.f32 0.0, %v1786
        %v1788 = vpop.f32.mrb[0].mxu0
        %v1789 = vadd.f32 0.0, %v1788
        %1790 = vmatprep.mubr.bf16.mxu0 0
        %1791 = vmatmul.mubr.bf16.gmra.mrb[0].mxu0 %v1664
        %v1792 = vpop.f32.mrb[0].mxu0
        %v1793 = vadd.f32 0.0, %v1792
        %v1794 = vpop.f32.mrb[0].mxu0
        %v1795 = vadd.f32 0.0, %v1794
        %v1796 = vpop.f32.mrb[0].mxu0
        %v1797 = vadd.f32 0.0, %v1796
        %v1798 = vpop.f32.mrb[0].mxu0
        %v1799 = vadd.f32 0.0, %v1798
        %1800 = vmatprep.mubr.bf16.mxu0 0
        %1801 = vmatmul.mubr.bf16.gmra.mrb[0].mxu0 %v1667
        %v1802 = vpop.f32.mrb[0].mxu0
        %v1803 = vadd.f32 0.0, %v1802
        %v1804 = vpop.f32.mrb[0].mxu0
        %v1805 = vadd.f32 0.0, %v1804
        %v1806 = vpop.f32.mrb[0].mxu0
        %v1807 = vadd.f32 0.0, %v1806
        %v1808 = vpop.f32.mrb[0].mxu0
        %v1809 = vadd.f32 0.0, %v1808
        %1810 = vmatprep.mubr.bf16.mxu0 0
        %1811 = vmatmul.mubr.bf16.gmra.mrb[0].mxu0 %v1670
        %v1812 = vpop.f32.mrb[0].mxu0
        %v1813 = vadd.f32 0.0, %v1812
        %v1814 = vpop.f32.mrb[0].mxu0
        %v1815 = vadd.f32 0.0, %v1814
        %v1816 = vpop.f32.mrb[0].mxu0
        %v1817 = vadd.f32 0.0, %v1816
        %v1818 = vpop.f32.mrb[0].mxu0
        %v1819 = vadd.f32 0.0, %v1818
        %1820 = vmatprep.mubr.bf16.mxu0 0
        %1821 = vmatmul.mubr.bf16.gmra.mrb[0].mxu0 %v1673
        %v1822 = vpop.f32.mrb[0].mxu0
        %v1823 = vadd.f32 0.0, %v1822
        %v1824 = vpop.f32.mrb[0].mxu0
        %v1825 = vadd.f32 0.0, %v1824
        %v1826 = vpop.f32.mrb[0].mxu0
        %v1827 = vadd.f32 0.0, %v1826
        %v1828 = vpop.f32.mrb[0].mxu0
        %v1829 = vadd.f32 0.0, %v1828
        %1830 = vmatprep.mubr.bf16.mxu0 0
        %1831 = vmatmul.mubr.bf16.gmra.mrb[0].mxu0 %v1676
        %v1832 = vpop.f32.mrb[0].mxu0
        %v1833 = vadd.f32 0.0, %v1832
        %v1834 = vpop.f32.mrb[0].mxu0
        %v1835 = vadd.f32 0.0, %v1834
        %v1836 = vpop.f32.mrb[0].mxu0
        %v1837 = vadd.f32 0.0, %v1836
        %v1838 = vpop.f32.mrb[0].mxu0
        %v1839 = vadd.f32 0.0, %v1838
        %1840 = vmatprep.mubr.bf16.mxu0 0
        %1841 = vmatmul.mubr.bf16.gmra.mrb[0].mxu0 %v1679
        %v1842 = vpop.f32.mrb[0].mxu0
        %v1843 = vadd.f32 0.0, %v1842
        %v1844 = vpop.f32.mrb[0].mxu0
        %v1845 = vadd.f32 0.0, %v1844
        %v1846 = vpop.f32.mrb[0].mxu0
        %v1847 = vadd.f32 0.0, %v1846
        %v1848 = vpop.f32.mrb[0].mxu0
        %v1849 = vadd.f32 0.0, %v1848
        %1850 = vmatprep.mubr.bf16.mxu0 0
        %1851 = vmatmul.mubr.bf16.gmra.mrb[0].mxu0 %v1682
        %v1852 = vpop.f32.mrb[0].mxu0
        %v1853 = vadd.f32 0.0, %v1852
        %v1854 = vpop.f32.mrb[0].mxu0
        %v1855 = vadd.f32 0.0, %v1854
        %v1856 = vpop.f32.mrb[0].mxu0
        %v1857 = vadd.f32 0.0, %v1856
        %v1858 = vpop.f32.mrb[0].mxu0
        %v1859 = vadd.f32 0.0, %v1858
        %1860 = vmatprep.mubr.bf16.mxu0 0
        %1861 = vmatmul.mubr.bf16.gmra.mrb[0].mxu0 %v1685
        %v1862 = vpop.f32.mrb[0].mxu0
        %v1863 = vadd.f32 0.0, %v1862
        %v1864 = vpop.f32.mrb[0].mxu0
        %v1865 = vadd.f32 0.0, %v1864
        %v1866 = vpop.f32.mrb[0].mxu0
        %v1867 = vadd.f32 0.0, %v1866
        %v1868 = vpop.f32.mrb[0].mxu0
        %v1869 = vadd.f32 0.0, %v1868
        %1870 = vmatprep.mubr.bf16.mxu0 0
        %1871 = vmatmul.mubr.bf16.gmra.mrb[0].mxu0 %v1688
        %v1872 = vpop.f32.mrb[0].mxu0
        %v1873 = vadd.f32 0.0, %v1872
        %v1874 = vpop.f32.mrb[0].mxu0
        %v1875 = vadd.f32 0.0, %v1874
        %v1876 = vpop.f32.mrb[0].mxu0
        %v1877 = vadd.f32 0.0, %v1876
        %v1878 = vpop.f32.mrb[0].mxu0
        %v1879 = vadd.f32 0.0, %v1878
        %1880 = vmatprep.mubr.bf16.mxu0 0
        %1881 = vmatmul.mubr.bf16.gmra.mrb[0].mxu0 %v1691
        %v1882 = vpop.f32.mrb[0].mxu0
        %v1883 = vadd.f32 0.0, %v1882
        %v1884 = vpop.f32.mrb[0].mxu0
        %v1885 = vadd.f32 0.0, %v1884
        %v1886 = vpop.f32.mrb[0].mxu0
        %v1887 = vadd.f32 0.0, %v1886
        %v1888 = vpop.f32.mrb[0].mxu0
        %v1889 = vadd.f32 0.0, %v1888
        %1890 = vmatprep.mubr.bf16.mxu0 0
        %1891 = vmatmul.mubr.bf16.gmra.mrb[0].mxu0 %v1694
        %v1892 = vpop.f32.mrb[0].mxu0
        %v1893 = vadd.f32 0.0, %v1892
        %v1894 = vpop.f32.mrb[0].mxu0
        %v1895 = vadd.f32 0.0, %v1894
        %v1896 = vpop.f32.mrb[0].mxu0
        %v1897 = vadd.f32 0.0, %v1896
        %v1898 = vpop.f32.mrb[0].mxu0
        %v1899 = vadd.f32 0.0, %v1898
        %1900 = vmatprep.mubr.bf16.mxu0 0
        %1901 = vmatmul.mubr.bf16.gmra.mrb[0].mxu0 %v1697
        %v1902 = vpop.f32.mrb[0].mxu0
        %v1903 = vadd.f32 0.0, %v1902
        %v1904 = vpop.f32.mrb[0].mxu0
        %v1905 = vadd.f32 0.0, %v1904
        %v1906 = vpop.f32.mrb[0].mxu0
        %v1907 = vadd.f32 0.0, %v1906
        %v1908 = vpop.f32.mrb[0].mxu0
        %v1909 = vadd.f32 0.0, %v1908
        %1910 = vmatprep.mubr.bf16.mxu0 0
        %1911 = vmatmul.mubr.bf16.gmra.mrb[0].mxu0 %v1700
        %v1912 = vpop.f32.mrb[0].mxu0
        %v1913 = vadd.f32 0.0, %v1912
        %v1914 = vpop.f32.mrb[0].mxu0
        %v1915 = vadd.f32 0.0, %v1914
        %v1916 = vpop.f32.mrb[0].mxu0
        %v1917 = vadd.f32 0.0, %v1916
        %v1918 = vpop.f32.mrb[0].mxu0
        %v1919 = vadd.f32 0.0, %v1918
        %1920 = vmatprep.mubr.bf16.mxu0 0
        %1921 = vmatmul.mubr.bf16.gmra.mrb[0].mxu0 %v1703
        %v1922 = vpop.f32.mrb[0].mxu0
        %v1923 = vadd.f32 0.0, %v1922
        %v1924 = vpop.f32.mrb[0].mxu0
        %v1925 = vadd.f32 0.0, %v1924
        %v1926 = vpop.f32.mrb[0].mxu0
        %v1927 = vadd.f32 0.0, %v1926
        %v1928 = vpop.f32.mrb[0].mxu0
        %v1929 = vadd.f32 0.0, %v1928
        %1930 = vmatprep.mubr.bf16.mxu0 0
        %1931 = vmatmul.mubr.bf16.gmra.mrb[0].mxu0 %v1706
        %v1932 = vpop.f32.mrb[0].mxu0
        %v1933 = vadd.f32 0.0, %v1932
        %v1934 = vpop.f32.mrb[0].mxu0
        %v1935 = vadd.f32 0.0, %v1934
        %v1936 = vpop.f32.mrb[0].mxu0
        %v1937 = vpop.f32.mrb[0].mxu0
        %1938 = vdwg.mxu0
        %v1939 = vadd.f32 %v1486, %v1743
        %v1940 = vadd.f32 %v1487, %v1745
        %v1941 = vadd.f32 %v1488, %v1747
        %v1942 = vadd.f32 %v1489, %v1749
        %v1943 = vadd.f32 %v1490, %v1753
        %v1944 = vadd.f32 %v1491, %v1755
        %v1945 = vadd.f32 %v1492, %v1757
        %v1946 = vadd.f32 %v1493, %v1759
        %v1947 = vadd.f32 %v1494, %v1763
        %v1948 = vadd.f32 %v1495, %v1765
        %v1949 = vadd.f32 %v1496, %v1767
        %v1950 = vadd.f32 %v1497, %v1769
        %v1951 = vadd.f32 %v1498, %v1773
        %v1952 = vadd.f32 %v1499, %v1775
        %v1953 = vadd.f32 %v1500, %v1777
        %v1954 = vadd.f32 %v1501, %v1779
        %v1955 = vadd.f32 %v1502, %v1783
        %v1956 = vadd.f32 %v1503, %v1785
        %v1957 = vadd.f32 %v1504, %v1787
        %v1958 = vadd.f32 %v1505, %v1789
        %v1959 = vadd.f32 %v1506, %v1793
        %v1960 = vadd.f32 %v1507, %v1795
        %v1961 = vadd.f32 %v1508, %v1797
        %v1962 = vadd.f32 %v1509, %v1799
        %v1963 = vadd.f32 %v1510, %v1803
        %v1964 = vadd.f32 %v1511, %v1805
        %v1965 = vadd.f32 %v1512, %v1807
        %v1966 = vadd.f32 %v1513, %v1809
        %v1967 = vadd.f32 %v1514, %v1813
        %v1968 = vadd.f32 %v1515, %v1815
        %v1969 = vadd.f32 %v1516, %v1817
        %v1970 = vadd.f32 %v1517, %v1819
        %v1971 = vadd.f32 %v1518, %v1823
        %v1972 = vadd.f32 %v1519, %v1825
        %v1973 = vadd.f32 %v1520, %v1827
        %v1974 = vadd.f32 %v1521, %v1829
        %v1975 = vadd.f32 %v1522, %v1833
        %v1976 = vadd.f32 %v1523, %v1835
        %v1977 = vadd.f32 %v1524, %v1837
        %v1978 = vadd.f32 %v1525, %v1839
        %v1979 = vadd.f32 %v1526, %v1843
        %v1980 = vadd.f32 %v1527, %v1845
        %v1981 = vadd.f32 %v1528, %v1847
        %v1982 = vadd.f32 %v1529, %v1849
        %v1983 = vadd.f32 %v1530, %v1853
        %v1984 = vadd.f32 %v1531, %v1855
        %v1985 = vadd.f32 %v1532, %v1857
        %v1986 = vadd.f32 %v1533, %v1859
        %v1987 = vadd.f32 %v1534, %v1863
        %v1988 = vadd.f32 %v1535, %v1865
        %v1989 = vadd.f32 %v1536, %v1867
        %v1990 = vadd.f32 %v1537, %v1869
        %v1991 = vadd.f32 %v1538, %v1873
        %v1992 = vadd.f32 %v1539, %v1875
        %v1993 = vadd.f32 %v1540, %v1877
        %v1994 = vadd.f32 %v1541, %v1879
        %v1995 = vadd.f32 %v1542, %v1883
        %v1996 = vadd.f32 %v1543, %v1885
        %v1997 = vadd.f32 %v1544, %v1887
        %v1998 = vadd.f32 %v1545, %v1889
        %v1999 = vadd.f32 %v1546, %v1893
        %v2000 = vadd.f32 %v1547, %v1895
        %v2001 = vadd.f32 %v1548, %v1897
        %v2002 = vadd.f32 %v1549, %v1899
        %v2003 = vadd.f32 %v1550, %v1903
        %v2004 = vadd.f32 %v1551, %v1905
        %v2005 = vadd.f32 %v1552, %v1907
        %v2006 = vadd.f32 %v1553, %v1909
        %v2007 = vadd.f32 %v1554, %v1913
        %v2008 = vadd.f32 %v1555, %v1915
        %v2009 = vadd.f32 %v1556, %v1917
        %v2010 = vadd.f32 %v1557, %v1919
        %v2011 = vadd.f32 %v1558, %v1923
        %v2012 = vadd.f32 %v1559, %v1925
        %v2013 = vadd.f32 %v1560, %v1927
        %v2014 = vadd.f32 %v1561, %v1929
        %v2015 = vadd.f32 %v1562, %v1933
        %v2016 = vadd.f32 %v1563, %v1935
        %v2017 = vld [vmem:[%s358 + $0x4] sm:$0xff]
        %v2018 = vld [vmem:[%s358 + $0xc] sm:$0xff]
        %v2019 = vld [vmem:[%s358 + $0x14] sm:$0xff]
        %v2020 = vld [vmem:[%s358 + $0x1c] sm:$0xff]
        %v2021 = vld [vmem:[%s358 + $0x24] sm:$0xff]
        %v2022 = vld [vmem:[%s358 + $0x2c] sm:$0xff]
        %v2023 = vld [vmem:[%s358 + $0x34] sm:$0xff]
        %v2024 = vld [vmem:[%s358 + $0x3c] sm:$0xff]
        %v2025 = vld [vmem:[%s358 + $0x44] sm:$0xff]
        %v2026 = vld [vmem:[%s358 + $0x4c] sm:$0xff]
        %v2027 = vld [vmem:[%s358 + $0x54] sm:$0xff]
        %v2028 = vld [vmem:[%s358 + $0x5c] sm:$0xff]
        %v2029 = vld [vmem:[%s358 + $0x64] sm:$0xff]
        %v2030 = vld [vmem:[%s358 + $0x6c] sm:$0xff]
        %v2031 = vld [vmem:[%s358 + $0x74] sm:$0xff]
        %v2032 = vld [vmem:[%s358 + $0x7c] sm:$0xff]
        %v2033 = vld [vmem:[%s358 + $0x84] sm:$0xff]
        %v2034 = vld [vmem:[%s358 + $0x8c] sm:$0xff]
        %v2035 = vld [vmem:[%s358 + $0x94] sm:$0xff]
        %v2036 = vld [vmem:[%s358 + $0x9c] sm:$0xff]
        %v2037 = vld [vmem:[%s358 + $0xa4] sm:$0xff]
        %v2038 = vld [vmem:[%s358 + $0xac] sm:$0xff]
        %v2039 = vld [vmem:[%s358 + $0xb4] sm:$0xff]
        %v2040 = vld [vmem:[%s358 + $0xbc] sm:$0xff]
        %v2041 = vld [vmem:[%s358 + $0xc4] sm:$0xff]
        %v2042 = vld [vmem:[%s358 + $0xcc] sm:$0xff]
        %v2043 = vld [vmem:[%s358 + $0xd4] sm:$0xff]
        %v2044 = vld [vmem:[%s358 + $0xdc] sm:$0xff]
        %v2045 = vld [vmem:[%s358 + $0xe4] sm:$0xff]
        %v2046 = vld [vmem:[%s358 + $0xec] sm:$0xff]
        %v2047 = vld [vmem:[%s358 + $0xf4] sm:$0xff]
        %v2048 = vld [vmem:[%s358 + $0xfc] sm:$0xff]
        %v2049 = vld [vmem:[%s358 + $0x104] sm:$0xff]
        %v2050 = vld [vmem:[%s358 + $0x10c] sm:$0xff]
        %v2051 = vld [vmem:[%s358 + $0x114] sm:$0xff]
        %v2052 = vld [vmem:[%s358 + $0x11c] sm:$0xff]
        %v2053 = vld [vmem:[%s358 + $0x124] sm:$0xff]
        %v2054 = vld [vmem:[%s358 + $0x12c] sm:$0xff]
        %v2055 = vld [vmem:[%s358 + $0x134] sm:$0xff]
        %v2056 = vpack.c.bf16 %v2018, %v2017
        %v2057 = vpack.c.bf16 %v2020, %v2019
        %v2058 = vpack.c.bf16 %v2022, %v2021
        %v2059 = vpack.c.bf16 %v2024, %v2023
        %v2060 = vpack.c.bf16 %v2026, %v2025
        %v2061 = vpack.c.bf16 %v2028, %v2027
        %v2062 = vpack.c.bf16 %v2030, %v2029
        %v2063 = vpack.c.bf16 %v2032, %v2031
        %v2064 = vpack.c.bf16 %v2034, %v2033
        %v2065 = vpack.c.bf16 %v2036, %v2035
        %v2066 = vpack.c.bf16 %v2038, %v2037
        %v2067 = vpack.c.bf16 %v2040, %v2039
        %v2068 = vpack.c.bf16 %v2042, %v2041
        %v2069 = vpack.c.bf16 %v2044, %v2043
        %v2070 = vpack.c.bf16 %v2046, %v2045
        %v2071 = vpack.c.bf16 %v2048, %v2047
        %v2072 = vpack.c.bf16 %v2050, %v2049
        %v2073 = vpack.c.bf16 %v2052, %v2051
        %v2074 = vpack.c.bf16 %v2054, %v2053
        %v2075 = vpack.c.bf16 %v2055, %v2055
        %s2076 = scalar_lea.vmem %s1, 128
        %v2077 = vld [vmem:[%s2076] sm:$0xff]
        %v2078 = vld [vmem:[%s2076 + $0x8] sm:$0xff]
        %v2079 = vld [vmem:[%s2076 + $0x10] sm:$0xff]
        %v2080 = vld [vmem:[%s2076 + $0x18] sm:$0xff]
        %v2085 = vunpack.c.l.b16 %v2077
        %v2086 = vunpack.c.h.b16 %v2077
        %v2087 = vunpack.c.l.b16 %v2078
        %v2088 = vunpack.c.h.b16 %v2078
        %v2089 = vunpack.c.l.b16 %v2079
        %v2090 = vunpack.c.h.b16 %v2079
        %v2091 = vunpack.c.l.b16 %v2080
        %v2092 = vunpack.c.h.b16 %v2080
        %v2093 = vpack.c.b16 %v2087, %v2085
        %v2094 = vpack.c.b16 %v2088, %v2086
        %v2095 = vpack.c.b16 %v2091, %v2089
        %v2096 = vpack.c.b16 %v2092, %v2090
        %v2102 = vsel %vm508, %v2056, 0
        %v2105 = vsel %vm508, %v2057, 0
        %v2108 = vsel %vm508, %v2058, 0
        %v2111 = vsel %vm508, %v2059, 0
        %v2114 = vsel %vm508, %v2060, 0
        %v2117 = vsel %vm508, %v2061, 0
        %v2120 = vsel %vm508, %v2062, 0
        %v2123 = vsel %vm508, %v2063, 0
        %v2126 = vsel %vm508, %v2064, 0
        %v2129 = vsel %vm508, %v2065, 0
        %v2132 = vsel %vm508, %v2066, 0
        %v2135 = vsel %vm508, %v2067, 0
        %v2138 = vsel %vm508, %v2068, 0
        %v2141 = vsel %vm508, %v2069, 0
        %v2144 = vsel %vm508, %v2070, 0
        %v2147 = vsel %vm508, %v2071, 0
        %v2150 = vsel %vm508, %v2072, 0
        %v2153 = vsel %vm508, %v2073, 0
        %v2156 = vsel %vm508, %v2074, 0
        %v2159 = vsel %vm508, %v2075, 0
        %2161 = vmatprep.subr.bf16.mxu0 %v2094
        %2162 = vmatpush1.bf16.msra.mxu0 %v2093
        %2163 = vmatprep.subr.bf16.mxu0 %v2096
        %2164 = vmatpush1.bf16.msra.mxu0 %v2095
        %2165 = vmatprep.subr.bf16.mxu0 0
        %2166 = vmatpush1.bf16.msra.mxu0 0
        %2167 = vmatprep.subr.bf16.mxu0 0
        %2168 = vmatpush1.bf16.msra.mxu0 0
        %2169 = vmatprep.subr.bf16.mxu0 0
        %2170 = vmatpush1.bf16.msra.mxu0 0
        %2171 = vmatprep.subr.bf16.mxu0 0
        %2172 = vmatpush1.bf16.msra.mxu0 0
        %2173 = vmatprep.subr.bf16.mxu0 0
        %2174 = vmatpush1.bf16.msra.mxu0 0
        %2175 = vmatprep.subr.bf16.mxu0 0
        %2176 = vmatpush1.bf16.msra.mxu0 0
        %2177 = vmatprep.subr.bf16.mxu0 0
        %2178 = vmatpush1.bf16.msra.mxu0 0
        %2179 = vmatprep.subr.bf16.mxu0 0
        %2180 = vmatpush1.bf16.msra.mxu0 0
        %2181 = vmatprep.subr.bf16.mxu0 0
        %2182 = vmatpush1.bf16.msra.mxu0 0
        %2183 = vmatprep.subr.bf16.mxu0 0
        %2184 = vmatpush1.bf16.msra.mxu0 0
        %2185 = vmatprep.subr.bf16.mxu0 0
        %2186 = vmatpush1.bf16.msra.mxu0 0
        %2187 = vmatprep.subr.bf16.mxu0 0
        %2188 = vmatpush1.bf16.msra.mxu0 0
        %2189 = vmatprep.subr.bf16.mxu0 0
        %2190 = vmatpush1.bf16.msra.mxu0 0
        %2191 = vmatprep.subr.bf16.mxu0 0
        %2192 = vmatpush1.bf16.msra.mxu0 0
        %2193 = vmatprep.mubr.bf16.mxu0 0
        %2194 = vmatmul.mubr.bf16.gmra.mrb[0].mxu0 %v2102
        %v2195 = vpop.f32.mrb[0].mxu0
        %v2196 = vadd.f32 0.0, %v2195
        %v2197 = vpop.f32.mrb[0].mxu0
        %v2198 = vadd.f32 0.0, %v2197
        %v2199 = vpop.f32.mrb[0].mxu0
        %v2200 = vadd.f32 0.0, %v2199
        %v2201 = vpop.f32.mrb[0].mxu0
        %v2202 = vadd.f32 0.0, %v2201
        %2203 = vmatprep.mubr.bf16.mxu0 0
        %2204 = vmatmul.mubr.bf16.gmra.mrb[0].mxu0 %v2105
        %v2205 = vpop.f32.mrb[0].mxu0
        %v2206 = vadd.f32 0.0, %v2205
        %v2207 = vpop.f32.mrb[0].mxu0
        %v2208 = vadd.f32 0.0, %v2207
        %v2209 = vpop.f32.mrb[0].mxu0
        %v2210 = vadd.f32 0.0, %v2209
        %v2211 = vpop.f32.mrb[0].mxu0
        %v2212 = vadd.f32 0.0, %v2211
        %2213 = vmatprep.mubr.bf16.mxu0 0
        %2214 = vmatmul.mubr.bf16.gmra.mrb[0].mxu0 %v2108
        %v2215 = vpop.f32.mrb[0].mxu0
        %v2216 = vadd.f32 0.0, %v2215
        %v2217 = vpop.f32.mrb[0].mxu0
        %v2218 = vadd.f32 0.0, %v2217
        %v2219 = vpop.f32.mrb[0].mxu0
        %v2220 = vadd.f32 0.0, %v2219
        %v2221 = vpop.f32.mrb[0].mxu0
        %v2222 = vadd.f32 0.0, %v2221
        %2223 = vmatprep.mubr.bf16.mxu0 0
        %2224 = vmatmul.mubr.bf16.gmra.mrb[0].mxu0 %v2111
        %v2225 = vpop.f32.mrb[0].mxu0
        %v2226 = vadd.f32 0.0, %v2225
        %v2227 = vpop.f32.mrb[0].mxu0
        %v2228 = vadd.f32 0.0, %v2227
        %v2229 = vpop.f32.mrb[0].mxu0
        %v2230 = vadd.f32 0.0, %v2229
        %v2231 = vpop.f32.mrb[0].mxu0
        %v2232 = vadd.f32 0.0, %v2231
        %2233 = vmatprep.mubr.bf16.mxu0 0
        %2234 = vmatmul.mubr.bf16.gmra.mrb[0].mxu0 %v2114
        %v2235 = vpop.f32.mrb[0].mxu0
        %v2236 = vadd.f32 0.0, %v2235
        %v2237 = vpop.f32.mrb[0].mxu0
        %v2238 = vadd.f32 0.0, %v2237
        %v2239 = vpop.f32.mrb[0].mxu0
        %v2240 = vadd.f32 0.0, %v2239
        %v2241 = vpop.f32.mrb[0].mxu0
        %v2242 = vadd.f32 0.0, %v2241
        %2243 = vmatprep.mubr.bf16.mxu0 0
        %2244 = vmatmul.mubr.bf16.gmra.mrb[0].mxu0 %v2117
        %v2245 = vpop.f32.mrb[0].mxu0
        %v2246 = vadd.f32 0.0, %v2245
        %v2247 = vpop.f32.mrb[0].mxu0
        %v2248 = vadd.f32 0.0, %v2247
        %v2249 = vpop.f32.mrb[0].mxu0
        %v2250 = vadd.f32 0.0, %v2249
        %v2251 = vpop.f32.mrb[0].mxu0
        %v2252 = vadd.f32 0.0, %v2251
        %2253 = vmatprep.mubr.bf16.mxu0 0
        %2254 = vmatmul.mubr.bf16.gmra.mrb[0].mxu0 %v2120
        %v2255 = vpop.f32.mrb[0].mxu0
        %v2256 = vadd.f32 0.0, %v2255
        %v2257 = vpop.f32.mrb[0].mxu0
        %v2258 = vadd.f32 0.0, %v2257
        %v2259 = vpop.f32.mrb[0].mxu0
        %v2260 = vadd.f32 0.0, %v2259
        %v2261 = vpop.f32.mrb[0].mxu0
        %v2262 = vadd.f32 0.0, %v2261
        %2263 = vmatprep.mubr.bf16.mxu0 0
        %2264 = vmatmul.mubr.bf16.gmra.mrb[0].mxu0 %v2123
        %v2265 = vpop.f32.mrb[0].mxu0
        %v2266 = vadd.f32 0.0, %v2265
        %v2267 = vpop.f32.mrb[0].mxu0
        %v2268 = vadd.f32 0.0, %v2267
        %v2269 = vpop.f32.mrb[0].mxu0
        %v2270 = vadd.f32 0.0, %v2269
        %v2271 = vpop.f32.mrb[0].mxu0
        %v2272 = vadd.f32 0.0, %v2271
        %2273 = vmatprep.mubr.bf16.mxu0 0
        %2274 = vmatmul.mubr.bf16.gmra.mrb[0].mxu0 %v2126
        %v2275 = vpop.f32.mrb[0].mxu0
        %v2276 = vadd.f32 0.0, %v2275
        %v2277 = vpop.f32.mrb[0].mxu0
        %v2278 = vadd.f32 0.0, %v2277
        %v2279 = vpop.f32.mrb[0].mxu0
        %v2280 = vadd.f32 0.0, %v2279
        %v2281 = vpop.f32.mrb[0].mxu0
        %v2282 = vadd.f32 0.0, %v2281
        %2283 = vmatprep.mubr.bf16.mxu0 0
        %2284 = vmatmul.mubr.bf16.gmra.mrb[0].mxu0 %v2129
        %v2285 = vpop.f32.mrb[0].mxu0
        %v2286 = vadd.f32 0.0, %v2285
        %v2287 = vpop.f32.mrb[0].mxu0
        %v2288 = vadd.f32 0.0, %v2287
        %v2289 = vpop.f32.mrb[0].mxu0
        %v2290 = vadd.f32 0.0, %v2289
        %v2291 = vpop.f32.mrb[0].mxu0
        %v2292 = vadd.f32 0.0, %v2291
        %2293 = vmatprep.mubr.bf16.mxu0 0
        %2294 = vmatmul.mubr.bf16.gmra.mrb[0].mxu0 %v2132
        %v2295 = vpop.f32.mrb[0].mxu0
        %v2296 = vadd.f32 0.0, %v2295
        %v2297 = vpop.f32.mrb[0].mxu0
        %v2298 = vadd.f32 0.0, %v2297
        %v2299 = vpop.f32.mrb[0].mxu0
        %v2300 = vadd.f32 0.0, %v2299
        %v2301 = vpop.f32.mrb[0].mxu0
        %v2302 = vadd.f32 0.0, %v2301
        %2303 = vmatprep.mubr.bf16.mxu0 0
        %2304 = vmatmul.mubr.bf16.gmra.mrb[0].mxu0 %v2135
        %v2305 = vpop.f32.mrb[0].mxu0
        %v2306 = vadd.f32 0.0, %v2305
        %v2307 = vpop.f32.mrb[0].mxu0
        %v2308 = vadd.f32 0.0, %v2307
        %v2309 = vpop.f32.mrb[0].mxu0
        %v2310 = vadd.f32 0.0, %v2309
        %v2311 = vpop.f32.mrb[0].mxu0
        %v2312 = vadd.f32 0.0, %v2311
        %2313 = vmatprep.mubr.bf16.mxu0 0
        %2314 = vmatmul.mubr.bf16.gmra.mrb[0].mxu0 %v2138
        %v2315 = vpop.f32.mrb[0].mxu0
        %v2316 = vadd.f32 0.0, %v2315
        %v2317 = vpop.f32.mrb[0].mxu0
        %v2318 = vadd.f32 0.0, %v2317
        %v2319 = vpop.f32.mrb[0].mxu0
        %v2320 = vadd.f32 0.0, %v2319
        %v2321 = vpop.f32.mrb[0].mxu0
        %v2322 = vadd.f32 0.0, %v2321
        %2323 = vmatprep.mubr.bf16.mxu0 0
        %2324 = vmatmul.mubr.bf16.gmra.mrb[0].mxu0 %v2141
        %v2325 = vpop.f32.mrb[0].mxu0
        %v2326 = vadd.f32 0.0, %v2325
        %v2327 = vpop.f32.mrb[0].mxu0
        %v2328 = vadd.f32 0.0, %v2327
        %v2329 = vpop.f32.mrb[0].mxu0
        %v2330 = vadd.f32 0.0, %v2329
        %v2331 = vpop.f32.mrb[0].mxu0
        %v2332 = vadd.f32 0.0, %v2331
        %2333 = vmatprep.mubr.bf16.mxu0 0
        %2334 = vmatmul.mubr.bf16.gmra.mrb[0].mxu0 %v2144
        %v2335 = vpop.f32.mrb[0].mxu0
        %v2336 = vadd.f32 0.0, %v2335
        %v2337 = vpop.f32.mrb[0].mxu0
        %v2338 = vadd.f32 0.0, %v2337
        %v2339 = vpop.f32.mrb[0].mxu0
        %v2340 = vadd.f32 0.0, %v2339
        %v2341 = vpop.f32.mrb[0].mxu0
        %v2342 = vadd.f32 0.0, %v2341
        %2343 = vmatprep.mubr.bf16.mxu0 0
        %2344 = vmatmul.mubr.bf16.gmra.mrb[0].mxu0 %v2147
        %v2345 = vpop.f32.mrb[0].mxu0
        %v2346 = vadd.f32 0.0, %v2345
        %v2347 = vpop.f32.mrb[0].mxu0
        %v2348 = vadd.f32 0.0, %v2347
        %v2349 = vpop.f32.mrb[0].mxu0
        %v2350 = vadd.f32 0.0, %v2349
        %v2351 = vpop.f32.mrb[0].mxu0
        %v2352 = vadd.f32 0.0, %v2351
        %2353 = vmatprep.mubr.bf16.mxu0 0
        %2354 = vmatmul.mubr.bf16.gmra.mrb[0].mxu0 %v2150
        %v2355 = vpop.f32.mrb[0].mxu0
        %v2356 = vadd.f32 0.0, %v2355
        %v2357 = vpop.f32.mrb[0].mxu0
        %v2358 = vadd.f32 0.0, %v2357
        %v2359 = vpop.f32.mrb[0].mxu0
        %v2360 = vadd.f32 0.0, %v2359
        %v2361 = vpop.f32.mrb[0].mxu0
        %v2362 = vadd.f32 0.0, %v2361
        %2363 = vmatprep.mubr.bf16.mxu0 0
        %2364 = vmatmul.mubr.bf16.gmra.mrb[0].mxu0 %v2153
        %v2365 = vpop.f32.mrb[0].mxu0
        %v2366 = vadd.f32 0.0, %v2365
        %v2367 = vpop.f32.mrb[0].mxu0
        %v2368 = vadd.f32 0.0, %v2367
        %v2369 = vpop.f32.mrb[0].mxu0
        %v2370 = vadd.f32 0.0, %v2369
        %v2371 = vpop.f32.mrb[0].mxu0
        %v2372 = vadd.f32 0.0, %v2371
        %2373 = vmatprep.mubr.bf16.mxu0 0
        %2374 = vmatmul.mubr.bf16.gmra.mrb[0].mxu0 %v2156
        %v2375 = vpop.f32.mrb[0].mxu0
        %v2376 = vadd.f32 0.0, %v2375
        %v2377 = vpop.f32.mrb[0].mxu0
        %v2378 = vadd.f32 0.0, %v2377
        %v2379 = vpop.f32.mrb[0].mxu0
        %v2380 = vadd.f32 0.0, %v2379
        %v2381 = vpop.f32.mrb[0].mxu0
        %v2382 = vadd.f32 0.0, %v2381
        %2383 = vmatprep.mubr.bf16.mxu0 0
        %2384 = vmatmul.mubr.bf16.gmra.mrb[0].mxu0 %v2159
        %v2385 = vpop.f32.mrb[0].mxu0
        %v2386 = vadd.f32 0.0, %v2385
        %v2387 = vpop.f32.mrb[0].mxu0
        %v2388 = vadd.f32 0.0, %v2387
        %v2389 = vpop.f32.mrb[0].mxu0
        %v2390 = vpop.f32.mrb[0].mxu0
        %2391 = vdwg.mxu0
        %v2392 = vadd.f32 %v1939, %v2196
        %v2393 = vadd.f32 %v1940, %v2198
        %v2394 = vadd.f32 %v1941, %v2200
        %v2395 = vadd.f32 %v1942, %v2202
        %v2396 = vadd.f32 %v1943, %v2206
        %v2397 = vadd.f32 %v1944, %v2208
        %v2398 = vadd.f32 %v1945, %v2210
        %v2399 = vadd.f32 %v1946, %v2212
        %v2400 = vadd.f32 %v1947, %v2216
        %v2401 = vadd.f32 %v1948, %v2218
        %v2402 = vadd.f32 %v1949, %v2220
        %v2403 = vadd.f32 %v1950, %v2222
        %v2404 = vadd.f32 %v1951, %v2226
        %v2405 = vadd.f32 %v1952, %v2228
        %v2406 = vadd.f32 %v1953, %v2230
        %v2407 = vadd.f32 %v1954, %v2232
        %v2408 = vadd.f32 %v1955, %v2236
        %v2409 = vadd.f32 %v1956, %v2238
        %v2410 = vadd.f32 %v1957, %v2240
        %v2411 = vadd.f32 %v1958, %v2242
        %v2412 = vadd.f32 %v1959, %v2246
        %v2413 = vadd.f32 %v1960, %v2248
        %v2414 = vadd.f32 %v1961, %v2250
        %v2415 = vadd.f32 %v1962, %v2252
        %v2416 = vadd.f32 %v1963, %v2256
        %v2417 = vadd.f32 %v1964, %v2258
        %v2418 = vadd.f32 %v1965, %v2260
        %v2419 = vadd.f32 %v1966, %v2262
        %v2420 = vadd.f32 %v1967, %v2266
        %v2421 = vadd.f32 %v1968, %v2268
        %v2422 = vadd.f32 %v1969, %v2270
        %v2423 = vadd.f32 %v1970, %v2272
        %v2424 = vadd.f32 %v1971, %v2276
        %v2425 = vadd.f32 %v1972, %v2278
        %v2426 = vadd.f32 %v1973, %v2280
        %v2427 = vadd.f32 %v1974, %v2282
        %v2428 = vadd.f32 %v1975, %v2286
        %v2429 = vadd.f32 %v1976, %v2288
        %v2430 = vadd.f32 %v1977, %v2290
        %v2431 = vadd.f32 %v1978, %v2292
        %v2432 = vadd.f32 %v1979, %v2296
        %v2433 = vadd.f32 %v1980, %v2298
        %v2434 = vadd.f32 %v1981, %v2300
        %v2435 = vadd.f32 %v1982, %v2302
        %v2436 = vadd.f32 %v1983, %v2306
        %v2437 = vadd.f32 %v1984, %v2308
        %v2438 = vadd.f32 %v1985, %v2310
        %v2439 = vadd.f32 %v1986, %v2312
        %v2440 = vadd.f32 %v1987, %v2316
        %v2441 = vadd.f32 %v1988, %v2318
        %v2442 = vadd.f32 %v1989, %v2320
        %v2443 = vadd.f32 %v1990, %v2322
        %v2444 = vadd.f32 %v1991, %v2326
        %v2445 = vadd.f32 %v1992, %v2328
        %v2446 = vadd.f32 %v1993, %v2330
        %v2447 = vadd.f32 %v1994, %v2332
        %v2448 = vadd.f32 %v1995, %v2336
        %v2449 = vadd.f32 %v1996, %v2338
        %v2450 = vadd.f32 %v1997, %v2340
        %v2451 = vadd.f32 %v1998, %v2342
        %v2452 = vadd.f32 %v1999, %v2346
        %v2453 = vadd.f32 %v2000, %v2348
        %v2454 = vadd.f32 %v2001, %v2350
        %v2455 = vadd.f32 %v2002, %v2352
        %v2456 = vadd.f32 %v2003, %v2356
        %v2457 = vadd.f32 %v2004, %v2358
        %v2458 = vadd.f32 %v2005, %v2360
        %v2459 = vadd.f32 %v2006, %v2362
        %v2460 = vadd.f32 %v2007, %v2366
        %v2461 = vadd.f32 %v2008, %v2368
        %v2462 = vadd.f32 %v2009, %v2370
        %v2463 = vadd.f32 %v2010, %v2372
        %v2464 = vadd.f32 %v2011, %v2376
        %v2465 = vadd.f32 %v2012, %v2378
        %v2466 = vadd.f32 %v2013, %v2380
        %v2467 = vadd.f32 %v2014, %v2382
        %v2468 = vadd.f32 %v2015, %v2386
        %v2469 = vadd.f32 %v2016, %v2388
        %v2470 = vld [vmem:[%s2] sm:$0x3]
        %v2472 = vlaneseq
        %v2473 = vshrl.u32 %v2472, 7
        %v2474 = vsub.s32 0, %v2473
        %v2475 = vrot.slane %v2470, %v2474
        %v2476 = vlaneseq
        %v2477 = vshrl.u32 %v2476, 7
        %v2478 = vsub.s32 1, %v2477
        %v2479 = vrot.slane %v2470, %v2478
        %v2482 = vadd.f32 %v2392, %v2475
        %v2483 = vadd.f32 %v2393, %v2479
        %v2484 = vadd.f32 %v2394, %v2475
        %v2485 = vadd.f32 %v2395, %v2479
        %v2486 = vadd.f32 %v2396, %v2475
        %v2487 = vadd.f32 %v2397, %v2479
        %v2488 = vadd.f32 %v2398, %v2475
        %v2489 = vadd.f32 %v2399, %v2479
        %v2490 = vadd.f32 %v2400, %v2475
        %v2491 = vadd.f32 %v2401, %v2479
        %v2492 = vadd.f32 %v2402, %v2475
        %v2493 = vadd.f32 %v2403, %v2479
        %v2494 = vadd.f32 %v2404, %v2475
        %v2495 = vadd.f32 %v2405, %v2479
        %v2496 = vadd.f32 %v2406, %v2475
        %v2497 = vadd.f32 %v2407, %v2479
        %v2498 = vadd.f32 %v2408, %v2475
        %v2499 = vadd.f32 %v2409, %v2479
        %v2500 = vadd.f32 %v2410, %v2475
        %v2501 = vadd.f32 %v2411, %v2479
        %v2502 = vadd.f32 %v2412, %v2475
        %v2503 = vadd.f32 %v2413, %v2479
        %v2504 = vadd.f32 %v2414, %v2475
        %v2505 = vadd.f32 %v2415, %v2479
        %v2506 = vadd.f32 %v2416, %v2475
        %v2507 = vadd.f32 %v2417, %v2479
        %v2508 = vadd.f32 %v2418, %v2475
        %v2509 = vadd.f32 %v2419, %v2479
        %v2510 = vadd.f32 %v2420, %v2475
        %v2511 = vadd.f32 %v2421, %v2479
        %v2512 = vadd.f32 %v2422, %v2475
        %v2513 = vadd.f32 %v2423, %v2479
        %v2514 = vadd.f32 %v2424, %v2475
        %v2515 = vadd.f32 %v2425, %v2479
        %v2516 = vadd.f32 %v2426, %v2475
        %v2517 = vadd.f32 %v2427, %v2479
        %v2518 = vadd.f32 %v2428, %v2475
        %v2519 = vadd.f32 %v2429, %v2479
        %v2520 = vadd.f32 %v2430, %v2475
        %v2521 = vadd.f32 %v2431, %v2479
        %v2522 = vadd.f32 %v2432, %v2475
        %v2523 = vadd.f32 %v2433, %v2479
        %v2524 = vadd.f32 %v2434, %v2475
        %v2525 = vadd.f32 %v2435, %v2479
        %v2526 = vadd.f32 %v2436, %v2475
        %v2527 = vadd.f32 %v2437, %v2479
        %v2528 = vadd.f32 %v2438, %v2475
        %v2529 = vadd.f32 %v2439, %v2479
        %v2530 = vadd.f32 %v2440, %v2475
        %v2531 = vadd.f32 %v2441, %v2479
        %v2532 = vadd.f32 %v2442, %v2475
        %v2533 = vadd.f32 %v2443, %v2479
        %v2534 = vadd.f32 %v2444, %v2475
        %v2535 = vadd.f32 %v2445, %v2479
        %v2536 = vadd.f32 %v2446, %v2475
        %v2537 = vadd.f32 %v2447, %v2479
        %v2538 = vadd.f32 %v2448, %v2475
        %v2539 = vadd.f32 %v2449, %v2479
        %v2540 = vadd.f32 %v2450, %v2475
        %v2541 = vadd.f32 %v2451, %v2479
        %v2542 = vadd.f32 %v2452, %v2475
        %v2543 = vadd.f32 %v2453, %v2479
        %v2544 = vadd.f32 %v2454, %v2475
        %v2545 = vadd.f32 %v2455, %v2479
        %v2546 = vadd.f32 %v2456, %v2475
        %v2547 = vadd.f32 %v2457, %v2479
        %v2548 = vadd.f32 %v2458, %v2475
        %v2549 = vadd.f32 %v2459, %v2479
        %v2550 = vadd.f32 %v2460, %v2475
        %v2551 = vadd.f32 %v2461, %v2479
        %v2552 = vadd.f32 %v2462, %v2475
        %v2553 = vadd.f32 %v2463, %v2479
        %v2554 = vadd.f32 %v2464, %v2475
        %v2555 = vadd.f32 %v2465, %v2479
        %v2556 = vadd.f32 %v2466, %v2475
        %v2557 = vadd.f32 %v2467, %v2479
        %v2558 = vadd.f32 %v2468, %v2475
        %v2559 = vadd.f32 %v2469, %v2479
        %v2560 = vtanh.pop %v2482
        %v2561 = vtanh.pop %v2483
        %v2562 = vtanh.pop %v2484
        %v2563 = vtanh.pop %v2485
        %v2564 = vtanh.pop %v2486
        %v2565 = vtanh.pop %v2487
        %v2566 = vtanh.pop %v2488
        %v2567 = vtanh.pop %v2489
        %v2568 = vtanh.pop %v2490
        %v2569 = vtanh.pop %v2491
        %v2570 = vtanh.pop %v2492
        %v2571 = vtanh.pop %v2493
        %v2572 = vtanh.pop %v2494
        %v2573 = vtanh.pop %v2495
        %v2574 = vtanh.pop %v2496
        %v2575 = vtanh.pop %v2497
        %v2576 = vtanh.pop %v2498
        %v2577 = vtanh.pop %v2499
        %v2578 = vtanh.pop %v2500
        %v2579 = vtanh.pop %v2501
        %v2580 = vtanh.pop %v2502
        %v2581 = vtanh.pop %v2503
        %v2582 = vtanh.pop %v2504
        %v2583 = vtanh.pop %v2505
        %v2584 = vtanh.pop %v2506
        %v2585 = vtanh.pop %v2507
        %v2586 = vtanh.pop %v2508
        %v2587 = vtanh.pop %v2509
        %v2588 = vtanh.pop %v2510
        %v2589 = vtanh.pop %v2511
        %v2590 = vtanh.pop %v2512
        %v2591 = vtanh.pop %v2513
        %v2592 = vtanh.pop %v2514
        %v2593 = vtanh.pop %v2515
        %v2594 = vtanh.pop %v2516
        %v2595 = vtanh.pop %v2517
        %v2596 = vtanh.pop %v2518
        %v2597 = vtanh.pop %v2519
        %v2598 = vtanh.pop %v2520
        %v2599 = vtanh.pop %v2521
        %v2600 = vtanh.pop %v2522
        %v2601 = vtanh.pop %v2523
        %v2602 = vtanh.pop %v2524
        %v2603 = vtanh.pop %v2525
        %v2604 = vtanh.pop %v2526
        %v2605 = vtanh.pop %v2527
        %v2606 = vtanh.pop %v2528
        %v2607 = vtanh.pop %v2529
        %v2608 = vtanh.pop %v2530
        %v2609 = vtanh.pop %v2531
        %v2610 = vtanh.pop %v2532
        %v2611 = vtanh.pop %v2533
        %v2612 = vtanh.pop %v2534
        %v2613 = vtanh.pop %v2535
        %v2614 = vtanh.pop %v2536
        %v2615 = vtanh.pop %v2537
        %v2616 = vtanh.pop %v2538
        %v2617 = vtanh.pop %v2539
        %v2618 = vtanh.pop %v2540
        %v2619 = vtanh.pop %v2541
        %v2620 = vtanh.pop %v2542
        %v2621 = vtanh.pop %v2543
        %v2622 = vtanh.pop %v2544
        %v2623 = vtanh.pop %v2545
        %v2624 = vtanh.pop %v2546
        %v2625 = vtanh.pop %v2547
        %v2626 = vtanh.pop %v2548
        %v2627 = vtanh.pop %v2549
        %v2628 = vtanh.pop %v2550
        %v2629 = vtanh.pop %v2551
        %v2630 = vtanh.pop %v2552
        %v2631 = vtanh.pop %v2553
        %v2632 = vtanh.pop %v2554
        %v2633 = vtanh.pop %v2555
        %v2634 = vtanh.pop %v2556
        %v2635 = vtanh.pop %v2557
        %v2636 = vtanh.pop %v2558
        %v2637 = vtanh.pop %v2559
        %2638 = vst [vmem:[#allocation2] sm:$0xff] %v2560
        %vm2639 = vcmask 326656
        %2640 = vst.msk [vmem:[#allocation2 + $0x8] sm:$0xff] %vm2639, %v2561
        %2641 = vst [vmem:[#allocation2 + $0x10] sm:$0xff] %v2562
        %2642 = vst.msk [vmem:[#allocation2 + $0x18] sm:$0xff] %vm2639, %v2563
        %2643 = vst [vmem:[#allocation2 + $0x20] sm:$0xff] %v2564
        %2644 = vst.msk [vmem:[#allocation2 + $0x28] sm:$0xff] %vm2639, %v2565
        %2645 = vst [vmem:[#allocation2 + $0x30] sm:$0xff] %v2566
        %2646 = vst.msk [vmem:[#allocation2 + $0x38] sm:$0xff] %vm2639, %v2567
        %2647 = vst [vmem:[#allocation2 + $0x40] sm:$0xff] %v2568
        %2648 = vst.msk [vmem:[#allocation2 + $0x48] sm:$0xff] %vm2639, %v2569
        %2649 = vst [vmem:[#allocation2 + $0x50] sm:$0xff] %v2570
        %2650 = vst.msk [vmem:[#allocation2 + $0x58] sm:$0xff] %vm2639, %v2571
        %2651 = vst [vmem:[#allocation2 + $0x60] sm:$0xff] %v2572
        %2652 = vst.msk [vmem:[#allocation2 + $0x68] sm:$0xff] %vm2639, %v2573
        %2653 = vst [vmem:[#allocation2 + $0x70] sm:$0xff] %v2574
        %2654 = vst.msk [vmem:[#allocation2 + $0x78] sm:$0xff] %vm2639, %v2575
        %2655 = vst [vmem:[#allocation2 + $0x80] sm:$0xff] %v2576
        %2656 = vst.msk [vmem:[#allocation2 + $0x88] sm:$0xff] %vm2639, %v2577
        %2657 = vst [vmem:[#allocation2 + $0x90] sm:$0xff] %v2578
        %2658 = vst.msk [vmem:[#allocation2 + $0x98] sm:$0xff] %vm2639, %v2579
        %2659 = vst [vmem:[#allocation2 + $0xa0] sm:$0xff] %v2580
        %2660 = vst.msk [vmem:[#allocation2 + $0xa8] sm:$0xff] %vm2639, %v2581
        %2661 = vst [vmem:[#allocation2 + $0xb0] sm:$0xff] %v2582
        %2662 = vst.msk [vmem:[#allocation2 + $0xb8] sm:$0xff] %vm2639, %v2583
        %2663 = vst [vmem:[#allocation2 + $0xc0] sm:$0xff] %v2584
        %2664 = vst.msk [vmem:[#allocation2 + $0xc8] sm:$0xff] %vm2639, %v2585
        %2665 = vst [vmem:[#allocation2 + $0xd0] sm:$0xff] %v2586
        %2666 = vst.msk [vmem:[#allocation2 + $0xd8] sm:$0xff] %vm2639, %v2587
        %2667 = vst [vmem:[#allocation2 + $0xe0] sm:$0xff] %v2588
        %2668 = vst.msk [vmem:[#allocation2 + $0xe8] sm:$0xff] %vm2639, %v2589
        %2669 = vst [vmem:[#allocation2 + $0xf0] sm:$0xff] %v2590
        %2670 = vst.msk [vmem:[#allocation2 + $0xf8] sm:$0xff] %vm2639, %v2591
        %2671 = vst [vmem:[#allocation2 + $0x100] sm:$0xff] %v2592
        %2672 = vst.msk [vmem:[#allocation2 + $0x108] sm:$0xff] %vm2639, %v2593
        %2673 = vst [vmem:[#allocation2 + $0x110] sm:$0xff] %v2594
        %2674 = vst.msk [vmem:[#allocation2 + $0x118] sm:$0xff] %vm2639, %v2595
        %2675 = vst [vmem:[#allocation2 + $0x120] sm:$0xff] %v2596
        %2676 = vst.msk [vmem:[#allocation2 + $0x128] sm:$0xff] %vm2639, %v2597
        %2677 = vst [vmem:[#allocation2 + $0x130] sm:$0xff] %v2598
        %2678 = vst.msk [vmem:[#allocation2 + $0x138] sm:$0xff] %vm2639, %v2599
        %2679 = vst [vmem:[#allocation2 + $0x140] sm:$0xff] %v2600
        %2680 = vst.msk [vmem:[#allocation2 + $0x148] sm:$0xff] %vm2639, %v2601
        %2681 = vst [vmem:[#allocation2 + $0x150] sm:$0xff] %v2602
        %2682 = vst.msk [vmem:[#allocation2 + $0x158] sm:$0xff] %vm2639, %v2603
        %2683 = vst [vmem:[#allocation2 + $0x160] sm:$0xff] %v2604
        %2684 = vst.msk [vmem:[#allocation2 + $0x168] sm:$0xff] %vm2639, %v2605
        %2685 = vst [vmem:[#allocation2 + $0x170] sm:$0xff] %v2606
        %2686 = vst.msk [vmem:[#allocation2 + $0x178] sm:$0xff] %vm2639, %v2607
        %2687 = vst [vmem:[#allocation2 + $0x180] sm:$0xff] %v2608
        %2688 = vst.msk [vmem:[#allocation2 + $0x188] sm:$0xff] %vm2639, %v2609
        %2689 = vst [vmem:[#allocation2 + $0x190] sm:$0xff] %v2610
        %2690 = vst.msk [vmem:[#allocation2 + $0x198] sm:$0xff] %vm2639, %v2611
        %2691 = vst [vmem:[#allocation2 + $0x1a0] sm:$0xff] %v2612
        %2692 = vst.msk [vmem:[#allocation2 + $0x1a8] sm:$0xff] %vm2639, %v2613
        %2693 = vst [vmem:[#allocation2 + $0x1b0] sm:$0xff] %v2614
        %2694 = vst.msk [vmem:[#allocation2 + $0x1b8] sm:$0xff] %vm2639, %v2615
        %2695 = vst [vmem:[#allocation2 + $0x1c0] sm:$0xff] %v2616
        %2696 = vst.msk [vmem:[#allocation2 + $0x1c8] sm:$0xff] %vm2639, %v2617
        %2697 = vst [vmem:[#allocation2 + $0x1d0] sm:$0xff] %v2618
        %2698 = vst.msk [vmem:[#allocation2 + $0x1d8] sm:$0xff] %vm2639, %v2619
        %2699 = vst [vmem:[#allocation2 + $0x1e0] sm:$0xff] %v2620
        %2700 = vst.msk [vmem:[#allocation2 + $0x1e8] sm:$0xff] %vm2639, %v2621
        %2701 = vst [vmem:[#allocation2 + $0x1f0] sm:$0xff] %v2622
        %2702 = vst.msk [vmem:[#allocation2 + $0x1f8] sm:$0xff] %vm2639, %v2623
        %2703 = vst [vmem:[#allocation2 + $0x200] sm:$0xff] %v2624
        %2704 = vst.msk [vmem:[#allocation2 + $0x208] sm:$0xff] %vm2639, %v2625
        %2705 = vst [vmem:[#allocation2 + $0x210] sm:$0xff] %v2626
        %2706 = vst.msk [vmem:[#allocation2 + $0x218] sm:$0xff] %vm2639, %v2627
        %2707 = vst [vmem:[#allocation2 + $0x220] sm:$0xff] %v2628
        %2708 = vst.msk [vmem:[#allocation2 + $0x228] sm:$0xff] %vm2639, %v2629
        %2709 = vst [vmem:[#allocation2 + $0x230] sm:$0xff] %v2630
        %2710 = vst.msk [vmem:[#allocation2 + $0x238] sm:$0xff] %vm2639, %v2631
        %2711 = vst [vmem:[#allocation2 + $0x240] sm:$0xff] %v2632
        %2712 = vst.msk [vmem:[#allocation2 + $0x248] sm:$0xff] %vm2639, %v2633
        %2713 = vst [vmem:[#allocation2 + $0x250] sm:$0xff] %v2634
        %2714 = vst.msk [vmem:[#allocation2 + $0x258] sm:$0xff] %vm2639, %v2635
        %2715 = vst [vmem:[#allocation2 + $0x260] sm:$0xff] %v2636
        %2716 = vst.msk [vmem:[#allocation2 + $0x268] sm:$0xff] %vm2639, %v2637
        %2717 = vst [vmem:[#allocation2 + $0x270] sm:$0xff] 0.0
        %2718 = vst.msk [vmem:[#allocation2 + $0x278] sm:$0xff] %vm2639, 0.0
        %2719 = vst [vmem:[#allocation2 + $0x280] sm:$0xff] 0.0
        %2720 = vst.msk [vmem:[#allocation2 + $0x288] sm:$0xff] %vm2639, 0.0
        %v2721 = vld [vmem:[#allocation2] sm:$0xff]
        %v2722 = vld [vmem:[#allocation2 + $0x8] sm:$0xff]
        %v2723 = vld [vmem:[#allocation2 + $0x10] sm:$0xff]
        %v2724 = vld [vmem:[#allocation2 + $0x18] sm:$0xff]
        %v2725 = vld [vmem:[#allocation2 + $0x20] sm:$0xff]
        %v2726 = vld [vmem:[#allocation2 + $0x28] sm:$0xff]
        %v2727 = vld [vmem:[#allocation2 + $0x30] sm:$0xff]
        %v2728 = vld [vmem:[#allocation2 + $0x38] sm:$0xff]
        %v2729 = vld [vmem:[#allocation2 + $0x40] sm:$0xff]
        %v2730 = vld [vmem:[#allocation2 + $0x48] sm:$0xff]
        %v2731 = vld [vmem:[#allocation2 + $0x50] sm:$0xff]
        %v2732 = vld [vmem:[#allocation2 + $0x58] sm:$0xff]
        %v2733 = vld [vmem:[#allocation2 + $0x60] sm:$0xff]
        %v2734 = vld [vmem:[#allocation2 + $0x68] sm:$0xff]
        %v2735 = vld [vmem:[#allocation2 + $0x70] sm:$0xff]
        %v2736 = vld [vmem:[#allocation2 + $0x78] sm:$0xff]
        %v2737 = vld [vmem:[#allocation2 + $0x80] sm:$0xff]
        %v2738 = vld [vmem:[#allocation2 + $0x88] sm:$0xff]
        %v2739 = vld [vmem:[#allocation2 + $0x90] sm:$0xff]
        %v2740 = vld [vmem:[#allocation2 + $0x98] sm:$0xff]
        %v2741 = vld [vmem:[#allocation2 + $0xa0] sm:$0xff]
        %v2742 = vld [vmem:[#allocation2 + $0xa8] sm:$0xff]
        %v2743 = vld [vmem:[#allocation2 + $0xb0] sm:$0xff]
        %v2744 = vld [vmem:[#allocation2 + $0xb8] sm:$0xff]
        %v2745 = vld [vmem:[#allocation2 + $0xc0] sm:$0xff]
        %v2746 = vld [vmem:[#allocation2 + $0xc8] sm:$0xff]
        %v2747 = vld [vmem:[#allocation2 + $0xd0] sm:$0xff]
        %v2748 = vld [vmem:[#allocation2 + $0xd8] sm:$0xff]
        %v2749 = vld [vmem:[#allocation2 + $0xe0] sm:$0xff]
        %v2750 = vld [vmem:[#allocation2 + $0xe8] sm:$0xff]
        %v2751 = vld [vmem:[#allocation2 + $0xf0] sm:$0xff]
        %v2752 = vld [vmem:[#allocation2 + $0xf8] sm:$0xff]
        %v2753 = vld [vmem:[#allocation2 + $0x100] sm:$0xff]
        %v2754 = vld [vmem:[#allocation2 + $0x108] sm:$0xff]
        %v2755 = vld [vmem:[#allocation2 + $0x110] sm:$0xff]
        %v2756 = vld [vmem:[#allocation2 + $0x118] sm:$0xff]
        %v2757 = vld [vmem:[#allocation2 + $0x120] sm:$0xff]
        %v2758 = vld [vmem:[#allocation2 + $0x128] sm:$0xff]
        %v2759 = vld [vmem:[#allocation2 + $0x130] sm:$0xff]
        %v2760 = vld [vmem:[#allocation2 + $0x138] sm:$0xff]
        %v2761 = vld [vmem:[#allocation2 + $0x140] sm:$0xff]
        %v2762 = vld [vmem:[#allocation2 + $0x148] sm:$0xff]
        %v2763 = vld [vmem:[#allocation2 + $0x150] sm:$0xff]
        %v2764 = vld [vmem:[#allocation2 + $0x158] sm:$0xff]
        %v2765 = vld [vmem:[#allocation2 + $0x160] sm:$0xff]
        %v2766 = vld [vmem:[#allocation2 + $0x168] sm:$0xff]
        %v2767 = vld [vmem:[#allocation2 + $0x170] sm:$0xff]
        %v2768 = vld [vmem:[#allocation2 + $0x178] sm:$0xff]
        %v2769 = vld [vmem:[#allocation2 + $0x180] sm:$0xff]
        %v2770 = vld [vmem:[#allocation2 + $0x188] sm:$0xff]
        %v2771 = vld [vmem:[#allocation2 + $0x190] sm:$0xff]
        %v2772 = vld [vmem:[#allocation2 + $0x198] sm:$0xff]
        %v2773 = vld [vmem:[#allocation2 + $0x1a0] sm:$0xff]
        %v2774 = vld [vmem:[#allocation2 + $0x1a8] sm:$0xff]
        %v2775 = vld [vmem:[#allocation2 + $0x1b0] sm:$0xff]
        %v2776 = vld [vmem:[#allocation2 + $0x1b8] sm:$0xff]
        %v2777 = vld [vmem:[#allocation2 + $0x1c0] sm:$0xff]
        %v2778 = vld [vmem:[#allocation2 + $0x1c8] sm:$0xff]
        %v2779 = vld [vmem:[#allocation2 + $0x1d0] sm:$0xff]
        %v2780 = vld [vmem:[#allocation2 + $0x1d8] sm:$0xff]
        %v2781 = vld [vmem:[#allocation2 + $0x1e0] sm:$0xff]
        %v2782 = vld [vmem:[#allocation2 + $0x1e8] sm:$0xff]
        %v2783 = vld [vmem:[#allocation2 + $0x1f0] sm:$0xff]
        %v2784 = vld [vmem:[#allocation2 + $0x1f8] sm:$0xff]
        %v2785 = vld [vmem:[#allocation2 + $0x200] sm:$0xff]
        %v2786 = vld [vmem:[#allocation2 + $0x208] sm:$0xff]
        %v2787 = vld [vmem:[#allocation2 + $0x210] sm:$0xff]
        %v2788 = vld [vmem:[#allocation2 + $0x218] sm:$0xff]
        %v2789 = vld [vmem:[#allocation2 + $0x220] sm:$0xff]
        %v2790 = vld [vmem:[#allocation2 + $0x228] sm:$0xff]
        %v2791 = vld [vmem:[#allocation2 + $0x230] sm:$0xff]
        %v2792 = vld [vmem:[#allocation2 + $0x238] sm:$0xff]
        %v2793 = vld [vmem:[#allocation2 + $0x240] sm:$0xff]
        %v2794 = vld [vmem:[#allocation2 + $0x248] sm:$0xff]
        %v2795 = vld [vmem:[#allocation2 + $0x250] sm:$0xff]
        %v2796 = vld [vmem:[#allocation2 + $0x258] sm:$0xff]
        %v2797 = vld [vmem:[#allocation2 + $0x260] sm:$0xff]
        %v2798 = vld [vmem:[#allocation2 + $0x268] sm:$0xff]
        %v2799 = vpack.c.bf16 %v2723, %v2721
        %v2800 = vpack.c.bf16 %v2724, %v2722
        %v2801 = vpack.c.bf16 %v2727, %v2725
        %v2802 = vpack.c.bf16 %v2728, %v2726
        %v2803 = vpack.c.bf16 %v2731, %v2729
        %v2804 = vpack.c.bf16 %v2732, %v2730
        %v2805 = vpack.c.bf16 %v2735, %v2733
        %v2806 = vpack.c.bf16 %v2736, %v2734
        %v2807 = vpack.c.bf16 %v2739, %v2737
        %v2808 = vpack.c.bf16 %v2740, %v2738
        %v2809 = vpack.c.bf16 %v2743, %v2741
        %v2810 = vpack.c.bf16 %v2744, %v2742
        %v2811 = vpack.c.bf16 %v2747, %v2745
        %v2812 = vpack.c.bf16 %v2748, %v2746
        %v2813 = vpack.c.bf16 %v2751, %v2749
        %v2814 = vpack.c.bf16 %v2752, %v2750
        %v2815 = vpack.c.bf16 %v2755, %v2753
        %v2816 = vpack.c.bf16 %v2756, %v2754
        %v2817 = vpack.c.bf16 %v2759, %v2757
        %v2818 = vpack.c.bf16 %v2760, %v2758
        %v2819 = vpack.c.bf16 %v2763, %v2761
        %v2820 = vpack.c.bf16 %v2764, %v2762
        %v2821 = vpack.c.bf16 %v2767, %v2765
        %v2822 = vpack.c.bf16 %v2768, %v2766
        %v2823 = vpack.c.bf16 %v2771, %v2769
        %v2824 = vpack.c.bf16 %v2772, %v2770
        %v2825 = vpack.c.bf16 %v2775, %v2773
        %v2826 = vpack.c.bf16 %v2776, %v2774
        %v2827 = vpack.c.bf16 %v2779, %v2777
        %v2828 = vpack.c.bf16 %v2780, %v2778
        %v2829 = vpack.c.bf16 %v2783, %v2781
        %v2830 = vpack.c.bf16 %v2784, %v2782
        %v2831 = vpack.c.bf16 %v2787, %v2785
        %v2832 = vpack.c.bf16 %v2788, %v2786
        %v2833 = vpack.c.bf16 %v2791, %v2789
        %v2834 = vpack.c.bf16 %v2792, %v2790
        %v2835 = vpack.c.bf16 %v2795, %v2793
        %v2836 = vpack.c.bf16 %v2796, %v2794
        %v2837 = vpack.c.bf16 %v2797, %v2797
        %v2838 = vpack.c.bf16 %v2798, %v2798
        %v2839 = vld [vmem:[%s3] sm:$0xff]
        %v2840 = vld [vmem:[%s3 + $0x8] sm:$0xff]
        %v2841 = vld [vmem:[%s3 + $0x10] sm:$0xff]
        %v2842 = vld [vmem:[%s3 + $0x18] sm:$0xff]
        %v2843 = vld [vmem:[%s3 + $0x20] sm:$0xff]
        %v2844 = vld [vmem:[%s3 + $0x28] sm:$0xff]
        %v2845 = vld [vmem:[%s3 + $0x30] sm:$0xff]
        %v2846 = vld [vmem:[%s3 + $0x38] sm:$0xff]
        %v2847 = vld [vmem:[%s3 + $0x40] sm:$0xff]
        %v2848 = vld [vmem:[%s3 + $0x48] sm:$0xff]
        %v2849 = vld [vmem:[%s3 + $0x50] sm:$0xff]
        %v2850 = vld [vmem:[%s3 + $0x58] sm:$0xff]
        %v2851 = vld [vmem:[%s3 + $0x60] sm:$0xff]
        %v2852 = vld [vmem:[%s3 + $0x68] sm:$0xff]
        %v2853 = vld [vmem:[%s3 + $0x70] sm:$0xff]
        %v2854 = vld [vmem:[%s3 + $0x78] sm:$0xff]
        %v2855 = vld [vmem:[%s3 + $0x80] sm:$0xff]
        %v2856 = vld [vmem:[%s3 + $0x88] sm:$0xff]
        %v2857 = vld [vmem:[%s3 + $0x90] sm:$0xff]
        %v2858 = vld [vmem:[%s3 + $0x98] sm:$0xff]
        %v2859 = vld [vmem:[%s3 + $0xa0] sm:$0xff]
        %v2860 = vld [vmem:[#allocation2] sm:$0xfe]
        %v2861 = vld [vmem:[#allocation2 + $0x8] sm:$0xfe]
        %v2862 = vld [vmem:[#allocation2 + $0x270] sm:$0x1]
        %v2863 = vld [vmem:[#allocation2 + $0x278] sm:$0x1]
        %v2864 = vpack.c.bf16 %v2723, %v2860
        %v2865 = vpack.c.bf16 %v2724, %v2861
        %v2866 = vpack.c.bf16 %v2862, %v2797
        %v2867 = vpack.c.bf16 %v2863, %v2798
        %s2868 = scalar_lea.vmem %s3, 168
        %v2869 = vld [vmem:[%s2868] sm:$0xff]
        %v2870 = vld [vmem:[%s2868 + $0x8] sm:$0xff]
        %v2871 = vld [vmem:[%s2868 + $0x10] sm:$0xff]
        %v2872 = vld [vmem:[%s2868 + $0x18] sm:$0xff]
        %v2873 = vld [vmem:[%s2868 + $0x20] sm:$0xff]
        %v2874 = vld [vmem:[%s2868 + $0x28] sm:$0xff]
        %v2875 = vld [vmem:[%s2868 + $0x30] sm:$0xff]
        %v2876 = vld [vmem:[%s2868 + $0x38] sm:$0xff]
        %v2877 = vld [vmem:[%s2868 + $0x40] sm:$0xff]
        %v2878 = vld [vmem:[%s2868 + $0x48] sm:$0xff]
        %v2879 = vld [vmem:[%s2868 + $0x50] sm:$0xff]
        %v2880 = vld [vmem:[%s2868 + $0x58] sm:$0xff]
        %v2881 = vld [vmem:[%s2868 + $0x60] sm:$0xff]
        %v2882 = vld [vmem:[%s2868 + $0x68] sm:$0xff]
        %v2883 = vld [vmem:[%s2868 + $0x70] sm:$0xff]
        %v2884 = vld [vmem:[%s2868 + $0x78] sm:$0xff]
        %v2885 = vld [vmem:[%s2868 + $0x80] sm:$0xff]
        %v2886 = vld [vmem:[%s2868 + $0x88] sm:$0xff]
        %v2887 = vld [vmem:[%s2868 + $0x90] sm:$0xff]
        %v2888 = vld [vmem:[%s2868 + $0x98] sm:$0xff]
        %v2889 = vld [vmem:[%s2868 + $0xa0] sm:$0xff]
        %vm2890 = vsmask.f32 7424
        %v2892 = vshrl.u32 %v2864, 16
        %v2894 = vshll.u32 %v2864, 16
        %v2896 = vrot.slane %v2894, 1
        %v2897 = vor.u32 %v2892, %v2896
        %v2899 = vshll.u32 %v2801, 16
        %v2901 = vrot.slane %v2899, 1
        %v2902 = vsel %vm2890, %v2897, %v2901
        %v2904 = vshrl.u32 %v2865, 16
        %v2906 = vshll.u32 %v2865, 16
        %v2908 = vrot.slane %v2906, 1
        %v2909 = vor.u32 %v2904, %v2908
        %v2911 = vshll.u32 %v2802, 16
        %v2913 = vrot.slane %v2911, 1
        %v2914 = vsel %vm2890, %v2909, %v2913
        %v2915 = vshrl.u32 %v2801, 16
        %v2917 = vor.u32 %v2915, %v2901
        %v2919 = vshll.u32 %v2803, 16
        %v2921 = vrot.slane %v2919, 1
        %v2922 = vsel %vm2890, %v2917, %v2921
        %v2923 = vshrl.u32 %v2802, 16
        %v2925 = vor.u32 %v2923, %v2913
        %v2927 = vshll.u32 %v2804, 16
        %v2929 = vrot.slane %v2927, 1
        %v2930 = vsel %vm2890, %v2925, %v2929
        %v2931 = vshrl.u32 %v2803, 16
        %v2933 = vor.u32 %v2931, %v2921
        %v2935 = vshll.u32 %v2805, 16
        %v2937 = vrot.slane %v2935, 1
        %v2938 = vsel %vm2890, %v2933, %v2937
        %v2939 = vshrl.u32 %v2804, 16
        %v2941 = vor.u32 %v2939, %v2929
        %v2943 = vshll.u32 %v2806, 16
        %v2945 = vrot.slane %v2943, 1
        %v2946 = vsel %vm2890, %v2941, %v2945
        %v2947 = vshrl.u32 %v2805, 16
        %v2949 = vor.u32 %v2947, %v2937
        %v2951 = vshll.u32 %v2807, 16
        %v2953 = vrot.slane %v2951, 1
        %v2954 = vsel %vm2890, %v2949, %v2953
        %v2955 = vshrl.u32 %v2806, 16
        %v2957 = vor.u32 %v2955, %v2945
        %v2959 = vshll.u32 %v2808, 16
        %v2961 = vrot.slane %v2959, 1
        %v2962 = vsel %vm2890, %v2957, %v2961
        %v2963 = vshrl.u32 %v2807, 16
        %v2965 = vor.u32 %v2963, %v2953
        %v2967 = vshll.u32 %v2809, 16
        %v2969 = vrot.slane %v2967, 1
        %v2970 = vsel %vm2890, %v2965, %v2969
        %v2971 = vshrl.u32 %v2808, 16
        %v2973 = vor.u32 %v2971, %v2961
        %v2975 = vshll.u32 %v2810, 16
        %v2977 = vrot.slane %v2975, 1
        %v2978 = vsel %vm2890, %v2973, %v2977
        %v2979 = vshrl.u32 %v2809, 16
        %v2981 = vor.u32 %v2979, %v2969
        %v2983 = vshll.u32 %v2811, 16
        %v2985 = vrot.slane %v2983, 1
        %v2986 = vsel %vm2890, %v2981, %v2985
        %v2987 = vshrl.u32 %v2810, 16
        %v2989 = vor.u32 %v2987, %v2977
        %v2991 = vshll.u32 %v2812, 16
        %v2993 = vrot.slane %v2991, 1
        %v2994 = vsel %vm2890, %v2989, %v2993
        %v2995 = vshrl.u32 %v2811, 16
        %v2997 = vor.u32 %v2995, %v2985
        %v2999 = vshll.u32 %v2813, 16
        %v3001 = vrot.slane %v2999, 1
        %v3002 = vsel %vm2890, %v2997, %v3001
        %v3003 = vshrl.u32 %v2812, 16
        %v3005 = vor.u32 %v3003, %v2993
        %v3007 = vshll.u32 %v2814, 16
        %v3009 = vrot.slane %v3007, 1
        %v3010 = vsel %vm2890, %v3005, %v3009
        %v3011 = vshrl.u32 %v2813, 16
        %v3013 = vor.u32 %v3011, %v3001
        %v3015 = vshll.u32 %v2815, 16
        %v3017 = vrot.slane %v3015, 1
        %v3018 = vsel %vm2890, %v3013, %v3017
        %v3019 = vshrl.u32 %v2814, 16
        %v3021 = vor.u32 %v3019, %v3009
        %v3023 = vshll.u32 %v2816, 16
        %v3025 = vrot.slane %v3023, 1
        %v3026 = vsel %vm2890, %v3021, %v3025
        %v3027 = vshrl.u32 %v2815, 16
        %v3029 = vor.u32 %v3027, %v3017
        %v3031 = vshll.u32 %v2817, 16
        %v3033 = vrot.slane %v3031, 1
        %v3034 = vsel %vm2890, %v3029, %v3033
        %v3035 = vshrl.u32 %v2816, 16
        %v3037 = vor.u32 %v3035, %v3025
        %v3039 = vshll.u32 %v2818, 16
        %v3041 = vrot.slane %v3039, 1
        %v3042 = vsel %vm2890, %v3037, %v3041
        %v3043 = vshrl.u32 %v2817, 16
        %v3045 = vor.u32 %v3043, %v3033
        %v3047 = vshll.u32 %v2819, 16
        %v3049 = vrot.slane %v3047, 1
        %v3050 = vsel %vm2890, %v3045, %v3049
        %v3051 = vshrl.u32 %v2818, 16
        %v3053 = vor.u32 %v3051, %v3041
        %v3055 = vshll.u32 %v2820, 16
        %v3057 = vrot.slane %v3055, 1
        %v3058 = vsel %vm2890, %v3053, %v3057
        %v3059 = vshrl.u32 %v2819, 16
        %v3061 = vor.u32 %v3059, %v3049
        %v3063 = vshll.u32 %v2821, 16
        %v3065 = vrot.slane %v3063, 1
        %v3066 = vsel %vm2890, %v3061, %v3065
        %v3067 = vshrl.u32 %v2820, 16
        %v3069 = vor.u32 %v3067, %v3057
        %v3071 = vshll.u32 %v2822, 16
        %v3073 = vrot.slane %v3071, 1
        %v3074 = vsel %vm2890, %v3069, %v3073
        %v3075 = vshrl.u32 %v2821, 16
        %v3077 = vor.u32 %v3075, %v3065
        %v3079 = vshll.u32 %v2823, 16
        %v3081 = vrot.slane %v3079, 1
        %v3082 = vsel %vm2890, %v3077, %v3081
        %v3083 = vshrl.u32 %v2822, 16
        %v3085 = vor.u32 %v3083, %v3073
        %v3087 = vshll.u32 %v2824, 16
        %v3089 = vrot.slane %v3087, 1
        %v3090 = vsel %vm2890, %v3085, %v3089
        %v3091 = vshrl.u32 %v2823, 16
        %v3093 = vor.u32 %v3091, %v3081
        %v3095 = vshll.u32 %v2825, 16
        %v3097 = vrot.slane %v3095, 1
        %v3098 = vsel %vm2890, %v3093, %v3097
        %v3099 = vshrl.u32 %v2824, 16
        %v3101 = vor.u32 %v3099, %v3089
        %v3103 = vshll.u32 %v2826, 16
        %v3105 = vrot.slane %v3103, 1
        %v3106 = vsel %vm2890, %v3101, %v3105
        %v3107 = vshrl.u32 %v2825, 16
        %v3109 = vor.u32 %v3107, %v3097
        %v3111 = vshll.u32 %v2827, 16
        %v3113 = vrot.slane %v3111, 1
        %v3114 = vsel %vm2890, %v3109, %v3113
        %v3115 = vshrl.u32 %v2826, 16
        %v3117 = vor.u32 %v3115, %v3105
        %v3119 = vshll.u32 %v2828, 16
        %v3121 = vrot.slane %v3119, 1
        %v3122 = vsel %vm2890, %v3117, %v3121
        %v3123 = vshrl.u32 %v2827, 16
        %v3125 = vor.u32 %v3123, %v3113
        %v3127 = vshll.u32 %v2829, 16
        %v3129 = vrot.slane %v3127, 1
        %v3130 = vsel %vm2890, %v3125, %v3129
        %v3131 = vshrl.u32 %v2828, 16
        %v3133 = vor.u32 %v3131, %v3121
        %v3135 = vshll.u32 %v2830, 16
        %v3137 = vrot.slane %v3135, 1
        %v3138 = vsel %vm2890, %v3133, %v3137
        %v3139 = vshrl.u32 %v2829, 16
        %v3141 = vor.u32 %v3139, %v3129
        %v3143 = vshll.u32 %v2831, 16
        %v3145 = vrot.slane %v3143, 1
        %v3146 = vsel %vm2890, %v3141, %v3145
        %v3147 = vshrl.u32 %v2830, 16
        %v3149 = vor.u32 %v3147, %v3137
        %v3151 = vshll.u32 %v2832, 16
        %v3153 = vrot.slane %v3151, 1
        %v3154 = vsel %vm2890, %v3149, %v3153
        %v3155 = vshrl.u32 %v2831, 16
        %v3157 = vor.u32 %v3155, %v3145
        %v3159 = vshll.u32 %v2833, 16
        %v3161 = vrot.slane %v3159, 1
        %v3162 = vsel %vm2890, %v3157, %v3161
        %v3163 = vshrl.u32 %v2832, 16
        %v3165 = vor.u32 %v3163, %v3153
        %v3167 = vshll.u32 %v2834, 16
        %v3169 = vrot.slane %v3167, 1
        %v3170 = vsel %vm2890, %v3165, %v3169
        %v3171 = vshrl.u32 %v2833, 16
        %v3173 = vor.u32 %v3171, %v3161
        %v3175 = vshll.u32 %v2835, 16
        %v3177 = vrot.slane %v3175, 1
        %v3178 = vsel %vm2890, %v3173, %v3177
        %v3179 = vshrl.u32 %v2834, 16
        %v3181 = vor.u32 %v3179, %v3169
        %v3183 = vshll.u32 %v2836, 16
        %v3185 = vrot.slane %v3183, 1
        %v3186 = vsel %vm2890, %v3181, %v3185
        %v3187 = vshrl.u32 %v2835, 16
        %v3189 = vor.u32 %v3187, %v3177
        %v3191 = vshll.u32 %v2866, 16
        %v3193 = vrot.slane %v3191, 1
        %v3194 = vsel %vm2890, %v3189, %v3193
        %v3195 = vshrl.u32 %v2836, 16
        %v3197 = vor.u32 %v3195, %v3185
        %v3199 = vshll.u32 %v2867, 16
        %v3201 = vrot.slane %v3199, 1
        %v3202 = vsel %vm2890, %v3197, %v3201
        %v3203 = vshrl.u32 %v2866, 16
        %v3205 = vor.u32 %v3203, %v3193
        %v3206 = vshrl.u32 %v2867, 16
        %v3208 = vor.u32 %v3206, %v3201
        %v3250 = vunpack.c.l.b16 %v2869
        %v3251 = vunpack.c.h.b16 %v2869
        %v3252 = vunpack.c.l.b16 %v2870
        %v3253 = vunpack.c.h.b16 %v2870
        %v3254 = vunpack.c.l.b16 %v2871
        %v3255 = vunpack.c.h.b16 %v2871
        %v3256 = vunpack.c.l.b16 %v2872
        %v3257 = vunpack.c.h.b16 %v2872
        %v3258 = vunpack.c.l.b16 %v2873
        %v3259 = vunpack.c.h.b16 %v2873
        %v3260 = vunpack.c.l.b16 %v2874
        %v3261 = vunpack.c.h.b16 %v2874
        %v3262 = vunpack.c.l.b16 %v2875
        %v3263 = vunpack.c.h.b16 %v2875
        %v3264 = vunpack.c.l.b16 %v2876
        %v3265 = vunpack.c.h.b16 %v2876
        %v3266 = vunpack.c.l.b16 %v2877
        %v3267 = vunpack.c.h.b16 %v2877
        %v3268 = vunpack.c.l.b16 %v2878
        %v3269 = vunpack.c.h.b16 %v2878
        %v3270 = vunpack.c.l.b16 %v2879
        %v3271 = vunpack.c.h.b16 %v2879
        %v3272 = vunpack.c.l.b16 %v2880
        %v3273 = vunpack.c.h.b16 %v2880
        %v3274 = vunpack.c.l.b16 %v2881
        %v3275 = vunpack.c.h.b16 %v2881
        %v3276 = vunpack.c.l.b16 %v2882
        %v3277 = vunpack.c.h.b16 %v2882
        %v3278 = vunpack.c.l.b16 %v2883
        %v3279 = vunpack.c.h.b16 %v2883
        %v3280 = vunpack.c.l.b16 %v2884
        %v3281 = vunpack.c.h.b16 %v2884
        %v3282 = vunpack.c.l.b16 %v2885
        %v3283 = vunpack.c.h.b16 %v2885
        %v3284 = vunpack.c.l.b16 %v2886
        %v3285 = vunpack.c.h.b16 %v2886
        %v3286 = vunpack.c.l.b16 %v2887
        %v3287 = vunpack.c.h.b16 %v2887
        %v3288 = vunpack.c.l.b16 %v2888
        %v3289 = vunpack.c.h.b16 %v2888
        %v3290 = vunpack.c.l.b16 %v2889
        %v3291 = vunpack.c.h.b16 %v2889
        %v3292 = vpack.c.b16 %v3252, %v3250
        %v3293 = vpack.c.b16 %v3253, %v3251
        %v3294 = vpack.c.b16 %v3256, %v3254
        %v3295 = vpack.c.b16 %v3257, %v3255
        %v3296 = vpack.c.b16 %v3260, %v3258
        %v3297 = vpack.c.b16 %v3261, %v3259
        %v3298 = vpack.c.b16 %v3264, %v3262
        %v3299 = vpack.c.b16 %v3265, %v3263
        %v3300 = vpack.c.b16 %v3268, %v3266
        %v3301 = vpack.c.b16 %v3269, %v3267
        %v3302 = vpack.c.b16 %v3272, %v3270
        %v3303 = vpack.c.b16 %v3273, %v3271
        %v3304 = vpack.c.b16 %v3276, %v3274
        %v3305 = vpack.c.b16 %v3277, %v3275
        %v3306 = vpack.c.b16 %v3280, %v3278
        %v3307 = vpack.c.b16 %v3281, %v3279
        %v3308 = vpack.c.b16 %v3284, %v3282
        %v3309 = vpack.c.b16 %v3285, %v3283
        %v3310 = vpack.c.b16 %v3288, %v3286
        %v3311 = vpack.c.b16 %v3289, %v3287
        %v3312 = vpack.c.b16 %v3290, %v3290
        %v3313 = vpack.c.b16 %v3291, %v3291
        %v3335 = vsel %vm2639, %v2914, 0
        %v3338 = vsel %vm2639, %v2930, 0
        %v3341 = vsel %vm2639, %v2946, 0
        %v3344 = vsel %vm2639, %v2962, 0
        %v3347 = vsel %vm2639, %v2978, 0
        %v3350 = vsel %vm2639, %v2994, 0
        %v3353 = vsel %vm2639, %v3010, 0
        %v3356 = vsel %vm2639, %v3026, 0
        %v3359 = vsel %vm2639, %v3042, 0
        %v3362 = vsel %vm2639, %v3058, 0
        %v3365 = vsel %vm2639, %v3074, 0
        %v3368 = vsel %vm2639, %v3090, 0
        %v3371 = vsel %vm2639, %v3106, 0
        %v3374 = vsel %vm2639, %v3122, 0
        %v3377 = vsel %vm2639, %v3138, 0
        %v3380 = vsel %vm2639, %v3154, 0
        %v3383 = vsel %vm2639, %v3170, 0
        %v3386 = vsel %vm2639, %v3186, 0
        %v3389 = vsel %vm2639, %v3202, 0
        %v3392 = vsel %vm2639, %v3208, 0
        %vm3394 = vcmask 1043456
        %v3396 = vsel %vm3394, %v3312, 0
        %v3399 = vsel %vm3394, %v3313, 0
        %3401 = vmatprep.subr.bf16.mxu0 %v3293
        %3402 = vmatpush1.bf16.msra.mxu0 %v3292
        %3403 = vmatprep.subr.bf16.mxu0 %v3295
        %3404 = vmatpush1.bf16.msra.mxu0 %v3294
        %3405 = vmatprep.subr.bf16.mxu0 %v3297
        %3406 = vmatpush1.bf16.msra.mxu0 %v3296
        %3407 = vmatprep.subr.bf16.mxu0 %v3299
        %3408 = vmatpush1.bf16.msra.mxu0 %v3298
        %3409 = vmatprep.subr.bf16.mxu0 %v3301
        %3410 = vmatpush1.bf16.msra.mxu0 %v3300
        %3411 = vmatprep.subr.bf16.mxu0 %v3303
        %3412 = vmatpush1.bf16.msra.mxu0 %v3302
        %3413 = vmatprep.subr.bf16.mxu0 %v3305
        %3414 = vmatpush1.bf16.msra.mxu0 %v3304
        %3415 = vmatprep.subr.bf16.mxu0 %v3307
        %3416 = vmatpush1.bf16.msra.mxu0 %v3306
        %3417 = vmatprep.subr.bf16.mxu0 %v3309
        %3418 = vmatpush1.bf16.msra.mxu0 %v3308
        %3419 = vmatprep.subr.bf16.mxu0 %v3311
        %3420 = vmatpush1.bf16.msra.mxu0 %v3310
        %3421 = vmatprep.subr.bf16.mxu0 %v3399
        %3422 = vmatpush1.bf16.msra.mxu0 %v3396
        %3423 = vmatprep.subr.bf16.mxu0 0
        %3424 = vmatpush1.bf16.msra.mxu0 0
        %3425 = vmatprep.subr.bf16.mxu0 0
        %3426 = vmatpush1.bf16.msra.mxu0 0
        %3427 = vmatprep.subr.bf16.mxu0 0
        %3428 = vmatpush1.bf16.msra.mxu0 0
        %3429 = vmatprep.subr.bf16.mxu0 0
        %3430 = vmatpush1.bf16.msra.mxu0 0
        %3431 = vmatprep.subr.bf16.mxu0 0
        %3432 = vmatpush1.bf16.msra.mxu0 0
        %3433 = vmatprep.mubr.bf16.mxu0 %v3335
        %3434 = vmatmul.mubr.bf16.gmra.mrb[0].mxu0 %v2902
        %v3435 = vpop.f32.mrb[0].mxu0
        %v3436 = vadd.f32 0.0, %v3435
        %v3437 = vpop.f32.mrb[0].mxu0
        %v3438 = vadd.f32 0.0, %v3437
        %v3439 = vpop.f32.mrb[0].mxu0
        %v3440 = vadd.f32 0.0, %v3439
        %v3441 = vpop.f32.mrb[0].mxu0
        %v3442 = vadd.f32 0.0, %v3441
        %3443 = vmatprep.mubr.bf16.mxu0 %v3338
        %3444 = vmatmul.mubr.bf16.gmra.mrb[0].mxu0 %v2922
        %v3445 = vpop.f32.mrb[0].mxu0
        %v3446 = vadd.f32 0.0, %v3445
        %v3447 = vpop.f32.mrb[0].mxu0
        %v3448 = vadd.f32 0.0, %v3447
        %v3449 = vpop.f32.mrb[0].mxu0
        %v3450 = vadd.f32 0.0, %v3449
        %v3451 = vpop.f32.mrb[0].mxu0
        %v3452 = vadd.f32 0.0, %v3451
        %3453 = vmatprep.mubr.bf16.mxu0 %v3341
        %3454 = vmatmul.mubr.bf16.gmra.mrb[0].mxu0 %v2938
        %v3455 = vpop.f32.mrb[0].mxu0
        %v3456 = vadd.f32 0.0, %v3455
        %v3457 = vpop.f32.mrb[0].mxu0
        %v3458 = vadd.f32 0.0, %v3457
        %v3459 = vpop.f32.mrb[0].mxu0
        %v3460 = vadd.f32 0.0, %v3459
        %v3461 = vpop.f32.mrb[0].mxu0
        %v3462 = vadd.f32 0.0, %v3461
        %3463 = vmatprep.mubr.bf16.mxu0 %v3344
        %3464 = vmatmul.mubr.bf16.gmra.mrb[0].mxu0 %v2954
        %v3465 = vpop.f32.mrb[0].mxu0
        %v3466 = vadd.f32 0.0, %v3465
        %v3467 = vpop.f32.mrb[0].mxu0
        %v3468 = vadd.f32 0.0, %v3467
        %v3469 = vpop.f32.mrb[0].mxu0
        %v3470 = vadd.f32 0.0, %v3469
        %v3471 = vpop.f32.mrb[0].mxu0
        %v3472 = vadd.f32 0.0, %v3471
        %3473 = vmatprep.mubr.bf16.mxu0 %v3347
        %3474 = vmatmul.mubr.bf16.gmra.mrb[0].mxu0 %v2970
        %v3475 = vpop.f32.mrb[0].mxu0
        %v3476 = vadd.f32 0.0, %v3475
        %v3477 = vpop.f32.mrb[0].mxu0
        %v3478 = vadd.f32 0.0, %v3477
        %v3479 = vpop.f32.mrb[0].mxu0
        %v3480 = vadd.f32 0.0, %v3479
        %v3481 = vpop.f32.mrb[0].mxu0
        %v3482 = vadd.f32 0.0, %v3481
        %3483 = vmatprep.mubr.bf16.mxu0 %v3350
        %3484 = vmatmul.mubr.bf16.gmra.mrb[0].mxu0 %v2986
        %v3485 = vpop.f32.mrb[0].mxu0
        %v3486 = vadd.f32 0.0, %v3485
        %v3487 = vpop.f32.mrb[0].mxu0
        %v3488 = vadd.f32 0.0, %v3487
        %v3489 = vpop.f32.mrb[0].mxu0
        %v3490 = vadd.f32 0.0, %v3489
        %v3491 = vpop.f32.mrb[0].mxu0
        %v3492 = vadd.f32 0.0, %v3491
        %3493 = vmatprep.mubr.bf16.mxu0 %v3353
        %3494 = vmatmul.mubr.bf16.gmra.mrb[0].mxu0 %v3002
        %v3495 = vpop.f32.mrb[0].mxu0
        %v3496 = vadd.f32 0.0, %v3495
        %v3497 = vpop.f32.mrb[0].mxu0
        %v3498 = vadd.f32 0.0, %v3497
        %v3499 = vpop.f32.mrb[0].mxu0
        %v3500 = vadd.f32 0.0, %v3499
        %v3501 = vpop.f32.mrb[0].mxu0
        %v3502 = vadd.f32 0.0, %v3501
        %3503 = vmatprep.mubr.bf16.mxu0 %v3356
        %3504 = vmatmul.mubr.bf16.gmra.mrb[0].mxu0 %v3018
        %v3505 = vpop.f32.mrb[0].mxu0
        %v3506 = vadd.f32 0.0, %v3505
        %v3507 = vpop.f32.mrb[0].mxu0
        %v3508 = vadd.f32 0.0, %v3507
        %v3509 = vpop.f32.mrb[0].mxu0
        %v3510 = vadd.f32 0.0, %v3509
        %v3511 = vpop.f32.mrb[0].mxu0
        %v3512 = vadd.f32 0.0, %v3511
        %3513 = vmatprep.mubr.bf16.mxu0 %v3359
        %3514 = vmatmul.mubr.bf16.gmra.mrb[0].mxu0 %v3034
        %v3515 = vpop.f32.mrb[0].mxu0
        %v3516 = vadd.f32 0.0, %v3515
        %v3517 = vpop.f32.mrb[0].mxu0
        %v3518 = vadd.f32 0.0, %v3517
        %v3519 = vpop.f32.mrb[0].mxu0
        %v3520 = vadd.f32 0.0, %v3519
        %v3521 = vpop.f32.mrb[0].mxu0
        %v3522 = vadd.f32 0.0, %v3521
        %3523 = vmatprep.mubr.bf16.mxu0 %v3362
        %3524 = vmatmul.mubr.bf16.gmra.mrb[0].mxu0 %v3050
        %v3525 = vpop.f32.mrb[0].mxu0
        %v3526 = vadd.f32 0.0, %v3525
        %v3527 = vpop.f32.mrb[0].mxu0
        %v3528 = vadd.f32 0.0, %v3527
        %v3529 = vpop.f32.mrb[0].mxu0
        %v3530 = vadd.f32 0.0, %v3529
        %v3531 = vpop.f32.mrb[0].mxu0
        %v3532 = vadd.f32 0.0, %v3531
        %3533 = vmatprep.mubr.bf16.mxu0 %v3365
        %3534 = vmatmul.mubr.bf16.gmra.mrb[0].mxu0 %v3066
        %v3535 = vpop.f32.mrb[0].mxu0
        %v3536 = vadd.f32 0.0, %v3535
        %v3537 = vpop.f32.mrb[0].mxu0
        %v3538 = vadd.f32 0.0, %v3537
        %v3539 = vpop.f32.mrb[0].mxu0
        %v3540 = vadd.f32 0.0, %v3539
        %v3541 = vpop.f32.mrb[0].mxu0
        %v3542 = vadd.f32 0.0, %v3541
        %3543 = vmatprep.mubr.bf16.mxu0 %v3368
        %3544 = vmatmul.mubr.bf16.gmra.mrb[0].mxu0 %v3082
        %v3545 = vpop.f32.mrb[0].mxu0
        %v3546 = vadd.f32 0.0, %v3545
        %v3547 = vpop.f32.mrb[0].mxu0
        %v3548 = vadd.f32 0.0, %v3547
        %v3549 = vpop.f32.mrb[0].mxu0
        %v3550 = vadd.f32 0.0, %v3549
        %v3551 = vpop.f32.mrb[0].mxu0
        %v3552 = vadd.f32 0.0, %v3551
        %3553 = vmatprep.mubr.bf16.mxu0 %v3371
        %3554 = vmatmul.mubr.bf16.gmra.mrb[0].mxu0 %v3098
        %v3555 = vpop.f32.mrb[0].mxu0
        %v3556 = vadd.f32 0.0, %v3555
        %v3557 = vpop.f32.mrb[0].mxu0
        %v3558 = vadd.f32 0.0, %v3557
        %v3559 = vpop.f32.mrb[0].mxu0
        %v3560 = vadd.f32 0.0, %v3559
        %v3561 = vpop.f32.mrb[0].mxu0
        %v3562 = vadd.f32 0.0, %v3561
        %3563 = vmatprep.mubr.bf16.mxu0 %v3374
        %3564 = vmatmul.mubr.bf16.gmra.mrb[0].mxu0 %v3114
        %v3565 = vpop.f32.mrb[0].mxu0
        %v3566 = vadd.f32 0.0, %v3565
        %v3567 = vpop.f32.mrb[0].mxu0
        %v3568 = vadd.f32 0.0, %v3567
        %v3569 = vpop.f32.mrb[0].mxu0
        %v3570 = vadd.f32 0.0, %v3569
        %v3571 = vpop.f32.mrb[0].mxu0
        %v3572 = vadd.f32 0.0, %v3571
        %3573 = vmatprep.mubr.bf16.mxu0 %v3377
        %3574 = vmatmul.mubr.bf16.gmra.mrb[0].mxu0 %v3130
        %v3575 = vpop.f32.mrb[0].mxu0
        %v3576 = vadd.f32 0.0, %v3575
        %v3577 = vpop.f32.mrb[0].mxu0
        %v3578 = vadd.f32 0.0, %v3577
        %v3579 = vpop.f32.mrb[0].mxu0
        %v3580 = vadd.f32 0.0, %v3579
        %v3581 = vpop.f32.mrb[0].mxu0
        %v3582 = vadd.f32 0.0, %v3581
        %3583 = vmatprep.mubr.bf16.mxu0 %v3380
        %3584 = vmatmul.mubr.bf16.gmra.mrb[0].mxu0 %v3146
        %v3585 = vpop.f32.mrb[0].mxu0
        %v3586 = vadd.f32 0.0, %v3585
        %v3587 = vpop.f32.mrb[0].mxu0
        %v3588 = vadd.f32 0.0, %v3587
        %v3589 = vpop.f32.mrb[0].mxu0
        %v3590 = vadd.f32 0.0, %v3589
        %v3591 = vpop.f32.mrb[0].mxu0
        %v3592 = vadd.f32 0.0, %v3591
        %3593 = vmatprep.mubr.bf16.mxu0 %v3383
        %3594 = vmatmul.mubr.bf16.gmra.mrb[0].mxu0 %v3162
        %v3595 = vpop.f32.mrb[0].mxu0
        %v3596 = vadd.f32 0.0, %v3595
        %v3597 = vpop.f32.mrb[0].mxu0
        %v3598 = vadd.f32 0.0, %v3597
        %v3599 = vpop.f32.mrb[0].mxu0
        %v3600 = vadd.f32 0.0, %v3599
        %v3601 = vpop.f32.mrb[0].mxu0
        %v3602 = vadd.f32 0.0, %v3601
        %3603 = vmatprep.mubr.bf16.mxu0 %v3386
        %3604 = vmatmul.mubr.bf16.gmra.mrb[0].mxu0 %v3178
        %v3605 = vpop.f32.mrb[0].mxu0
        %v3606 = vadd.f32 0.0, %v3605
        %v3607 = vpop.f32.mrb[0].mxu0
        %v3608 = vadd.f32 0.0, %v3607
        %v3609 = vpop.f32.mrb[0].mxu0
        %v3610 = vadd.f32 0.0, %v3609
        %v3611 = vpop.f32.mrb[0].mxu0
        %v3612 = vadd.f32 0.0, %v3611
        %3613 = vmatprep.mubr.bf16.mxu0 %v3389
        %3614 = vmatmul.mubr.bf16.gmra.mrb[0].mxu0 %v3194
        %v3615 = vpop.f32.mrb[0].mxu0
        %v3616 = vadd.f32 0.0, %v3615
        %v3617 = vpop.f32.mrb[0].mxu0
        %v3618 = vadd.f32 0.0, %v3617
        %v3619 = vpop.f32.mrb[0].mxu0
        %v3620 = vadd.f32 0.0, %v3619
        %v3621 = vpop.f32.mrb[0].mxu0
        %v3622 = vadd.f32 0.0, %v3621
        %3623 = vmatprep.mubr.bf16.mxu0 %v3392
        %3624 = vmatmul.mubr.bf16.gmra.mrb[0].mxu0 %v3205
        %v3625 = vpop.f32.mrb[0].mxu0
        %v3626 = vadd.f32 0.0, %v3625
        %v3627 = vpop.f32.mrb[0].mxu0
        %v3628 = vadd.f32 0.0, %v3627
        %v3629 = vpop.f32.mrb[0].mxu0
        %v3630 = vpop.f32.mrb[0].mxu0
        %3631 = vdwg.mxu0
        %v3653 = vunpack.c.l.b16 %v2839
        %v3654 = vunpack.c.h.b16 %v2839
        %v3655 = vunpack.c.l.b16 %v2840
        %v3656 = vunpack.c.h.b16 %v2840
        %v3657 = vunpack.c.l.b16 %v2841
        %v3658 = vunpack.c.h.b16 %v2841
        %v3659 = vunpack.c.l.b16 %v2842
        %v3660 = vunpack.c.h.b16 %v2842
        %v3661 = vunpack.c.l.b16 %v2843
        %v3662 = vunpack.c.h.b16 %v2843
        %v3663 = vunpack.c.l.b16 %v2844
        %v3664 = vunpack.c.h.b16 %v2844
        %v3665 = vunpack.c.l.b16 %v2845
        %v3666 = vunpack.c.h.b16 %v2845
        %v3667 = vunpack.c.l.b16 %v2846
        %v3668 = vunpack.c.h.b16 %v2846
        %v3669 = vunpack.c.l.b16 %v2847
        %v3670 = vunpack.c.h.b16 %v2847
        %v3671 = vunpack.c.l.b16 %v2848
        %v3672 = vunpack.c.h.b16 %v2848
        %v3673 = vunpack.c.l.b16 %v2849
        %v3674 = vunpack.c.h.b16 %v2849
        %v3675 = vunpack.c.l.b16 %v2850
        %v3676 = vunpack.c.h.b16 %v2850
        %v3677 = vunpack.c.l.b16 %v2851
        %v3678 = vunpack.c.h.b16 %v2851
        %v3679 = vunpack.c.l.b16 %v2852
        %v3680 = vunpack.c.h.b16 %v2852
        %v3681 = vunpack.c.l.b16 %v2853
        %v3682 = vunpack.c.h.b16 %v2853
        %v3683 = vunpack.c.l.b16 %v2854
        %v3684 = vunpack.c.h.b16 %v2854
        %v3685 = vunpack.c.l.b16 %v2855
        %v3686 = vunpack.c.h.b16 %v2855
        %v3687 = vunpack.c.l.b16 %v2856
        %v3688 = vunpack.c.h.b16 %v2856
        %v3689 = vunpack.c.l.b16 %v2857
        %v3690 = vunpack.c.h.b16 %v2857
        %v3691 = vunpack.c.l.b16 %v2858
        %v3692 = vunpack.c.h.b16 %v2858
        %v3693 = vunpack.c.l.b16 %v2859
        %v3694 = vunpack.c.h.b16 %v2859
        %v3695 = vpack.c.b16 %v3655, %v3653
        %v3696 = vpack.c.b16 %v3656, %v3654
        %v3697 = vpack.c.b16 %v3659, %v3657
        %v3698 = vpack.c.b16 %v3660, %v3658
        %v3699 = vpack.c.b16 %v3663, %v3661
        %v3700 = vpack.c.b16 %v3664, %v3662
        %v3701 = vpack.c.b16 %v3667, %v3665
        %v3702 = vpack.c.b16 %v3668, %v3666
        %v3703 = vpack.c.b16 %v3671, %v3669
        %v3704 = vpack.c.b16 %v3672, %v3670
        %v3705 = vpack.c.b16 %v3675, %v3673
        %v3706 = vpack.c.b16 %v3676, %v3674
        %v3707 = vpack.c.b16 %v3679, %v3677
        %v3708 = vpack.c.b16 %v3680, %v3678
        %v3709 = vpack.c.b16 %v3683, %v3681
        %v3710 = vpack.c.b16 %v3684, %v3682
        %v3711 = vpack.c.b16 %v3687, %v3685
        %v3712 = vpack.c.b16 %v3688, %v3686
        %v3713 = vpack.c.b16 %v3691, %v3689
        %v3714 = vpack.c.b16 %v3692, %v3690
        %v3715 = vpack.c.b16 %v3693, %v3693
        %v3716 = vpack.c.b16 %v3694, %v3694
        %v3738 = vsel %vm2639, %v2800, 0
        %v3740 = vsel %vm2639, %v2802, 0
        %v3742 = vsel %vm2639, %v2804, 0
        %v3744 = vsel %vm2639, %v2806, 0
        %v3746 = vsel %vm2639, %v2808, 0
        %v3748 = vsel %vm2639, %v2810, 0
        %v3750 = vsel %vm2639, %v2812, 0
        %v3752 = vsel %vm2639, %v2814, 0
        %v3754 = vsel %vm2639, %v2816, 0
        %v3756 = vsel %vm2639, %v2818, 0
        %v3758 = vsel %vm2639, %v2820, 0
        %v3760 = vsel %vm2639, %v2822, 0
        %v3762 = vsel %vm2639, %v2824, 0
        %v3764 = vsel %vm2639, %v2826, 0
        %v3766 = vsel %vm2639, %v2828, 0
        %v3768 = vsel %vm2639, %v2830, 0
        %v3770 = vsel %vm2639, %v2832, 0
        %v3772 = vsel %vm2639, %v2834, 0
        %v3774 = vsel %vm2639, %v2836, 0
        %v3777 = vsel %vm2639, %v2838, 0
        %v3780 = vsel %vm3394, %v3715, 0
        %v3783 = vsel %vm3394, %v3716, 0
        %3785 = vmatprep.subr.bf16.mxu0 %v3696
        %3786 = vmatpush1.bf16.msra.mxu0 %v3695
        %3787 = vmatprep.subr.bf16.mxu0 %v3698
        %3788 = vmatpush1.bf16.msra.mxu0 %v3697
        %3789 = vmatprep.subr.bf16.mxu0 %v3700
        %3790 = vmatpush1.bf16.msra.mxu0 %v3699
        %3791 = vmatprep.subr.bf16.mxu0 %v3702
        %3792 = vmatpush1.bf16.msra.mxu0 %v3701
        %3793 = vmatprep.subr.bf16.mxu0 %v3704
        %3794 = vmatpush1.bf16.msra.mxu0 %v3703
        %3795 = vmatprep.subr.bf16.mxu0 %v3706
        %3796 = vmatpush1.bf16.msra.mxu0 %v3705
        %3797 = vmatprep.subr.bf16.mxu0 %v3708
        %3798 = vmatpush1.bf16.msra.mxu0 %v3707
        %3799 = vmatprep.subr.bf16.mxu0 %v3710
        %3800 = vmatpush1.bf16.msra.mxu0 %v3709
        %3801 = vmatprep.subr.bf16.mxu0 %v3712
        %3802 = vmatpush1.bf16.msra.mxu0 %v3711
        %3803 = vmatprep.subr.bf16.mxu0 %v3714
        %3804 = vmatpush1.bf16.msra.mxu0 %v3713
        %3805 = vmatprep.subr.bf16.mxu0 %v3783
        %3806 = vmatpush1.bf16.msra.mxu0 %v3780
        %3807 = vmatprep.subr.bf16.mxu0 0
        %3808 = vmatpush1.bf16.msra.mxu0 0
        %3809 = vmatprep.subr.bf16.mxu0 0
        %3810 = vmatpush1.bf16.msra.mxu0 0
        %3811 = vmatprep.subr.bf16.mxu0 0
        %3812 = vmatpush1.bf16.msra.mxu0 0
        %3813 = vmatprep.subr.bf16.mxu0 0
        %3814 = vmatpush1.bf16.msra.mxu0 0
        %3815 = vmatprep.subr.bf16.mxu0 0
        %3816 = vmatpush1.bf16.msra.mxu0 0
        %3817 = vmatprep.mubr.bf16.mxu0 %v3738
        %3818 = vmatmul.mubr.bf16.gmra.mrb[0].mxu0 %v2799
        %v3819 = vpop.f32.mrb[0].mxu0
        %v3820 = vadd.f32 %v3436, %v3819
        %v3821 = vpop.f32.mrb[0].mxu0
        %v3822 = vadd.f32 %v3438, %v3821
        %v3823 = vpop.f32.mrb[0].mxu0
        %v3824 = vadd.f32 %v3440, %v3823
        %v3825 = vpop.f32.mrb[0].mxu0
        %v3826 = vadd.f32 %v3442, %v3825
        %3827 = vmatprep.mubr.bf16.mxu0 %v3740
        %3828 = vmatmul.mubr.bf16.gmra.mrb[0].mxu0 %v2801
        %v3829 = vpop.f32.mrb[0].mxu0
        %v3830 = vadd.f32 %v3446, %v3829
        %v3831 = vpop.f32.mrb[0].mxu0
        %v3832 = vadd.f32 %v3448, %v3831
        %v3833 = vpop.f32.mrb[0].mxu0
        %v3834 = vadd.f32 %v3450, %v3833
        %v3835 = vpop.f32.mrb[0].mxu0
        %v3836 = vadd.f32 %v3452, %v3835
        %3837 = vmatprep.mubr.bf16.mxu0 %v3742
        %3838 = vmatmul.mubr.bf16.gmra.mrb[0].mxu0 %v2803
        %v3839 = vpop.f32.mrb[0].mxu0
        %v3840 = vadd.f32 %v3456, %v3839
        %v3841 = vpop.f32.mrb[0].mxu0
        %v3842 = vadd.f32 %v3458, %v3841
        %v3843 = vpop.f32.mrb[0].mxu0
        %v3844 = vadd.f32 %v3460, %v3843
        %v3845 = vpop.f32.mrb[0].mxu0
        %v3846 = vadd.f32 %v3462, %v3845
        %3847 = vmatprep.mubr.bf16.mxu0 %v3744
        %3848 = vmatmul.mubr.bf16.gmra.mrb[0].mxu0 %v2805
        %v3849 = vpop.f32.mrb[0].mxu0
        %v3850 = vadd.f32 %v3466, %v3849
        %v3851 = vpop.f32.mrb[0].mxu0
        %v3852 = vadd.f32 %v3468, %v3851
        %v3853 = vpop.f32.mrb[0].mxu0
        %v3854 = vadd.f32 %v3470, %v3853
        %v3855 = vpop.f32.mrb[0].mxu0
        %v3856 = vadd.f32 %v3472, %v3855
        %3857 = vmatprep.mubr.bf16.mxu0 %v3746
        %3858 = vmatmul.mubr.bf16.gmra.mrb[0].mxu0 %v2807
        %v3859 = vpop.f32.mrb[0].mxu0
        %v3860 = vadd.f32 %v3476, %v3859
        %v3861 = vpop.f32.mrb[0].mxu0
        %v3862 = vadd.f32 %v3478, %v3861
        %v3863 = vpop.f32.mrb[0].mxu0
        %v3864 = vadd.f32 %v3480, %v3863
        %v3865 = vpop.f32.mrb[0].mxu0
        %v3866 = vadd.f32 %v3482, %v3865
        %3867 = vmatprep.mubr.bf16.mxu0 %v3748
        %3868 = vmatmul.mubr.bf16.gmra.mrb[0].mxu0 %v2809
        %v3869 = vpop.f32.mrb[0].mxu0
        %v3870 = vadd.f32 %v3486, %v3869
        %v3871 = vpop.f32.mrb[0].mxu0
        %v3872 = vadd.f32 %v3488, %v3871
        %v3873 = vpop.f32.mrb[0].mxu0
        %v3874 = vadd.f32 %v3490, %v3873
        %v3875 = vpop.f32.mrb[0].mxu0
        %v3876 = vadd.f32 %v3492, %v3875
        %3877 = vmatprep.mubr.bf16.mxu0 %v3750
        %3878 = vmatmul.mubr.bf16.gmra.mrb[0].mxu0 %v2811
        %v3879 = vpop.f32.mrb[0].mxu0
        %v3880 = vadd.f32 %v3496, %v3879
        %v3881 = vpop.f32.mrb[0].mxu0
        %v3882 = vadd.f32 %v3498, %v3881
        %v3883 = vpop.f32.mrb[0].mxu0
        %v3884 = vadd.f32 %v3500, %v3883
        %v3885 = vpop.f32.mrb[0].mxu0
        %v3886 = vadd.f32 %v3502, %v3885
        %3887 = vmatprep.mubr.bf16.mxu0 %v3752
        %3888 = vmatmul.mubr.bf16.gmra.mrb[0].mxu0 %v2813
        %v3889 = vpop.f32.mrb[0].mxu0
        %v3890 = vadd.f32 %v3506, %v3889
        %v3891 = vpop.f32.mrb[0].mxu0
        %v3892 = vadd.f32 %v3508, %v3891
        %v3893 = vpop.f32.mrb[0].mxu0
        %v3894 = vadd.f32 %v3510, %v3893
        %v3895 = vpop.f32.mrb[0].mxu0
        %v3896 = vadd.f32 %v3512, %v3895
        %3897 = vmatprep.mubr.bf16.mxu0 %v3754
        %3898 = vmatmul.mubr.bf16.gmra.mrb[0].mxu0 %v2815
        %v3899 = vpop.f32.mrb[0].mxu0
        %v3900 = vadd.f32 %v3516, %v3899
        %v3901 = vpop.f32.mrb[0].mxu0
        %v3902 = vadd.f32 %v3518, %v3901
        %v3903 = vpop.f32.mrb[0].mxu0
        %v3904 = vadd.f32 %v3520, %v3903
        %v3905 = vpop.f32.mrb[0].mxu0
        %v3906 = vadd.f32 %v3522, %v3905
        %3907 = vmatprep.mubr.bf16.mxu0 %v3756
        %3908 = vmatmul.mubr.bf16.gmra.mrb[0].mxu0 %v2817
        %v3909 = vpop.f32.mrb[0].mxu0
        %v3910 = vadd.f32 %v3526, %v3909
        %v3911 = vpop.f32.mrb[0].mxu0
        %v3912 = vadd.f32 %v3528, %v3911
        %v3913 = vpop.f32.mrb[0].mxu0
        %v3914 = vadd.f32 %v3530, %v3913
        %v3915 = vpop.f32.mrb[0].mxu0
        %v3916 = vadd.f32 %v3532, %v3915
        %3917 = vmatprep.mubr.bf16.mxu0 %v3758
        %3918 = vmatmul.mubr.bf16.gmra.mrb[0].mxu0 %v2819
        %v3919 = vpop.f32.mrb[0].mxu0
        %v3920 = vadd.f32 %v3536, %v3919
        %v3921 = vpop.f32.mrb[0].mxu0
        %v3922 = vadd.f32 %v3538, %v3921
        %v3923 = vpop.f32.mrb[0].mxu0
        %v3924 = vadd.f32 %v3540, %v3923
        %v3925 = vpop.f32.mrb[0].mxu0
        %v3926 = vadd.f32 %v3542, %v3925
        %3927 = vmatprep.mubr.bf16.mxu0 %v3760
        %3928 = vmatmul.mubr.bf16.gmra.mrb[0].mxu0 %v2821
        %v3929 = vpop.f32.mrb[0].mxu0
        %v3930 = vadd.f32 %v3546, %v3929
        %v3931 = vpop.f32.mrb[0].mxu0
        %v3932 = vadd.f32 %v3548, %v3931
        %v3933 = vpop.f32.mrb[0].mxu0
        %v3934 = vadd.f32 %v3550, %v3933
        %v3935 = vpop.f32.mrb[0].mxu0
        %v3936 = vadd.f32 %v3552, %v3935
        %3937 = vmatprep.mubr.bf16.mxu0 %v3762
        %3938 = vmatmul.mubr.bf16.gmra.mrb[0].mxu0 %v2823
        %v3939 = vpop.f32.mrb[0].mxu0
        %v3940 = vadd.f32 %v3556, %v3939
        %v3941 = vpop.f32.mrb[0].mxu0
        %v3942 = vadd.f32 %v3558, %v3941
        %v3943 = vpop.f32.mrb[0].mxu0
        %v3944 = vadd.f32 %v3560, %v3943
        %v3945 = vpop.f32.mrb[0].mxu0
        %v3946 = vadd.f32 %v3562, %v3945
        %3947 = vmatprep.mubr.bf16.mxu0 %v3764
        %3948 = vmatmul.mubr.bf16.gmra.mrb[0].mxu0 %v2825
        %v3949 = vpop.f32.mrb[0].mxu0
        %v3950 = vadd.f32 %v3566, %v3949
        %v3951 = vpop.f32.mrb[0].mxu0
        %v3952 = vadd.f32 %v3568, %v3951
        %v3953 = vpop.f32.mrb[0].mxu0
        %v3954 = vadd.f32 %v3570, %v3953
        %v3955 = vpop.f32.mrb[0].mxu0
        %v3956 = vadd.f32 %v3572, %v3955
        %3957 = vmatprep.mubr.bf16.mxu0 %v3766
        %3958 = vmatmul.mubr.bf16.gmra.mrb[0].mxu0 %v2827
        %v3959 = vpop.f32.mrb[0].mxu0
        %v3960 = vadd.f32 %v3576, %v3959
        %v3961 = vpop.f32.mrb[0].mxu0
        %v3962 = vadd.f32 %v3578, %v3961
        %v3963 = vpop.f32.mrb[0].mxu0
        %v3964 = vadd.f32 %v3580, %v3963
        %v3965 = vpop.f32.mrb[0].mxu0
        %v3966 = vadd.f32 %v3582, %v3965
        %3967 = vmatprep.mubr.bf16.mxu0 %v3768
        %3968 = vmatmul.mubr.bf16.gmra.mrb[0].mxu0 %v2829
        %v3969 = vpop.f32.mrb[0].mxu0
        %v3970 = vadd.f32 %v3586, %v3969
        %v3971 = vpop.f32.mrb[0].mxu0
        %v3972 = vadd.f32 %v3588, %v3971
        %v3973 = vpop.f32.mrb[0].mxu0
        %v3974 = vadd.f32 %v3590, %v3973
        %v3975 = vpop.f32.mrb[0].mxu0
        %v3976 = vadd.f32 %v3592, %v3975
        %3977 = vmatprep.mubr.bf16.mxu0 %v3770
        %3978 = vmatmul.mubr.bf16.gmra.mrb[0].mxu0 %v2831
        %v3979 = vpop.f32.mrb[0].mxu0
        %v3980 = vadd.f32 %v3596, %v3979
        %v3981 = vpop.f32.mrb[0].mxu0
        %v3982 = vadd.f32 %v3598, %v3981
        %v3983 = vpop.f32.mrb[0].mxu0
        %v3984 = vadd.f32 %v3600, %v3983
        %v3985 = vpop.f32.mrb[0].mxu0
        %v3986 = vadd.f32 %v3602, %v3985
        %3987 = vmatprep.mubr.bf16.mxu0 %v3772
        %3988 = vmatmul.mubr.bf16.gmra.mrb[0].mxu0 %v2833
        %v3989 = vpop.f32.mrb[0].mxu0
        %v3990 = vadd.f32 %v3606, %v3989
        %v3991 = vpop.f32.mrb[0].mxu0
        %v3992 = vadd.f32 %v3608, %v3991
        %v3993 = vpop.f32.mrb[0].mxu0
        %v3994 = vadd.f32 %v3610, %v3993
        %v3995 = vpop.f32.mrb[0].mxu0
        %v3996 = vadd.f32 %v3612, %v3995
        %3997 = vmatprep.mubr.bf16.mxu0 %v3774
        %3998 = vmatmul.mubr.bf16.gmra.mrb[0].mxu0 %v2835
        %v3999 = vpop.f32.mrb[0].mxu0
        %v4000 = vadd.f32 %v3616, %v3999
        %v4001 = vpop.f32.mrb[0].mxu0
        %v4002 = vadd.f32 %v3618, %v4001
        %v4003 = vpop.f32.mrb[0].mxu0
        %v4004 = vadd.f32 %v3620, %v4003
        %v4005 = vpop.f32.mrb[0].mxu0
        %v4006 = vadd.f32 %v3622, %v4005
        %4007 = vmatprep.mubr.bf16.mxu0 %v3777
        %4008 = vmatmul.mubr.bf16.gmra.mrb[0].mxu0 %v2837
        %v4009 = vpop.f32.mrb[0].mxu0
        %v4010 = vadd.f32 %v3626, %v4009
        %v4011 = vpop.f32.mrb[0].mxu0
        %v4012 = vadd.f32 %v3628, %v4011
        %v4013 = vpop.f32.mrb[0].mxu0
        %v4014 = vpop.f32.mrb[0].mxu0
        %4015 = vdwg.mxu0
        %v4016 = vld [vmem:[#allocation2] sm:$0xfc]
        %v4017 = vld [vmem:[#allocation2 + $0x8] sm:$0xfc]
        %v4018 = vld [vmem:[#allocation2 + $0x270] sm:$0x3]
        %v4019 = vld [vmem:[#allocation2 + $0x278] sm:$0x3]
        %v4020 = vpack.c.bf16 %v2723, %v4016
        %v4021 = vpack.c.bf16 %v2724, %v4017
        %v4022 = vpack.c.bf16 %v4018, %v2797
        %v4023 = vpack.c.bf16 %v4019, %v2798
        %s4024 = scalar_lea.vmem %s3, 336
        %v4025 = vld [vmem:[%s4024] sm:$0xff]
        %v4026 = vld [vmem:[%s4024 + $0x8] sm:$0xff]
        %v4027 = vld [vmem:[%s4024 + $0x10] sm:$0xff]
        %v4028 = vld [vmem:[%s4024 + $0x18] sm:$0xff]
        %v4029 = vld [vmem:[%s4024 + $0x20] sm:$0xff]
        %v4030 = vld [vmem:[%s4024 + $0x28] sm:$0xff]
        %v4031 = vld [vmem:[%s4024 + $0x30] sm:$0xff]
        %v4032 = vld [vmem:[%s4024 + $0x38] sm:$0xff]
        %v4033 = vld [vmem:[%s4024 + $0x40] sm:$0xff]
        %v4034 = vld [vmem:[%s4024 + $0x48] sm:$0xff]
        %v4035 = vld [vmem:[%s4024 + $0x50] sm:$0xff]
        %v4036 = vld [vmem:[%s4024 + $0x58] sm:$0xff]
        %v4037 = vld [vmem:[%s4024 + $0x60] sm:$0xff]
        %v4038 = vld [vmem:[%s4024 + $0x68] sm:$0xff]
        %v4039 = vld [vmem:[%s4024 + $0x70] sm:$0xff]
        %v4040 = vld [vmem:[%s4024 + $0x78] sm:$0xff]
        %v4041 = vld [vmem:[%s4024 + $0x80] sm:$0xff]
        %v4042 = vld [vmem:[%s4024 + $0x88] sm:$0xff]
        %v4043 = vld [vmem:[%s4024 + $0x90] sm:$0xff]
        %v4044 = vld [vmem:[%s4024 + $0x98] sm:$0xff]
        %v4045 = vld [vmem:[%s4024 + $0xa0] sm:$0xff]
        %vm4086 = vcmask 1046528
        %v4087 = vrot.slane %v4020, 1
        %v4088 = vrot.slane %v2801, 1
        %v4089 = vsel %vm4086, %v4087, %v4088
        %v4090 = vrot.slane %v4021, 1
        %v4091 = vrot.slane %v2802, 1
        %v4092 = vsel %vm4086, %v4090, %v4091
        %v4093 = vrot.slane %v2803, 1
        %v4094 = vsel %vm4086, %v4088, %v4093
        %v4095 = vrot.slane %v2804, 1
        %v4096 = vsel %vm4086, %v4091, %v4095
        %v4097 = vrot.slane %v2805, 1
        %v4098 = vsel %vm4086, %v4093, %v4097
        %v4099 = vrot.slane %v2806, 1
        %v4100 = vsel %vm4086, %v4095, %v4099
        %v4101 = vrot.slane %v2807, 1
        %v4102 = vsel %vm4086, %v4097, %v4101
        %v4103 = vrot.slane %v2808, 1
        %v4104 = vsel %vm4086, %v4099, %v4103
        %v4105 = vrot.slane %v2809, 1
        %v4106 = vsel %vm4086, %v4101, %v4105
        %v4107 = vrot.slane %v2810, 1
        %v4108 = vsel %vm4086, %v4103, %v4107
        %v4109 = vrot.slane %v2811, 1
        %v4110 = vsel %vm4086, %v4105, %v4109
        %v4111 = vrot.slane %v2812, 1
        %v4112 = vsel %vm4086, %v4107, %v4111
        %v4113 = vrot.slane %v2813, 1
        %v4114 = vsel %vm4086, %v4109, %v4113
        %v4115 = vrot.slane %v2814, 1
        %v4116 = vsel %vm4086, %v4111, %v4115
        %v4117 = vrot.slane %v2815, 1
        %v4118 = vsel %vm4086, %v4113, %v4117
        %v4119 = vrot.slane %v2816, 1
        %v4120 = vsel %vm4086, %v4115, %v4119
        %v4121 = vrot.slane %v2817, 1
        %v4122 = vsel %vm4086, %v4117, %v4121
        %v4123 = vrot.slane %v2818, 1
        %v4124 = vsel %vm4086, %v4119, %v4123
        %v4125 = vrot.slane %v2819, 1
        %v4126 = vsel %vm4086, %v4121, %v4125
        %v4127 = vrot.slane %v2820, 1
        %v4128 = vsel %vm4086, %v4123, %v4127
        %v4129 = vrot.slane %v2821, 1
        %v4130 = vsel %vm4086, %v4125, %v4129
        %v4131 = vrot.slane %v2822, 1
        %v4132 = vsel %vm4086, %v4127, %v4131
        %v4133 = vrot.slane %v2823, 1
        %v4134 = vsel %vm4086, %v4129, %v4133
        %v4135 = vrot.slane %v2824, 1
        %v4136 = vsel %vm4086, %v4131, %v4135
        %v4137 = vrot.slane %v2825, 1
        %v4138 = vsel %vm4086, %v4133, %v4137
        %v4139 = vrot.slane %v2826, 1
        %v4140 = vsel %vm4086, %v4135, %v4139
        %v4141 = vrot.slane %v2827, 1
        %v4142 = vsel %vm4086, %v4137, %v4141
        %v4143 = vrot.slane %v2828, 1
        %v4144 = vsel %vm4086, %v4139, %v4143
        %v4145 = vrot.slane %v2829, 1
        %v4146 = vsel %vm4086, %v4141, %v4145
        %v4147 = vrot.slane %v2830, 1
        %v4148 = vsel %vm4086, %v4143, %v4147
        %v4149 = vrot.slane %v2831, 1
        %v4150 = vsel %vm4086, %v4145, %v4149
        %v4151 = vrot.slane %v2832, 1
        %v4152 = vsel %vm4086, %v4147, %v4151
        %v4153 = vrot.slane %v2833, 1
        %v4154 = vsel %vm4086, %v4149, %v4153
        %v4155 = vrot.slane %v2834, 1
        %v4156 = vsel %vm4086, %v4151, %v4155
        %v4157 = vrot.slane %v2835, 1
        %v4158 = vsel %vm4086, %v4153, %v4157
        %v4159 = vrot.slane %v2836, 1
        %v4160 = vsel %vm4086, %v4155, %v4159
        %v4161 = vrot.slane %v4022, 1
        %v4162 = vsel %vm4086, %v4157, %v4161
        %v4163 = vrot.slane %v4023, 1
        %v4164 = vsel %vm4086, %v4159, %v4163
        %v4206 = vunpack.c.l.b16 %v4025
        %v4207 = vunpack.c.h.b16 %v4025
        %v4208 = vunpack.c.l.b16 %v4026
        %v4209 = vunpack.c.h.b16 %v4026
        %v4210 = vunpack.c.l.b16 %v4027
        %v4211 = vunpack.c.h.b16 %v4027
        %v4212 = vunpack.c.l.b16 %v4028
        %v4213 = vunpack.c.h.b16 %v4028
        %v4214 = vunpack.c.l.b16 %v4029
        %v4215 = vunpack.c.h.b16 %v4029
        %v4216 = vunpack.c.l.b16 %v4030
        %v4217 = vunpack.c.h.b16 %v4030
        %v4218 = vunpack.c.l.b16 %v4031
        %v4219 = vunpack.c.h.b16 %v4031
        %v4220 = vunpack.c.l.b16 %v4032
        %v4221 = vunpack.c.h.b16 %v4032
        %v4222 = vunpack.c.l.b16 %v4033
        %v4223 = vunpack.c.h.b16 %v4033
        %v4224 = vunpack.c.l.b16 %v4034
        %v4225 = vunpack.c.h.b16 %v4034
        %v4226 = vunpack.c.l.b16 %v4035
        %v4227 = vunpack.c.h.b16 %v4035
        %v4228 = vunpack.c.l.b16 %v4036
        %v4229 = vunpack.c.h.b16 %v4036
        %v4230 = vunpack.c.l.b16 %v4037
        %v4231 = vunpack.c.h.b16 %v4037
        %v4232 = vunpack.c.l.b16 %v4038
        %v4233 = vunpack.c.h.b16 %v4038
        %v4234 = vunpack.c.l.b16 %v4039
        %v4235 = vunpack.c.h.b16 %v4039
        %v4236 = vunpack.c.l.b16 %v4040
        %v4237 = vunpack.c.h.b16 %v4040
        %v4238 = vunpack.c.l.b16 %v4041
        %v4239 = vunpack.c.h.b16 %v4041
        %v4240 = vunpack.c.l.b16 %v4042
        %v4241 = vunpack.c.h.b16 %v4042
        %v4242 = vunpack.c.l.b16 %v4043
        %v4243 = vunpack.c.h.b16 %v4043
        %v4244 = vunpack.c.l.b16 %v4044
        %v4245 = vunpack.c.h.b16 %v4044
        %v4246 = vunpack.c.l.b16 %v4045
        %v4247 = vunpack.c.h.b16 %v4045
        %v4248 = vpack.c.b16 %v4208, %v4206
        %v4249 = vpack.c.b16 %v4209, %v4207
        %v4250 = vpack.c.b16 %v4212, %v4210
        %v4251 = vpack.c.b16 %v4213, %v4211
        %v4252 = vpack.c.b16 %v4216, %v4214
        %v4253 = vpack.c.b16 %v4217, %v4215
        %v4254 = vpack.c.b16 %v4220, %v4218
        %v4255 = vpack.c.b16 %v4221, %v4219
        %v4256 = vpack.c.b16 %v4224, %v4222
        %v4257 = vpack.c.b16 %v4225, %v4223
        %v4258 = vpack.c.b16 %v4228, %v4226
        %v4259 = vpack.c.b16 %v4229, %v4227
        %v4260 = vpack.c.b16 %v4232, %v4230
        %v4261 = vpack.c.b16 %v4233, %v4231
        %v4262 = vpack.c.b16 %v4236, %v4234
        %v4263 = vpack.c.b16 %v4237, %v4235
        %v4264 = vpack.c.b16 %v4240, %v4238
        %v4265 = vpack.c.b16 %v4241, %v4239
        %v4266 = vpack.c.b16 %v4244, %v4242
        %v4267 = vpack.c.b16 %v4245, %v4243
        %v4268 = vpack.c.b16 %v4246, %v4246
        %v4269 = vpack.c.b16 %v4247, %v4247
        %v4291 = vsel %vm2639, %v4092, 0
        %v4294 = vsel %vm2639, %v4096, 0
        %v4297 = vsel %vm2639, %v4100, 0
        %v4300 = vsel %vm2639, %v4104, 0
        %v4303 = vsel %vm2639, %v4108, 0
        %v4306 = vsel %vm2639, %v4112, 0
        %v4309 = vsel %vm2639, %v4116, 0
        %v4312 = vsel %vm2639, %v4120, 0
        %v4315 = vsel %vm2639, %v4124, 0
        %v4318 = vsel %vm2639, %v4128, 0
        %v4321 = vsel %vm2639, %v4132, 0
        %v4324 = vsel %vm2639, %v4136, 0
        %v4327 = vsel %vm2639, %v4140, 0
        %v4330 = vsel %vm2639, %v4144, 0
        %v4333 = vsel %vm2639, %v4148, 0
        %v4336 = vsel %vm2639, %v4152, 0
        %v4339 = vsel %vm2639, %v4156, 0
        %v4342 = vsel %vm2639, %v4160, 0
        %v4345 = vsel %vm2639, %v4164, 0
        %v4348 = vsel %vm2639, %v4163, 0
        %v4351 = vsel %vm3394, %v4268, 0
        %v4354 = vsel %vm3394, %v4269, 0
        %4356 = vmatprep.subr.bf16.mxu0 %v4249
        %4357 = vmatpush1.bf16.msra.mxu0 %v4248
        %4358 = vmatprep.subr.bf16.mxu0 %v4251
        %4359 = vmatpush1.bf16.msra.mxu0 %v4250
        %4360 = vmatprep.subr.bf16.mxu0 %v4253
        %4361 = vmatpush1.bf16.msra.mxu0 %v4252
        %4362 = vmatprep.subr.bf16.mxu0 %v4255
        %4363 = vmatpush1.bf16.msra.mxu0 %v4254
        %4364 = vmatprep.subr.bf16.mxu0 %v4257
        %4365 = vmatpush1.bf16.msra.mxu0 %v4256
        %4366 = vmatprep.subr.bf16.mxu0 %v4259
        %4367 = vmatpush1.bf16.msra.mxu0 %v4258
        %4368 = vmatprep.subr.bf16.mxu0 %v4261
        %4369 = vmatpush1.bf16.msra.mxu0 %v4260
        %4370 = vmatprep.subr.bf16.mxu0 %v4263
        %4371 = vmatpush1.bf16.msra.mxu0 %v4262
        %4372 = vmatprep.subr.bf16.mxu0 %v4265
        %4373 = vmatpush1.bf16.msra.mxu0 %v4264
        %4374 = vmatprep.subr.bf16.mxu0 %v4267
        %4375 = vmatpush1.bf16.msra.mxu0 %v4266
        %4376 = vmatprep.subr.bf16.mxu0 %v4354
        %4377 = vmatpush1.bf16.msra.mxu0 %v4351
        %4378 = vmatprep.subr.bf16.mxu0 0
        %4379 = vmatpush1.bf16.msra.mxu0 0
        %4380 = vmatprep.subr.bf16.mxu0 0
        %4381 = vmatpush1.bf16.msra.mxu0 0
        %4382 = vmatprep.subr.bf16.mxu0 0
        %4383 = vmatpush1.bf16.msra.mxu0 0
        %4384 = vmatprep.subr.bf16.mxu0 0
        %4385 = vmatpush1.bf16.msra.mxu0 0
        %4386 = vmatprep.subr.bf16.mxu0 0
        %4387 = vmatpush1.bf16.msra.mxu0 0
        %4388 = vmatprep.mubr.bf16.mxu0 %v4291
        %4389 = vmatmul.mubr.bf16.gmra.mrb[0].mxu0 %v4089
        %v4390 = vpop.f32.mrb[0].mxu0
        %v4391 = vadd.f32 0.0, %v4390
        %v4392 = vpop.f32.mrb[0].mxu0
        %v4393 = vadd.f32 0.0, %v4392
        %v4394 = vpop.f32.mrb[0].mxu0
        %v4395 = vadd.f32 0.0, %v4394
        %v4396 = vpop.f32.mrb[0].mxu0
        %v4397 = vadd.f32 0.0, %v4396
        %4398 = vmatprep.mubr.bf16.mxu0 %v4294
        %4399 = vmatmul.mubr.bf16.gmra.mrb[0].mxu0 %v4094
        %v4400 = vpop.f32.mrb[0].mxu0
        %v4401 = vadd.f32 0.0, %v4400
        %v4402 = vpop.f32.mrb[0].mxu0
        %v4403 = vadd.f32 0.0, %v4402
        %v4404 = vpop.f32.mrb[0].mxu0
        %v4405 = vadd.f32 0.0, %v4404
        %v4406 = vpop.f32.mrb[0].mxu0
        %v4407 = vadd.f32 0.0, %v4406
        %4408 = vmatprep.mubr.bf16.mxu0 %v4297
        %4409 = vmatmul.mubr.bf16.gmra.mrb[0].mxu0 %v4098
        %v4410 = vpop.f32.mrb[0].mxu0
        %v4411 = vadd.f32 0.0, %v4410
        %v4412 = vpop.f32.mrb[0].mxu0
        %v4413 = vadd.f32 0.0, %v4412
        %v4414 = vpop.f32.mrb[0].mxu0
        %v4415 = vadd.f32 0.0, %v4414
        %v4416 = vpop.f32.mrb[0].mxu0
        %v4417 = vadd.f32 0.0, %v4416
        %4418 = vmatprep.mubr.bf16.mxu0 %v4300
        %4419 = vmatmul.mubr.bf16.gmra.mrb[0].mxu0 %v4102
        %v4420 = vpop.f32.mrb[0].mxu0
        %v4421 = vadd.f32 0.0, %v4420
        %v4422 = vpop.f32.mrb[0].mxu0
        %v4423 = vadd.f32 0.0, %v4422
        %v4424 = vpop.f32.mrb[0].mxu0
        %v4425 = vadd.f32 0.0, %v4424
        %v4426 = vpop.f32.mrb[0].mxu0
        %v4427 = vadd.f32 0.0, %v4426
        %4428 = vmatprep.mubr.bf16.mxu0 %v4303
        %4429 = vmatmul.mubr.bf16.gmra.mrb[0].mxu0 %v4106
        %v4430 = vpop.f32.mrb[0].mxu0
        %v4431 = vadd.f32 0.0, %v4430
        %v4432 = vpop.f32.mrb[0].mxu0
        %v4433 = vadd.f32 0.0, %v4432
        %v4434 = vpop.f32.mrb[0].mxu0
        %v4435 = vadd.f32 0.0, %v4434
        %v4436 = vpop.f32.mrb[0].mxu0
        %v4437 = vadd.f32 0.0, %v4436
        %4438 = vmatprep.mubr.bf16.mxu0 %v4306
        %4439 = vmatmul.mubr.bf16.gmra.mrb[0].mxu0 %v4110
        %v4440 = vpop.f32.mrb[0].mxu0
        %v4441 = vadd.f32 0.0, %v4440
        %v4442 = vpop.f32.mrb[0].mxu0
        %v4443 = vadd.f32 0.0, %v4442
        %v4444 = vpop.f32.mrb[0].mxu0
        %v4445 = vadd.f32 0.0, %v4444
        %v4446 = vpop.f32.mrb[0].mxu0
        %v4447 = vadd.f32 0.0, %v4446
        %4448 = vmatprep.mubr.bf16.mxu0 %v4309
        %4449 = vmatmul.mubr.bf16.gmra.mrb[0].mxu0 %v4114
        %v4450 = vpop.f32.mrb[0].mxu0
        %v4451 = vadd.f32 0.0, %v4450
        %v4452 = vpop.f32.mrb[0].mxu0
        %v4453 = vadd.f32 0.0, %v4452
        %v4454 = vpop.f32.mrb[0].mxu0
        %v4455 = vadd.f32 0.0, %v4454
        %v4456 = vpop.f32.mrb[0].mxu0
        %v4457 = vadd.f32 0.0, %v4456
        %4458 = vmatprep.mubr.bf16.mxu0 %v4312
        %4459 = vmatmul.mubr.bf16.gmra.mrb[0].mxu0 %v4118
        %v4460 = vpop.f32.mrb[0].mxu0
        %v4461 = vadd.f32 0.0, %v4460
        %v4462 = vpop.f32.mrb[0].mxu0
        %v4463 = vadd.f32 0.0, %v4462
        %v4464 = vpop.f32.mrb[0].mxu0
        %v4465 = vadd.f32 0.0, %v4464
        %v4466 = vpop.f32.mrb[0].mxu0
        %v4467 = vadd.f32 0.0, %v4466
        %4468 = vmatprep.mubr.bf16.mxu0 %v4315
        %4469 = vmatmul.mubr.bf16.gmra.mrb[0].mxu0 %v4122
        %v4470 = vpop.f32.mrb[0].mxu0
        %v4471 = vadd.f32 0.0, %v4470
        %v4472 = vpop.f32.mrb[0].mxu0
        %v4473 = vadd.f32 0.0, %v4472
        %v4474 = vpop.f32.mrb[0].mxu0
        %v4475 = vadd.f32 0.0, %v4474
        %v4476 = vpop.f32.mrb[0].mxu0
        %v4477 = vadd.f32 0.0, %v4476
        %4478 = vmatprep.mubr.bf16.mxu0 %v4318
        %4479 = vmatmul.mubr.bf16.gmra.mrb[0].mxu0 %v4126
        %v4480 = vpop.f32.mrb[0].mxu0
        %v4481 = vadd.f32 0.0, %v4480
        %v4482 = vpop.f32.mrb[0].mxu0
        %v4483 = vadd.f32 0.0, %v4482
        %v4484 = vpop.f32.mrb[0].mxu0
        %v4485 = vadd.f32 0.0, %v4484
        %v4486 = vpop.f32.mrb[0].mxu0
        %v4487 = vadd.f32 0.0, %v4486
        %4488 = vmatprep.mubr.bf16.mxu0 %v4321
        %4489 = vmatmul.mubr.bf16.gmra.mrb[0].mxu0 %v4130
        %v4490 = vpop.f32.mrb[0].mxu0
        %v4491 = vadd.f32 0.0, %v4490
        %v4492 = vpop.f32.mrb[0].mxu0
        %v4493 = vadd.f32 0.0, %v4492
        %v4494 = vpop.f32.mrb[0].mxu0
        %v4495 = vadd.f32 0.0, %v4494
        %v4496 = vpop.f32.mrb[0].mxu0
        %v4497 = vadd.f32 0.0, %v4496
        %4498 = vmatprep.mubr.bf16.mxu0 %v4324
        %4499 = vmatmul.mubr.bf16.gmra.mrb[0].mxu0 %v4134
        %v4500 = vpop.f32.mrb[0].mxu0
        %v4501 = vadd.f32 0.0, %v4500
        %v4502 = vpop.f32.mrb[0].mxu0
        %v4503 = vadd.f32 0.0, %v4502
        %v4504 = vpop.f32.mrb[0].mxu0
        %v4505 = vadd.f32 0.0, %v4504
        %v4506 = vpop.f32.mrb[0].mxu0
        %v4507 = vadd.f32 0.0, %v4506
        %4508 = vmatprep.mubr.bf16.mxu0 %v4327
        %4509 = vmatmul.mubr.bf16.gmra.mrb[0].mxu0 %v4138
        %v4510 = vpop.f32.mrb[0].mxu0
        %v4511 = vadd.f32 0.0, %v4510
        %v4512 = vpop.f32.mrb[0].mxu0
        %v4513 = vadd.f32 0.0, %v4512
        %v4514 = vpop.f32.mrb[0].mxu0
        %v4515 = vadd.f32 0.0, %v4514
        %v4516 = vpop.f32.mrb[0].mxu0
        %v4517 = vadd.f32 0.0, %v4516
        %4518 = vmatprep.mubr.bf16.mxu0 %v4330
        %4519 = vmatmul.mubr.bf16.gmra.mrb[0].mxu0 %v4142
        %v4520 = vpop.f32.mrb[0].mxu0
        %v4521 = vadd.f32 0.0, %v4520
        %v4522 = vpop.f32.mrb[0].mxu0
        %v4523 = vadd.f32 0.0, %v4522
        %v4524 = vpop.f32.mrb[0].mxu0
        %v4525 = vadd.f32 0.0, %v4524
        %v4526 = vpop.f32.mrb[0].mxu0
        %v4527 = vadd.f32 0.0, %v4526
        %4528 = vmatprep.mubr.bf16.mxu0 %v4333
        %4529 = vmatmul.mubr.bf16.gmra.mrb[0].mxu0 %v4146
        %v4530 = vpop.f32.mrb[0].mxu0
        %v4531 = vadd.f32 0.0, %v4530
        %v4532 = vpop.f32.mrb[0].mxu0
        %v4533 = vadd.f32 0.0, %v4532
        %v4534 = vpop.f32.mrb[0].mxu0
        %v4535 = vadd.f32 0.0, %v4534
        %v4536 = vpop.f32.mrb[0].mxu0
        %v4537 = vadd.f32 0.0, %v4536
        %4538 = vmatprep.mubr.bf16.mxu0 %v4336
        %4539 = vmatmul.mubr.bf16.gmra.mrb[0].mxu0 %v4150
        %v4540 = vpop.f32.mrb[0].mxu0
        %v4541 = vadd.f32 0.0, %v4540
        %v4542 = vpop.f32.mrb[0].mxu0
        %v4543 = vadd.f32 0.0, %v4542
        %v4544 = vpop.f32.mrb[0].mxu0
        %v4545 = vadd.f32 0.0, %v4544
        %v4546 = vpop.f32.mrb[0].mxu0
        %v4547 = vadd.f32 0.0, %v4546
        %4548 = vmatprep.mubr.bf16.mxu0 %v4339
        %4549 = vmatmul.mubr.bf16.gmra.mrb[0].mxu0 %v4154
        %v4550 = vpop.f32.mrb[0].mxu0
        %v4551 = vadd.f32 0.0, %v4550
        %v4552 = vpop.f32.mrb[0].mxu0
        %v4553 = vadd.f32 0.0, %v4552
        %v4554 = vpop.f32.mrb[0].mxu0
        %v4555 = vadd.f32 0.0, %v4554
        %v4556 = vpop.f32.mrb[0].mxu0
        %v4557 = vadd.f32 0.0, %v4556
        %4558 = vmatprep.mubr.bf16.mxu0 %v4342
        %4559 = vmatmul.mubr.bf16.gmra.mrb[0].mxu0 %v4158
        %v4560 = vpop.f32.mrb[0].mxu0
        %v4561 = vadd.f32 0.0, %v4560
        %v4562 = vpop.f32.mrb[0].mxu0
        %v4563 = vadd.f32 0.0, %v4562
        %v4564 = vpop.f32.mrb[0].mxu0
        %v4565 = vadd.f32 0.0, %v4564
        %v4566 = vpop.f32.mrb[0].mxu0
        %v4567 = vadd.f32 0.0, %v4566
        %4568 = vmatprep.mubr.bf16.mxu0 %v4345
        %4569 = vmatmul.mubr.bf16.gmra.mrb[0].mxu0 %v4162
        %v4570 = vpop.f32.mrb[0].mxu0
        %v4571 = vadd.f32 0.0, %v4570
        %v4572 = vpop.f32.mrb[0].mxu0
        %v4573 = vadd.f32 0.0, %v4572
        %v4574 = vpop.f32.mrb[0].mxu0
        %v4575 = vadd.f32 0.0, %v4574
        %v4576 = vpop.f32.mrb[0].mxu0
        %v4577 = vadd.f32 0.0, %v4576
        %4578 = vmatprep.mubr.bf16.mxu0 %v4348
        %4579 = vmatmul.mubr.bf16.gmra.mrb[0].mxu0 %v4161
        %v4580 = vpop.f32.mrb[0].mxu0
        %v4581 = vadd.f32 0.0, %v4580
        %v4582 = vpop.f32.mrb[0].mxu0
        %v4583 = vadd.f32 0.0, %v4582
        %v4584 = vpop.f32.mrb[0].mxu0
        %v4585 = vpop.f32.mrb[0].mxu0
        %4586 = vdwg.mxu0
        %v4587 = vadd.f32 %v3820, %v4391
        %v4588 = vadd.f32 %v3822, %v4393
        %v4589 = vadd.f32 %v3824, %v4395
        %v4590 = vadd.f32 %v3826, %v4397
        %v4591 = vadd.f32 %v3830, %v4401
        %v4592 = vadd.f32 %v3832, %v4403
        %v4593 = vadd.f32 %v3834, %v4405
        %v4594 = vadd.f32 %v3836, %v4407
        %v4595 = vadd.f32 %v3840, %v4411
        %v4596 = vadd.f32 %v3842, %v4413
        %v4597 = vadd.f32 %v3844, %v4415
        %v4598 = vadd.f32 %v3846, %v4417
        %v4599 = vadd.f32 %v3850, %v4421
        %v4600 = vadd.f32 %v3852, %v4423
        %v4601 = vadd.f32 %v3854, %v4425
        %v4602 = vadd.f32 %v3856, %v4427
        %v4603 = vadd.f32 %v3860, %v4431
        %v4604 = vadd.f32 %v3862, %v4433
        %v4605 = vadd.f32 %v3864, %v4435
        %v4606 = vadd.f32 %v3866, %v4437
        %v4607 = vadd.f32 %v3870, %v4441
        %v4608 = vadd.f32 %v3872, %v4443
        %v4609 = vadd.f32 %v3874, %v4445
        %v4610 = vadd.f32 %v3876, %v4447
        %v4611 = vadd.f32 %v3880, %v4451
        %v4612 = vadd.f32 %v3882, %v4453
        %v4613 = vadd.f32 %v3884, %v4455
        %v4614 = vadd.f32 %v3886, %v4457
        %v4615 = vadd.f32 %v3890, %v4461
        %v4616 = vadd.f32 %v3892, %v4463
        %v4617 = vadd.f32 %v3894, %v4465
        %v4618 = vadd.f32 %v3896, %v4467
        %v4619 = vadd.f32 %v3900, %v4471
        %v4620 = vadd.f32 %v3902, %v4473
        %v4621 = vadd.f32 %v3904, %v4475
        %v4622 = vadd.f32 %v3906, %v4477
        %v4623 = vadd.f32 %v3910, %v4481
        %v4624 = vadd.f32 %v3912, %v4483
        %v4625 = vadd.f32 %v3914, %v4485
        %v4626 = vadd.f32 %v3916, %v4487
        %v4627 = vadd.f32 %v3920, %v4491
        %v4628 = vadd.f32 %v3922, %v4493
        %v4629 = vadd.f32 %v3924, %v4495
        %v4630 = vadd.f32 %v3926, %v4497
        %v4631 = vadd.f32 %v3930, %v4501
        %v4632 = vadd.f32 %v3932, %v4503
        %v4633 = vadd.f32 %v3934, %v4505
        %v4634 = vadd.f32 %v3936, %v4507
        %v4635 = vadd.f32 %v3940, %v4511
        %v4636 = vadd.f32 %v3942, %v4513
        %v4637 = vadd.f32 %v3944, %v4515
        %v4638 = vadd.f32 %v3946, %v4517
        %v4639 = vadd.f32 %v3950, %v4521
        %v4640 = vadd.f32 %v3952, %v4523
        %v4641 = vadd.f32 %v3954, %v4525
        %v4642 = vadd.f32 %v3956, %v4527
        %v4643 = vadd.f32 %v3960, %v4531
        %v4644 = vadd.f32 %v3962, %v4533
        %v4645 = vadd.f32 %v3964, %v4535
        %v4646 = vadd.f32 %v3966, %v4537
        %v4647 = vadd.f32 %v3970, %v4541
        %v4648 = vadd.f32 %v3972, %v4543
        %v4649 = vadd.f32 %v3974, %v4545
        %v4650 = vadd.f32 %v3976, %v4547
        %v4651 = vadd.f32 %v3980, %v4551
        %v4652 = vadd.f32 %v3982, %v4553
        %v4653 = vadd.f32 %v3984, %v4555
        %v4654 = vadd.f32 %v3986, %v4557
        %v4655 = vadd.f32 %v3990, %v4561
        %v4656 = vadd.f32 %v3992, %v4563
        %v4657 = vadd.f32 %v3994, %v4565
        %v4658 = vadd.f32 %v3996, %v4567
        %v4659 = vadd.f32 %v4000, %v4571
        %v4660 = vadd.f32 %v4002, %v4573
        %v4661 = vadd.f32 %v4004, %v4575
        %v4662 = vadd.f32 %v4006, %v4577
        %v4663 = vadd.f32 %v4010, %v4581
        %v4664 = vadd.f32 %v4012, %v4583
        %v4665 = vld [vmem:[#allocation2] sm:$0xf8]
        %v4666 = vld [vmem:[#allocation2 + $0x8] sm:$0xf8]
        %v4667 = vld [vmem:[#allocation2 + $0x270] sm:$0x7]
        %v4668 = vld [vmem:[#allocation2 + $0x278] sm:$0x7]
        %v4669 = vpack.c.bf16 %v2723, %v4665
        %v4670 = vpack.c.bf16 %v2724, %v4666
        %v4671 = vpack.c.bf16 %v4667, %v2797
        %v4672 = vpack.c.bf16 %v4668, %v2798
        %s4673 = scalar_lea.vmem %s3, 504
        %v4674 = vld [vmem:[%s4673] sm:$0xff]
        %v4675 = vld [vmem:[%s4673 + $0x8] sm:$0xff]
        %v4676 = vld [vmem:[%s4673 + $0x10] sm:$0xff]
        %v4677 = vld [vmem:[%s4673 + $0x18] sm:$0xff]
        %v4678 = vld [vmem:[%s4673 + $0x20] sm:$0xff]
        %v4679 = vld [vmem:[%s4673 + $0x28] sm:$0xff]
        %v4680 = vld [vmem:[%s4673 + $0x30] sm:$0xff]
        %v4681 = vld [vmem:[%s4673 + $0x38] sm:$0xff]
        %v4682 = vld [vmem:[%s4673 + $0x40] sm:$0xff]
        %v4683 = vld [vmem:[%s4673 + $0x48] sm:$0xff]
        %v4684 = vld [vmem:[%s4673 + $0x50] sm:$0xff]
        %v4685 = vld [vmem:[%s4673 + $0x58] sm:$0xff]
        %v4686 = vld [vmem:[%s4673 + $0x60] sm:$0xff]
        %v4687 = vld [vmem:[%s4673 + $0x68] sm:$0xff]
        %v4688 = vld [vmem:[%s4673 + $0x70] sm:$0xff]
        %v4689 = vld [vmem:[%s4673 + $0x78] sm:$0xff]
        %v4690 = vld [vmem:[%s4673 + $0x80] sm:$0xff]
        %v4691 = vld [vmem:[%s4673 + $0x88] sm:$0xff]
        %v4692 = vld [vmem:[%s4673 + $0x90] sm:$0xff]
        %v4693 = vld [vmem:[%s4673 + $0x98] sm:$0xff]
        %v4694 = vld [vmem:[%s4673 + $0xa0] sm:$0xff]
        %vm4695 = vsmask.f32 6400
        %v4697 = vshrl.u32 %v4669, 16
        %v4699 = vrot.slane %v4697, 1
        %v4700 = vshll.u32 %v4669, 16
        %v4702 = vrot.slane %v4700, 2
        %v4703 = vor.u32 %v4699, %v4702
        %v4704 = vrot.slane %v2915, 1
        %v4705 = vrot.slane %v2899, 2
        %v4706 = vor.u32 %v4704, %v4705
        %v4707 = vsel %vm4695, %v4703, %v4706
        %v4709 = vshrl.u32 %v4670, 16
        %v4711 = vrot.slane %v4709, 1
        %v4712 = vshll.u32 %v4670, 16
        %v4714 = vrot.slane %v4712, 2
        %v4715 = vor.u32 %v4711, %v4714
        %v4716 = vrot.slane %v2923, 1
        %v4717 = vrot.slane %v2911, 2
        %v4718 = vor.u32 %v4716, %v4717
        %v4719 = vsel %vm4695, %v4715, %v4718
        %v4720 = vrot.slane %v2931, 1
        %v4721 = vrot.slane %v2919, 2
        %v4722 = vor.u32 %v4720, %v4721
        %v4723 = vsel %vm4695, %v4706, %v4722
        %v4724 = vrot.slane %v2939, 1
        %v4725 = vrot.slane %v2927, 2
        %v4726 = vor.u32 %v4724, %v4725
        %v4727 = vsel %vm4695, %v4718, %v4726
        %v4728 = vrot.slane %v2947, 1
        %v4729 = vrot.slane %v2935, 2
        %v4730 = vor.u32 %v4728, %v4729
        %v4731 = vsel %vm4695, %v4722, %v4730
        %v4732 = vrot.slane %v2955, 1
        %v4733 = vrot.slane %v2943, 2
        %v4734 = vor.u32 %v4732, %v4733
        %v4735 = vsel %vm4695, %v4726, %v4734
        %v4736 = vrot.slane %v2963, 1
        %v4737 = vrot.slane %v2951, 2
        %v4738 = vor.u32 %v4736, %v4737
        %v4739 = vsel %vm4695, %v4730, %v4738
        %v4740 = vrot.slane %v2971, 1
        %v4741 = vrot.slane %v2959, 2
        %v4742 = vor.u32 %v4740, %v4741
        %v4743 = vsel %vm4695, %v4734, %v4742
        %v4744 = vrot.slane %v2979, 1
        %v4745 = vrot.slane %v2967, 2
        %v4746 = vor.u32 %v4744, %v4745
        %v4747 = vsel %vm4695, %v4738, %v4746
        %v4748 = vrot.slane %v2987, 1
        %v4749 = vrot.slane %v2975, 2
        %v4750 = vor.u32 %v4748, %v4749
        %v4751 = vsel %vm4695, %v4742, %v4750
        %v4752 = vrot.slane %v2995, 1
        %v4753 = vrot.slane %v2983, 2
        %v4754 = vor.u32 %v4752, %v4753
        %v4755 = vsel %vm4695, %v4746, %v4754
        %v4756 = vrot.slane %v3003, 1
        %v4757 = vrot.slane %v2991, 2
        %v4758 = vor.u32 %v4756, %v4757
        %v4759 = vsel %vm4695, %v4750, %v4758
        %v4760 = vrot.slane %v3011, 1
        %v4761 = vrot.slane %v2999, 2
        %v4762 = vor.u32 %v4760, %v4761
        %v4763 = vsel %vm4695, %v4754, %v4762
        %v4764 = vrot.slane %v3019, 1
        %v4765 = vrot.slane %v3007, 2
        %v4766 = vor.u32 %v4764, %v4765
        %v4767 = vsel %vm4695, %v4758, %v4766
        %v4768 = vrot.slane %v3027, 1
        %v4769 = vrot.slane %v3015, 2
        %v4770 = vor.u32 %v4768, %v4769
        %v4771 = vsel %vm4695, %v4762, %v4770
        %v4772 = vrot.slane %v3035, 1
        %v4773 = vrot.slane %v3023, 2
        %v4774 = vor.u32 %v4772, %v4773
        %v4775 = vsel %vm4695, %v4766, %v4774
        %v4776 = vrot.slane %v3043, 1
        %v4777 = vrot.slane %v3031, 2
        %v4778 = vor.u32 %v4776, %v4777
        %v4779 = vsel %vm4695, %v4770, %v4778
        %v4780 = vrot.slane %v3051, 1
        %v4781 = vrot.slane %v3039, 2
        %v4782 = vor.u32 %v4780, %v4781
        %v4783 = vsel %vm4695, %v4774, %v4782
        %v4784 = vrot.slane %v3059, 1
        %v4785 = vrot.slane %v3047, 2
        %v4786 = vor.u32 %v4784, %v4785
        %v4787 = vsel %vm4695, %v4778, %v4786
        %v4788 = vrot.slane %v3067, 1
        %v4789 = vrot.slane %v3055, 2
        %v4790 = vor.u32 %v4788, %v4789
        %v4791 = vsel %vm4695, %v4782, %v4790
        %v4792 = vrot.slane %v3075, 1
        %v4793 = vrot.slane %v3063, 2
        %v4794 = vor.u32 %v4792, %v4793
        %v4795 = vsel %vm4695, %v4786, %v4794
        %v4796 = vrot.slane %v3083, 1
        %v4797 = vrot.slane %v3071, 2
        %v4798 = vor.u32 %v4796, %v4797
        %v4799 = vsel %vm4695, %v4790, %v4798
        %v4800 = vrot.slane %v3091, 1
        %v4801 = vrot.slane %v3079, 2
        %v4802 = vor.u32 %v4800, %v4801
        %v4803 = vsel %vm4695, %v4794, %v4802
        %v4804 = vrot.slane %v3099, 1
        %v4805 = vrot.slane %v3087, 2
        %v4806 = vor.u32 %v4804, %v4805
        %v4807 = vsel %vm4695, %v4798, %v4806
        %v4808 = vrot.slane %v3107, 1
        %v4809 = vrot.slane %v3095, 2
        %v4810 = vor.u32 %v4808, %v4809
        %v4811 = vsel %vm4695, %v4802, %v4810
        %v4812 = vrot.slane %v3115, 1
        %v4813 = vrot.slane %v3103, 2
        %v4814 = vor.u32 %v4812, %v4813
        %v4815 = vsel %vm4695, %v4806, %v4814
        %v4816 = vrot.slane %v3123, 1
        %v4817 = vrot.slane %v3111, 2
        %v4818 = vor.u32 %v4816, %v4817
        %v4819 = vsel %vm4695, %v4810, %v4818
        %v4820 = vrot.slane %v3131, 1
        %v4821 = vrot.slane %v3119, 2
        %v4822 = vor.u32 %v4820, %v4821
        %v4823 = vsel %vm4695, %v4814, %v4822
        %v4824 = vrot.slane %v3139, 1
        %v4825 = vrot.slane %v3127, 2
        %v4826 = vor.u32 %v4824, %v4825
        %v4827 = vsel %vm4695, %v4818, %v4826
        %v4828 = vrot.slane %v3147, 1
        %v4829 = vrot.slane %v3135, 2
        %v4830 = vor.u32 %v4828, %v4829
        %v4831 = vsel %vm4695, %v4822, %v4830
        %v4832 = vrot.slane %v3155, 1
        %v4833 = vrot.slane %v3143, 2
        %v4834 = vor.u32 %v4832, %v4833
        %v4835 = vsel %vm4695, %v4826, %v4834
        %v4836 = vrot.slane %v3163, 1
        %v4837 = vrot.slane %v3151, 2
        %v4838 = vor.u32 %v4836, %v4837
        %v4839 = vsel %vm4695, %v4830, %v4838
        %v4840 = vrot.slane %v3171, 1
        %v4841 = vrot.slane %v3159, 2
        %v4842 = vor.u32 %v4840, %v4841
        %v4843 = vsel %vm4695, %v4834, %v4842
        %v4844 = vrot.slane %v3179, 1
        %v4845 = vrot.slane %v3167, 2
        %v4846 = vor.u32 %v4844, %v4845
        %v4847 = vsel %vm4695, %v4838, %v4846
        %v4848 = vrot.slane %v3187, 1
        %v4849 = vrot.slane %v3175, 2
        %v4850 = vor.u32 %v4848, %v4849
        %v4851 = vsel %vm4695, %v4842, %v4850
        %v4852 = vrot.slane %v3195, 1
        %v4853 = vrot.slane %v3183, 2
        %v4854 = vor.u32 %v4852, %v4853
        %v4855 = vsel %vm4695, %v4846, %v4854
        %v4857 = vshrl.u32 %v4671, 16
        %v4859 = vrot.slane %v4857, 1
        %v4860 = vshll.u32 %v4671, 16
        %v4862 = vrot.slane %v4860, 2
        %v4863 = vor.u32 %v4859, %v4862
        %v4864 = vsel %vm4695, %v4850, %v4863
        %v4866 = vshrl.u32 %v4672, 16
        %v4868 = vrot.slane %v4866, 1
        %v4869 = vshll.u32 %v4672, 16
        %v4871 = vrot.slane %v4869, 2
        %v4872 = vor.u32 %v4868, %v4871
        %v4873 = vsel %vm4695, %v4854, %v4872
        %v4915 = vunpack.c.l.b16 %v4674
        %v4916 = vunpack.c.h.b16 %v4674
        %v4917 = vunpack.c.l.b16 %v4675
        %v4918 = vunpack.c.h.b16 %v4675
        %v4919 = vunpack.c.l.b16 %v4676
        %v4920 = vunpack.c.h.b16 %v4676
        %v4921 = vunpack.c.l.b16 %v4677
        %v4922 = vunpack.c.h.b16 %v4677
        %v4923 = vunpack.c.l.b16 %v4678
        %v4924 = vunpack.c.h.b16 %v4678
        %v4925 = vunpack.c.l.b16 %v4679
        %v4926 = vunpack.c.h.b16 %v4679
        %v4927 = vunpack.c.l.b16 %v4680
        %v4928 = vunpack.c.h.b16 %v4680
        %v4929 = vunpack.c.l.b16 %v4681
        %v4930 = vunpack.c.h.b16 %v4681
        %v4931 = vunpack.c.l.b16 %v4682
        %v4932 = vunpack.c.h.b16 %v4682
        %v4933 = vunpack.c.l.b16 %v4683
        %v4934 = vunpack.c.h.b16 %v4683
        %v4935 = vunpack.c.l.b16 %v4684
        %v4936 = vunpack.c.h.b16 %v4684
        %v4937 = vunpack.c.l.b16 %v4685
        %v4938 = vunpack.c.h.b16 %v4685
        %v4939 = vunpack.c.l.b16 %v4686
        %v4940 = vunpack.c.h.b16 %v4686
        %v4941 = vunpack.c.l.b16 %v4687
        %v4942 = vunpack.c.h.b16 %v4687
        %v4943 = vunpack.c.l.b16 %v4688
        %v4944 = vunpack.c.h.b16 %v4688
        %v4945 = vunpack.c.l.b16 %v4689
        %v4946 = vunpack.c.h.b16 %v4689
        %v4947 = vunpack.c.l.b16 %v4690
        %v4948 = vunpack.c.h.b16 %v4690
        %v4949 = vunpack.c.l.b16 %v4691
        %v4950 = vunpack.c.h.b16 %v4691
        %v4951 = vunpack.c.l.b16 %v4692
        %v4952 = vunpack.c.h.b16 %v4692
        %v4953 = vunpack.c.l.b16 %v4693
        %v4954 = vunpack.c.h.b16 %v4693
        %v4955 = vunpack.c.l.b16 %v4694
        %v4956 = vunpack.c.h.b16 %v4694
        %v4957 = vpack.c.b16 %v4917, %v4915
        %v4958 = vpack.c.b16 %v4918, %v4916
        %v4959 = vpack.c.b16 %v4921, %v4919
        %v4960 = vpack.c.b16 %v4922, %v4920
        %v4961 = vpack.c.b16 %v4925, %v4923
        %v4962 = vpack.c.b16 %v4926, %v4924
        %v4963 = vpack.c.b16 %v4929, %v4927
        %v4964 = vpack.c.b16 %v4930, %v4928
        %v4965 = vpack.c.b16 %v4933, %v4931
        %v4966 = vpack.c.b16 %v4934, %v4932
        %v4967 = vpack.c.b16 %v4937, %v4935
        %v4968 = vpack.c.b16 %v4938, %v4936
        %v4969 = vpack.c.b16 %v4941, %v4939
        %v4970 = vpack.c.b16 %v4942, %v4940
        %v4971 = vpack.c.b16 %v4945, %v4943
        %v4972 = vpack.c.b16 %v4946, %v4944
        %v4973 = vpack.c.b16 %v4949, %v4947
        %v4974 = vpack.c.b16 %v4950, %v4948
        %v4975 = vpack.c.b16 %v4953, %v4951
        %v4976 = vpack.c.b16 %v4954, %v4952
        %v4977 = vpack.c.b16 %v4955, %v4955
        %v4978 = vpack.c.b16 %v4956, %v4956
        %v5000 = vsel %vm2639, %v4719, 0
        %v5003 = vsel %vm2639, %v4727, 0
        %v5006 = vsel %vm2639, %v4735, 0
        %v5009 = vsel %vm2639, %v4743, 0
        %v5012 = vsel %vm2639, %v4751, 0
        %v5015 = vsel %vm2639, %v4759, 0
        %v5018 = vsel %vm2639, %v4767, 0
        %v5021 = vsel %vm2639, %v4775, 0
        %v5024 = vsel %vm2639, %v4783, 0
        %v5027 = vsel %vm2639, %v4791, 0
        %v5030 = vsel %vm2639, %v4799, 0
        %v5033 = vsel %vm2639, %v4807, 0
        %v5036 = vsel %vm2639, %v4815, 0
        %v5039 = vsel %vm2639, %v4823, 0
        %v5042 = vsel %vm2639, %v4831, 0
        %v5045 = vsel %vm2639, %v4839, 0
        %v5048 = vsel %vm2639, %v4847, 0
        %v5051 = vsel %vm2639, %v4855, 0
        %v5054 = vsel %vm2639, %v4873, 0
        %v5057 = vsel %vm2639, %v4872, 0
        %v5060 = vsel %vm3394, %v4977, 0
        %v5063 = vsel %vm3394, %v4978, 0
        %5065 = vmatprep.subr.bf16.mxu0 %v4958
        %5066 = vmatpush1.bf16.msra.mxu0 %v4957
        %5067 = vmatprep.subr.bf16.mxu0 %v4960
        %5068 = vmatpush1.bf16.msra.mxu0 %v4959
        %5069 = vmatprep.subr.bf16.mxu0 %v4962
        %5070 = vmatpush1.bf16.msra.mxu0 %v4961
        %5071 = vmatprep.subr.bf16.mxu0 %v4964
        %5072 = vmatpush1.bf16.msra.mxu0 %v4963
        %5073 = vmatprep.subr.bf16.mxu0 %v4966
        %5074 = vmatpush1.bf16.msra.mxu0 %v4965
        %5075 = vmatprep.subr.bf16.mxu0 %v4968
        %5076 = vmatpush1.bf16.msra.mxu0 %v4967
        %5077 = vmatprep.subr.bf16.mxu0 %v4970
        %5078 = vmatpush1.bf16.msra.mxu0 %v4969
        %5079 = vmatprep.subr.bf16.mxu0 %v4972
        %5080 = vmatpush1.bf16.msra.mxu0 %v4971
        %5081 = vmatprep.subr.bf16.mxu0 %v4974
        %5082 = vmatpush1.bf16.msra.mxu0 %v4973
        %5083 = vmatprep.subr.bf16.mxu0 %v4976
        %5084 = vmatpush1.bf16.msra.mxu0 %v4975
        %5085 = vmatprep.subr.bf16.mxu0 %v5063
        %5086 = vmatpush1.bf16.msra.mxu0 %v5060
        %5087 = vmatprep.subr.bf16.mxu0 0
        %5088 = vmatpush1.bf16.msra.mxu0 0
        %5089 = vmatprep.subr.bf16.mxu0 0
        %5090 = vmatpush1.bf16.msra.mxu0 0
        %5091 = vmatprep.subr.bf16.mxu0 0
        %5092 = vmatpush1.bf16.msra.mxu0 0
        %5093 = vmatprep.subr.bf16.mxu0 0
        %5094 = vmatpush1.bf16.msra.mxu0 0
        %5095 = vmatprep.subr.bf16.mxu0 0
        %5096 = vmatpush1.bf16.msra.mxu0 0
        %5097 = vmatprep.mubr.bf16.mxu0 %v5000
        %5098 = vmatmul.mubr.bf16.gmra.mrb[0].mxu0 %v4707
        %v5099 = vpop.f32.mrb[0].mxu0
        %v5100 = vadd.f32 0.0, %v5099
        %v5101 = vpop.f32.mrb[0].mxu0
        %v5102 = vadd.f32 0.0, %v5101
        %v5103 = vpop.f32.mrb[0].mxu0
        %v5104 = vadd.f32 0.0, %v5103
        %v5105 = vpop.f32.mrb[0].mxu0
        %v5106 = vadd.f32 0.0, %v5105
        %5107 = vmatprep.mubr.bf16.mxu0 %v5003
        %5108 = vmatmul.mubr.bf16.gmra.mrb[0].mxu0 %v4723
        %v5109 = vpop.f32.mrb[0].mxu0
        %v5110 = vadd.f32 0.0, %v5109
        %v5111 = vpop.f32.mrb[0].mxu0
        %v5112 = vadd.f32 0.0, %v5111
        %v5113 = vpop.f32.mrb[0].mxu0
        %v5114 = vadd.f32 0.0, %v5113
        %v5115 = vpop.f32.mrb[0].mxu0
        %v5116 = vadd.f32 0.0, %v5115
        %5117 = vmatprep.mubr.bf16.mxu0 %v5006
        %5118 = vmatmul.mubr.bf16.gmra.mrb[0].mxu0 %v4731
        %v5119 = vpop.f32.mrb[0].mxu0
        %v5120 = vadd.f32 0.0, %v5119
        %v5121 = vpop.f32.mrb[0].mxu0
        %v5122 = vadd.f32 0.0, %v5121
        %v5123 = vpop.f32.mrb[0].mxu0
        %v5124 = vadd.f32 0.0, %v5123
        %v5125 = vpop.f32.mrb[0].mxu0
        %v5126 = vadd.f32 0.0, %v5125
        %5127 = vmatprep.mubr.bf16.mxu0 %v5009
        %5128 = vmatmul.mubr.bf16.gmra.mrb[0].mxu0 %v4739
        %v5129 = vpop.f32.mrb[0].mxu0
        %v5130 = vadd.f32 0.0, %v5129
        %v5131 = vpop.f32.mrb[0].mxu0
        %v5132 = vadd.f32 0.0, %v5131
        %v5133 = vpop.f32.mrb[0].mxu0
        %v5134 = vadd.f32 0.0, %v5133
        %v5135 = vpop.f32.mrb[0].mxu0
        %v5136 = vadd.f32 0.0, %v5135
        %5137 = vmatprep.mubr.bf16.mxu0 %v5012
        %5138 = vmatmul.mubr.bf16.gmra.mrb[0].mxu0 %v4747
        %v5139 = vpop.f32.mrb[0].mxu0
        %v5140 = vadd.f32 0.0, %v5139
        %v5141 = vpop.f32.mrb[0].mxu0
        %v5142 = vadd.f32 0.0, %v5141
        %v5143 = vpop.f32.mrb[0].mxu0
        %v5144 = vadd.f32 0.0, %v5143
        %v5145 = vpop.f32.mrb[0].mxu0
        %v5146 = vadd.f32 0.0, %v5145
        %5147 = vmatprep.mubr.bf16.mxu0 %v5015
        %5148 = vmatmul.mubr.bf16.gmra.mrb[0].mxu0 %v4755
        %v5149 = vpop.f32.mrb[0].mxu0
        %v5150 = vadd.f32 0.0, %v5149
        %v5151 = vpop.f32.mrb[0].mxu0
        %v5152 = vadd.f32 0.0, %v5151
        %v5153 = vpop.f32.mrb[0].mxu0
        %v5154 = vadd.f32 0.0, %v5153
        %v5155 = vpop.f32.mrb[0].mxu0
        %v5156 = vadd.f32 0.0, %v5155
        %5157 = vmatprep.mubr.bf16.mxu0 %v5018
        %5158 = vmatmul.mubr.bf16.gmra.mrb[0].mxu0 %v4763
        %v5159 = vpop.f32.mrb[0].mxu0
        %v5160 = vadd.f32 0.0, %v5159
        %v5161 = vpop.f32.mrb[0].mxu0
        %v5162 = vadd.f32 0.0, %v5161
        %v5163 = vpop.f32.mrb[0].mxu0
        %v5164 = vadd.f32 0.0, %v5163
        %v5165 = vpop.f32.mrb[0].mxu0
        %v5166 = vadd.f32 0.0, %v5165
        %5167 = vmatprep.mubr.bf16.mxu0 %v5021
        %5168 = vmatmul.mubr.bf16.gmra.mrb[0].mxu0 %v4771
        %v5169 = vpop.f32.mrb[0].mxu0
        %v5170 = vadd.f32 0.0, %v5169
        %v5171 = vpop.f32.mrb[0].mxu0
        %v5172 = vadd.f32 0.0, %v5171
        %v5173 = vpop.f32.mrb[0].mxu0
        %v5174 = vadd.f32 0.0, %v5173
        %v5175 = vpop.f32.mrb[0].mxu0
        %v5176 = vadd.f32 0.0, %v5175
        %5177 = vmatprep.mubr.bf16.mxu0 %v5024
        %5178 = vmatmul.mubr.bf16.gmra.mrb[0].mxu0 %v4779
        %v5179 = vpop.f32.mrb[0].mxu0
        %v5180 = vadd.f32 0.0, %v5179
        %v5181 = vpop.f32.mrb[0].mxu0
        %v5182 = vadd.f32 0.0, %v5181
        %v5183 = vpop.f32.mrb[0].mxu0
        %v5184 = vadd.f32 0.0, %v5183
        %v5185 = vpop.f32.mrb[0].mxu0
        %v5186 = vadd.f32 0.0, %v5185
        %5187 = vmatprep.mubr.bf16.mxu0 %v5027
        %5188 = vmatmul.mubr.bf16.gmra.mrb[0].mxu0 %v4787
        %v5189 = vpop.f32.mrb[0].mxu0
        %v5190 = vadd.f32 0.0, %v5189
        %v5191 = vpop.f32.mrb[0].mxu0
        %v5192 = vadd.f32 0.0, %v5191
        %v5193 = vpop.f32.mrb[0].mxu0
        %v5194 = vadd.f32 0.0, %v5193
        %v5195 = vpop.f32.mrb[0].mxu0
        %v5196 = vadd.f32 0.0, %v5195
        %5197 = vmatprep.mubr.bf16.mxu0 %v5030
        %5198 = vmatmul.mubr.bf16.gmra.mrb[0].mxu0 %v4795
        %v5199 = vpop.f32.mrb[0].mxu0
        %v5200 = vadd.f32 0.0, %v5199
        %v5201 = vpop.f32.mrb[0].mxu0
        %v5202 = vadd.f32 0.0, %v5201
        %v5203 = vpop.f32.mrb[0].mxu0
        %v5204 = vadd.f32 0.0, %v5203
        %v5205 = vpop.f32.mrb[0].mxu0
        %v5206 = vadd.f32 0.0, %v5205
        %5207 = vmatprep.mubr.bf16.mxu0 %v5033
        %5208 = vmatmul.mubr.bf16.gmra.mrb[0].mxu0 %v4803
        %v5209 = vpop.f32.mrb[0].mxu0
        %v5210 = vadd.f32 0.0, %v5209
        %v5211 = vpop.f32.mrb[0].mxu0
        %v5212 = vadd.f32 0.0, %v5211
        %v5213 = vpop.f32.mrb[0].mxu0
        %v5214 = vadd.f32 0.0, %v5213
        %v5215 = vpop.f32.mrb[0].mxu0
        %v5216 = vadd.f32 0.0, %v5215
        %5217 = vmatprep.mubr.bf16.mxu0 %v5036
        %5218 = vmatmul.mubr.bf16.gmra.mrb[0].mxu0 %v4811
        %v5219 = vpop.f32.mrb[0].mxu0
        %v5220 = vadd.f32 0.0, %v5219
        %v5221 = vpop.f32.mrb[0].mxu0
        %v5222 = vadd.f32 0.0, %v5221
        %v5223 = vpop.f32.mrb[0].mxu0
        %v5224 = vadd.f32 0.0, %v5223
        %v5225 = vpop.f32.mrb[0].mxu0
        %v5226 = vadd.f32 0.0, %v5225
        %5227 = vmatprep.mubr.bf16.mxu0 %v5039
        %5228 = vmatmul.mubr.bf16.gmra.mrb[0].mxu0 %v4819
        %v5229 = vpop.f32.mrb[0].mxu0
        %v5230 = vadd.f32 0.0, %v5229
        %v5231 = vpop.f32.mrb[0].mxu0
        %v5232 = vadd.f32 0.0, %v5231
        %v5233 = vpop.f32.mrb[0].mxu0
        %v5234 = vadd.f32 0.0, %v5233
        %v5235 = vpop.f32.mrb[0].mxu0
        %v5236 = vadd.f32 0.0, %v5235
        %5237 = vmatprep.mubr.bf16.mxu0 %v5042
        %5238 = vmatmul.mubr.bf16.gmra.mrb[0].mxu0 %v4827
        %v5239 = vpop.f32.mrb[0].mxu0
        %v5240 = vadd.f32 0.0, %v5239
        %v5241 = vpop.f32.mrb[0].mxu0
        %v5242 = vadd.f32 0.0, %v5241
        %v5243 = vpop.f32.mrb[0].mxu0
        %v5244 = vadd.f32 0.0, %v5243
        %v5245 = vpop.f32.mrb[0].mxu0
        %v5246 = vadd.f32 0.0, %v5245
        %5247 = vmatprep.mubr.bf16.mxu0 %v5045
        %5248 = vmatmul.mubr.bf16.gmra.mrb[0].mxu0 %v4835
        %v5249 = vpop.f32.mrb[0].mxu0
        %v5250 = vadd.f32 0.0, %v5249
        %v5251 = vpop.f32.mrb[0].mxu0
        %v5252 = vadd.f32 0.0, %v5251
        %v5253 = vpop.f32.mrb[0].mxu0
        %v5254 = vadd.f32 0.0, %v5253
        %v5255 = vpop.f32.mrb[0].mxu0
        %v5256 = vadd.f32 0.0, %v5255
        %5257 = vmatprep.mubr.bf16.mxu0 %v5048
        %5258 = vmatmul.mubr.bf16.gmra.mrb[0].mxu0 %v4843
        %v5259 = vpop.f32.mrb[0].mxu0
        %v5260 = vadd.f32 0.0, %v5259
        %v5261 = vpop.f32.mrb[0].mxu0
        %v5262 = vadd.f32 0.0, %v5261
        %v5263 = vpop.f32.mrb[0].mxu0
        %v5264 = vadd.f32 0.0, %v5263
        %v5265 = vpop.f32.mrb[0].mxu0
        %v5266 = vadd.f32 0.0, %v5265
        %5267 = vmatprep.mubr.bf16.mxu0 %v5051
        %5268 = vmatmul.mubr.bf16.gmra.mrb[0].mxu0 %v4851
        %v5269 = vpop.f32.mrb[0].mxu0
        %v5270 = vadd.f32 0.0, %v5269
        %v5271 = vpop.f32.mrb[0].mxu0
        %v5272 = vadd.f32 0.0, %v5271
        %v5273 = vpop.f32.mrb[0].mxu0
        %v5274 = vadd.f32 0.0, %v5273
        %v5275 = vpop.f32.mrb[0].mxu0
        %v5276 = vadd.f32 0.0, %v5275
        %5277 = vmatprep.mubr.bf16.mxu0 %v5054
        %5278 = vmatmul.mubr.bf16.gmra.mrb[0].mxu0 %v4864
        %v5279 = vpop.f32.mrb[0].mxu0
        %v5280 = vadd.f32 0.0, %v5279
        %v5281 = vpop.f32.mrb[0].mxu0
        %v5282 = vadd.f32 0.0, %v5281
        %v5283 = vpop.f32.mrb[0].mxu0
        %v5284 = vadd.f32 0.0, %v5283
        %v5285 = vpop.f32.mrb[0].mxu0
        %v5286 = vadd.f32 0.0, %v5285
        %5287 = vmatprep.mubr.bf16.mxu0 %v5057
        %5288 = vmatmul.mubr.bf16.gmra.mrb[0].mxu0 %v4863
        %v5289 = vpop.f32.mrb[0].mxu0
        %v5290 = vadd.f32 0.0, %v5289
        %v5291 = vpop.f32.mrb[0].mxu0
        %v5292 = vadd.f32 0.0, %v5291
        %v5293 = vpop.f32.mrb[0].mxu0
        %v5294 = vpop.f32.mrb[0].mxu0
        %5295 = vdwg.mxu0
        %v5296 = vadd.f32 %v4587, %v5100
        %v5297 = vadd.f32 %v4588, %v5102
        %v5298 = vadd.f32 %v4589, %v5104
        %v5299 = vadd.f32 %v4590, %v5106
        %v5300 = vadd.f32 %v4591, %v5110
        %v5301 = vadd.f32 %v4592, %v5112
        %v5302 = vadd.f32 %v4593, %v5114
        %v5303 = vadd.f32 %v4594, %v5116
        %v5304 = vadd.f32 %v4595, %v5120
        %v5305 = vadd.f32 %v4596, %v5122
        %v5306 = vadd.f32 %v4597, %v5124
        %v5307 = vadd.f32 %v4598, %v5126
        %v5308 = vadd.f32 %v4599, %v5130
        %v5309 = vadd.f32 %v4600, %v5132
        %v5310 = vadd.f32 %v4601, %v5134
        %v5311 = vadd.f32 %v4602, %v5136
        %v5312 = vadd.f32 %v4603, %v5140
        %v5313 = vadd.f32 %v4604, %v5142
        %v5314 = vadd.f32 %v4605, %v5144
        %v5315 = vadd.f32 %v4606, %v5146
        %v5316 = vadd.f32 %v4607, %v5150
        %v5317 = vadd.f32 %v4608, %v5152
        %v5318 = vadd.f32 %v4609, %v5154
        %v5319 = vadd.f32 %v4610, %v5156
        %v5320 = vadd.f32 %v4611, %v5160
        %v5321 = vadd.f32 %v4612, %v5162
        %v5322 = vadd.f32 %v4613, %v5164
        %v5323 = vadd.f32 %v4614, %v5166
        %v5324 = vadd.f32 %v4615, %v5170
        %v5325 = vadd.f32 %v4616, %v5172
        %v5326 = vadd.f32 %v4617, %v5174
        %v5327 = vadd.f32 %v4618, %v5176
        %v5328 = vadd.f32 %v4619, %v5180
        %v5329 = vadd.f32 %v4620, %v5182
        %v5330 = vadd.f32 %v4621, %v5184
        %v5331 = vadd.f32 %v4622, %v5186
        %v5332 = vadd.f32 %v4623, %v5190
        %v5333 = vadd.f32 %v4624, %v5192
        %v5334 = vadd.f32 %v4625, %v5194
        %v5335 = vadd.f32 %v4626, %v5196
        %v5336 = vadd.f32 %v4627, %v5200
        %v5337 = vadd.f32 %v4628, %v5202
        %v5338 = vadd.f32 %v4629, %v5204
        %v5339 = vadd.f32 %v4630, %v5206
        %v5340 = vadd.f32 %v4631, %v5210
        %v5341 = vadd.f32 %v4632, %v5212
        %v5342 = vadd.f32 %v4633, %v5214
        %v5343 = vadd.f32 %v4634, %v5216
        %v5344 = vadd.f32 %v4635, %v5220
        %v5345 = vadd.f32 %v4636, %v5222
        %v5346 = vadd.f32 %v4637, %v5224
        %v5347 = vadd.f32 %v4638, %v5226
        %v5348 = vadd.f32 %v4639, %v5230
        %v5349 = vadd.f32 %v4640, %v5232
        %v5350 = vadd.f32 %v4641, %v5234
        %v5351 = vadd.f32 %v4642, %v5236
        %v5352 = vadd.f32 %v4643, %v5240
        %v5353 = vadd.f32 %v4644, %v5242
        %v5354 = vadd.f32 %v4645, %v5244
        %v5355 = vadd.f32 %v4646, %v5246
        %v5356 = vadd.f32 %v4647, %v5250
        %v5357 = vadd.f32 %v4648, %v5252
        %v5358 = vadd.f32 %v4649, %v5254
        %v5359 = vadd.f32 %v4650, %v5256
        %v5360 = vadd.f32 %v4651, %v5260
        %v5361 = vadd.f32 %v4652, %v5262
        %v5362 = vadd.f32 %v4653, %v5264
        %v5363 = vadd.f32 %v4654, %v5266
        %v5364 = vadd.f32 %v4655, %v5270
        %v5365 = vadd.f32 %v4656, %v5272
        %v5366 = vadd.f32 %v4657, %v5274
        %v5367 = vadd.f32 %v4658, %v5276
        %v5368 = vadd.f32 %v4659, %v5280
        %v5369 = vadd.f32 %v4660, %v5282
        %v5370 = vadd.f32 %v4661, %v5284
        %v5371 = vadd.f32 %v4662, %v5286
        %v5372 = vadd.f32 %v4663, %v5290
        %v5373 = vadd.f32 %v4664, %v5292
        %v5374 = vld [vmem:[#allocation2] sm:$0xf0]
        %v5375 = vld [vmem:[#allocation2 + $0x8] sm:$0xf0]
        %v5376 = vld [vmem:[#allocation2 + $0x270] sm:$0xf]
        %v5377 = vld [vmem:[#allocation2 + $0x278] sm:$0xf]
        %v5378 = vpack.c.bf16 %v2723, %v5374
        %v5379 = vpack.c.bf16 %v2724, %v5375
        %v5380 = vpack.c.bf16 %v5376, %v2797
        %v5381 = vpack.c.bf16 %v5377, %v2798
        %s5382 = scalar_lea.vmem %s3, 672
        %v5383 = vld [vmem:[%s5382] sm:$0xff]
        %v5384 = vld [vmem:[%s5382 + $0x8] sm:$0xff]
        %v5385 = vld [vmem:[%s5382 + $0x10] sm:$0xff]
        %v5386 = vld [vmem:[%s5382 + $0x18] sm:$0xff]
        %v5387 = vld [vmem:[%s5382 + $0x20] sm:$0xff]
        %v5388 = vld [vmem:[%s5382 + $0x28] sm:$0xff]
        %v5389 = vld [vmem:[%s5382 + $0x30] sm:$0xff]
        %v5390 = vld [vmem:[%s5382 + $0x38] sm:$0xff]
        %v5391 = vld [vmem:[%s5382 + $0x40] sm:$0xff]
        %v5392 = vld [vmem:[%s5382 + $0x48] sm:$0xff]
        %v5393 = vld [vmem:[%s5382 + $0x50] sm:$0xff]
        %v5394 = vld [vmem:[%s5382 + $0x58] sm:$0xff]
        %v5395 = vld [vmem:[%s5382 + $0x60] sm:$0xff]
        %v5396 = vld [vmem:[%s5382 + $0x68] sm:$0xff]
        %v5397 = vld [vmem:[%s5382 + $0x70] sm:$0xff]
        %v5398 = vld [vmem:[%s5382 + $0x78] sm:$0xff]
        %v5399 = vld [vmem:[%s5382 + $0x80] sm:$0xff]
        %v5400 = vld [vmem:[%s5382 + $0x88] sm:$0xff]
        %v5401 = vld [vmem:[%s5382 + $0x90] sm:$0xff]
        %v5402 = vld [vmem:[%s5382 + $0x98] sm:$0xff]
        %v5403 = vld [vmem:[%s5382 + $0xa0] sm:$0xff]
        %vm5408 = vcmask 1045504
        %v5409 = vrot.slane %v5378, 2
        %v5410 = vrot.slane %v2801, 2
        %v5411 = vsel %vm5408, %v5409, %v5410
        %v5412 = vrot.slane %v5379, 2
        %v5413 = vrot.slane %v2802, 2
        %v5414 = vsel %vm5408, %v5412, %v5413
        %v5415 = vrot.slane %v2803, 2
        %v5416 = vsel %vm5408, %v5410, %v5415
        %v5417 = vrot.slane %v2804, 2
        %v5418 = vsel %vm5408, %v5413, %v5417
        %v5419 = vrot.slane %v2805, 2
        %v5420 = vsel %vm5408, %v5415, %v5419
        %v5421 = vrot.slane %v2806, 2
        %v5422 = vsel %vm5408, %v5417, %v5421
        %v5423 = vrot.slane %v2807, 2
        %v5424 = vsel %vm5408, %v5419, %v5423
        %v5425 = vrot.slane %v2808, 2
        %v5426 = vsel %vm5408, %v5421, %v5425
        %v5427 = vrot.slane %v2809, 2
        %v5428 = vsel %vm5408, %v5423, %v5427
        %v5429 = vrot.slane %v2810, 2
        %v5430 = vsel %vm5408, %v5425, %v5429
        %v5431 = vrot.slane %v2811, 2
        %v5432 = vsel %vm5408, %v5427, %v5431
        %v5433 = vrot.slane %v2812, 2
        %v5434 = vsel %vm5408, %v5429, %v5433
        %v5435 = vrot.slane %v2813, 2
        %v5436 = vsel %vm5408, %v5431, %v5435
        %v5437 = vrot.slane %v2814, 2
        %v5438 = vsel %vm5408, %v5433, %v5437
        %v5439 = vrot.slane %v2815, 2
        %v5440 = vsel %vm5408, %v5435, %v5439
        %v5441 = vrot.slane %v2816, 2
        %v5442 = vsel %vm5408, %v5437, %v5441
        %v5443 = vrot.slane %v2817, 2
        %v5444 = vsel %vm5408, %v5439, %v5443
        %v5445 = vrot.slane %v2818, 2
        %v5446 = vsel %vm5408, %v5441, %v5445
        %v5447 = vrot.slane %v2819, 2
        %v5448 = vsel %vm5408, %v5443, %v5447
        %v5449 = vrot.slane %v2820, 2
        %v5450 = vsel %vm5408, %v5445, %v5449
        %v5451 = vrot.slane %v2821, 2
        %v5452 = vsel %vm5408, %v5447, %v5451
        %v5453 = vrot.slane %v2822, 2
        %v5454 = vsel %vm5408, %v5449, %v5453
        %v5455 = vrot.slane %v2823, 2
        %v5456 = vsel %vm5408, %v5451, %v5455
        %v5457 = vrot.slane %v2824, 2
        %v5458 = vsel %vm5408, %v5453, %v5457
        %v5459 = vrot.slane %v2825, 2
        %v5460 = vsel %vm5408, %v5455, %v5459
        %v5461 = vrot.slane %v2826, 2
        %v5462 = vsel %vm5408, %v5457, %v5461
        %v5463 = vrot.slane %v2827, 2
        %v5464 = vsel %vm5408, %v5459, %v5463
        %v5465 = vrot.slane %v2828, 2
        %v5466 = vsel %vm5408, %v5461, %v5465
        %v5467 = vrot.slane %v2829, 2
        %v5468 = vsel %vm5408, %v5463, %v5467
        %v5469 = vrot.slane %v2830, 2
        %v5470 = vsel %vm5408, %v5465, %v5469
        %v5471 = vrot.slane %v2831, 2
        %v5472 = vsel %vm5408, %v5467, %v5471
        %v5473 = vrot.slane %v2832, 2
        %v5474 = vsel %vm5408, %v5469, %v5473
        %v5475 = vrot.slane %v2833, 2
        %v5476 = vsel %vm5408, %v5471, %v5475
        %v5477 = vrot.slane %v2834, 2
        %v5478 = vsel %vm5408, %v5473, %v5477
        %v5479 = vrot.slane %v2835, 2
        %v5480 = vsel %vm5408, %v5475, %v5479
        %v5481 = vrot.slane %v2836, 2
        %v5482 = vsel %vm5408, %v5477, %v5481
        %v5483 = vrot.slane %v5380, 2
        %v5484 = vsel %vm5408, %v5479, %v5483
        %v5485 = vrot.slane %v5381, 2
        %v5486 = vsel %vm5408, %v5481, %v5485
        %v5528 = vunpack.c.l.b16 %v5383
        %v5529 = vunpack.c.h.b16 %v5383
        %v5530 = vunpack.c.l.b16 %v5384
        %v5531 = vunpack.c.h.b16 %v5384
        %v5532 = vunpack.c.l.b16 %v5385
        %v5533 = vunpack.c.h.b16 %v5385
        %v5534 = vunpack.c.l.b16 %v5386
        %v5535 = vunpack.c.h.b16 %v5386
        %v5536 = vunpack.c.l.b16 %v5387
        %v5537 = vunpack.c.h.b16 %v5387
        %v5538 = vunpack.c.l.b16 %v5388
        %v5539 = vunpack.c.h.b16 %v5388
        %v5540 = vunpack.c.l.b16 %v5389
        %v5541 = vunpack.c.h.b16 %v5389
        %v5542 = vunpack.c.l.b16 %v5390
        %v5543 = vunpack.c.h.b16 %v5390
        %v5544 = vunpack.c.l.b16 %v5391
        %v5545 = vunpack.c.h.b16 %v5391
        %v5546 = vunpack.c.l.b16 %v5392
        %v5547 = vunpack.c.h.b16 %v5392
        %v5548 = vunpack.c.l.b16 %v5393
        %v5549 = vunpack.c.h.b16 %v5393
        %v5550 = vunpack.c.l.b16 %v5394
        %v5551 = vunpack.c.h.b16 %v5394
        %v5552 = vunpack.c.l.b16 %v5395
        %v5553 = vunpack.c.h.b16 %v5395
        %v5554 = vunpack.c.l.b16 %v5396
        %v5555 = vunpack.c.h.b16 %v5396
        %v5556 = vunpack.c.l.b16 %v5397
        %v5557 = vunpack.c.h.b16 %v5397
        %v5558 = vunpack.c.l.b16 %v5398
        %v5559 = vunpack.c.h.b16 %v5398
        %v5560 = vunpack.c.l.b16 %v5399
        %v5561 = vunpack.c.h.b16 %v5399
        %v5562 = vunpack.c.l.b16 %v5400
        %v5563 = vunpack.c.h.b16 %v5400
        %v5564 = vunpack.c.l.b16 %v5401
        %v5565 = vunpack.c.h.b16 %v5401
        %v5566 = vunpack.c.l.b16 %v5402
        %v5567 = vunpack.c.h.b16 %v5402
        %v5568 = vunpack.c.l.b16 %v5403
        %v5569 = vunpack.c.h.b16 %v5403
        %v5570 = vpack.c.b16 %v5530, %v5528
        %v5571 = vpack.c.b16 %v5531, %v5529
        %v5572 = vpack.c.b16 %v5534, %v5532
        %v5573 = vpack.c.b16 %v5535, %v5533
        %v5574 = vpack.c.b16 %v5538, %v5536
        %v5575 = vpack.c.b16 %v5539, %v5537
        %v5576 = vpack.c.b16 %v5542, %v5540
        %v5577 = vpack.c.b16 %v5543, %v5541
        %v5578 = vpack.c.b16 %v5546, %v5544
        %v5579 = vpack.c.b16 %v5547, %v5545
        %v5580 = vpack.c.b16 %v5550, %v5548
        %v5581 = vpack.c.b16 %v5551, %v5549
        %v5582 = vpack.c.b16 %v5554, %v5552
        %v5583 = vpack.c.b16 %v5555, %v5553
        %v5584 = vpack.c.b16 %v5558, %v5556
        %v5585 = vpack.c.b16 %v5559, %v5557
        %v5586 = vpack.c.b16 %v5562, %v5560
        %v5587 = vpack.c.b16 %v5563, %v5561
        %v5588 = vpack.c.b16 %v5566, %v5564
        %v5589 = vpack.c.b16 %v5567, %v5565
        %v5590 = vpack.c.b16 %v5568, %v5568
        %v5591 = vpack.c.b16 %v5569, %v5569
        %v5613 = vsel %vm2639, %v5414, 0
        %v5616 = vsel %vm2639, %v5418, 0
        %v5619 = vsel %vm2639, %v5422, 0
        %v5622 = vsel %vm2639, %v5426, 0
        %v5625 = vsel %vm2639, %v5430, 0
        %v5628 = vsel %vm2639, %v5434, 0
        %v5631 = vsel %vm2639, %v5438, 0
        %v5634 = vsel %vm2639, %v5442, 0
        %v5637 = vsel %vm2639, %v5446, 0
        %v5640 = vsel %vm2639, %v5450, 0
        %v5643 = vsel %vm2639, %v5454, 0
        %v5646 = vsel %vm2639, %v5458, 0
        %v5649 = vsel %vm2639, %v5462, 0
        %v5652 = vsel %vm2639, %v5466, 0
        %v5655 = vsel %vm2639, %v5470, 0
        %v5658 = vsel %vm2639, %v5474, 0
        %v5661 = vsel %vm2639, %v5478, 0
        %v5664 = vsel %vm2639, %v5482, 0
        %v5667 = vsel %vm2639, %v5486, 0
        %v5670 = vsel %vm2639, %v5485, 0
        %v5673 = vsel %vm3394, %v5590, 0
        %v5676 = vsel %vm3394, %v5591, 0
        %5678 = vmatprep.subr.bf16.mxu0 %v5571
        %5679 = vmatpush1.bf16.msra.mxu0 %v5570
        %5680 = vmatprep.subr.bf16.mxu0 %v5573
        %5681 = vmatpush1.bf16.msra.mxu0 %v5572
        %5682 = vmatprep.subr.bf16.mxu0 %v5575
        %5683 = vmatpush1.bf16.msra.mxu0 %v5574
        %5684 = vmatprep.subr.bf16.mxu0 %v5577
        %5685 = vmatpush1.bf16.msra.mxu0 %v5576
        %5686 = vmatprep.subr.bf16.mxu0 %v5579
        %5687 = vmatpush1.bf16.msra.mxu0 %v5578
        %5688 = vmatprep.subr.bf16.mxu0 %v5581
        %5689 = vmatpush1.bf16.msra.mxu0 %v5580
        %5690 = vmatprep.subr.bf16.mxu0 %v5583
        %5691 = vmatpush1.bf16.msra.mxu0 %v5582
        %5692 = vmatprep.subr.bf16.mxu0 %v5585
        %5693 = vmatpush1.bf16.msra.mxu0 %v5584
        %5694 = vmatprep.subr.bf16.mxu0 %v5587
        %5695 = vmatpush1.bf16.msra.mxu0 %v5586
        %5696 = vmatprep.subr.bf16.mxu0 %v5589
        %5697 = vmatpush1.bf16.msra.mxu0 %v5588
        %5698 = vmatprep.subr.bf16.mxu0 %v5676
        %5699 = vmatpush1.bf16.msra.mxu0 %v5673
        %5700 = vmatprep.subr.bf16.mxu0 0
        %5701 = vmatpush1.bf16.msra.mxu0 0
        %5702 = vmatprep.subr.bf16.mxu0 0
        %5703 = vmatpush1.bf16.msra.mxu0 0
        %5704 = vmatprep.subr.bf16.mxu0 0
        %5705 = vmatpush1.bf16.msra.mxu0 0
        %5706 = vmatprep.subr.bf16.mxu0 0
        %5707 = vmatpush1.bf16.msra.mxu0 0
        %5708 = vmatprep.subr.bf16.mxu0 0
        %5709 = vmatpush1.bf16.msra.mxu0 0
        %5710 = vmatprep.mubr.bf16.mxu0 %v5613
        %5711 = vmatmul.mubr.bf16.gmra.mrb[0].mxu0 %v5411
        %v5712 = vpop.f32.mrb[0].mxu0
        %v5713 = vadd.f32 0.0, %v5712
        %v5714 = vpop.f32.mrb[0].mxu0
        %v5715 = vadd.f32 0.0, %v5714
        %v5716 = vpop.f32.mrb[0].mxu0
        %v5717 = vadd.f32 0.0, %v5716
        %v5718 = vpop.f32.mrb[0].mxu0
        %v5719 = vadd.f32 0.0, %v5718
        %5720 = vmatprep.mubr.bf16.mxu0 %v5616
        %5721 = vmatmul.mubr.bf16.gmra.mrb[0].mxu0 %v5416
        %v5722 = vpop.f32.mrb[0].mxu0
        %v5723 = vadd.f32 0.0, %v5722
        %v5724 = vpop.f32.mrb[0].mxu0
        %v5725 = vadd.f32 0.0, %v5724
        %v5726 = vpop.f32.mrb[0].mxu0
        %v5727 = vadd.f32 0.0, %v5726
        %v5728 = vpop.f32.mrb[0].mxu0
        %v5729 = vadd.f32 0.0, %v5728
        %5730 = vmatprep.mubr.bf16.mxu0 %v5619
        %5731 = vmatmul.mubr.bf16.gmra.mrb[0].mxu0 %v5420
        %v5732 = vpop.f32.mrb[0].mxu0
        %v5733 = vadd.f32 0.0, %v5732
        %v5734 = vpop.f32.mrb[0].mxu0
        %v5735 = vadd.f32 0.0, %v5734
        %v5736 = vpop.f32.mrb[0].mxu0
        %v5737 = vadd.f32 0.0, %v5736
        %v5738 = vpop.f32.mrb[0].mxu0
        %v5739 = vadd.f32 0.0, %v5738
        %5740 = vmatprep.mubr.bf16.mxu0 %v5622
        %5741 = vmatmul.mubr.bf16.gmra.mrb[0].mxu0 %v5424
        %v5742 = vpop.f32.mrb[0].mxu0
        %v5743 = vadd.f32 0.0, %v5742
        %v5744 = vpop.f32.mrb[0].mxu0
        %v5745 = vadd.f32 0.0, %v5744
        %v5746 = vpop.f32.mrb[0].mxu0
        %v5747 = vadd.f32 0.0, %v5746
        %v5748 = vpop.f32.mrb[0].mxu0
        %v5749 = vadd.f32 0.0, %v5748
        %5750 = vmatprep.mubr.bf16.mxu0 %v5625
        %5751 = vmatmul.mubr.bf16.gmra.mrb[0].mxu0 %v5428
        %v5752 = vpop.f32.mrb[0].mxu0
        %v5753 = vadd.f32 0.0, %v5752
        %v5754 = vpop.f32.mrb[0].mxu0
        %v5755 = vadd.f32 0.0, %v5754
        %v5756 = vpop.f32.mrb[0].mxu0
        %v5757 = vadd.f32 0.0, %v5756
        %v5758 = vpop.f32.mrb[0].mxu0
        %v5759 = vadd.f32 0.0, %v5758
        %5760 = vmatprep.mubr.bf16.mxu0 %v5628
        %5761 = vmatmul.mubr.bf16.gmra.mrb[0].mxu0 %v5432
        %v5762 = vpop.f32.mrb[0].mxu0
        %v5763 = vadd.f32 0.0, %v5762
        %v5764 = vpop.f32.mrb[0].mxu0
        %v5765 = vadd.f32 0.0, %v5764
        %v5766 = vpop.f32.mrb[0].mxu0
        %v5767 = vadd.f32 0.0, %v5766
        %v5768 = vpop.f32.mrb[0].mxu0
        %v5769 = vadd.f32 0.0, %v5768
        %5770 = vmatprep.mubr.bf16.mxu0 %v5631
        %5771 = vmatmul.mubr.bf16.gmra.mrb[0].mxu0 %v5436
        %v5772 = vpop.f32.mrb[0].mxu0
        %v5773 = vadd.f32 0.0, %v5772
        %v5774 = vpop.f32.mrb[0].mxu0
        %v5775 = vadd.f32 0.0, %v5774
        %v5776 = vpop.f32.mrb[0].mxu0
        %v5777 = vadd.f32 0.0, %v5776
        %v5778 = vpop.f32.mrb[0].mxu0
        %v5779 = vadd.f32 0.0, %v5778
        %5780 = vmatprep.mubr.bf16.mxu0 %v5634
        %5781 = vmatmul.mubr.bf16.gmra.mrb[0].mxu0 %v5440
        %v5782 = vpop.f32.mrb[0].mxu0
        %v5783 = vadd.f32 0.0, %v5782
        %v5784 = vpop.f32.mrb[0].mxu0
        %v5785 = vadd.f32 0.0, %v5784
        %v5786 = vpop.f32.mrb[0].mxu0
        %v5787 = vadd.f32 0.0, %v5786
        %v5788 = vpop.f32.mrb[0].mxu0
        %v5789 = vadd.f32 0.0, %v5788
        %5790 = vmatprep.mubr.bf16.mxu0 %v5637
        %5791 = vmatmul.mubr.bf16.gmra.mrb[0].mxu0 %v5444
        %v5792 = vpop.f32.mrb[0].mxu0
        %v5793 = vadd.f32 0.0, %v5792
        %v5794 = vpop.f32.mrb[0].mxu0
        %v5795 = vadd.f32 0.0, %v5794
        %v5796 = vpop.f32.mrb[0].mxu0
        %v5797 = vadd.f32 0.0, %v5796
        %v5798 = vpop.f32.mrb[0].mxu0
        %v5799 = vadd.f32 0.0, %v5798
        %5800 = vmatprep.mubr.bf16.mxu0 %v5640
        %5801 = vmatmul.mubr.bf16.gmra.mrb[0].mxu0 %v5448
        %v5802 = vpop.f32.mrb[0].mxu0
        %v5803 = vadd.f32 0.0, %v5802
        %v5804 = vpop.f32.mrb[0].mxu0
        %v5805 = vadd.f32 0.0, %v5804
        %v5806 = vpop.f32.mrb[0].mxu0
        %v5807 = vadd.f32 0.0, %v5806
        %v5808 = vpop.f32.mrb[0].mxu0
        %v5809 = vadd.f32 0.0, %v5808
        %5810 = vmatprep.mubr.bf16.mxu0 %v5643
        %5811 = vmatmul.mubr.bf16.gmra.mrb[0].mxu0 %v5452
        %v5812 = vpop.f32.mrb[0].mxu0
        %v5813 = vadd.f32 0.0, %v5812
        %v5814 = vpop.f32.mrb[0].mxu0
        %v5815 = vadd.f32 0.0, %v5814
        %v5816 = vpop.f32.mrb[0].mxu0
        %v5817 = vadd.f32 0.0, %v5816
        %v5818 = vpop.f32.mrb[0].mxu0
        %v5819 = vadd.f32 0.0, %v5818
        %5820 = vmatprep.mubr.bf16.mxu0 %v5646
        %5821 = vmatmul.mubr.bf16.gmra.mrb[0].mxu0 %v5456
        %v5822 = vpop.f32.mrb[0].mxu0
        %v5823 = vadd.f32 0.0, %v5822
        %v5824 = vpop.f32.mrb[0].mxu0
        %v5825 = vadd.f32 0.0, %v5824
        %v5826 = vpop.f32.mrb[0].mxu0
        %v5827 = vadd.f32 0.0, %v5826
        %v5828 = vpop.f32.mrb[0].mxu0
        %v5829 = vadd.f32 0.0, %v5828
        %5830 = vmatprep.mubr.bf16.mxu0 %v5649
        %5831 = vmatmul.mubr.bf16.gmra.mrb[0].mxu0 %v5460
        %v5832 = vpop.f32.mrb[0].mxu0
        %v5833 = vadd.f32 0.0, %v5832
        %v5834 = vpop.f32.mrb[0].mxu0
        %v5835 = vadd.f32 0.0, %v5834
        %v5836 = vpop.f32.mrb[0].mxu0
        %v5837 = vadd.f32 0.0, %v5836
        %v5838 = vpop.f32.mrb[0].mxu0
        %v5839 = vadd.f32 0.0, %v5838
        %5840 = vmatprep.mubr.bf16.mxu0 %v5652
        %5841 = vmatmul.mubr.bf16.gmra.mrb[0].mxu0 %v5464
        %v5842 = vpop.f32.mrb[0].mxu0
        %v5843 = vadd.f32 0.0, %v5842
        %v5844 = vpop.f32.mrb[0].mxu0
        %v5845 = vadd.f32 0.0, %v5844
        %v5846 = vpop.f32.mrb[0].mxu0
        %v5847 = vadd.f32 0.0, %v5846
        %v5848 = vpop.f32.mrb[0].mxu0
        %v5849 = vadd.f32 0.0, %v5848
        %5850 = vmatprep.mubr.bf16.mxu0 %v5655
        %5851 = vmatmul.mubr.bf16.gmra.mrb[0].mxu0 %v5468
        %v5852 = vpop.f32.mrb[0].mxu0
        %v5853 = vadd.f32 0.0, %v5852
        %v5854 = vpop.f32.mrb[0].mxu0
        %v5855 = vadd.f32 0.0, %v5854
        %v5856 = vpop.f32.mrb[0].mxu0
        %v5857 = vadd.f32 0.0, %v5856
        %v5858 = vpop.f32.mrb[0].mxu0
        %v5859 = vadd.f32 0.0, %v5858
        %5860 = vmatprep.mubr.bf16.mxu0 %v5658
        %5861 = vmatmul.mubr.bf16.gmra.mrb[0].mxu0 %v5472
        %v5862 = vpop.f32.mrb[0].mxu0
        %v5863 = vadd.f32 0.0, %v5862
        %v5864 = vpop.f32.mrb[0].mxu0
        %v5865 = vadd.f32 0.0, %v5864
        %v5866 = vpop.f32.mrb[0].mxu0
        %v5867 = vadd.f32 0.0, %v5866
        %v5868 = vpop.f32.mrb[0].mxu0
        %v5869 = vadd.f32 0.0, %v5868
        %5870 = vmatprep.mubr.bf16.mxu0 %v5661
        %5871 = vmatmul.mubr.bf16.gmra.mrb[0].mxu0 %v5476
        %v5872 = vpop.f32.mrb[0].mxu0
        %v5873 = vadd.f32 0.0, %v5872
        %v5874 = vpop.f32.mrb[0].mxu0
        %v5875 = vadd.f32 0.0, %v5874
        %v5876 = vpop.f32.mrb[0].mxu0
        %v5877 = vadd.f32 0.0, %v5876
        %v5878 = vpop.f32.mrb[0].mxu0
        %v5879 = vadd.f32 0.0, %v5878
        %5880 = vmatprep.mubr.bf16.mxu0 %v5664
        %5881 = vmatmul.mubr.bf16.gmra.mrb[0].mxu0 %v5480
        %v5882 = vpop.f32.mrb[0].mxu0
        %v5883 = vadd.f32 0.0, %v5882
        %v5884 = vpop.f32.mrb[0].mxu0
        %v5885 = vadd.f32 0.0, %v5884
        %v5886 = vpop.f32.mrb[0].mxu0
        %v5887 = vadd.f32 0.0, %v5886
        %v5888 = vpop.f32.mrb[0].mxu0
        %v5889 = vadd.f32 0.0, %v5888
        %5890 = vmatprep.mubr.bf16.mxu0 %v5667
        %5891 = vmatmul.mubr.bf16.gmra.mrb[0].mxu0 %v5484
        %v5892 = vpop.f32.mrb[0].mxu0
        %v5893 = vadd.f32 0.0, %v5892
        %v5894 = vpop.f32.mrb[0].mxu0
        %v5895 = vadd.f32 0.0, %v5894
        %v5896 = vpop.f32.mrb[0].mxu0
        %v5897 = vadd.f32 0.0, %v5896
        %v5898 = vpop.f32.mrb[0].mxu0
        %v5899 = vadd.f32 0.0, %v5898
        %5900 = vmatprep.mubr.bf16.mxu0 %v5670
        %5901 = vmatmul.mubr.bf16.gmra.mrb[0].mxu0 %v5483
        %v5902 = vpop.f32.mrb[0].mxu0
        %v5903 = vadd.f32 0.0, %v5902
        %v5904 = vpop.f32.mrb[0].mxu0
        %v5905 = vadd.f32 0.0, %v5904
        %v5906 = vpop.f32.mrb[0].mxu0
        %v5907 = vpop.f32.mrb[0].mxu0
        %5908 = vdwg.mxu0
        %v5909 = vadd.f32 %v5296, %v5713
        %v5910 = vadd.f32 %v5297, %v5715
        %v5911 = vadd.f32 %v5298, %v5717
        %v5912 = vadd.f32 %v5299, %v5719
        %v5913 = vadd.f32 %v5300, %v5723
        %v5914 = vadd.f32 %v5301, %v5725
        %v5915 = vadd.f32 %v5302, %v5727
        %v5916 = vadd.f32 %v5303, %v5729
        %v5917 = vadd.f32 %v5304, %v5733
        %v5918 = vadd.f32 %v5305, %v5735
        %v5919 = vadd.f32 %v5306, %v5737
        %v5920 = vadd.f32 %v5307, %v5739
        %v5921 = vadd.f32 %v5308, %v5743
        %v5922 = vadd.f32 %v5309, %v5745
        %v5923 = vadd.f32 %v5310, %v5747
        %v5924 = vadd.f32 %v5311, %v5749
        %v5925 = vadd.f32 %v5312, %v5753
        %v5926 = vadd.f32 %v5313, %v5755
        %v5927 = vadd.f32 %v5314, %v5757
        %v5928 = vadd.f32 %v5315, %v5759
        %v5929 = vadd.f32 %v5316, %v5763
        %v5930 = vadd.f32 %v5317, %v5765
        %v5931 = vadd.f32 %v5318, %v5767
        %v5932 = vadd.f32 %v5319, %v5769
        %v5933 = vadd.f32 %v5320, %v5773
        %v5934 = vadd.f32 %v5321, %v5775
        %v5935 = vadd.f32 %v5322, %v5777
        %v5936 = vadd.f32 %v5323, %v5779
        %v5937 = vadd.f32 %v5324, %v5783
        %v5938 = vadd.f32 %v5325, %v5785
        %v5939 = vadd.f32 %v5326, %v5787
        %v5940 = vadd.f32 %v5327, %v5789
        %v5941 = vadd.f32 %v5328, %v5793
        %v5942 = vadd.f32 %v5329, %v5795
        %v5943 = vadd.f32 %v5330, %v5797
        %v5944 = vadd.f32 %v5331, %v5799
        %v5945 = vadd.f32 %v5332, %v5803
        %v5946 = vadd.f32 %v5333, %v5805
        %v5947 = vadd.f32 %v5334, %v5807
        %v5948 = vadd.f32 %v5335, %v5809
        %v5949 = vadd.f32 %v5336, %v5813
        %v5950 = vadd.f32 %v5337, %v5815
        %v5951 = vadd.f32 %v5338, %v5817
        %v5952 = vadd.f32 %v5339, %v5819
        %v5953 = vadd.f32 %v5340, %v5823
        %v5954 = vadd.f32 %v5341, %v5825
        %v5955 = vadd.f32 %v5342, %v5827
        %v5956 = vadd.f32 %v5343, %v5829
        %v5957 = vadd.f32 %v5344, %v5833
        %v5958 = vadd.f32 %v5345, %v5835
        %v5959 = vadd.f32 %v5346, %v5837
        %v5960 = vadd.f32 %v5347, %v5839
        %v5961 = vadd.f32 %v5348, %v5843
        %v5962 = vadd.f32 %v5349, %v5845
        %v5963 = vadd.f32 %v5350, %v5847
        %v5964 = vadd.f32 %v5351, %v5849
        %v5965 = vadd.f32 %v5352, %v5853
        %v5966 = vadd.f32 %v5353, %v5855
        %v5967 = vadd.f32 %v5354, %v5857
        %v5968 = vadd.f32 %v5355, %v5859
        %v5969 = vadd.f32 %v5356, %v5863
        %v5970 = vadd.f32 %v5357, %v5865
        %v5971 = vadd.f32 %v5358, %v5867
        %v5972 = vadd.f32 %v5359, %v5869
        %v5973 = vadd.f32 %v5360, %v5873
        %v5974 = vadd.f32 %v5361, %v5875
        %v5975 = vadd.f32 %v5362, %v5877
        %v5976 = vadd.f32 %v5363, %v5879
        %v5977 = vadd.f32 %v5364, %v5883
        %v5978 = vadd.f32 %v5365, %v5885
        %v5979 = vadd.f32 %v5366, %v5887
        %v5980 = vadd.f32 %v5367, %v5889
        %v5981 = vadd.f32 %v5368, %v5893
        %v5982 = vadd.f32 %v5369, %v5895
        %v5983 = vadd.f32 %v5370, %v5897
        %v5984 = vadd.f32 %v5371, %v5899
        %v5985 = vadd.f32 %v5372, %v5903
        %v5986 = vadd.f32 %v5373, %v5905
        %v5987 = vld [vmem:[#allocation2] sm:$0xe0]
        %v5988 = vld [vmem:[#allocation2 + $0x8] sm:$0xe0]
        %v5989 = vld [vmem:[#allocation2 + $0x270] sm:$0x1f]
        %v5990 = vld [vmem:[#allocation2 + $0x278] sm:$0x1f]
        %v5991 = vpack.c.bf16 %v2723, %v5987
        %v5992 = vpack.c.bf16 %v2724, %v5988
        %v5993 = vpack.c.bf16 %v5989, %v2797
        %v5994 = vpack.c.bf16 %v5990, %v2798
        %s5995 = scalar_lea.vmem %s3, 840
        %v5996 = vld [vmem:[%s5995] sm:$0xff]
        %v5997 = vld [vmem:[%s5995 + $0x8] sm:$0xff]
        %v5998 = vld [vmem:[%s5995 + $0x10] sm:$0xff]
        %v5999 = vld [vmem:[%s5995 + $0x18] sm:$0xff]
        %v6000 = vld [vmem:[%s5995 + $0x20] sm:$0xff]
        %v6001 = vld [vmem:[%s5995 + $0x28] sm:$0xff]
        %v6002 = vld [vmem:[%s5995 + $0x30] sm:$0xff]
        %v6003 = vld [vmem:[%s5995 + $0x38] sm:$0xff]
        %v6004 = vld [vmem:[%s5995 + $0x40] sm:$0xff]
        %v6005 = vld [vmem:[%s5995 + $0x48] sm:$0xff]
        %v6006 = vld [vmem:[%s5995 + $0x50] sm:$0xff]
        %v6007 = vld [vmem:[%s5995 + $0x58] sm:$0xff]
        %v6008 = vld [vmem:[%s5995 + $0x60] sm:$0xff]
        %v6009 = vld [vmem:[%s5995 + $0x68] sm:$0xff]
        %v6010 = vld [vmem:[%s5995 + $0x70] sm:$0xff]
        %v6011 = vld [vmem:[%s5995 + $0x78] sm:$0xff]
        %v6012 = vld [vmem:[%s5995 + $0x80] sm:$0xff]
        %v6013 = vld [vmem:[%s5995 + $0x88] sm:$0xff]
        %v6014 = vld [vmem:[%s5995 + $0x90] sm:$0xff]
        %v6015 = vld [vmem:[%s5995 + $0x98] sm:$0xff]
        %v6016 = vld [vmem:[%s5995 + $0xa0] sm:$0xff]
        %vm6017 = vsmask.f32 5376
        %v6019 = vshrl.u32 %v5991, 16
        %v6021 = vrot.slane %v6019, 2
        %v6022 = vshll.u32 %v5991, 16
        %v6024 = vrot.slane %v6022, 3
        %v6025 = vor.u32 %v6021, %v6024
        %v6026 = vrot.slane %v2915, 2
        %v6027 = vrot.slane %v2899, 3
        %v6028 = vor.u32 %v6026, %v6027
        %v6029 = vsel %vm6017, %v6025, %v6028
        %v6031 = vshrl.u32 %v5992, 16
        %v6033 = vrot.slane %v6031, 2
        %v6034 = vshll.u32 %v5992, 16
        %v6036 = vrot.slane %v6034, 3
        %v6037 = vor.u32 %v6033, %v6036
        %v6038 = vrot.slane %v2923, 2
        %v6039 = vrot.slane %v2911, 3
        %v6040 = vor.u32 %v6038, %v6039
        %v6041 = vsel %vm6017, %v6037, %v6040
        %v6042 = vrot.slane %v2931, 2
        %v6043 = vrot.slane %v2919, 3
        %v6044 = vor.u32 %v6042, %v6043
        %v6045 = vsel %vm6017, %v6028, %v6044
        %v6046 = vrot.slane %v2939, 2
        %v6047 = vrot.slane %v2927, 3
        %v6048 = vor.u32 %v6046, %v6047
        %v6049 = vsel %vm6017, %v6040, %v6048
        %v6050 = vrot.slane %v2947, 2
        %v6051 = vrot.slane %v2935, 3
        %v6052 = vor.u32 %v6050, %v6051
        %v6053 = vsel %vm6017, %v6044, %v6052
        %v6054 = vrot.slane %v2955, 2
        %v6055 = vrot.slane %v2943, 3
        %v6056 = vor.u32 %v6054, %v6055
        %v6057 = vsel %vm6017, %v6048, %v6056
        %v6058 = vrot.slane %v2963, 2
        %v6059 = vrot.slane %v2951, 3
        %v6060 = vor.u32 %v6058, %v6059
        %v6061 = vsel %vm6017, %v6052, %v6060
        %v6062 = vrot.slane %v2971, 2
        %v6063 = vrot.slane %v2959, 3
        %v6064 = vor.u32 %v6062, %v6063
        %v6065 = vsel %vm6017, %v6056, %v6064
        %v6066 = vrot.slane %v2979, 2
        %v6067 = vrot.slane %v2967, 3
        %v6068 = vor.u32 %v6066, %v6067
        %v6069 = vsel %vm6017, %v6060, %v6068
        %v6070 = vrot.slane %v2987, 2
        %v6071 = vrot.slane %v2975, 3
        %v6072 = vor.u32 %v6070, %v6071
        %v6073 = vsel %vm6017, %v6064, %v6072
        %v6074 = vrot.slane %v2995, 2
        %v6075 = vrot.slane %v2983, 3
        %v6076 = vor.u32 %v6074, %v6075
        %v6077 = vsel %vm6017, %v6068, %v6076
        %v6078 = vrot.slane %v3003, 2
        %v6079 = vrot.slane %v2991, 3
        %v6080 = vor.u32 %v6078, %v6079
        %v6081 = vsel %vm6017, %v6072, %v6080
        %v6082 = vrot.slane %v3011, 2
        %v6083 = vrot.slane %v2999, 3
        %v6084 = vor.u32 %v6082, %v6083
        %v6085 = vsel %vm6017, %v6076, %v6084
        %v6086 = vrot.slane %v3019, 2
        %v6087 = vrot.slane %v3007, 3
        %v6088 = vor.u32 %v6086, %v6087
        %v6089 = vsel %vm6017, %v6080, %v6088
        %v6090 = vrot.slane %v3027, 2
        %v6091 = vrot.slane %v3015, 3
        %v6092 = vor.u32 %v6090, %v6091
        %v6093 = vsel %vm6017, %v6084, %v6092
        %v6094 = vrot.slane %v3035, 2
        %v6095 = vrot.slane %v3023, 3
        %v6096 = vor.u32 %v6094, %v6095
        %v6097 = vsel %vm6017, %v6088, %v6096
        %v6098 = vrot.slane %v3043, 2
        %v6099 = vrot.slane %v3031, 3
        %v6100 = vor.u32 %v6098, %v6099
        %v6101 = vsel %vm6017, %v6092, %v6100
        %v6102 = vrot.slane %v3051, 2
        %v6103 = vrot.slane %v3039, 3
        %v6104 = vor.u32 %v6102, %v6103
        %v6105 = vsel %vm6017, %v6096, %v6104
        %v6106 = vrot.slane %v3059, 2
        %v6107 = vrot.slane %v3047, 3
        %v6108 = vor.u32 %v6106, %v6107
        %v6109 = vsel %vm6017, %v6100, %v6108
        %v6110 = vrot.slane %v3067, 2
        %v6111 = vrot.slane %v3055, 3
        %v6112 = vor.u32 %v6110, %v6111
        %v6113 = vsel %vm6017, %v6104, %v6112
        %v6114 = vrot.slane %v3075, 2
        %v6115 = vrot.slane %v3063, 3
        %v6116 = vor.u32 %v6114, %v6115
        %v6117 = vsel %vm6017, %v6108, %v6116
        %v6118 = vrot.slane %v3083, 2
        %v6119 = vrot.slane %v3071, 3
        %v6120 = vor.u32 %v6118, %v6119
        %v6121 = vsel %vm6017, %v6112, %v6120
        %v6122 = vrot.slane %v3091, 2
        %v6123 = vrot.slane %v3079, 3
        %v6124 = vor.u32 %v6122, %v6123
        %v6125 = vsel %vm6017, %v6116, %v6124
        %v6126 = vrot.slane %v3099, 2
        %v6127 = vrot.slane %v3087, 3
        %v6128 = vor.u32 %v6126, %v6127
        %v6129 = vsel %vm6017, %v6120, %v6128
        %v6130 = vrot.slane %v3107, 2
        %v6131 = vrot.slane %v3095, 3
        %v6132 = vor.u32 %v6130, %v6131
        %v6133 = vsel %vm6017, %v6124, %v6132
        %v6134 = vrot.slane %v3115, 2
        %v6135 = vrot.slane %v3103, 3
        %v6136 = vor.u32 %v6134, %v6135
        %v6137 = vsel %vm6017, %v6128, %v6136
        %v6138 = vrot.slane %v3123, 2
        %v6139 = vrot.slane %v3111, 3
        %v6140 = vor.u32 %v6138, %v6139
        %v6141 = vsel %vm6017, %v6132, %v6140
        %v6142 = vrot.slane %v3131, 2
        %v6143 = vrot.slane %v3119, 3
        %v6144 = vor.u32 %v6142, %v6143
        %v6145 = vsel %vm6017, %v6136, %v6144
        %v6146 = vrot.slane %v3139, 2
        %v6147 = vrot.slane %v3127, 3
        %v6148 = vor.u32 %v6146, %v6147
        %v6149 = vsel %vm6017, %v6140, %v6148
        %v6150 = vrot.slane %v3147, 2
        %v6151 = vrot.slane %v3135, 3
        %v6152 = vor.u32 %v6150, %v6151
        %v6153 = vsel %vm6017, %v6144, %v6152
        %v6154 = vrot.slane %v3155, 2
        %v6155 = vrot.slane %v3143, 3
        %v6156 = vor.u32 %v6154, %v6155
        %v6157 = vsel %vm6017, %v6148, %v6156
        %v6158 = vrot.slane %v3163, 2
        %v6159 = vrot.slane %v3151, 3
        %v6160 = vor.u32 %v6158, %v6159
        %v6161 = vsel %vm6017, %v6152, %v6160
        %v6162 = vrot.slane %v3171, 2
        %v6163 = vrot.slane %v3159, 3
        %v6164 = vor.u32 %v6162, %v6163
        %v6165 = vsel %vm6017, %v6156, %v6164
        %v6166 = vrot.slane %v3179, 2
        %v6167 = vrot.slane %v3167, 3
        %v6168 = vor.u32 %v6166, %v6167
        %v6169 = vsel %vm6017, %v6160, %v6168
        %v6170 = vrot.slane %v3187, 2
        %v6171 = vrot.slane %v3175, 3
        %v6172 = vor.u32 %v6170, %v6171
        %v6173 = vsel %vm6017, %v6164, %v6172
        %v6174 = vrot.slane %v3195, 2
        %v6175 = vrot.slane %v3183, 3
        %v6176 = vor.u32 %v6174, %v6175
        %v6177 = vsel %vm6017, %v6168, %v6176
        %v6179 = vshrl.u32 %v5993, 16
        %v6181 = vrot.slane %v6179, 2
        %v6182 = vshll.u32 %v5993, 16
        %v6184 = vrot.slane %v6182, 3
        %v6185 = vor.u32 %v6181, %v6184
        %v6186 = vsel %vm6017, %v6172, %v6185
        %v6188 = vshrl.u32 %v5994, 16
        %v6190 = vrot.slane %v6188, 2
        %v6191 = vshll.u32 %v5994, 16
        %v6193 = vrot.slane %v6191, 3
        %v6194 = vor.u32 %v6190, %v6193
        %v6195 = vsel %vm6017, %v6176, %v6194
        %v6237 = vunpack.c.l.b16 %v5996
        %v6238 = vunpack.c.h.b16 %v5996
        %v6239 = vunpack.c.l.b16 %v5997
        %v6240 = vunpack.c.h.b16 %v5997
        %v6241 = vunpack.c.l.b16 %v5998
        %v6242 = vunpack.c.h.b16 %v5998
        %v6243 = vunpack.c.l.b16 %v5999
        %v6244 = vunpack.c.h.b16 %v5999
        %v6245 = vunpack.c.l.b16 %v6000
        %v6246 = vunpack.c.h.b16 %v6000
        %v6247 = vunpack.c.l.b16 %v6001
        %v6248 = vunpack.c.h.b16 %v6001
        %v6249 = vunpack.c.l.b16 %v6002
        %v6250 = vunpack.c.h.b16 %v6002
        %v6251 = vunpack.c.l.b16 %v6003
        %v6252 = vunpack.c.h.b16 %v6003
        %v6253 = vunpack.c.l.b16 %v6004
        %v6254 = vunpack.c.h.b16 %v6004
        %v6255 = vunpack.c.l.b16 %v6005
        %v6256 = vunpack.c.h.b16 %v6005
        %v6257 = vunpack.c.l.b16 %v6006
        %v6258 = vunpack.c.h.b16 %v6006
        %v6259 = vunpack.c.l.b16 %v6007
        %v6260 = vunpack.c.h.b16 %v6007
        %v6261 = vunpack.c.l.b16 %v6008
        %v6262 = vunpack.c.h.b16 %v6008
        %v6263 = vunpack.c.l.b16 %v6009
        %v6264 = vunpack.c.h.b16 %v6009
        %v6265 = vunpack.c.l.b16 %v6010
        %v6266 = vunpack.c.h.b16 %v6010
        %v6267 = vunpack.c.l.b16 %v6011
        %v6268 = vunpack.c.h.b16 %v6011
        %v6269 = vunpack.c.l.b16 %v6012
        %v6270 = vunpack.c.h.b16 %v6012
        %v6271 = vunpack.c.l.b16 %v6013
        %v6272 = vunpack.c.h.b16 %v6013
        %v6273 = vunpack.c.l.b16 %v6014
        %v6274 = vunpack.c.h.b16 %v6014
        %v6275 = vunpack.c.l.b16 %v6015
        %v6276 = vunpack.c.h.b16 %v6015
        %v6277 = vunpack.c.l.b16 %v6016
        %v6278 = vunpack.c.h.b16 %v6016
        %v6279 = vpack.c.b16 %v6239, %v6237
        %v6280 = vpack.c.b16 %v6240, %v6238
        %v6281 = vpack.c.b16 %v6243, %v6241
        %v6282 = vpack.c.b16 %v6244, %v6242
        %v6283 = vpack.c.b16 %v6247, %v6245
        %v6284 = vpack.c.b16 %v6248, %v6246
        %v6285 = vpack.c.b16 %v6251, %v6249
        %v6286 = vpack.c.b16 %v6252, %v6250
        %v6287 = vpack.c.b16 %v6255, %v6253
        %v6288 = vpack.c.b16 %v6256, %v6254
        %v6289 = vpack.c.b16 %v6259, %v6257
        %v6290 = vpack.c.b16 %v6260, %v6258
        %v6291 = vpack.c.b16 %v6263, %v6261
        %v6292 = vpack.c.b16 %v6264, %v6262
        %v6293 = vpack.c.b16 %v6267, %v6265
        %v6294 = vpack.c.b16 %v6268, %v6266
        %v6295 = vpack.c.b16 %v6271, %v6269
        %v6296 = vpack.c.b16 %v6272, %v6270
        %v6297 = vpack.c.b16 %v6275, %v6273
        %v6298 = vpack.c.b16 %v6276, %v6274
        %v6299 = vpack.c.b16 %v6277, %v6277
        %v6300 = vpack.c.b16 %v6278, %v6278
        %v6322 = vsel %vm2639, %v6041, 0
        %v6325 = vsel %vm2639, %v6049, 0
        %v6328 = vsel %vm2639, %v6057, 0
        %v6331 = vsel %vm2639, %v6065, 0
        %v6334 = vsel %vm2639, %v6073, 0
        %v6337 = vsel %vm2639, %v6081, 0
        %v6340 = vsel %vm2639, %v6089, 0
        %v6343 = vsel %vm2639, %v6097, 0
        %v6346 = vsel %vm2639, %v6105, 0
        %v6349 = vsel %vm2639, %v6113, 0
        %v6352 = vsel %vm2639, %v6121, 0
        %v6355 = vsel %vm2639, %v6129, 0
        %v6358 = vsel %vm2639, %v6137, 0
        %v6361 = vsel %vm2639, %v6145, 0
        %v6364 = vsel %vm2639, %v6153, 0
        %v6367 = vsel %vm2639, %v6161, 0
        %v6370 = vsel %vm2639, %v6169, 0
        %v6373 = vsel %vm2639, %v6177, 0
        %v6376 = vsel %vm2639, %v6195, 0
        %v6379 = vsel %vm2639, %v6194, 0
        %v6382 = vsel %vm3394, %v6299, 0
        %v6385 = vsel %vm3394, %v6300, 0
        %6387 = vmatprep.subr.bf16.mxu0 %v6280
        %6388 = vmatpush1.bf16.msra.mxu0 %v6279
        %6389 = vmatprep.subr.bf16.mxu0 %v6282
        %6390 = vmatpush1.bf16.msra.mxu0 %v6281
        %6391 = vmatprep.subr.bf16.mxu0 %v6284
        %6392 = vmatpush1.bf16.msra.mxu0 %v6283
        %6393 = vmatprep.subr.bf16.mxu0 %v6286
        %6394 = vmatpush1.bf16.msra.mxu0 %v6285
        %6395 = vmatprep.subr.bf16.mxu0 %v6288
        %6396 = vmatpush1.bf16.msra.mxu0 %v6287
        %6397 = vmatprep.subr.bf16.mxu0 %v6290
        %6398 = vmatpush1.bf16.msra.mxu0 %v6289
        %6399 = vmatprep.subr.bf16.mxu0 %v6292
        %6400 = vmatpush1.bf16.msra.mxu0 %v6291
        %6401 = vmatprep.subr.bf16.mxu0 %v6294
        %6402 = vmatpush1.bf16.msra.mxu0 %v6293
        %6403 = vmatprep.subr.bf16.mxu0 %v6296
        %6404 = vmatpush1.bf16.msra.mxu0 %v6295
        %6405 = vmatprep.subr.bf16.mxu0 %v6298
        %6406 = vmatpush1.bf16.msra.mxu0 %v6297
        %6407 = vmatprep.subr.bf16.mxu0 %v6385
        %6408 = vmatpush1.bf16.msra.mxu0 %v6382
        %6409 = vmatprep.subr.bf16.mxu0 0
        %6410 = vmatpush1.bf16.msra.mxu0 0
        %6411 = vmatprep.subr.bf16.mxu0 0
        %6412 = vmatpush1.bf16.msra.mxu0 0
        %6413 = vmatprep.subr.bf16.mxu0 0
        %6414 = vmatpush1.bf16.msra.mxu0 0
        %6415 = vmatprep.subr.bf16.mxu0 0
        %6416 = vmatpush1.bf16.msra.mxu0 0
        %6417 = vmatprep.subr.bf16.mxu0 0
        %6418 = vmatpush1.bf16.msra.mxu0 0
        %6419 = vmatprep.mubr.bf16.mxu0 %v6322
        %6420 = vmatmul.mubr.bf16.gmra.mrb[0].mxu0 %v6029
        %v6421 = vpop.f32.mrb[0].mxu0
        %v6422 = vadd.f32 0.0, %v6421
        %v6423 = vpop.f32.mrb[0].mxu0
        %v6424 = vadd.f32 0.0, %v6423
        %v6425 = vpop.f32.mrb[0].mxu0
        %v6426 = vadd.f32 0.0, %v6425
        %v6427 = vpop.f32.mrb[0].mxu0
        %v6428 = vadd.f32 0.0, %v6427
        %6429 = vmatprep.mubr.bf16.mxu0 %v6325
        %6430 = vmatmul.mubr.bf16.gmra.mrb[0].mxu0 %v6045
        %v6431 = vpop.f32.mrb[0].mxu0
        %v6432 = vadd.f32 0.0, %v6431
        %v6433 = vpop.f32.mrb[0].mxu0
        %v6434 = vadd.f32 0.0, %v6433
        %v6435 = vpop.f32.mrb[0].mxu0
        %v6436 = vadd.f32 0.0, %v6435
        %v6437 = vpop.f32.mrb[0].mxu0
        %v6438 = vadd.f32 0.0, %v6437
        %6439 = vmatprep.mubr.bf16.mxu0 %v6328
        %6440 = vmatmul.mubr.bf16.gmra.mrb[0].mxu0 %v6053
        %v6441 = vpop.f32.mrb[0].mxu0
        %v6442 = vadd.f32 0.0, %v6441
        %v6443 = vpop.f32.mrb[0].mxu0
        %v6444 = vadd.f32 0.0, %v6443
        %v6445 = vpop.f32.mrb[0].mxu0
        %v6446 = vadd.f32 0.0, %v6445
        %v6447 = vpop.f32.mrb[0].mxu0
        %v6448 = vadd.f32 0.0, %v6447
        %6449 = vmatprep.mubr.bf16.mxu0 %v6331
        %6450 = vmatmul.mubr.bf16.gmra.mrb[0].mxu0 %v6061
        %v6451 = vpop.f32.mrb[0].mxu0
        %v6452 = vadd.f32 0.0, %v6451
        %v6453 = vpop.f32.mrb[0].mxu0
        %v6454 = vadd.f32 0.0, %v6453
        %v6455 = vpop.f32.mrb[0].mxu0
        %v6456 = vadd.f32 0.0, %v6455
        %v6457 = vpop.f32.mrb[0].mxu0
        %v6458 = vadd.f32 0.0, %v6457
        %6459 = vmatprep.mubr.bf16.mxu0 %v6334
        %6460 = vmatmul.mubr.bf16.gmra.mrb[0].mxu0 %v6069
        %v6461 = vpop.f32.mrb[0].mxu0
        %v6462 = vadd.f32 0.0, %v6461
        %v6463 = vpop.f32.mrb[0].mxu0
        %v6464 = vadd.f32 0.0, %v6463
        %v6465 = vpop.f32.mrb[0].mxu0
        %v6466 = vadd.f32 0.0, %v6465
        %v6467 = vpop.f32.mrb[0].mxu0
        %v6468 = vadd.f32 0.0, %v6467
        %6469 = vmatprep.mubr.bf16.mxu0 %v6337
        %6470 = vmatmul.mubr.bf16.gmra.mrb[0].mxu0 %v6077
        %v6471 = vpop.f32.mrb[0].mxu0
        %v6472 = vadd.f32 0.0, %v6471
        %v6473 = vpop.f32.mrb[0].mxu0
        %v6474 = vadd.f32 0.0, %v6473
        %v6475 = vpop.f32.mrb[0].mxu0
        %v6476 = vadd.f32 0.0, %v6475
        %v6477 = vpop.f32.mrb[0].mxu0
        %v6478 = vadd.f32 0.0, %v6477
        %6479 = vmatprep.mubr.bf16.mxu0 %v6340
        %6480 = vmatmul.mubr.bf16.gmra.mrb[0].mxu0 %v6085
        %v6481 = vpop.f32.mrb[0].mxu0
        %v6482 = vadd.f32 0.0, %v6481
        %v6483 = vpop.f32.mrb[0].mxu0
        %v6484 = vadd.f32 0.0, %v6483
        %v6485 = vpop.f32.mrb[0].mxu0
        %v6486 = vadd.f32 0.0, %v6485
        %v6487 = vpop.f32.mrb[0].mxu0
        %v6488 = vadd.f32 0.0, %v6487
        %6489 = vmatprep.mubr.bf16.mxu0 %v6343
        %6490 = vmatmul.mubr.bf16.gmra.mrb[0].mxu0 %v6093
        %v6491 = vpop.f32.mrb[0].mxu0
        %v6492 = vadd.f32 0.0, %v6491
        %v6493 = vpop.f32.mrb[0].mxu0
        %v6494 = vadd.f32 0.0, %v6493
        %v6495 = vpop.f32.mrb[0].mxu0
        %v6496 = vadd.f32 0.0, %v6495
        %v6497 = vpop.f32.mrb[0].mxu0
        %v6498 = vadd.f32 0.0, %v6497
        %6499 = vmatprep.mubr.bf16.mxu0 %v6346
        %6500 = vmatmul.mubr.bf16.gmra.mrb[0].mxu0 %v6101
        %v6501 = vpop.f32.mrb[0].mxu0
        %v6502 = vadd.f32 0.0, %v6501
        %v6503 = vpop.f32.mrb[0].mxu0
        %v6504 = vadd.f32 0.0, %v6503
        %v6505 = vpop.f32.mrb[0].mxu0
        %v6506 = vadd.f32 0.0, %v6505
        %v6507 = vpop.f32.mrb[0].mxu0
        %v6508 = vadd.f32 0.0, %v6507
        %6509 = vmatprep.mubr.bf16.mxu0 %v6349
        %6510 = vmatmul.mubr.bf16.gmra.mrb[0].mxu0 %v6109
        %v6511 = vpop.f32.mrb[0].mxu0
        %v6512 = vadd.f32 0.0, %v6511
        %v6513 = vpop.f32.mrb[0].mxu0
        %v6514 = vadd.f32 0.0, %v6513
        %v6515 = vpop.f32.mrb[0].mxu0
        %v6516 = vadd.f32 0.0, %v6515
        %v6517 = vpop.f32.mrb[0].mxu0
        %v6518 = vadd.f32 0.0, %v6517
        %6519 = vmatprep.mubr.bf16.mxu0 %v6352
        %6520 = vmatmul.mubr.bf16.gmra.mrb[0].mxu0 %v6117
        %v6521 = vpop.f32.mrb[0].mxu0
        %v6522 = vadd.f32 0.0, %v6521
        %v6523 = vpop.f32.mrb[0].mxu0
        %v6524 = vadd.f32 0.0, %v6523
        %v6525 = vpop.f32.mrb[0].mxu0
        %v6526 = vadd.f32 0.0, %v6525
        %v6527 = vpop.f32.mrb[0].mxu0
        %v6528 = vadd.f32 0.0, %v6527
        %6529 = vmatprep.mubr.bf16.mxu0 %v6355
        %6530 = vmatmul.mubr.bf16.gmra.mrb[0].mxu0 %v6125
        %v6531 = vpop.f32.mrb[0].mxu0
        %v6532 = vadd.f32 0.0, %v6531
        %v6533 = vpop.f32.mrb[0].mxu0
        %v6534 = vadd.f32 0.0, %v6533
        %v6535 = vpop.f32.mrb[0].mxu0
        %v6536 = vadd.f32 0.0, %v6535
        %v6537 = vpop.f32.mrb[0].mxu0
        %v6538 = vadd.f32 0.0, %v6537
        %6539 = vmatprep.mubr.bf16.mxu0 %v6358
        %6540 = vmatmul.mubr.bf16.gmra.mrb[0].mxu0 %v6133
        %v6541 = vpop.f32.mrb[0].mxu0
        %v6542 = vadd.f32 0.0, %v6541
        %v6543 = vpop.f32.mrb[0].mxu0
        %v6544 = vadd.f32 0.0, %v6543
        %v6545 = vpop.f32.mrb[0].mxu0
        %v6546 = vadd.f32 0.0, %v6545
        %v6547 = vpop.f32.mrb[0].mxu0
        %v6548 = vadd.f32 0.0, %v6547
        %6549 = vmatprep.mubr.bf16.mxu0 %v6361
        %6550 = vmatmul.mubr.bf16.gmra.mrb[0].mxu0 %v6141
        %v6551 = vpop.f32.mrb[0].mxu0
        %v6552 = vadd.f32 0.0, %v6551
        %v6553 = vpop.f32.mrb[0].mxu0
        %v6554 = vadd.f32 0.0, %v6553
        %v6555 = vpop.f32.mrb[0].mxu0
        %v6556 = vadd.f32 0.0, %v6555
        %v6557 = vpop.f32.mrb[0].mxu0
        %v6558 = vadd.f32 0.0, %v6557
        %6559 = vmatprep.mubr.bf16.mxu0 %v6364
        %6560 = vmatmul.mubr.bf16.gmra.mrb[0].mxu0 %v6149
        %v6561 = vpop.f32.mrb[0].mxu0
        %v6562 = vadd.f32 0.0, %v6561
        %v6563 = vpop.f32.mrb[0].mxu0
        %v6564 = vadd.f32 0.0, %v6563
        %v6565 = vpop.f32.mrb[0].mxu0
        %v6566 = vadd.f32 0.0, %v6565
        %v6567 = vpop.f32.mrb[0].mxu0
        %v6568 = vadd.f32 0.0, %v6567
        %6569 = vmatprep.mubr.bf16.mxu0 %v6367
        %6570 = vmatmul.mubr.bf16.gmra.mrb[0].mxu0 %v6157
        %v6571 = vpop.f32.mrb[0].mxu0
        %v6572 = vadd.f32 0.0, %v6571
        %v6573 = vpop.f32.mrb[0].mxu0
        %v6574 = vadd.f32 0.0, %v6573
        %v6575 = vpop.f32.mrb[0].mxu0
        %v6576 = vadd.f32 0.0, %v6575
        %v6577 = vpop.f32.mrb[0].mxu0
        %v6578 = vadd.f32 0.0, %v6577
        %6579 = vmatprep.mubr.bf16.mxu0 %v6370
        %6580 = vmatmul.mubr.bf16.gmra.mrb[0].mxu0 %v6165
        %v6581 = vpop.f32.mrb[0].mxu0
        %v6582 = vadd.f32 0.0, %v6581
        %v6583 = vpop.f32.mrb[0].mxu0
        %v6584 = vadd.f32 0.0, %v6583
        %v6585 = vpop.f32.mrb[0].mxu0
        %v6586 = vadd.f32 0.0, %v6585
        %v6587 = vpop.f32.mrb[0].mxu0
        %v6588 = vadd.f32 0.0, %v6587
        %6589 = vmatprep.mubr.bf16.mxu0 %v6373
        %6590 = vmatmul.mubr.bf16.gmra.mrb[0].mxu0 %v6173
        %v6591 = vpop.f32.mrb[0].mxu0
        %v6592 = vadd.f32 0.0, %v6591
        %v6593 = vpop.f32.mrb[0].mxu0
        %v6594 = vadd.f32 0.0, %v6593
        %v6595 = vpop.f32.mrb[0].mxu0
        %v6596 = vadd.f32 0.0, %v6595
        %v6597 = vpop.f32.mrb[0].mxu0
        %v6598 = vadd.f32 0.0, %v6597
        %6599 = vmatprep.mubr.bf16.mxu0 %v6376
        %6600 = vmatmul.mubr.bf16.gmra.mrb[0].mxu0 %v6186
        %v6601 = vpop.f32.mrb[0].mxu0
        %v6602 = vadd.f32 0.0, %v6601
        %v6603 = vpop.f32.mrb[0].mxu0
        %v6604 = vadd.f32 0.0, %v6603
        %v6605 = vpop.f32.mrb[0].mxu0
        %v6606 = vadd.f32 0.0, %v6605
        %v6607 = vpop.f32.mrb[0].mxu0
        %v6608 = vadd.f32 0.0, %v6607
        %6609 = vmatprep.mubr.bf16.mxu0 %v6379
        %6610 = vmatmul.mubr.bf16.gmra.mrb[0].mxu0 %v6185
        %v6611 = vpop.f32.mrb[0].mxu0
        %v6612 = vadd.f32 0.0, %v6611
        %v6613 = vpop.f32.mrb[0].mxu0
        %v6614 = vadd.f32 0.0, %v6613
        %v6615 = vpop.f32.mrb[0].mxu0
        %v6616 = vpop.f32.mrb[0].mxu0
        %6617 = vdwg.mxu0
        %v6618 = vadd.f32 %v5909, %v6422
        %v6619 = vadd.f32 %v5910, %v6424
        %v6620 = vadd.f32 %v5911, %v6426
        %v6621 = vadd.f32 %v5912, %v6428
        %v6622 = vadd.f32 %v5913, %v6432
        %v6623 = vadd.f32 %v5914, %v6434
        %v6624 = vadd.f32 %v5915, %v6436
        %v6625 = vadd.f32 %v5916, %v6438
        %v6626 = vadd.f32 %v5917, %v6442
        %v6627 = vadd.f32 %v5918, %v6444
        %v6628 = vadd.f32 %v5919, %v6446
        %v6629 = vadd.f32 %v5920, %v6448
        %v6630 = vadd.f32 %v5921, %v6452
        %v6631 = vadd.f32 %v5922, %v6454
        %v6632 = vadd.f32 %v5923, %v6456
        %v6633 = vadd.f32 %v5924, %v6458
        %v6634 = vadd.f32 %v5925, %v6462
        %v6635 = vadd.f32 %v5926, %v6464
        %v6636 = vadd.f32 %v5927, %v6466
        %v6637 = vadd.f32 %v5928, %v6468
        %v6638 = vadd.f32 %v5929, %v6472
        %v6639 = vadd.f32 %v5930, %v6474
        %v6640 = vadd.f32 %v5931, %v6476
        %v6641 = vadd.f32 %v5932, %v6478
        %v6642 = vadd.f32 %v5933, %v6482
        %v6643 = vadd.f32 %v5934, %v6484
        %v6644 = vadd.f32 %v5935, %v6486
        %v6645 = vadd.f32 %v5936, %v6488
        %v6646 = vadd.f32 %v5937, %v6492
        %v6647 = vadd.f32 %v5938, %v6494
        %v6648 = vadd.f32 %v5939, %v6496
        %v6649 = vadd.f32 %v5940, %v6498
        %v6650 = vadd.f32 %v5941, %v6502
        %v6651 = vadd.f32 %v5942, %v6504
        %v6652 = vadd.f32 %v5943, %v6506
        %v6653 = vadd.f32 %v5944, %v6508
        %v6654 = vadd.f32 %v5945, %v6512
        %v6655 = vadd.f32 %v5946, %v6514
        %v6656 = vadd.f32 %v5947, %v6516
        %v6657 = vadd.f32 %v5948, %v6518
        %v6658 = vadd.f32 %v5949, %v6522
        %v6659 = vadd.f32 %v5950, %v6524
        %v6660 = vadd.f32 %v5951, %v6526
        %v6661 = vadd.f32 %v5952, %v6528
        %v6662 = vadd.f32 %v5953, %v6532
        %v6663 = vadd.f32 %v5954, %v6534
        %v6664 = vadd.f32 %v5955, %v6536
        %v6665 = vadd.f32 %v5956, %v6538
        %v6666 = vadd.f32 %v5957, %v6542
        %v6667 = vadd.f32 %v5958, %v6544
        %v6668 = vadd.f32 %v5959, %v6546
        %v6669 = vadd.f32 %v5960, %v6548
        %v6670 = vadd.f32 %v5961, %v6552
        %v6671 = vadd.f32 %v5962, %v6554
        %v6672 = vadd.f32 %v5963, %v6556
        %v6673 = vadd.f32 %v5964, %v6558
        %v6674 = vadd.f32 %v5965, %v6562
        %v6675 = vadd.f32 %v5966, %v6564
        %v6676 = vadd.f32 %v5967, %v6566
        %v6677 = vadd.f32 %v5968, %v6568
        %v6678 = vadd.f32 %v5969, %v6572
        %v6679 = vadd.f32 %v5970, %v6574
        %v6680 = vadd.f32 %v5971, %v6576
        %v6681 = vadd.f32 %v5972, %v6578
        %v6682 = vadd.f32 %v5973, %v6582
        %v6683 = vadd.f32 %v5974, %v6584
        %v6684 = vadd.f32 %v5975, %v6586
        %v6685 = vadd.f32 %v5976, %v6588
        %v6686 = vadd.f32 %v5977, %v6592
        %v6687 = vadd.f32 %v5978, %v6594
        %v6688 = vadd.f32 %v5979, %v6596
        %v6689 = vadd.f32 %v5980, %v6598
        %v6690 = vadd.f32 %v5981, %v6602
        %v6691 = vadd.f32 %v5982, %v6604
        %v6692 = vadd.f32 %v5983, %v6606
        %v6693 = vadd.f32 %v5984, %v6608
        %v6694 = vadd.f32 %v5985, %v6612
        %v6695 = vadd.f32 %v5986, %v6614
        %v6696 = vld [vmem:[#allocation2] sm:$0xc0]
        %v6697 = vld [vmem:[#allocation2 + $0x8] sm:$0xc0]
        %v6698 = vld [vmem:[#allocation2 + $0x270] sm:$0x3f]
        %v6699 = vld [vmem:[#allocation2 + $0x278] sm:$0x3f]
        %v6700 = vpack.c.bf16 %v2723, %v6696
        %v6701 = vpack.c.bf16 %v2724, %v6697
        %v6702 = vpack.c.bf16 %v6698, %v2797
        %v6703 = vpack.c.bf16 %v6699, %v2798
        %s6704 = scalar_lea.vmem %s3, 1008
        %v6705 = vld [vmem:[%s6704] sm:$0xff]
        %v6706 = vld [vmem:[%s6704 + $0x8] sm:$0xff]
        %v6707 = vld [vmem:[%s6704 + $0x10] sm:$0xff]
        %v6708 = vld [vmem:[%s6704 + $0x18] sm:$0xff]
        %v6709 = vld [vmem:[%s6704 + $0x20] sm:$0xff]
        %v6710 = vld [vmem:[%s6704 + $0x28] sm:$0xff]
        %v6711 = vld [vmem:[%s6704 + $0x30] sm:$0xff]
        %v6712 = vld [vmem:[%s6704 + $0x38] sm:$0xff]
        %v6713 = vld [vmem:[%s6704 + $0x40] sm:$0xff]
        %v6714 = vld [vmem:[%s6704 + $0x48] sm:$0xff]
        %v6715 = vld [vmem:[%s6704 + $0x50] sm:$0xff]
        %v6716 = vld [vmem:[%s6704 + $0x58] sm:$0xff]
        %v6717 = vld [vmem:[%s6704 + $0x60] sm:$0xff]
        %v6718 = vld [vmem:[%s6704 + $0x68] sm:$0xff]
        %v6719 = vld [vmem:[%s6704 + $0x70] sm:$0xff]
        %v6720 = vld [vmem:[%s6704 + $0x78] sm:$0xff]
        %v6721 = vld [vmem:[%s6704 + $0x80] sm:$0xff]
        %v6722 = vld [vmem:[%s6704 + $0x88] sm:$0xff]
        %v6723 = vld [vmem:[%s6704 + $0x90] sm:$0xff]
        %v6724 = vld [vmem:[%s6704 + $0x98] sm:$0xff]
        %v6725 = vld [vmem:[%s6704 + $0xa0] sm:$0xff]
        %vm6730 = vcmask 1044480
        %v6731 = vrot.slane %v6700, 3
        %v6732 = vrot.slane %v2801, 3
        %v6733 = vsel %vm6730, %v6731, %v6732
        %v6734 = vrot.slane %v6701, 3
        %v6735 = vrot.slane %v2802, 3
        %v6736 = vsel %vm6730, %v6734, %v6735
        %v6737 = vrot.slane %v2803, 3
        %v6738 = vsel %vm6730, %v6732, %v6737
        %v6739 = vrot.slane %v2804, 3
        %v6740 = vsel %vm6730, %v6735, %v6739
        %v6741 = vrot.slane %v2805, 3
        %v6742 = vsel %vm6730, %v6737, %v6741
        %v6743 = vrot.slane %v2806, 3
        %v6744 = vsel %vm6730, %v6739, %v6743
        %v6745 = vrot.slane %v2807, 3
        %v6746 = vsel %vm6730, %v6741, %v6745
        %v6747 = vrot.slane %v2808, 3
        %v6748 = vsel %vm6730, %v6743, %v6747
        %v6749 = vrot.slane %v2809, 3
        %v6750 = vsel %vm6730, %v6745, %v6749
        %v6751 = vrot.slane %v2810, 3
        %v6752 = vsel %vm6730, %v6747, %v6751
        %v6753 = vrot.slane %v2811, 3
        %v6754 = vsel %vm6730, %v6749, %v6753
        %v6755 = vrot.slane %v2812, 3
        %v6756 = vsel %vm6730, %v6751, %v6755
        %v6757 = vrot.slane %v2813, 3
        %v6758 = vsel %vm6730, %v6753, %v6757
        %v6759 = vrot.slane %v2814, 3
        %v6760 = vsel %vm6730, %v6755, %v6759
        %v6761 = vrot.slane %v2815, 3
        %v6762 = vsel %vm6730, %v6757, %v6761
        %v6763 = vrot.slane %v2816, 3
        %v6764 = vsel %vm6730, %v6759, %v6763
        %v6765 = vrot.slane %v2817, 3
        %v6766 = vsel %vm6730, %v6761, %v6765
        %v6767 = vrot.slane %v2818, 3
        %v6768 = vsel %vm6730, %v6763, %v6767
        %v6769 = vrot.slane %v2819, 3
        %v6770 = vsel %vm6730, %v6765, %v6769
        %v6771 = vrot.slane %v2820, 3
        %v6772 = vsel %vm6730, %v6767, %v6771
        %v6773 = vrot.slane %v2821, 3
        %v6774 = vsel %vm6730, %v6769, %v6773
        %v6775 = vrot.slane %v2822, 3
        %v6776 = vsel %vm6730, %v6771, %v6775
        %v6777 = vrot.slane %v2823, 3
        %v6778 = vsel %vm6730, %v6773, %v6777
        %v6779 = vrot.slane %v2824, 3
        %v6780 = vsel %vm6730, %v6775, %v6779
        %v6781 = vrot.slane %v2825, 3
        %v6782 = vsel %vm6730, %v6777, %v6781
        %v6783 = vrot.slane %v2826, 3
        %v6784 = vsel %vm6730, %v6779, %v6783
        %v6785 = vrot.slane %v2827, 3
        %v6786 = vsel %vm6730, %v6781, %v6785
        %v6787 = vrot.slane %v2828, 3
        %v6788 = vsel %vm6730, %v6783, %v6787
        %v6789 = vrot.slane %v2829, 3
        %v6790 = vsel %vm6730, %v6785, %v6789
        %v6791 = vrot.slane %v2830, 3
        %v6792 = vsel %vm6730, %v6787, %v6791
        %v6793 = vrot.slane %v2831, 3
        %v6794 = vsel %vm6730, %v6789, %v6793
        %v6795 = vrot.slane %v2832, 3
        %v6796 = vsel %vm6730, %v6791, %v6795
        %v6797 = vrot.slane %v2833, 3
        %v6798 = vsel %vm6730, %v6793, %v6797
        %v6799 = vrot.slane %v2834, 3
        %v6800 = vsel %vm6730, %v6795, %v6799
        %v6801 = vrot.slane %v2835, 3
        %v6802 = vsel %vm6730, %v6797, %v6801
        %v6803 = vrot.slane %v2836, 3
        %v6804 = vsel %vm6730, %v6799, %v6803
        %v6805 = vrot.slane %v6702, 3
        %v6806 = vsel %vm6730, %v6801, %v6805
        %v6807 = vrot.slane %v6703, 3
        %v6808 = vsel %vm6730, %v6803, %v6807
        %v6850 = vunpack.c.l.b16 %v6705
        %v6851 = vunpack.c.h.b16 %v6705
        %v6852 = vunpack.c.l.b16 %v6706
        %v6853 = vunpack.c.h.b16 %v6706
        %v6854 = vunpack.c.l.b16 %v6707
        %v6855 = vunpack.c.h.b16 %v6707
        %v6856 = vunpack.c.l.b16 %v6708
        %v6857 = vunpack.c.h.b16 %v6708
        %v6858 = vunpack.c.l.b16 %v6709
        %v6859 = vunpack.c.h.b16 %v6709
        %v6860 = vunpack.c.l.b16 %v6710
        %v6861 = vunpack.c.h.b16 %v6710
        %v6862 = vunpack.c.l.b16 %v6711
        %v6863 = vunpack.c.h.b16 %v6711
        %v6864 = vunpack.c.l.b16 %v6712
        %v6865 = vunpack.c.h.b16 %v6712
        %v6866 = vunpack.c.l.b16 %v6713
        %v6867 = vunpack.c.h.b16 %v6713
        %v6868 = vunpack.c.l.b16 %v6714
        %v6869 = vunpack.c.h.b16 %v6714
        %v6870 = vunpack.c.l.b16 %v6715
        %v6871 = vunpack.c.h.b16 %v6715
        %v6872 = vunpack.c.l.b16 %v6716
        %v6873 = vunpack.c.h.b16 %v6716
        %v6874 = vunpack.c.l.b16 %v6717
        %v6875 = vunpack.c.h.b16 %v6717
        %v6876 = vunpack.c.l.b16 %v6718
        %v6877 = vunpack.c.h.b16 %v6718
        %v6878 = vunpack.c.l.b16 %v6719
        %v6879 = vunpack.c.h.b16 %v6719
        %v6880 = vunpack.c.l.b16 %v6720
        %v6881 = vunpack.c.h.b16 %v6720
        %v6882 = vunpack.c.l.b16 %v6721
        %v6883 = vunpack.c.h.b16 %v6721
        %v6884 = vunpack.c.l.b16 %v6722
        %v6885 = vunpack.c.h.b16 %v6722
        %v6886 = vunpack.c.l.b16 %v6723
        %v6887 = vunpack.c.h.b16 %v6723
        %v6888 = vunpack.c.l.b16 %v6724
        %v6889 = vunpack.c.h.b16 %v6724
        %v6890 = vunpack.c.l.b16 %v6725
        %v6891 = vunpack.c.h.b16 %v6725
        %v6892 = vpack.c.b16 %v6852, %v6850
        %v6893 = vpack.c.b16 %v6853, %v6851
        %v6894 = vpack.c.b16 %v6856, %v6854
        %v6895 = vpack.c.b16 %v6857, %v6855
        %v6896 = vpack.c.b16 %v6860, %v6858
        %v6897 = vpack.c.b16 %v6861, %v6859
        %v6898 = vpack.c.b16 %v6864, %v6862
        %v6899 = vpack.c.b16 %v6865, %v6863
        %v6900 = vpack.c.b16 %v6868, %v6866
        %v6901 = vpack.c.b16 %v6869, %v6867
        %v6902 = vpack.c.b16 %v6872, %v6870
        %v6903 = vpack.c.b16 %v6873, %v6871
        %v6904 = vpack.c.b16 %v6876, %v6874
        %v6905 = vpack.c.b16 %v6877, %v6875
        %v6906 = vpack.c.b16 %v6880, %v6878
        %v6907 = vpack.c.b16 %v6881, %v6879
        %v6908 = vpack.c.b16 %v6884, %v6882
        %v6909 = vpack.c.b16 %v6885, %v6883
        %v6910 = vpack.c.b16 %v6888, %v6886
        %v6911 = vpack.c.b16 %v6889, %v6887
        %v6912 = vpack.c.b16 %v6890, %v6890
        %v6913 = vpack.c.b16 %v6891, %v6891
        %v6935 = vsel %vm2639, %v6736, 0
        %v6938 = vsel %vm2639, %v6740, 0
        %v6941 = vsel %vm2639, %v6744, 0
        %v6944 = vsel %vm2639, %v6748, 0
        %v6947 = vsel %vm2639, %v6752, 0
        %v6950 = vsel %vm2639, %v6756, 0
        %v6953 = vsel %vm2639, %v6760, 0
        %v6956 = vsel %vm2639, %v6764, 0
        %v6959 = vsel %vm2639, %v6768, 0
        %v6962 = vsel %vm2639, %v6772, 0
        %v6965 = vsel %vm2639, %v6776, 0
        %v6968 = vsel %vm2639, %v6780, 0
        %v6971 = vsel %vm2639, %v6784, 0
        %v6974 = vsel %vm2639, %v6788, 0
        %v6977 = vsel %vm2639, %v6792, 0
        %v6980 = vsel %vm2639, %v6796, 0
        %v6983 = vsel %vm2639, %v6800, 0
        %v6986 = vsel %vm2639, %v6804, 0
        %v6989 = vsel %vm2639, %v6808, 0
        %v6992 = vsel %vm2639, %v6807, 0
        %v6995 = vsel %vm3394, %v6912, 0
        %v6998 = vsel %vm3394, %v6913, 0
        %7000 = vmatprep.subr.bf16.mxu0 %v6893
        %7001 = vmatpush1.bf16.msra.mxu0 %v6892
        %7002 = vmatprep.subr.bf16.mxu0 %v6895
        %7003 = vmatpush1.bf16.msra.mxu0 %v6894
        %7004 = vmatprep.subr.bf16.mxu0 %v6897
        %7005 = vmatpush1.bf16.msra.mxu0 %v6896
        %7006 = vmatprep.subr.bf16.mxu0 %v6899
        %7007 = vmatpush1.bf16.msra.mxu0 %v6898
        %7008 = vmatprep.subr.bf16.mxu0 %v6901
        %7009 = vmatpush1.bf16.msra.mxu0 %v6900
        %7010 = vmatprep.subr.bf16.mxu0 %v6903
        %7011 = vmatpush1.bf16.msra.mxu0 %v6902
        %7012 = vmatprep.subr.bf16.mxu0 %v6905
        %7013 = vmatpush1.bf16.msra.mxu0 %v6904
        %7014 = vmatprep.subr.bf16.mxu0 %v6907
        %7015 = vmatpush1.bf16.msra.mxu0 %v6906
        %7016 = vmatprep.subr.bf16.mxu0 %v6909
        %7017 = vmatpush1.bf16.msra.mxu0 %v6908
        %7018 = vmatprep.subr.bf16.mxu0 %v6911
        %7019 = vmatpush1.bf16.msra.mxu0 %v6910
        %7020 = vmatprep.subr.bf16.mxu0 %v6998
        %7021 = vmatpush1.bf16.msra.mxu0 %v6995
        %7022 = vmatprep.subr.bf16.mxu0 0
        %7023 = vmatpush1.bf16.msra.mxu0 0
        %7024 = vmatprep.subr.bf16.mxu0 0
        %7025 = vmatpush1.bf16.msra.mxu0 0
        %7026 = vmatprep.subr.bf16.mxu0 0
        %7027 = vmatpush1.bf16.msra.mxu0 0
        %7028 = vmatprep.subr.bf16.mxu0 0
        %7029 = vmatpush1.bf16.msra.mxu0 0
        %7030 = vmatprep.subr.bf16.mxu0 0
        %7031 = vmatpush1.bf16.msra.mxu0 0
        %7032 = vmatprep.mubr.bf16.mxu0 %v6935
        %7033 = vmatmul.mubr.bf16.gmra.mrb[0].mxu0 %v6733
        %v7034 = vpop.f32.mrb[0].mxu0
        %v7035 = vadd.f32 0.0, %v7034
        %v7036 = vpop.f32.mrb[0].mxu0
        %v7037 = vadd.f32 0.0, %v7036
        %v7038 = vpop.f32.mrb[0].mxu0
        %v7039 = vadd.f32 0.0, %v7038
        %v7040 = vpop.f32.mrb[0].mxu0
        %v7041 = vadd.f32 0.0, %v7040
        %7042 = vmatprep.mubr.bf16.mxu0 %v6938
        %7043 = vmatmul.mubr.bf16.gmra.mrb[0].mxu0 %v6738
        %v7044 = vpop.f32.mrb[0].mxu0
        %v7045 = vadd.f32 0.0, %v7044
        %v7046 = vpop.f32.mrb[0].mxu0
        %v7047 = vadd.f32 0.0, %v7046
        %v7048 = vpop.f32.mrb[0].mxu0
        %v7049 = vadd.f32 0.0, %v7048
        %v7050 = vpop.f32.mrb[0].mxu0
        %v7051 = vadd.f32 0.0, %v7050
        %7052 = vmatprep.mubr.bf16.mxu0 %v6941
        %7053 = vmatmul.mubr.bf16.gmra.mrb[0].mxu0 %v6742
        %v7054 = vpop.f32.mrb[0].mxu0
        %v7055 = vadd.f32 0.0, %v7054
        %v7056 = vpop.f32.mrb[0].mxu0
        %v7057 = vadd.f32 0.0, %v7056
        %v7058 = vpop.f32.mrb[0].mxu0
        %v7059 = vadd.f32 0.0, %v7058
        %v7060 = vpop.f32.mrb[0].mxu0
        %v7061 = vadd.f32 0.0, %v7060
        %7062 = vmatprep.mubr.bf16.mxu0 %v6944
        %7063 = vmatmul.mubr.bf16.gmra.mrb[0].mxu0 %v6746
        %v7064 = vpop.f32.mrb[0].mxu0
        %v7065 = vadd.f32 0.0, %v7064
        %v7066 = vpop.f32.mrb[0].mxu0
        %v7067 = vadd.f32 0.0, %v7066
        %v7068 = vpop.f32.mrb[0].mxu0
        %v7069 = vadd.f32 0.0, %v7068
        %v7070 = vpop.f32.mrb[0].mxu0
        %v7071 = vadd.f32 0.0, %v7070
        %7072 = vmatprep.mubr.bf16.mxu0 %v6947
        %7073 = vmatmul.mubr.bf16.gmra.mrb[0].mxu0 %v6750
        %v7074 = vpop.f32.mrb[0].mxu0
        %v7075 = vadd.f32 0.0, %v7074
        %v7076 = vpop.f32.mrb[0].mxu0
        %v7077 = vadd.f32 0.0, %v7076
        %v7078 = vpop.f32.mrb[0].mxu0
        %v7079 = vadd.f32 0.0, %v7078
        %v7080 = vpop.f32.mrb[0].mxu0
        %v7081 = vadd.f32 0.0, %v7080
        %7082 = vmatprep.mubr.bf16.mxu0 %v6950
        %7083 = vmatmul.mubr.bf16.gmra.mrb[0].mxu0 %v6754
        %v7084 = vpop.f32.mrb[0].mxu0
        %v7085 = vadd.f32 0.0, %v7084
        %v7086 = vpop.f32.mrb[0].mxu0
        %v7087 = vadd.f32 0.0, %v7086
        %v7088 = vpop.f32.mrb[0].mxu0
        %v7089 = vadd.f32 0.0, %v7088
        %v7090 = vpop.f32.mrb[0].mxu0
        %v7091 = vadd.f32 0.0, %v7090
        %7092 = vmatprep.mubr.bf16.mxu0 %v6953
        %7093 = vmatmul.mubr.bf16.gmra.mrb[0].mxu0 %v6758
        %v7094 = vpop.f32.mrb[0].mxu0
        %v7095 = vadd.f32 0.0, %v7094
        %v7096 = vpop.f32.mrb[0].mxu0
        %v7097 = vadd.f32 0.0, %v7096
        %v7098 = vpop.f32.mrb[0].mxu0
        %v7099 = vadd.f32 0.0, %v7098
        %v7100 = vpop.f32.mrb[0].mxu0
        %v7101 = vadd.f32 0.0, %v7100
        %7102 = vmatprep.mubr.bf16.mxu0 %v6956
        %7103 = vmatmul.mubr.bf16.gmra.mrb[0].mxu0 %v6762
        %v7104 = vpop.f32.mrb[0].mxu0
        %v7105 = vadd.f32 0.0, %v7104
        %v7106 = vpop.f32.mrb[0].mxu0
        %v7107 = vadd.f32 0.0, %v7106
        %v7108 = vpop.f32.mrb[0].mxu0
        %v7109 = vadd.f32 0.0, %v7108
        %v7110 = vpop.f32.mrb[0].mxu0
        %v7111 = vadd.f32 0.0, %v7110
        %7112 = vmatprep.mubr.bf16.mxu0 %v6959
        %7113 = vmatmul.mubr.bf16.gmra.mrb[0].mxu0 %v6766
        %v7114 = vpop.f32.mrb[0].mxu0
        %v7115 = vadd.f32 0.0, %v7114
        %v7116 = vpop.f32.mrb[0].mxu0
        %v7117 = vadd.f32 0.0, %v7116
        %v7118 = vpop.f32.mrb[0].mxu0
        %v7119 = vadd.f32 0.0, %v7118
        %v7120 = vpop.f32.mrb[0].mxu0
        %v7121 = vadd.f32 0.0, %v7120
        %7122 = vmatprep.mubr.bf16.mxu0 %v6962
        %7123 = vmatmul.mubr.bf16.gmra.mrb[0].mxu0 %v6770
        %v7124 = vpop.f32.mrb[0].mxu0
        %v7125 = vadd.f32 0.0, %v7124
        %v7126 = vpop.f32.mrb[0].mxu0
        %v7127 = vadd.f32 0.0, %v7126
        %v7128 = vpop.f32.mrb[0].mxu0
        %v7129 = vadd.f32 0.0, %v7128
        %v7130 = vpop.f32.mrb[0].mxu0
        %v7131 = vadd.f32 0.0, %v7130
        %7132 = vmatprep.mubr.bf16.mxu0 %v6965
        %7133 = vmatmul.mubr.bf16.gmra.mrb[0].mxu0 %v6774
        %v7134 = vpop.f32.mrb[0].mxu0
        %v7135 = vadd.f32 0.0, %v7134
        %v7136 = vpop.f32.mrb[0].mxu0
        %v7137 = vadd.f32 0.0, %v7136
        %v7138 = vpop.f32.mrb[0].mxu0
        %v7139 = vadd.f32 0.0, %v7138
        %v7140 = vpop.f32.mrb[0].mxu0
        %v7141 = vadd.f32 0.0, %v7140
        %7142 = vmatprep.mubr.bf16.mxu0 %v6968
        %7143 = vmatmul.mubr.bf16.gmra.mrb[0].mxu0 %v6778
        %v7144 = vpop.f32.mrb[0].mxu0
        %v7145 = vadd.f32 0.0, %v7144
        %v7146 = vpop.f32.mrb[0].mxu0
        %v7147 = vadd.f32 0.0, %v7146
        %v7148 = vpop.f32.mrb[0].mxu0
        %v7149 = vadd.f32 0.0, %v7148
        %v7150 = vpop.f32.mrb[0].mxu0
        %v7151 = vadd.f32 0.0, %v7150
        %7152 = vmatprep.mubr.bf16.mxu0 %v6971
        %7153 = vmatmul.mubr.bf16.gmra.mrb[0].mxu0 %v6782
        %v7154 = vpop.f32.mrb[0].mxu0
        %v7155 = vadd.f32 0.0, %v7154
        %v7156 = vpop.f32.mrb[0].mxu0
        %v7157 = vadd.f32 0.0, %v7156
        %v7158 = vpop.f32.mrb[0].mxu0
        %v7159 = vadd.f32 0.0, %v7158
        %v7160 = vpop.f32.mrb[0].mxu0
        %v7161 = vadd.f32 0.0, %v7160
        %7162 = vmatprep.mubr.bf16.mxu0 %v6974
        %7163 = vmatmul.mubr.bf16.gmra.mrb[0].mxu0 %v6786
        %v7164 = vpop.f32.mrb[0].mxu0
        %v7165 = vadd.f32 0.0, %v7164
        %v7166 = vpop.f32.mrb[0].mxu0
        %v7167 = vadd.f32 0.0, %v7166
        %v7168 = vpop.f32.mrb[0].mxu0
        %v7169 = vadd.f32 0.0, %v7168
        %v7170 = vpop.f32.mrb[0].mxu0
        %v7171 = vadd.f32 0.0, %v7170
        %7172 = vmatprep.mubr.bf16.mxu0 %v6977
        %7173 = vmatmul.mubr.bf16.gmra.mrb[0].mxu0 %v6790
        %v7174 = vpop.f32.mrb[0].mxu0
        %v7175 = vadd.f32 0.0, %v7174
        %v7176 = vpop.f32.mrb[0].mxu0
        %v7177 = vadd.f32 0.0, %v7176
        %v7178 = vpop.f32.mrb[0].mxu0
        %v7179 = vadd.f32 0.0, %v7178
        %v7180 = vpop.f32.mrb[0].mxu0
        %v7181 = vadd.f32 0.0, %v7180
        %7182 = vmatprep.mubr.bf16.mxu0 %v6980
        %7183 = vmatmul.mubr.bf16.gmra.mrb[0].mxu0 %v6794
        %v7184 = vpop.f32.mrb[0].mxu0
        %v7185 = vadd.f32 0.0, %v7184
        %v7186 = vpop.f32.mrb[0].mxu0
        %v7187 = vadd.f32 0.0, %v7186
        %v7188 = vpop.f32.mrb[0].mxu0
        %v7189 = vadd.f32 0.0, %v7188
        %v7190 = vpop.f32.mrb[0].mxu0
        %v7191 = vadd.f32 0.0, %v7190
        %7192 = vmatprep.mubr.bf16.mxu0 %v6983
        %7193 = vmatmul.mubr.bf16.gmra.mrb[0].mxu0 %v6798
        %v7194 = vpop.f32.mrb[0].mxu0
        %v7195 = vadd.f32 0.0, %v7194
        %v7196 = vpop.f32.mrb[0].mxu0
        %v7197 = vadd.f32 0.0, %v7196
        %v7198 = vpop.f32.mrb[0].mxu0
        %v7199 = vadd.f32 0.0, %v7198
        %v7200 = vpop.f32.mrb[0].mxu0
        %v7201 = vadd.f32 0.0, %v7200
        %7202 = vmatprep.mubr.bf16.mxu0 %v6986
        %7203 = vmatmul.mubr.bf16.gmra.mrb[0].mxu0 %v6802
        %v7204 = vpop.f32.mrb[0].mxu0
        %v7205 = vadd.f32 0.0, %v7204
        %v7206 = vpop.f32.mrb[0].mxu0
        %v7207 = vadd.f32 0.0, %v7206
        %v7208 = vpop.f32.mrb[0].mxu0
        %v7209 = vadd.f32 0.0, %v7208
        %v7210 = vpop.f32.mrb[0].mxu0
        %v7211 = vadd.f32 0.0, %v7210
        %7212 = vmatprep.mubr.bf16.mxu0 %v6989
        %7213 = vmatmul.mubr.bf16.gmra.mrb[0].mxu0 %v6806
        %v7214 = vpop.f32.mrb[0].mxu0
        %v7215 = vadd.f32 0.0, %v7214
        %v7216 = vpop.f32.mrb[0].mxu0
        %v7217 = vadd.f32 0.0, %v7216
        %v7218 = vpop.f32.mrb[0].mxu0
        %v7219 = vadd.f32 0.0, %v7218
        %v7220 = vpop.f32.mrb[0].mxu0
        %v7221 = vadd.f32 0.0, %v7220
        %7222 = vmatprep.mubr.bf16.mxu0 %v6992
        %7223 = vmatmul.mubr.bf16.gmra.mrb[0].mxu0 %v6805
        %v7224 = vpop.f32.mrb[0].mxu0
        %v7225 = vadd.f32 0.0, %v7224
        %v7226 = vpop.f32.mrb[0].mxu0
        %v7227 = vadd.f32 0.0, %v7226
        %v7228 = vpop.f32.mrb[0].mxu0
        %v7229 = vpop.f32.mrb[0].mxu0
        %7230 = vdwg.mxu0
        %v7231 = vadd.f32 %v6618, %v7035
        %v7232 = vadd.f32 %v6619, %v7037
        %v7233 = vadd.f32 %v6620, %v7039
        %v7234 = vadd.f32 %v6621, %v7041
        %v7235 = vadd.f32 %v6622, %v7045
        %v7236 = vadd.f32 %v6623, %v7047
        %v7237 = vadd.f32 %v6624, %v7049
        %v7238 = vadd.f32 %v6625, %v7051
        %v7239 = vadd.f32 %v6626, %v7055
        %v7240 = vadd.f32 %v6627, %v7057
        %v7241 = vadd.f32 %v6628, %v7059
        %v7242 = vadd.f32 %v6629, %v7061
        %v7243 = vadd.f32 %v6630, %v7065
        %v7244 = vadd.f32 %v6631, %v7067
        %v7245 = vadd.f32 %v6632, %v7069
        %v7246 = vadd.f32 %v6633, %v7071
        %v7247 = vadd.f32 %v6634, %v7075
        %v7248 = vadd.f32 %v6635, %v7077
        %v7249 = vadd.f32 %v6636, %v7079
        %v7250 = vadd.f32 %v6637, %v7081
        %v7251 = vadd.f32 %v6638, %v7085
        %v7252 = vadd.f32 %v6639, %v7087
        %v7253 = vadd.f32 %v6640, %v7089
        %v7254 = vadd.f32 %v6641, %v7091
        %v7255 = vadd.f32 %v6642, %v7095
        %v7256 = vadd.f32 %v6643, %v7097
        %v7257 = vadd.f32 %v6644, %v7099
        %v7258 = vadd.f32 %v6645, %v7101
        %v7259 = vadd.f32 %v6646, %v7105
        %v7260 = vadd.f32 %v6647, %v7107
        %v7261 = vadd.f32 %v6648, %v7109
        %v7262 = vadd.f32 %v6649, %v7111
        %v7263 = vadd.f32 %v6650, %v7115
        %v7264 = vadd.f32 %v6651, %v7117
        %v7265 = vadd.f32 %v6652, %v7119
        %v7266 = vadd.f32 %v6653, %v7121
        %v7267 = vadd.f32 %v6654, %v7125
        %v7268 = vadd.f32 %v6655, %v7127
        %v7269 = vadd.f32 %v6656, %v7129
        %v7270 = vadd.f32 %v6657, %v7131
        %v7271 = vadd.f32 %v6658, %v7135
        %v7272 = vadd.f32 %v6659, %v7137
        %v7273 = vadd.f32 %v6660, %v7139
        %v7274 = vadd.f32 %v6661, %v7141
        %v7275 = vadd.f32 %v6662, %v7145
        %v7276 = vadd.f32 %v6663, %v7147
        %v7277 = vadd.f32 %v6664, %v7149
        %v7278 = vadd.f32 %v6665, %v7151
        %v7279 = vadd.f32 %v6666, %v7155
        %v7280 = vadd.f32 %v6667, %v7157
        %v7281 = vadd.f32 %v6668, %v7159
        %v7282 = vadd.f32 %v6669, %v7161
        %v7283 = vadd.f32 %v6670, %v7165
        %v7284 = vadd.f32 %v6671, %v7167
        %v7285 = vadd.f32 %v6672, %v7169
        %v7286 = vadd.f32 %v6673, %v7171
        %v7287 = vadd.f32 %v6674, %v7175
        %v7288 = vadd.f32 %v6675, %v7177
        %v7289 = vadd.f32 %v6676, %v7179
        %v7290 = vadd.f32 %v6677, %v7181
        %v7291 = vadd.f32 %v6678, %v7185
        %v7292 = vadd.f32 %v6679, %v7187
        %v7293 = vadd.f32 %v6680, %v7189
        %v7294 = vadd.f32 %v6681, %v7191
        %v7295 = vadd.f32 %v6682, %v7195
        %v7296 = vadd.f32 %v6683, %v7197
        %v7297 = vadd.f32 %v6684, %v7199
        %v7298 = vadd.f32 %v6685, %v7201
        %v7299 = vadd.f32 %v6686, %v7205
        %v7300 = vadd.f32 %v6687, %v7207
        %v7301 = vadd.f32 %v6688, %v7209
        %v7302 = vadd.f32 %v6689, %v7211
        %v7303 = vadd.f32 %v6690, %v7215
        %v7304 = vadd.f32 %v6691, %v7217
        %v7305 = vadd.f32 %v6692, %v7219
        %v7306 = vadd.f32 %v6693, %v7221
        %v7307 = vadd.f32 %v6694, %v7225
        %v7308 = vadd.f32 %v6695, %v7227
        %v7309 = vld [vmem:[#allocation2] sm:$0x80]
        %v7310 = vld [vmem:[#allocation2 + $0x8] sm:$0x80]
        %v7311 = vld [vmem:[#allocation2 + $0x270] sm:$0x7f]
        %v7312 = vld [vmem:[#allocation2 + $0x278] sm:$0x7f]
        %v7313 = vpack.c.bf16 %v2723, %v7309
        %v7314 = vpack.c.bf16 %v2724, %v7310
        %v7315 = vpack.c.bf16 %v7311, %v2797
        %v7316 = vpack.c.bf16 %v7312, %v2798
        %s7317 = scalar_lea.vmem %s3, 1176
        %v7318 = vld [vmem:[%s7317] sm:$0xff]
        %v7319 = vld [vmem:[%s7317 + $0x8] sm:$0xff]
        %v7320 = vld [vmem:[%s7317 + $0x10] sm:$0xff]
        %v7321 = vld [vmem:[%s7317 + $0x18] sm:$0xff]
        %v7322 = vld [vmem:[%s7317 + $0x20] sm:$0xff]
        %v7323 = vld [vmem:[%s7317 + $0x28] sm:$0xff]
        %v7324 = vld [vmem:[%s7317 + $0x30] sm:$0xff]
        %v7325 = vld [vmem:[%s7317 + $0x38] sm:$0xff]
        %v7326 = vld [vmem:[%s7317 + $0x40] sm:$0xff]
        %v7327 = vld [vmem:[%s7317 + $0x48] sm:$0xff]
        %v7328 = vld [vmem:[%s7317 + $0x50] sm:$0xff]
        %v7329 = vld [vmem:[%s7317 + $0x58] sm:$0xff]
        %v7330 = vld [vmem:[%s7317 + $0x60] sm:$0xff]
        %v7331 = vld [vmem:[%s7317 + $0x68] sm:$0xff]
        %v7332 = vld [vmem:[%s7317 + $0x70] sm:$0xff]
        %v7333 = vld [vmem:[%s7317 + $0x78] sm:$0xff]
        %v7334 = vld [vmem:[%s7317 + $0x80] sm:$0xff]
        %v7335 = vld [vmem:[%s7317 + $0x88] sm:$0xff]
        %v7336 = vld [vmem:[%s7317 + $0x90] sm:$0xff]
        %v7337 = vld [vmem:[%s7317 + $0x98] sm:$0xff]
        %v7338 = vld [vmem:[%s7317 + $0xa0] sm:$0xff]
        %vm7339 = vsmask.f32 4352
        %v7341 = vshrl.u32 %v7313, 16
        %v7343 = vrot.slane %v7341, 3
        %v7344 = vshll.u32 %v7313, 16
        %v7346 = vrot.slane %v7344, 4
        %v7347 = vor.u32 %v7343, %v7346
        %v7348 = vrot.slane %v2915, 3
        %v7349 = vrot.slane %v2899, 4
        %v7350 = vor.u32 %v7348, %v7349
        %v7351 = vsel %vm7339, %v7347, %v7350
        %v7353 = vshrl.u32 %v7314, 16
        %v7355 = vrot.slane %v7353, 3
        %v7356 = vshll.u32 %v7314, 16
        %v7358 = vrot.slane %v7356, 4
        %v7359 = vor.u32 %v7355, %v7358
        %v7360 = vrot.slane %v2923, 3
        %v7361 = vrot.slane %v2911, 4
        %v7362 = vor.u32 %v7360, %v7361
        %v7363 = vsel %vm7339, %v7359, %v7362
        %v7364 = vrot.slane %v2931, 3
        %v7365 = vrot.slane %v2919, 4
        %v7366 = vor.u32 %v7364, %v7365
        %v7367 = vsel %vm7339, %v7350, %v7366
        %v7368 = vrot.slane %v2939, 3
        %v7369 = vrot.slane %v2927, 4
        %v7370 = vor.u32 %v7368, %v7369
        %v7371 = vsel %vm7339, %v7362, %v7370
        %v7372 = vrot.slane %v2947, 3
        %v7373 = vrot.slane %v2935, 4
        %v7374 = vor.u32 %v7372, %v7373
        %v7375 = vsel %vm7339, %v7366, %v7374
        %v7376 = vrot.slane %v2955, 3
        %v7377 = vrot.slane %v2943, 4
        %v7378 = vor.u32 %v7376, %v7377
        %v7379 = vsel %vm7339, %v7370, %v7378
        %v7380 = vrot.slane %v2963, 3
        %v7381 = vrot.slane %v2951, 4
        %v7382 = vor.u32 %v7380, %v7381
        %v7383 = vsel %vm7339, %v7374, %v7382
        %v7384 = vrot.slane %v2971, 3
        %v7385 = vrot.slane %v2959, 4
        %v7386 = vor.u32 %v7384, %v7385
        %v7387 = vsel %vm7339, %v7378, %v7386
        %v7388 = vrot.slane %v2979, 3
        %v7389 = vrot.slane %v2967, 4
        %v7390 = vor.u32 %v7388, %v7389
        %v7391 = vsel %vm7339, %v7382, %v7390
        %v7392 = vrot.slane %v2987, 3
        %v7393 = vrot.slane %v2975, 4
        %v7394 = vor.u32 %v7392, %v7393
        %v7395 = vsel %vm7339, %v7386, %v7394
        %v7396 = vrot.slane %v2995, 3
        %v7397 = vrot.slane %v2983, 4
        %v7398 = vor.u32 %v7396, %v7397
        %v7399 = vsel %vm7339, %v7390, %v7398
        %v7400 = vrot.slane %v3003, 3
        %v7401 = vrot.slane %v2991, 4
        %v7402 = vor.u32 %v7400, %v7401
        %v7403 = vsel %vm7339, %v7394, %v7402
        %v7404 = vrot.slane %v3011, 3
        %v7405 = vrot.slane %v2999, 4
        %v7406 = vor.u32 %v7404, %v7405
        %v7407 = vsel %vm7339, %v7398, %v7406
        %v7408 = vrot.slane %v3019, 3
        %v7409 = vrot.slane %v3007, 4
        %v7410 = vor.u32 %v7408, %v7409
        %v7411 = vsel %vm7339, %v7402, %v7410
        %v7412 = vrot.slane %v3027, 3
        %v7413 = vrot.slane %v3015, 4
        %v7414 = vor.u32 %v7412, %v7413
        %v7415 = vsel %vm7339, %v7406, %v7414
        %v7416 = vrot.slane %v3035, 3
        %v7417 = vrot.slane %v3023, 4
        %v7418 = vor.u32 %v7416, %v7417
        %v7419 = vsel %vm7339, %v7410, %v7418
        %v7420 = vrot.slane %v3043, 3
        %v7421 = vrot.slane %v3031, 4
        %v7422 = vor.u32 %v7420, %v7421
        %v7423 = vsel %vm7339, %v7414, %v7422
        %v7424 = vrot.slane %v3051, 3
        %v7425 = vrot.slane %v3039, 4
        %v7426 = vor.u32 %v7424, %v7425
        %v7427 = vsel %vm7339, %v7418, %v7426
        %v7428 = vrot.slane %v3059, 3
        %v7429 = vrot.slane %v3047, 4
        %v7430 = vor.u32 %v7428, %v7429
        %v7431 = vsel %vm7339, %v7422, %v7430
        %v7432 = vrot.slane %v3067, 3
        %v7433 = vrot.slane %v3055, 4
        %v7434 = vor.u32 %v7432, %v7433
        %v7435 = vsel %vm7339, %v7426, %v7434
        %v7436 = vrot.slane %v3075, 3
        %v7437 = vrot.slane %v3063, 4
        %v7438 = vor.u32 %v7436, %v7437
        %v7439 = vsel %vm7339, %v7430, %v7438
        %v7440 = vrot.slane %v3083, 3
        %v7441 = vrot.slane %v3071, 4
        %v7442 = vor.u32 %v7440, %v7441
        %v7443 = vsel %vm7339, %v7434, %v7442
        %v7444 = vrot.slane %v3091, 3
        %v7445 = vrot.slane %v3079, 4
        %v7446 = vor.u32 %v7444, %v7445
        %v7447 = vsel %vm7339, %v7438, %v7446
        %v7448 = vrot.slane %v3099, 3
        %v7449 = vrot.slane %v3087, 4
        %v7450 = vor.u32 %v7448, %v7449
        %v7451 = vsel %vm7339, %v7442, %v7450
        %v7452 = vrot.slane %v3107, 3
        %v7453 = vrot.slane %v3095, 4
        %v7454 = vor.u32 %v7452, %v7453
        %v7455 = vsel %vm7339, %v7446, %v7454
        %v7456 = vrot.slane %v3115, 3
        %v7457 = vrot.slane %v3103, 4
        %v7458 = vor.u32 %v7456, %v7457
        %v7459 = vsel %vm7339, %v7450, %v7458
        %v7460 = vrot.slane %v3123, 3
        %v7461 = vrot.slane %v3111, 4
        %v7462 = vor.u32 %v7460, %v7461
        %v7463 = vsel %vm7339, %v7454, %v7462
        %v7464 = vrot.slane %v3131, 3
        %v7465 = vrot.slane %v3119, 4
        %v7466 = vor.u32 %v7464, %v7465
        %v7467 = vsel %vm7339, %v7458, %v7466
        %v7468 = vrot.slane %v3139, 3
        %v7469 = vrot.slane %v3127, 4
        %v7470 = vor.u32 %v7468, %v7469
        %v7471 = vsel %vm7339, %v7462, %v7470
        %v7472 = vrot.slane %v3147, 3
        %v7473 = vrot.slane %v3135, 4
        %v7474 = vor.u32 %v7472, %v7473
        %v7475 = vsel %vm7339, %v7466, %v7474
        %v7476 = vrot.slane %v3155, 3
        %v7477 = vrot.slane %v3143, 4
        %v7478 = vor.u32 %v7476, %v7477
        %v7479 = vsel %vm7339, %v7470, %v7478
        %v7480 = vrot.slane %v3163, 3
        %v7481 = vrot.slane %v3151, 4
        %v7482 = vor.u32 %v7480, %v7481
        %v7483 = vsel %vm7339, %v7474, %v7482
        %v7484 = vrot.slane %v3171, 3
        %v7485 = vrot.slane %v3159, 4
        %v7486 = vor.u32 %v7484, %v7485
        %v7487 = vsel %vm7339, %v7478, %v7486
        %v7488 = vrot.slane %v3179, 3
        %v7489 = vrot.slane %v3167, 4
        %v7490 = vor.u32 %v7488, %v7489
        %v7491 = vsel %vm7339, %v7482, %v7490
        %v7492 = vrot.slane %v3187, 3
        %v7493 = vrot.slane %v3175, 4
        %v7494 = vor.u32 %v7492, %v7493
        %v7495 = vsel %vm7339, %v7486, %v7494
        %v7496 = vrot.slane %v3195, 3
        %v7497 = vrot.slane %v3183, 4
        %v7498 = vor.u32 %v7496, %v7497
        %v7499 = vsel %vm7339, %v7490, %v7498
        %v7501 = vshrl.u32 %v7315, 16
        %v7503 = vrot.slane %v7501, 3
        %v7504 = vshll.u32 %v7315, 16
        %v7506 = vrot.slane %v7504, 4
        %v7507 = vor.u32 %v7503, %v7506
        %v7508 = vsel %vm7339, %v7494, %v7507
        %v7510 = vshrl.u32 %v7316, 16
        %v7512 = vrot.slane %v7510, 3
        %v7513 = vshll.u32 %v7316, 16
        %v7515 = vrot.slane %v7513, 4
        %v7516 = vor.u32 %v7512, %v7515
        %v7517 = vsel %vm7339, %v7498, %v7516
        %v7559 = vunpack.c.l.b16 %v7318
        %v7560 = vunpack.c.h.b16 %v7318
        %v7561 = vunpack.c.l.b16 %v7319
        %v7562 = vunpack.c.h.b16 %v7319
        %v7563 = vunpack.c.l.b16 %v7320
        %v7564 = vunpack.c.h.b16 %v7320
        %v7565 = vunpack.c.l.b16 %v7321
        %v7566 = vunpack.c.h.b16 %v7321
        %v7567 = vunpack.c.l.b16 %v7322
        %v7568 = vunpack.c.h.b16 %v7322
        %v7569 = vunpack.c.l.b16 %v7323
        %v7570 = vunpack.c.h.b16 %v7323
        %v7571 = vunpack.c.l.b16 %v7324
        %v7572 = vunpack.c.h.b16 %v7324
        %v7573 = vunpack.c.l.b16 %v7325
        %v7574 = vunpack.c.h.b16 %v7325
        %v7575 = vunpack.c.l.b16 %v7326
        %v7576 = vunpack.c.h.b16 %v7326
        %v7577 = vunpack.c.l.b16 %v7327
        %v7578 = vunpack.c.h.b16 %v7327
        %v7579 = vunpack.c.l.b16 %v7328
        %v7580 = vunpack.c.h.b16 %v7328
        %v7581 = vunpack.c.l.b16 %v7329
        %v7582 = vunpack.c.h.b16 %v7329
        %v7583 = vunpack.c.l.b16 %v7330
        %v7584 = vunpack.c.h.b16 %v7330
        %v7585 = vunpack.c.l.b16 %v7331
        %v7586 = vunpack.c.h.b16 %v7331
        %v7587 = vunpack.c.l.b16 %v7332
        %v7588 = vunpack.c.h.b16 %v7332
        %v7589 = vunpack.c.l.b16 %v7333
        %v7590 = vunpack.c.h.b16 %v7333
        %v7591 = vunpack.c.l.b16 %v7334
        %v7592 = vunpack.c.h.b16 %v7334
        %v7593 = vunpack.c.l.b16 %v7335
        %v7594 = vunpack.c.h.b16 %v7335
        %v7595 = vunpack.c.l.b16 %v7336
        %v7596 = vunpack.c.h.b16 %v7336
        %v7597 = vunpack.c.l.b16 %v7337
        %v7598 = vunpack.c.h.b16 %v7337
        %v7599 = vunpack.c.l.b16 %v7338
        %v7600 = vunpack.c.h.b16 %v7338
        %v7601 = vpack.c.b16 %v7561, %v7559
        %v7602 = vpack.c.b16 %v7562, %v7560
        %v7603 = vpack.c.b16 %v7565, %v7563
        %v7604 = vpack.c.b16 %v7566, %v7564
        %v7605 = vpack.c.b16 %v7569, %v7567
        %v7606 = vpack.c.b16 %v7570, %v7568
        %v7607 = vpack.c.b16 %v7573, %v7571
        %v7608 = vpack.c.b16 %v7574, %v7572
        %v7609 = vpack.c.b16 %v7577, %v7575
        %v7610 = vpack.c.b16 %v7578, %v7576
        %v7611 = vpack.c.b16 %v7581, %v7579
        %v7612 = vpack.c.b16 %v7582, %v7580
        %v7613 = vpack.c.b16 %v7585, %v7583
        %v7614 = vpack.c.b16 %v7586, %v7584
        %v7615 = vpack.c.b16 %v7589, %v7587
        %v7616 = vpack.c.b16 %v7590, %v7588
        %v7617 = vpack.c.b16 %v7593, %v7591
        %v7618 = vpack.c.b16 %v7594, %v7592
        %v7619 = vpack.c.b16 %v7597, %v7595
        %v7620 = vpack.c.b16 %v7598, %v7596
        %v7621 = vpack.c.b16 %v7599, %v7599
        %v7622 = vpack.c.b16 %v7600, %v7600
        %v7644 = vsel %vm2639, %v7363, 0
        %v7647 = vsel %vm2639, %v7371, 0
        %v7650 = vsel %vm2639, %v7379, 0
        %v7653 = vsel %vm2639, %v7387, 0
        %v7656 = vsel %vm2639, %v7395, 0
        %v7659 = vsel %vm2639, %v7403, 0
        %v7662 = vsel %vm2639, %v7411, 0
        %v7665 = vsel %vm2639, %v7419, 0
        %v7668 = vsel %vm2639, %v7427, 0
        %v7671 = vsel %vm2639, %v7435, 0
        %v7674 = vsel %vm2639, %v7443, 0
        %v7677 = vsel %vm2639, %v7451, 0
        %v7680 = vsel %vm2639, %v7459, 0
        %v7683 = vsel %vm2639, %v7467, 0
        %v7686 = vsel %vm2639, %v7475, 0
        %v7689 = vsel %vm2639, %v7483, 0
        %v7692 = vsel %vm2639, %v7491, 0
        %v7695 = vsel %vm2639, %v7499, 0
        %v7698 = vsel %vm2639, %v7517, 0
        %v7701 = vsel %vm2639, %v7516, 0
        %v7704 = vsel %vm3394, %v7621, 0
        %v7707 = vsel %vm3394, %v7622, 0
        %7709 = vmatprep.subr.bf16.mxu0 %v7602
        %7710 = vmatpush1.bf16.msra.mxu0 %v7601
        %7711 = vmatprep.subr.bf16.mxu0 %v7604
        %7712 = vmatpush1.bf16.msra.mxu0 %v7603
        %7713 = vmatprep.subr.bf16.mxu0 %v7606
        %7714 = vmatpush1.bf16.msra.mxu0 %v7605
        %7715 = vmatprep.subr.bf16.mxu0 %v7608
        %7716 = vmatpush1.bf16.msra.mxu0 %v7607
        %7717 = vmatprep.subr.bf16.mxu0 %v7610
        %7718 = vmatpush1.bf16.msra.mxu0 %v7609
        %7719 = vmatprep.subr.bf16.mxu0 %v7612
        %7720 = vmatpush1.bf16.msra.mxu0 %v7611
        %7721 = vmatprep.subr.bf16.mxu0 %v7614
        %7722 = vmatpush1.bf16.msra.mxu0 %v7613
        %7723 = vmatprep.subr.bf16.mxu0 %v7616
        %7724 = vmatpush1.bf16.msra.mxu0 %v7615
        %7725 = vmatprep.subr.bf16.mxu0 %v7618
        %7726 = vmatpush1.bf16.msra.mxu0 %v7617
        %7727 = vmatprep.subr.bf16.mxu0 %v7620
        %7728 = vmatpush1.bf16.msra.mxu0 %v7619
        %7729 = vmatprep.subr.bf16.mxu0 %v7707
        %7730 = vmatpush1.bf16.msra.mxu0 %v7704
        %7731 = vmatprep.subr.bf16.mxu0 0
        %7732 = vmatpush1.bf16.msra.mxu0 0
        %7733 = vmatprep.subr.bf16.mxu0 0
        %7734 = vmatpush1.bf16.msra.mxu0 0
        %7735 = vmatprep.subr.bf16.mxu0 0
        %7736 = vmatpush1.bf16.msra.mxu0 0
        %7737 = vmatprep.subr.bf16.mxu0 0
        %7738 = vmatpush1.bf16.msra.mxu0 0
        %7739 = vmatprep.subr.bf16.mxu0 0
        %7740 = vmatpush1.bf16.msra.mxu0 0
        %7741 = vmatprep.mubr.bf16.mxu0 %v7644
        %7742 = vmatmul.mubr.bf16.gmra.mrb[0].mxu0 %v7351
        %v7743 = vpop.f32.mrb[0].mxu0
        %v7744 = vadd.f32 0.0, %v7743
        %v7745 = vpop.f32.mrb[0].mxu0
        %v7746 = vadd.f32 0.0, %v7745
        %v7747 = vpop.f32.mrb[0].mxu0
        %v7748 = vadd.f32 0.0, %v7747
        %v7749 = vpop.f32.mrb[0].mxu0
        %v7750 = vadd.f32 0.0, %v7749
        %7751 = vmatprep.mubr.bf16.mxu0 %v7647
        %7752 = vmatmul.mubr.bf16.gmra.mrb[0].mxu0 %v7367
        %v7753 = vpop.f32.mrb[0].mxu0
        %v7754 = vadd.f32 0.0, %v7753
        %v7755 = vpop.f32.mrb[0].mxu0
        %v7756 = vadd.f32 0.0, %v7755
        %v7757 = vpop.f32.mrb[0].mxu0
        %v7758 = vadd.f32 0.0, %v7757
        %v7759 = vpop.f32.mrb[0].mxu0
        %v7760 = vadd.f32 0.0, %v7759
        %7761 = vmatprep.mubr.bf16.mxu0 %v7650
        %7762 = vmatmul.mubr.bf16.gmra.mrb[0].mxu0 %v7375
        %v7763 = vpop.f32.mrb[0].mxu0
        %v7764 = vadd.f32 0.0, %v7763
        %v7765 = vpop.f32.mrb[0].mxu0
        %v7766 = vadd.f32 0.0, %v7765
        %v7767 = vpop.f32.mrb[0].mxu0
        %v7768 = vadd.f32 0.0, %v7767
        %v7769 = vpop.f32.mrb[0].mxu0
        %v7770 = vadd.f32 0.0, %v7769
        %7771 = vmatprep.mubr.bf16.mxu0 %v7653
        %7772 = vmatmul.mubr.bf16.gmra.mrb[0].mxu0 %v7383
        %v7773 = vpop.f32.mrb[0].mxu0
        %v7774 = vadd.f32 0.0, %v7773
        %v7775 = vpop.f32.mrb[0].mxu0
        %v7776 = vadd.f32 0.0, %v7775
        %v7777 = vpop.f32.mrb[0].mxu0
        %v7778 = vadd.f32 0.0, %v7777
        %v7779 = vpop.f32.mrb[0].mxu0
        %v7780 = vadd.f32 0.0, %v7779
        %7781 = vmatprep.mubr.bf16.mxu0 %v7656
        %7782 = vmatmul.mubr.bf16.gmra.mrb[0].mxu0 %v7391
        %v7783 = vpop.f32.mrb[0].mxu0
        %v7784 = vadd.f32 0.0, %v7783
        %v7785 = vpop.f32.mrb[0].mxu0
        %v7786 = vadd.f32 0.0, %v7785
        %v7787 = vpop.f32.mrb[0].mxu0
        %v7788 = vadd.f32 0.0, %v7787
        %v7789 = vpop.f32.mrb[0].mxu0
        %v7790 = vadd.f32 0.0, %v7789
        %7791 = vmatprep.mubr.bf16.mxu0 %v7659
        %7792 = vmatmul.mubr.bf16.gmra.mrb[0].mxu0 %v7399
        %v7793 = vpop.f32.mrb[0].mxu0
        %v7794 = vadd.f32 0.0, %v7793
        %v7795 = vpop.f32.mrb[0].mxu0
        %v7796 = vadd.f32 0.0, %v7795
        %v7797 = vpop.f32.mrb[0].mxu0
        %v7798 = vadd.f32 0.0, %v7797
        %v7799 = vpop.f32.mrb[0].mxu0
        %v7800 = vadd.f32 0.0, %v7799
        %7801 = vmatprep.mubr.bf16.mxu0 %v7662
        %7802 = vmatmul.mubr.bf16.gmra.mrb[0].mxu0 %v7407
        %v7803 = vpop.f32.mrb[0].mxu0
        %v7804 = vadd.f32 0.0, %v7803
        %v7805 = vpop.f32.mrb[0].mxu0
        %v7806 = vadd.f32 0.0, %v7805
        %v7807 = vpop.f32.mrb[0].mxu0
        %v7808 = vadd.f32 0.0, %v7807
        %v7809 = vpop.f32.mrb[0].mxu0
        %v7810 = vadd.f32 0.0, %v7809
        %7811 = vmatprep.mubr.bf16.mxu0 %v7665
        %7812 = vmatmul.mubr.bf16.gmra.mrb[0].mxu0 %v7415
        %v7813 = vpop.f32.mrb[0].mxu0
        %v7814 = vadd.f32 0.0, %v7813
        %v7815 = vpop.f32.mrb[0].mxu0
        %v7816 = vadd.f32 0.0, %v7815
        %v7817 = vpop.f32.mrb[0].mxu0
        %v7818 = vadd.f32 0.0, %v7817
        %v7819 = vpop.f32.mrb[0].mxu0
        %v7820 = vadd.f32 0.0, %v7819
        %7821 = vmatprep.mubr.bf16.mxu0 %v7668
        %7822 = vmatmul.mubr.bf16.gmra.mrb[0].mxu0 %v7423
        %v7823 = vpop.f32.mrb[0].mxu0
        %v7824 = vadd.f32 0.0, %v7823
        %v7825 = vpop.f32.mrb[0].mxu0
        %v7826 = vadd.f32 0.0, %v7825
        %v7827 = vpop.f32.mrb[0].mxu0
        %v7828 = vadd.f32 0.0, %v7827
        %v7829 = vpop.f32.mrb[0].mxu0
        %v7830 = vadd.f32 0.0, %v7829
        %7831 = vmatprep.mubr.bf16.mxu0 %v7671
        %7832 = vmatmul.mubr.bf16.gmra.mrb[0].mxu0 %v7431
        %v7833 = vpop.f32.mrb[0].mxu0
        %v7834 = vadd.f32 0.0, %v7833
        %v7835 = vpop.f32.mrb[0].mxu0
        %v7836 = vadd.f32 0.0, %v7835
        %v7837 = vpop.f32.mrb[0].mxu0
        %v7838 = vadd.f32 0.0, %v7837
        %v7839 = vpop.f32.mrb[0].mxu0
        %v7840 = vadd.f32 0.0, %v7839
        %7841 = vmatprep.mubr.bf16.mxu0 %v7674
        %7842 = vmatmul.mubr.bf16.gmra.mrb[0].mxu0 %v7439
        %v7843 = vpop.f32.mrb[0].mxu0
        %v7844 = vadd.f32 0.0, %v7843
        %v7845 = vpop.f32.mrb[0].mxu0
        %v7846 = vadd.f32 0.0, %v7845
        %v7847 = vpop.f32.mrb[0].mxu0
        %v7848 = vadd.f32 0.0, %v7847
        %v7849 = vpop.f32.mrb[0].mxu0
        %v7850 = vadd.f32 0.0, %v7849
        %7851 = vmatprep.mubr.bf16.mxu0 %v7677
        %7852 = vmatmul.mubr.bf16.gmra.mrb[0].mxu0 %v7447
        %v7853 = vpop.f32.mrb[0].mxu0
        %v7854 = vadd.f32 0.0, %v7853
        %v7855 = vpop.f32.mrb[0].mxu0
        %v7856 = vadd.f32 0.0, %v7855
        %v7857 = vpop.f32.mrb[0].mxu0
        %v7858 = vadd.f32 0.0, %v7857
        %v7859 = vpop.f32.mrb[0].mxu0
        %v7860 = vadd.f32 0.0, %v7859
        %7861 = vmatprep.mubr.bf16.mxu0 %v7680
        %7862 = vmatmul.mubr.bf16.gmra.mrb[0].mxu0 %v7455
        %v7863 = vpop.f32.mrb[0].mxu0
        %v7864 = vadd.f32 0.0, %v7863
        %v7865 = vpop.f32.mrb[0].mxu0
        %v7866 = vadd.f32 0.0, %v7865
        %v7867 = vpop.f32.mrb[0].mxu0
        %v7868 = vadd.f32 0.0, %v7867
        %v7869 = vpop.f32.mrb[0].mxu0
        %v7870 = vadd.f32 0.0, %v7869
        %7871 = vmatprep.mubr.bf16.mxu0 %v7683
        %7872 = vmatmul.mubr.bf16.gmra.mrb[0].mxu0 %v7463
        %v7873 = vpop.f32.mrb[0].mxu0
        %v7874 = vadd.f32 0.0, %v7873
        %v7875 = vpop.f32.mrb[0].mxu0
        %v7876 = vadd.f32 0.0, %v7875
        %v7877 = vpop.f32.mrb[0].mxu0
        %v7878 = vadd.f32 0.0, %v7877
        %v7879 = vpop.f32.mrb[0].mxu0
        %v7880 = vadd.f32 0.0, %v7879
        %7881 = vmatprep.mubr.bf16.mxu0 %v7686
        %7882 = vmatmul.mubr.bf16.gmra.mrb[0].mxu0 %v7471
        %v7883 = vpop.f32.mrb[0].mxu0
        %v7884 = vadd.f32 0.0, %v7883
        %v7885 = vpop.f32.mrb[0].mxu0
        %v7886 = vadd.f32 0.0, %v7885
        %v7887 = vpop.f32.mrb[0].mxu0
        %v7888 = vadd.f32 0.0, %v7887
        %v7889 = vpop.f32.mrb[0].mxu0
        %v7890 = vadd.f32 0.0, %v7889
        %7891 = vmatprep.mubr.bf16.mxu0 %v7689
        %7892 = vmatmul.mubr.bf16.gmra.mrb[0].mxu0 %v7479
        %v7893 = vpop.f32.mrb[0].mxu0
        %v7894 = vadd.f32 0.0, %v7893
        %v7895 = vpop.f32.mrb[0].mxu0
        %v7896 = vadd.f32 0.0, %v7895
        %v7897 = vpop.f32.mrb[0].mxu0
        %v7898 = vadd.f32 0.0, %v7897
        %v7899 = vpop.f32.mrb[0].mxu0
        %v7900 = vadd.f32 0.0, %v7899
        %7901 = vmatprep.mubr.bf16.mxu0 %v7692
        %7902 = vmatmul.mubr.bf16.gmra.mrb[0].mxu0 %v7487
        %v7903 = vpop.f32.mrb[0].mxu0
        %v7904 = vadd.f32 0.0, %v7903
        %v7905 = vpop.f32.mrb[0].mxu0
        %v7906 = vadd.f32 0.0, %v7905
        %v7907 = vpop.f32.mrb[0].mxu0
        %v7908 = vadd.f32 0.0, %v7907
        %v7909 = vpop.f32.mrb[0].mxu0
        %v7910 = vadd.f32 0.0, %v7909
        %7911 = vmatprep.mubr.bf16.mxu0 %v7695
        %7912 = vmatmul.mubr.bf16.gmra.mrb[0].mxu0 %v7495
        %v7913 = vpop.f32.mrb[0].mxu0
        %v7914 = vadd.f32 0.0, %v7913
        %v7915 = vpop.f32.mrb[0].mxu0
        %v7916 = vadd.f32 0.0, %v7915
        %v7917 = vpop.f32.mrb[0].mxu0
        %v7918 = vadd.f32 0.0, %v7917
        %v7919 = vpop.f32.mrb[0].mxu0
        %v7920 = vadd.f32 0.0, %v7919
        %7921 = vmatprep.mubr.bf16.mxu0 %v7698
        %7922 = vmatmul.mubr.bf16.gmra.mrb[0].mxu0 %v7508
        %v7923 = vpop.f32.mrb[0].mxu0
        %v7924 = vadd.f32 0.0, %v7923
        %v7925 = vpop.f32.mrb[0].mxu0
        %v7926 = vadd.f32 0.0, %v7925
        %v7927 = vpop.f32.mrb[0].mxu0
        %v7928 = vadd.f32 0.0, %v7927
        %v7929 = vpop.f32.mrb[0].mxu0
        %v7930 = vadd.f32 0.0, %v7929
        %7931 = vmatprep.mubr.bf16.mxu0 %v7701
        %7932 = vmatmul.mubr.bf16.gmra.mrb[0].mxu0 %v7507
        %v7933 = vpop.f32.mrb[0].mxu0
        %v7934 = vadd.f32 0.0, %v7933
        %v7935 = vpop.f32.mrb[0].mxu0
        %v7936 = vadd.f32 0.0, %v7935
        %v7937 = vpop.f32.mrb[0].mxu0
        %v7938 = vpop.f32.mrb[0].mxu0
        %7939 = vdwg.mxu0
        %v7940 = vadd.f32 %v7231, %v7744
        %v7941 = vadd.f32 %v7232, %v7746
        %v7942 = vadd.f32 %v7233, %v7748
        %v7943 = vadd.f32 %v7234, %v7750
        %v7944 = vadd.f32 %v7235, %v7754
        %v7945 = vadd.f32 %v7236, %v7756
        %v7946 = vadd.f32 %v7237, %v7758
        %v7947 = vadd.f32 %v7238, %v7760
        %v7948 = vadd.f32 %v7239, %v7764
        %v7949 = vadd.f32 %v7240, %v7766
        %v7950 = vadd.f32 %v7241, %v7768
        %v7951 = vadd.f32 %v7242, %v7770
        %v7952 = vadd.f32 %v7243, %v7774
        %v7953 = vadd.f32 %v7244, %v7776
        %v7954 = vadd.f32 %v7245, %v7778
        %v7955 = vadd.f32 %v7246, %v7780
        %v7956 = vadd.f32 %v7247, %v7784
        %v7957 = vadd.f32 %v7248, %v7786
        %v7958 = vadd.f32 %v7249, %v7788
        %v7959 = vadd.f32 %v7250, %v7790
        %v7960 = vadd.f32 %v7251, %v7794
        %v7961 = vadd.f32 %v7252, %v7796
        %v7962 = vadd.f32 %v7253, %v7798
        %v7963 = vadd.f32 %v7254, %v7800
        %v7964 = vadd.f32 %v7255, %v7804
        %v7965 = vadd.f32 %v7256, %v7806
        %v7966 = vadd.f32 %v7257, %v7808
        %v7967 = vadd.f32 %v7258, %v7810
        %v7968 = vadd.f32 %v7259, %v7814
        %v7969 = vadd.f32 %v7260, %v7816
        %v7970 = vadd.f32 %v7261, %v7818
        %v7971 = vadd.f32 %v7262, %v7820
        %v7972 = vadd.f32 %v7263, %v7824
        %v7973 = vadd.f32 %v7264, %v7826
        %v7974 = vadd.f32 %v7265, %v7828
        %v7975 = vadd.f32 %v7266, %v7830
        %v7976 = vadd.f32 %v7267, %v7834
        %v7977 = vadd.f32 %v7268, %v7836
        %v7978 = vadd.f32 %v7269, %v7838
        %v7979 = vadd.f32 %v7270, %v7840
        %v7980 = vadd.f32 %v7271, %v7844
        %v7981 = vadd.f32 %v7272, %v7846
        %v7982 = vadd.f32 %v7273, %v7848
        %v7983 = vadd.f32 %v7274, %v7850
        %v7984 = vadd.f32 %v7275, %v7854
        %v7985 = vadd.f32 %v7276, %v7856
        %v7986 = vadd.f32 %v7277, %v7858
        %v7987 = vadd.f32 %v7278, %v7860
        %v7988 = vadd.f32 %v7279, %v7864
        %v7989 = vadd.f32 %v7280, %v7866
        %v7990 = vadd.f32 %v7281, %v7868
        %v7991 = vadd.f32 %v7282, %v7870
        %v7992 = vadd.f32 %v7283, %v7874
        %v7993 = vadd.f32 %v7284, %v7876
        %v7994 = vadd.f32 %v7285, %v7878
        %v7995 = vadd.f32 %v7286, %v7880
        %v7996 = vadd.f32 %v7287, %v7884
        %v7997 = vadd.f32 %v7288, %v7886
        %v7998 = vadd.f32 %v7289, %v7888
        %v7999 = vadd.f32 %v7290, %v7890
        %v8000 = vadd.f32 %v7291, %v7894
        %v8001 = vadd.f32 %v7292, %v7896
        %v8002 = vadd.f32 %v7293, %v7898
        %v8003 = vadd.f32 %v7294, %v7900
        %v8004 = vadd.f32 %v7295, %v7904
        %v8005 = vadd.f32 %v7296, %v7906
        %v8006 = vadd.f32 %v7297, %v7908
        %v8007 = vadd.f32 %v7298, %v7910
        %v8008 = vadd.f32 %v7299, %v7914
        %v8009 = vadd.f32 %v7300, %v7916
        %v8010 = vadd.f32 %v7301, %v7918
        %v8011 = vadd.f32 %v7302, %v7920
        %v8012 = vadd.f32 %v7303, %v7924
        %v8013 = vadd.f32 %v7304, %v7926
        %v8014 = vadd.f32 %v7305, %v7928
        %v8015 = vadd.f32 %v7306, %v7930
        %v8016 = vadd.f32 %v7307, %v7934
        %v8017 = vadd.f32 %v7308, %v7936
        %v8018 = vld [vmem:[#allocation2 + $0x270] sm:$0xff]
        %v8019 = vld [vmem:[#allocation2 + $0x278] sm:$0xff]
        %v8020 = vpack.c.bf16 %v2725, %v2723
        %v8021 = vpack.c.bf16 %v2726, %v2724
        %v8022 = vpack.c.bf16 %v2729, %v2727
        %v8023 = vpack.c.bf16 %v2730, %v2728
        %v8024 = vpack.c.bf16 %v2733, %v2731
        %v8025 = vpack.c.bf16 %v2734, %v2732
        %v8026 = vpack.c.bf16 %v2737, %v2735
        %v8027 = vpack.c.bf16 %v2738, %v2736
        %v8028 = vpack.c.bf16 %v2741, %v2739
        %v8029 = vpack.c.bf16 %v2742, %v2740
        %v8030 = vpack.c.bf16 %v2745, %v2743
        %v8031 = vpack.c.bf16 %v2746, %v2744
        %v8032 = vpack.c.bf16 %v2749, %v2747
        %v8033 = vpack.c.bf16 %v2750, %v2748
        %v8034 = vpack.c.bf16 %v2753, %v2751
        %v8035 = vpack.c.bf16 %v2754, %v2752
        %v8036 = vpack.c.bf16 %v2757, %v2755
        %v8037 = vpack.c.bf16 %v2758, %v2756
        %v8038 = vpack.c.bf16 %v2761, %v2759
        %v8039 = vpack.c.bf16 %v2762, %v2760
        %v8040 = vpack.c.bf16 %v2765, %v2763
        %v8041 = vpack.c.bf16 %v2766, %v2764
        %v8042 = vpack.c.bf16 %v2769, %v2767
        %v8043 = vpack.c.bf16 %v2770, %v2768
        %v8044 = vpack.c.bf16 %v2773, %v2771
        %v8045 = vpack.c.bf16 %v2774, %v2772
        %v8046 = vpack.c.bf16 %v2777, %v2775
        %v8047 = vpack.c.bf16 %v2778, %v2776
        %v8048 = vpack.c.bf16 %v2781, %v2779
        %v8049 = vpack.c.bf16 %v2782, %v2780
        %v8050 = vpack.c.bf16 %v2785, %v2783
        %v8051 = vpack.c.bf16 %v2786, %v2784
        %v8052 = vpack.c.bf16 %v2789, %v2787
        %v8053 = vpack.c.bf16 %v2790, %v2788
        %v8054 = vpack.c.bf16 %v2793, %v2791
        %v8055 = vpack.c.bf16 %v2794, %v2792
        %v8056 = vpack.c.bf16 %v2797, %v2795
        %v8057 = vpack.c.bf16 %v2798, %v2796
        %v8058 = vpack.c.bf16 %v8018, %v8018
        %v8059 = vpack.c.bf16 %v8019, %v8019
        %s8060 = scalar_lea.vmem %s3, 1344
        %v8061 = vld [vmem:[%s8060] sm:$0xff]
        %v8062 = vld [vmem:[%s8060 + $0x8] sm:$0xff]
        %v8063 = vld [vmem:[%s8060 + $0x10] sm:$0xff]
        %v8064 = vld [vmem:[%s8060 + $0x18] sm:$0xff]
        %v8065 = vld [vmem:[%s8060 + $0x20] sm:$0xff]
        %v8066 = vld [vmem:[%s8060 + $0x28] sm:$0xff]
        %v8067 = vld [vmem:[%s8060 + $0x30] sm:$0xff]
        %v8068 = vld [vmem:[%s8060 + $0x38] sm:$0xff]
        %v8069 = vld [vmem:[%s8060 + $0x40] sm:$0xff]
        %v8070 = vld [vmem:[%s8060 + $0x48] sm:$0xff]
        %v8071 = vld [vmem:[%s8060 + $0x50] sm:$0xff]
        %v8072 = vld [vmem:[%s8060 + $0x58] sm:$0xff]
        %v8073 = vld [vmem:[%s8060 + $0x60] sm:$0xff]
        %v8074 = vld [vmem:[%s8060 + $0x68] sm:$0xff]
        %v8075 = vld [vmem:[%s8060 + $0x70] sm:$0xff]
        %v8076 = vld [vmem:[%s8060 + $0x78] sm:$0xff]
        %v8077 = vld [vmem:[%s8060 + $0x80] sm:$0xff]
        %v8078 = vld [vmem:[%s8060 + $0x88] sm:$0xff]
        %v8079 = vld [vmem:[%s8060 + $0x90] sm:$0xff]
        %v8080 = vld [vmem:[%s8060 + $0x98] sm:$0xff]
        %v8081 = vld [vmem:[%s8060 + $0xa0] sm:$0xff]
        %v8103 = vunpack.c.l.b16 %v8061
        %v8104 = vunpack.c.h.b16 %v8061
        %v8105 = vunpack.c.l.b16 %v8062
        %v8106 = vunpack.c.h.b16 %v8062
        %v8107 = vunpack.c.l.b16 %v8063
        %v8108 = vunpack.c.h.b16 %v8063
        %v8109 = vunpack.c.l.b16 %v8064
        %v8110 = vunpack.c.h.b16 %v8064
        %v8111 = vunpack.c.l.b16 %v8065
        %v8112 = vunpack.c.h.b16 %v8065
        %v8113 = vunpack.c.l.b16 %v8066
        %v8114 = vunpack.c.h.b16 %v8066
        %v8115 = vunpack.c.l.b16 %v8067
        %v8116 = vunpack.c.h.b16 %v8067
        %v8117 = vunpack.c.l.b16 %v8068
        %v8118 = vunpack.c.h.b16 %v8068
        %v8119 = vunpack.c.l.b16 %v8069
        %v8120 = vunpack.c.h.b16 %v8069
        %v8121 = vunpack.c.l.b16 %v8070
        %v8122 = vunpack.c.h.b16 %v8070
        %v8123 = vunpack.c.l.b16 %v8071
        %v8124 = vunpack.c.h.b16 %v8071
        %v8125 = vunpack.c.l.b16 %v8072
        %v8126 = vunpack.c.h.b16 %v8072
        %v8127 = vunpack.c.l.b16 %v8073
        %v8128 = vunpack.c.h.b16 %v8073
        %v8129 = vunpack.c.l.b16 %v8074
        %v8130 = vunpack.c.h.b16 %v8074
        %v8131 = vunpack.c.l.b16 %v8075
        %v8132 = vunpack.c.h.b16 %v8075
        %v8133 = vunpack.c.l.b16 %v8076
        %v8134 = vunpack.c.h.b16 %v8076
        %v8135 = vunpack.c.l.b16 %v8077
        %v8136 = vunpack.c.h.b16 %v8077
        %v8137 = vunpack.c.l.b16 %v8078
        %v8138 = vunpack.c.h.b16 %v8078
        %v8139 = vunpack.c.l.b16 %v8079
        %v8140 = vunpack.c.h.b16 %v8079
        %v8141 = vunpack.c.l.b16 %v8080
        %v8142 = vunpack.c.h.b16 %v8080
        %v8143 = vunpack.c.l.b16 %v8081
        %v8144 = vunpack.c.h.b16 %v8081
        %v8145 = vpack.c.b16 %v8105, %v8103
        %v8146 = vpack.c.b16 %v8106, %v8104
        %v8147 = vpack.c.b16 %v8109, %v8107
        %v8148 = vpack.c.b16 %v8110, %v8108
        %v8149 = vpack.c.b16 %v8113, %v8111
        %v8150 = vpack.c.b16 %v8114, %v8112
        %v8151 = vpack.c.b16 %v8117, %v8115
        %v8152 = vpack.c.b16 %v8118, %v8116
        %v8153 = vpack.c.b16 %v8121, %v8119
        %v8154 = vpack.c.b16 %v8122, %v8120
        %v8155 = vpack.c.b16 %v8125, %v8123
        %v8156 = vpack.c.b16 %v8126, %v8124
        %v8157 = vpack.c.b16 %v8129, %v8127
        %v8158 = vpack.c.b16 %v8130, %v8128
        %v8159 = vpack.c.b16 %v8133, %v8131
        %v8160 = vpack.c.b16 %v8134, %v8132
        %v8161 = vpack.c.b16 %v8137, %v8135
        %v8162 = vpack.c.b16 %v8138, %v8136
        %v8163 = vpack.c.b16 %v8141, %v8139
        %v8164 = vpack.c.b16 %v8142, %v8140
        %v8165 = vpack.c.b16 %v8143, %v8143
        %v8166 = vpack.c.b16 %v8144, %v8144
        %v8188 = vsel %vm2639, %v8021, 0
        %v8191 = vsel %vm2639, %v8023, 0
        %v8194 = vsel %vm2639, %v8025, 0
        %v8197 = vsel %vm2639, %v8027, 0
        %v8200 = vsel %vm2639, %v8029, 0
        %v8203 = vsel %vm2639, %v8031, 0
        %v8206 = vsel %vm2639, %v8033, 0
        %v8209 = vsel %vm2639, %v8035, 0
        %v8212 = vsel %vm2639, %v8037, 0
        %v8215 = vsel %vm2639, %v8039, 0
        %v8218 = vsel %vm2639, %v8041, 0
        %v8221 = vsel %vm2639, %v8043, 0
        %v8224 = vsel %vm2639, %v8045, 0
        %v8227 = vsel %vm2639, %v8047, 0
        %v8230 = vsel %vm2639, %v8049, 0
        %v8233 = vsel %vm2639, %v8051, 0
        %v8236 = vsel %vm2639, %v8053, 0
        %v8239 = vsel %vm2639, %v8055, 0
        %v8242 = vsel %vm2639, %v8057, 0
        %v8245 = vsel %vm2639, %v8059, 0
        %v8248 = vsel %vm3394, %v8165, 0
        %v8251 = vsel %vm3394, %v8166, 0
        %8253 = vmatprep.subr.bf16.mxu0 %v8146
        %8254 = vmatpush1.bf16.msra.mxu0 %v8145
        %8255 = vmatprep.subr.bf16.mxu0 %v8148
        %8256 = vmatpush1.bf16.msra.mxu0 %v8147
        %8257 = vmatprep.subr.bf16.mxu0 %v8150
        %8258 = vmatpush1.bf16.msra.mxu0 %v8149
        %8259 = vmatprep.subr.bf16.mxu0 %v8152
        %8260 = vmatpush1.bf16.msra.mxu0 %v8151
        %8261 = vmatprep.subr.bf16.mxu0 %v8154
        %8262 = vmatpush1.bf16.msra.mxu0 %v8153
        %8263 = vmatprep.subr.bf16.mxu0 %v8156
        %8264 = vmatpush1.bf16.msra.mxu0 %v8155
        %8265 = vmatprep.subr.bf16.mxu0 %v8158
        %8266 = vmatpush1.bf16.msra.mxu0 %v8157
        %8267 = vmatprep.subr.bf16.mxu0 %v8160
        %8268 = vmatpush1.bf16.msra.mxu0 %v8159
        %8269 = vmatprep.subr.bf16.mxu0 %v8162
        %8270 = vmatpush1.bf16.msra.mxu0 %v8161
        %8271 = vmatprep.subr.bf16.mxu0 %v8164
        %8272 = vmatpush1.bf16.msra.mxu0 %v8163
        %8273 = vmatprep.subr.bf16.mxu0 %v8251
        %8274 = vmatpush1.bf16.msra.mxu0 %v8248
        %8275 = vmatprep.subr.bf16.mxu0 0
        %8276 = vmatpush1.bf16.msra.mxu0 0
        %8277 = vmatprep.subr.bf16.mxu0 0
        %8278 = vmatpush1.bf16.msra.mxu0 0
        %8279 = vmatprep.subr.bf16.mxu0 0
        %8280 = vmatpush1.bf16.msra.mxu0 0
        %8281 = vmatprep.subr.bf16.mxu0 0
        %8282 = vmatpush1.bf16.msra.mxu0 0
        %8283 = vmatprep.subr.bf16.mxu0 0
        %8284 = vmatpush1.bf16.msra.mxu0 0
        %8285 = vmatprep.mubr.bf16.mxu0 %v8188
        %8286 = vmatmul.mubr.bf16.gmra.mrb[0].mxu0 %v8020
        %v8287 = vpop.f32.mrb[0].mxu0
        %v8288 = vadd.f32 0.0, %v8287
        %v8289 = vpop.f32.mrb[0].mxu0
        %v8290 = vadd.f32 0.0, %v8289
        %v8291 = vpop.f32.mrb[0].mxu0
        %v8292 = vadd.f32 0.0, %v8291
        %v8293 = vpop.f32.mrb[0].mxu0
        %v8294 = vadd.f32 0.0, %v8293
        %8295 = vmatprep.mubr.bf16.mxu0 %v8191
        %8296 = vmatmul.mubr.bf16.gmra.mrb[0].mxu0 %v8022
        %v8297 = vpop.f32.mrb[0].mxu0
        %v8298 = vadd.f32 0.0, %v8297
        %v8299 = vpop.f32.mrb[0].mxu0
        %v8300 = vadd.f32 0.0, %v8299
        %v8301 = vpop.f32.mrb[0].mxu0
        %v8302 = vadd.f32 0.0, %v8301
        %v8303 = vpop.f32.mrb[0].mxu0
        %v8304 = vadd.f32 0.0, %v8303
        %8305 = vmatprep.mubr.bf16.mxu0 %v8194
        %8306 = vmatmul.mubr.bf16.gmra.mrb[0].mxu0 %v8024
        %v8307 = vpop.f32.mrb[0].mxu0
        %v8308 = vadd.f32 0.0, %v8307
        %v8309 = vpop.f32.mrb[0].mxu0
        %v8310 = vadd.f32 0.0, %v8309
        %v8311 = vpop.f32.mrb[0].mxu0
        %v8312 = vadd.f32 0.0, %v8311
        %v8313 = vpop.f32.mrb[0].mxu0
        %v8314 = vadd.f32 0.0, %v8313
        %8315 = vmatprep.mubr.bf16.mxu0 %v8197
        %8316 = vmatmul.mubr.bf16.gmra.mrb[0].mxu0 %v8026
        %v8317 = vpop.f32.mrb[0].mxu0
        %v8318 = vadd.f32 0.0, %v8317
        %v8319 = vpop.f32.mrb[0].mxu0
        %v8320 = vadd.f32 0.0, %v8319
        %v8321 = vpop.f32.mrb[0].mxu0
        %v8322 = vadd.f32 0.0, %v8321
        %v8323 = vpop.f32.mrb[0].mxu0
        %v8324 = vadd.f32 0.0, %v8323
        %8325 = vmatprep.mubr.bf16.mxu0 %v8200
        %8326 = vmatmul.mubr.bf16.gmra.mrb[0].mxu0 %v8028
        %v8327 = vpop.f32.mrb[0].mxu0
        %v8328 = vadd.f32 0.0, %v8327
        %v8329 = vpop.f32.mrb[0].mxu0
        %v8330 = vadd.f32 0.0, %v8329
        %v8331 = vpop.f32.mrb[0].mxu0
        %v8332 = vadd.f32 0.0, %v8331
        %v8333 = vpop.f32.mrb[0].mxu0
        %v8334 = vadd.f32 0.0, %v8333
        %8335 = vmatprep.mubr.bf16.mxu0 %v8203
        %8336 = vmatmul.mubr.bf16.gmra.mrb[0].mxu0 %v8030
        %v8337 = vpop.f32.mrb[0].mxu0
        %v8338 = vadd.f32 0.0, %v8337
        %v8339 = vpop.f32.mrb[0].mxu0
        %v8340 = vadd.f32 0.0, %v8339
        %v8341 = vpop.f32.mrb[0].mxu0
        %v8342 = vadd.f32 0.0, %v8341
        %v8343 = vpop.f32.mrb[0].mxu0
        %v8344 = vadd.f32 0.0, %v8343
        %8345 = vmatprep.mubr.bf16.mxu0 %v8206
        %8346 = vmatmul.mubr.bf16.gmra.mrb[0].mxu0 %v8032
        %v8347 = vpop.f32.mrb[0].mxu0
        %v8348 = vadd.f32 0.0, %v8347
        %v8349 = vpop.f32.mrb[0].mxu0
        %v8350 = vadd.f32 0.0, %v8349
        %v8351 = vpop.f32.mrb[0].mxu0
        %v8352 = vadd.f32 0.0, %v8351
        %v8353 = vpop.f32.mrb[0].mxu0
        %v8354 = vadd.f32 0.0, %v8353
        %8355 = vmatprep.mubr.bf16.mxu0 %v8209
        %8356 = vmatmul.mubr.bf16.gmra.mrb[0].mxu0 %v8034
        %v8357 = vpop.f32.mrb[0].mxu0
        %v8358 = vadd.f32 0.0, %v8357
        %v8359 = vpop.f32.mrb[0].mxu0
        %v8360 = vadd.f32 0.0, %v8359
        %v8361 = vpop.f32.mrb[0].mxu0
        %v8362 = vadd.f32 0.0, %v8361
        %v8363 = vpop.f32.mrb[0].mxu0
        %v8364 = vadd.f32 0.0, %v8363
        %8365 = vmatprep.mubr.bf16.mxu0 %v8212
        %8366 = vmatmul.mubr.bf16.gmra.mrb[0].mxu0 %v8036
        %v8367 = vpop.f32.mrb[0].mxu0
        %v8368 = vadd.f32 0.0, %v8367
        %v8369 = vpop.f32.mrb[0].mxu0
        %v8370 = vadd.f32 0.0, %v8369
        %v8371 = vpop.f32.mrb[0].mxu0
        %v8372 = vadd.f32 0.0, %v8371
        %v8373 = vpop.f32.mrb[0].mxu0
        %v8374 = vadd.f32 0.0, %v8373
        %8375 = vmatprep.mubr.bf16.mxu0 %v8215
        %8376 = vmatmul.mubr.bf16.gmra.mrb[0].mxu0 %v8038
        %v8377 = vpop.f32.mrb[0].mxu0
        %v8378 = vadd.f32 0.0, %v8377
        %v8379 = vpop.f32.mrb[0].mxu0
        %v8380 = vadd.f32 0.0, %v8379
        %v8381 = vpop.f32.mrb[0].mxu0
        %v8382 = vadd.f32 0.0, %v8381
        %v8383 = vpop.f32.mrb[0].mxu0
        %v8384 = vadd.f32 0.0, %v8383
        %8385 = vmatprep.mubr.bf16.mxu0 %v8218
        %8386 = vmatmul.mubr.bf16.gmra.mrb[0].mxu0 %v8040
        %v8387 = vpop.f32.mrb[0].mxu0
        %v8388 = vadd.f32 0.0, %v8387
        %v8389 = vpop.f32.mrb[0].mxu0
        %v8390 = vadd.f32 0.0, %v8389
        %v8391 = vpop.f32.mrb[0].mxu0
        %v8392 = vadd.f32 0.0, %v8391
        %v8393 = vpop.f32.mrb[0].mxu0
        %v8394 = vadd.f32 0.0, %v8393
        %8395 = vmatprep.mubr.bf16.mxu0 %v8221
        %8396 = vmatmul.mubr.bf16.gmra.mrb[0].mxu0 %v8042
        %v8397 = vpop.f32.mrb[0].mxu0
        %v8398 = vadd.f32 0.0, %v8397
        %v8399 = vpop.f32.mrb[0].mxu0
        %v8400 = vadd.f32 0.0, %v8399
        %v8401 = vpop.f32.mrb[0].mxu0
        %v8402 = vadd.f32 0.0, %v8401
        %v8403 = vpop.f32.mrb[0].mxu0
        %v8404 = vadd.f32 0.0, %v8403
        %8405 = vmatprep.mubr.bf16.mxu0 %v8224
        %8406 = vmatmul.mubr.bf16.gmra.mrb[0].mxu0 %v8044
        %v8407 = vpop.f32.mrb[0].mxu0
        %v8408 = vadd.f32 0.0, %v8407
        %v8409 = vpop.f32.mrb[0].mxu0
        %v8410 = vadd.f32 0.0, %v8409
        %v8411 = vpop.f32.mrb[0].mxu0
        %v8412 = vadd.f32 0.0, %v8411
        %v8413 = vpop.f32.mrb[0].mxu0
        %v8414 = vadd.f32 0.0, %v8413
        %8415 = vmatprep.mubr.bf16.mxu0 %v8227
        %8416 = vmatmul.mubr.bf16.gmra.mrb[0].mxu0 %v8046
        %v8417 = vpop.f32.mrb[0].mxu0
        %v8418 = vadd.f32 0.0, %v8417
        %v8419 = vpop.f32.mrb[0].mxu0
        %v8420 = vadd.f32 0.0, %v8419
        %v8421 = vpop.f32.mrb[0].mxu0
        %v8422 = vadd.f32 0.0, %v8421
        %v8423 = vpop.f32.mrb[0].mxu0
        %v8424 = vadd.f32 0.0, %v8423
        %8425 = vmatprep.mubr.bf16.mxu0 %v8230
        %8426 = vmatmul.mubr.bf16.gmra.mrb[0].mxu0 %v8048
        %v8427 = vpop.f32.mrb[0].mxu0
        %v8428 = vadd.f32 0.0, %v8427
        %v8429 = vpop.f32.mrb[0].mxu0
        %v8430 = vadd.f32 0.0, %v8429
        %v8431 = vpop.f32.mrb[0].mxu0
        %v8432 = vadd.f32 0.0, %v8431
        %v8433 = vpop.f32.mrb[0].mxu0
        %v8434 = vadd.f32 0.0, %v8433
        %8435 = vmatprep.mubr.bf16.mxu0 %v8233
        %8436 = vmatmul.mubr.bf16.gmra.mrb[0].mxu0 %v8050
        %v8437 = vpop.f32.mrb[0].mxu0
        %v8438 = vadd.f32 0.0, %v8437
        %v8439 = vpop.f32.mrb[0].mxu0
        %v8440 = vadd.f32 0.0, %v8439
        %v8441 = vpop.f32.mrb[0].mxu0
        %v8442 = vadd.f32 0.0, %v8441
        %v8443 = vpop.f32.mrb[0].mxu0
        %v8444 = vadd.f32 0.0, %v8443
        %8445 = vmatprep.mubr.bf16.mxu0 %v8236
        %8446 = vmatmul.mubr.bf16.gmra.mrb[0].mxu0 %v8052
        %v8447 = vpop.f32.mrb[0].mxu0
        %v8448 = vadd.f32 0.0, %v8447
        %v8449 = vpop.f32.mrb[0].mxu0
        %v8450 = vadd.f32 0.0, %v8449
        %v8451 = vpop.f32.mrb[0].mxu0
        %v8452 = vadd.f32 0.0, %v8451
        %v8453 = vpop.f32.mrb[0].mxu0
        %v8454 = vadd.f32 0.0, %v8453
        %8455 = vmatprep.mubr.bf16.mxu0 %v8239
        %8456 = vmatmul.mubr.bf16.gmra.mrb[0].mxu0 %v8054
        %v8457 = vpop.f32.mrb[0].mxu0
        %v8458 = vadd.f32 0.0, %v8457
        %v8459 = vpop.f32.mrb[0].mxu0
        %v8460 = vadd.f32 0.0, %v8459
        %v8461 = vpop.f32.mrb[0].mxu0
        %v8462 = vadd.f32 0.0, %v8461
        %v8463 = vpop.f32.mrb[0].mxu0
        %v8464 = vadd.f32 0.0, %v8463
        %8465 = vmatprep.mubr.bf16.mxu0 %v8242
        %8466 = vmatmul.mubr.bf16.gmra.mrb[0].mxu0 %v8056
        %v8467 = vpop.f32.mrb[0].mxu0
        %v8468 = vadd.f32 0.0, %v8467
        %v8469 = vpop.f32.mrb[0].mxu0
        %v8470 = vadd.f32 0.0, %v8469
        %v8471 = vpop.f32.mrb[0].mxu0
        %v8472 = vadd.f32 0.0, %v8471
        %v8473 = vpop.f32.mrb[0].mxu0
        %v8474 = vadd.f32 0.0, %v8473
        %8475 = vmatprep.mubr.bf16.mxu0 %v8245
        %8476 = vmatmul.mubr.bf16.gmra.mrb[0].mxu0 %v8058
        %v8477 = vpop.f32.mrb[0].mxu0
        %v8478 = vadd.f32 0.0, %v8477
        %v8479 = vpop.f32.mrb[0].mxu0
        %v8480 = vadd.f32 0.0, %v8479
        %v8481 = vpop.f32.mrb[0].mxu0
        %v8482 = vpop.f32.mrb[0].mxu0
        %8483 = vdwg.mxu0
        %v8484 = vadd.f32 %v7940, %v8288
        %v8485 = vadd.f32 %v7941, %v8290
        %v8486 = vadd.f32 %v7942, %v8292
        %v8487 = vadd.f32 %v7943, %v8294
        %v8488 = vadd.f32 %v7944, %v8298
        %v8489 = vadd.f32 %v7945, %v8300
        %v8490 = vadd.f32 %v7946, %v8302
        %v8491 = vadd.f32 %v7947, %v8304
        %v8492 = vadd.f32 %v7948, %v8308
        %v8493 = vadd.f32 %v7949, %v8310
        %v8494 = vadd.f32 %v7950, %v8312
        %v8495 = vadd.f32 %v7951, %v8314
        %v8496 = vadd.f32 %v7952, %v8318
        %v8497 = vadd.f32 %v7953, %v8320
        %v8498 = vadd.f32 %v7954, %v8322
        %v8499 = vadd.f32 %v7955, %v8324
        %v8500 = vadd.f32 %v7956, %v8328
        %v8501 = vadd.f32 %v7957, %v8330
        %v8502 = vadd.f32 %v7958, %v8332
        %v8503 = vadd.f32 %v7959, %v8334
        %v8504 = vadd.f32 %v7960, %v8338
        %v8505 = vadd.f32 %v7961, %v8340
        %v8506 = vadd.f32 %v7962, %v8342
        %v8507 = vadd.f32 %v7963, %v8344
        %v8508 = vadd.f32 %v7964, %v8348
        %v8509 = vadd.f32 %v7965, %v8350
        %v8510 = vadd.f32 %v7966, %v8352
        %v8511 = vadd.f32 %v7967, %v8354
        %v8512 = vadd.f32 %v7968, %v8358
        %v8513 = vadd.f32 %v7969, %v8360
        %v8514 = vadd.f32 %v7970, %v8362
        %v8515 = vadd.f32 %v7971, %v8364
        %v8516 = vadd.f32 %v7972, %v8368
        %v8517 = vadd.f32 %v7973, %v8370
        %v8518 = vadd.f32 %v7974, %v8372
        %v8519 = vadd.f32 %v7975, %v8374
        %v8520 = vadd.f32 %v7976, %v8378
        %v8521 = vadd.f32 %v7977, %v8380
        %v8522 = vadd.f32 %v7978, %v8382
        %v8523 = vadd.f32 %v7979, %v8384
        %v8524 = vadd.f32 %v7980, %v8388
        %v8525 = vadd.f32 %v7981, %v8390
        %v8526 = vadd.f32 %v7982, %v8392
        %v8527 = vadd.f32 %v7983, %v8394
        %v8528 = vadd.f32 %v7984, %v8398
        %v8529 = vadd.f32 %v7985, %v8400
        %v8530 = vadd.f32 %v7986, %v8402
        %v8531 = vadd.f32 %v7987, %v8404
        %v8532 = vadd.f32 %v7988, %v8408
        %v8533 = vadd.f32 %v7989, %v8410
        %v8534 = vadd.f32 %v7990, %v8412
        %v8535 = vadd.f32 %v7991, %v8414
        %v8536 = vadd.f32 %v7992, %v8418
        %v8537 = vadd.f32 %v7993, %v8420
        %v8538 = vadd.f32 %v7994, %v8422
        %v8539 = vadd.f32 %v7995, %v8424
        %v8540 = vadd.f32 %v7996, %v8428
        %v8541 = vadd.f32 %v7997, %v8430
        %v8542 = vadd.f32 %v7998, %v8432
        %v8543 = vadd.f32 %v7999, %v8434
        %v8544 = vadd.f32 %v8000, %v8438
        %v8545 = vadd.f32 %v8001, %v8440
        %v8546 = vadd.f32 %v8002, %v8442
        %v8547 = vadd.f32 %v8003, %v8444
        %v8548 = vadd.f32 %v8004, %v8448
        %v8549 = vadd.f32 %v8005, %v8450
        %v8550 = vadd.f32 %v8006, %v8452
        %v8551 = vadd.f32 %v8007, %v8454
        %v8552 = vadd.f32 %v8008, %v8458
        %v8553 = vadd.f32 %v8009, %v8460
        %v8554 = vadd.f32 %v8010, %v8462
        %v8555 = vadd.f32 %v8011, %v8464
        %v8556 = vadd.f32 %v8012, %v8468
        %v8557 = vadd.f32 %v8013, %v8470
        %v8558 = vadd.f32 %v8014, %v8472
        %v8559 = vadd.f32 %v8015, %v8474
        %v8560 = vadd.f32 %v8016, %v8478
        %v8561 = vadd.f32 %v8017, %v8480
        %v8562 = vld [vmem:[#allocation2 + $0x10] sm:$0xfe]
        %v8563 = vld [vmem:[#allocation2 + $0x18] sm:$0xfe]
        %v8564 = vld [vmem:[#allocation2 + $0x20] sm:$0xff]
        %v8565 = vld [vmem:[#allocation2 + $0x28] sm:$0xff]
        %v8566 = vld [vmem:[#allocation2 + $0x30] sm:$0xff]
        %v8567 = vld [vmem:[#allocation2 + $0x38] sm:$0xff]
        %v8568 = vld [vmem:[#allocation2 + $0x40] sm:$0xff]
        %v8569 = vld [vmem:[#allocation2 + $0x48] sm:$0xff]
        %v8570 = vld [vmem:[#allocation2 + $0x50] sm:$0xff]
        %v8571 = vld [vmem:[#allocation2 + $0x58] sm:$0xff]
        %v8572 = vld [vmem:[#allocation2 + $0x60] sm:$0xff]
        %v8573 = vld [vmem:[#allocation2 + $0x68] sm:$0xff]
        %v8574 = vld [vmem:[#allocation2 + $0x70] sm:$0xff]
        %v8575 = vld [vmem:[#allocation2 + $0x78] sm:$0xff]
        %v8576 = vld [vmem:[#allocation2 + $0x80] sm:$0xff]
        %v8577 = vld [vmem:[#allocation2 + $0x88] sm:$0xff]
        %v8578 = vld [vmem:[#allocation2 + $0x90] sm:$0xff]
        %v8579 = vld [vmem:[#allocation2 + $0x98] sm:$0xff]
        %v8580 = vld [vmem:[#allocation2 + $0xa0] sm:$0xff]
        %v8581 = vld [vmem:[#allocation2 + $0xa8] sm:$0xff]
        %v8582 = vld [vmem:[#allocation2 + $0xb0] sm:$0xff]
        %v8583 = vld [vmem:[#allocation2 + $0xb8] sm:$0xff]
        %v8584 = vld [vmem:[#allocation2 + $0xc0] sm:$0xff]
        %v8585 = vld [vmem:[#allocation2 + $0xc8] sm:$0xff]
        %v8586 = vld [vmem:[#allocation2 + $0xd0] sm:$0xff]
        %v8587 = vld [vmem:[#allocation2 + $0xd8] sm:$0xff]
        %v8588 = vld [vmem:[#allocation2 + $0xe0] sm:$0xff]
        %v8589 = vld [vmem:[#allocation2 + $0xe8] sm:$0xff]
        %v8590 = vld [vmem:[#allocation2 + $0xf0] sm:$0xff]
        %v8591 = vld [vmem:[#allocation2 + $0xf8] sm:$0xff]
        %v8592 = vld [vmem:[#allocation2 + $0x100] sm:$0xff]
        %v8593 = vld [vmem:[#allocation2 + $0x108] sm:$0xff]
        %v8594 = vld [vmem:[#allocation2 + $0x110] sm:$0xff]
        %v8595 = vld [vmem:[#allocation2 + $0x118] sm:$0xff]
        %v8596 = vld [vmem:[#allocation2 + $0x120] sm:$0xff]
        %v8597 = vld [vmem:[#allocation2 + $0x128] sm:$0xff]
        %v8598 = vld [vmem:[#allocation2 + $0x130] sm:$0xff]
        %v8599 = vld [vmem:[#allocation2 + $0x138] sm:$0xff]
        %v8600 = vld [vmem:[#allocation2 + $0x140] sm:$0xff]
        %v8601 = vld [vmem:[#allocation2 + $0x148] sm:$0xff]
        %v8602 = vld [vmem:[#allocation2 + $0x150] sm:$0xff]
        %v8603 = vld [vmem:[#allocation2 + $0x158] sm:$0xff]
        %v8604 = vld [vmem:[#allocation2 + $0x160] sm:$0xff]
        %v8605 = vld [vmem:[#allocation2 + $0x168] sm:$0xff]
        %v8606 = vld [vmem:[#allocation2 + $0x170] sm:$0xff]
        %v8607 = vld [vmem:[#allocation2 + $0x178] sm:$0xff]
        %v8608 = vld [vmem:[#allocation2 + $0x180] sm:$0xff]
        %v8609 = vld [vmem:[#allocation2 + $0x188] sm:$0xff]
        %v8610 = vld [vmem:[#allocation2 + $0x190] sm:$0xff]
        %v8611 = vld [vmem:[#allocation2 + $0x198] sm:$0xff]
        %v8612 = vld [vmem:[#allocation2 + $0x1a0] sm:$0xff]
        %v8613 = vld [vmem:[#allocation2 + $0x1a8] sm:$0xff]
        %v8614 = vld [vmem:[#allocation2 + $0x1b0] sm:$0xff]
        %v8615 = vld [vmem:[#allocation2 + $0x1b8] sm:$0xff]
        %v8616 = vld [vmem:[#allocation2 + $0x1c0] sm:$0xff]
        %v8617 = vld [vmem:[#allocation2 + $0x1c8] sm:$0xff]
        %v8618 = vld [vmem:[#allocation2 + $0x1d0] sm:$0xff]
        %v8619 = vld [vmem:[#allocation2 + $0x1d8] sm:$0xff]
        %v8620 = vld [vmem:[#allocation2 + $0x1e0] sm:$0xff]
        %v8621 = vld [vmem:[#allocation2 + $0x1e8] sm:$0xff]
        %v8622 = vld [vmem:[#allocation2 + $0x1f0] sm:$0xff]
        %v8623 = vld [vmem:[#allocation2 + $0x1f8] sm:$0xff]
        %v8624 = vld [vmem:[#allocation2 + $0x200] sm:$0xff]
        %v8625 = vld [vmem:[#allocation2 + $0x208] sm:$0xff]
        %v8626 = vld [vmem:[#allocation2 + $0x210] sm:$0xff]
        %v8627 = vld [vmem:[#allocation2 + $0x218] sm:$0xff]
        %v8628 = vld [vmem:[#allocation2 + $0x220] sm:$0xff]
        %v8629 = vld [vmem:[#allocation2 + $0x228] sm:$0xff]
        %v8630 = vld [vmem:[#allocation2 + $0x230] sm:$0xff]
        %v8631 = vld [vmem:[#allocation2 + $0x238] sm:$0xff]
        %v8632 = vld [vmem:[#allocation2 + $0x240] sm:$0xff]
        %v8633 = vld [vmem:[#allocation2 + $0x248] sm:$0xff]
        %v8634 = vld [vmem:[#allocation2 + $0x250] sm:$0xff]
        %v8635 = vld [vmem:[#allocation2 + $0x258] sm:$0xff]
        %v8636 = vld [vmem:[#allocation2 + $0x260] sm:$0xff]
        %v8637 = vld [vmem:[#allocation2 + $0x268] sm:$0xff]
        %v8638 = vld [vmem:[#allocation2 + $0x270] sm:$0xff]
        %v8639 = vld [vmem:[#allocation2 + $0x278] sm:$0xff]
        %v8640 = vld [vmem:[#allocation2 + $0x280] sm:$0x1]
        %v8641 = vld [vmem:[#allocation2 + $0x288] sm:$0x1]
        %v8642 = vpack.c.bf16 %v8564, %v8562
        %v8643 = vpack.c.bf16 %v8565, %v8563
        %v8644 = vpack.c.bf16 %v8568, %v8566
        %v8645 = vpack.c.bf16 %v8569, %v8567
        %v8646 = vpack.c.bf16 %v8572, %v8570
        %v8647 = vpack.c.bf16 %v8573, %v8571
        %v8648 = vpack.c.bf16 %v8576, %v8574
        %v8649 = vpack.c.bf16 %v8577, %v8575
        %v8650 = vpack.c.bf16 %v8580, %v8578
        %v8651 = vpack.c.bf16 %v8581, %v8579
        %v8652 = vpack.c.bf16 %v8584, %v8582
        %v8653 = vpack.c.bf16 %v8585, %v8583
        %v8654 = vpack.c.bf16 %v8588, %v8586
        %v8655 = vpack.c.bf16 %v8589, %v8587
        %v8656 = vpack.c.bf16 %v8592, %v8590
        %v8657 = vpack.c.bf16 %v8593, %v8591
        %v8658 = vpack.c.bf16 %v8596, %v8594
        %v8659 = vpack.c.bf16 %v8597, %v8595
        %v8660 = vpack.c.bf16 %v8600, %v8598
        %v8661 = vpack.c.bf16 %v8601, %v8599
        %v8662 = vpack.c.bf16 %v8604, %v8602
        %v8663 = vpack.c.bf16 %v8605, %v8603
        %v8664 = vpack.c.bf16 %v8608, %v8606
        %v8665 = vpack.c.bf16 %v8609, %v8607
        %v8666 = vpack.c.bf16 %v8612, %v8610
        %v8667 = vpack.c.bf16 %v8613, %v8611
        %v8668 = vpack.c.bf16 %v8616, %v8614
        %v8669 = vpack.c.bf16 %v8617, %v8615
        %v8670 = vpack.c.bf16 %v8620, %v8618
        %v8671 = vpack.c.bf16 %v8621, %v8619
        %v8672 = vpack.c.bf16 %v8624, %v8622
        %v8673 = vpack.c.bf16 %v8625, %v8623
        %v8674 = vpack.c.bf16 %v8628, %v8626
        %v8675 = vpack.c.bf16 %v8629, %v8627
        %v8676 = vpack.c.bf16 %v8632, %v8630
        %v8677 = vpack.c.bf16 %v8633, %v8631
        %v8678 = vpack.c.bf16 %v8636, %v8634
        %v8679 = vpack.c.bf16 %v8637, %v8635
        %v8680 = vpack.c.bf16 %v8640, %v8638
        %v8681 = vpack.c.bf16 %v8641, %v8639
        %s8682 = scalar_lea.vmem %s3, 1512
        %v8683 = vld [vmem:[%s8682] sm:$0xff]
        %v8684 = vld [vmem:[%s8682 + $0x8] sm:$0xff]
        %v8685 = vld [vmem:[%s8682 + $0x10] sm:$0xff]
        %v8686 = vld [vmem:[%s8682 + $0x18] sm:$0xff]
        %v8687 = vld [vmem:[%s8682 + $0x20] sm:$0xff]
        %v8688 = vld [vmem:[%s8682 + $0x28] sm:$0xff]
        %v8689 = vld [vmem:[%s8682 + $0x30] sm:$0xff]
        %v8690 = vld [vmem:[%s8682 + $0x38] sm:$0xff]
        %v8691 = vld [vmem:[%s8682 + $0x40] sm:$0xff]
        %v8692 = vld [vmem:[%s8682 + $0x48] sm:$0xff]
        %v8693 = vld [vmem:[%s8682 + $0x50] sm:$0xff]
        %v8694 = vld [vmem:[%s8682 + $0x58] sm:$0xff]
        %v8695 = vld [vmem:[%s8682 + $0x60] sm:$0xff]
        %v8696 = vld [vmem:[%s8682 + $0x68] sm:$0xff]
        %v8697 = vld [vmem:[%s8682 + $0x70] sm:$0xff]
        %v8698 = vld [vmem:[%s8682 + $0x78] sm:$0xff]
        %v8699 = vld [vmem:[%s8682 + $0x80] sm:$0xff]
        %v8700 = vld [vmem:[%s8682 + $0x88] sm:$0xff]
        %v8701 = vld [vmem:[%s8682 + $0x90] sm:$0xff]
        %v8702 = vld [vmem:[%s8682 + $0x98] sm:$0xff]
        %v8703 = vld [vmem:[%s8682 + $0xa0] sm:$0xff]
        %v8705 = vshrl.u32 %v8642, 16
        %v8707 = vshll.u32 %v8642, 16
        %v8709 = vrot.slane %v8707, 1
        %v8710 = vor.u32 %v8705, %v8709
        %v8712 = vshll.u32 %v8644, 16
        %v8714 = vrot.slane %v8712, 1
        %v8715 = vsel %vm2890, %v8710, %v8714
        %v8717 = vshrl.u32 %v8643, 16
        %v8719 = vshll.u32 %v8643, 16
        %v8721 = vrot.slane %v8719, 1
        %v8722 = vor.u32 %v8717, %v8721
        %v8724 = vshll.u32 %v8645, 16
        %v8726 = vrot.slane %v8724, 1
        %v8727 = vsel %vm2890, %v8722, %v8726
        %v8728 = vshrl.u32 %v8644, 16
        %v8730 = vor.u32 %v8728, %v8714
        %v8732 = vshll.u32 %v8646, 16
        %v8734 = vrot.slane %v8732, 1
        %v8735 = vsel %vm2890, %v8730, %v8734
        %v8736 = vshrl.u32 %v8645, 16
        %v8738 = vor.u32 %v8736, %v8726
        %v8740 = vshll.u32 %v8647, 16
        %v8742 = vrot.slane %v8740, 1
        %v8743 = vsel %vm2890, %v8738, %v8742
        %v8744 = vshrl.u32 %v8646, 16
        %v8746 = vor.u32 %v8744, %v8734
        %v8748 = vshll.u32 %v8648, 16
        %v8750 = vrot.slane %v8748, 1
        %v8751 = vsel %vm2890, %v8746, %v8750
        %v8752 = vshrl.u32 %v8647, 16
        %v8754 = vor.u32 %v8752, %v8742
        %v8756 = vshll.u32 %v8649, 16
        %v8758 = vrot.slane %v8756, 1
        %v8759 = vsel %vm2890, %v8754, %v8758
        %v8760 = vshrl.u32 %v8648, 16
        %v8762 = vor.u32 %v8760, %v8750
        %v8764 = vshll.u32 %v8650, 16
        %v8766 = vrot.slane %v8764, 1
        %v8767 = vsel %vm2890, %v8762, %v8766
        %v8768 = vshrl.u32 %v8649, 16
        %v8770 = vor.u32 %v8768, %v8758
        %v8772 = vshll.u32 %v8651, 16
        %v8774 = vrot.slane %v8772, 1
        %v8775 = vsel %vm2890, %v8770, %v8774
        %v8776 = vshrl.u32 %v8650, 16
        %v8778 = vor.u32 %v8776, %v8766
        %v8780 = vshll.u32 %v8652, 16
        %v8782 = vrot.slane %v8780, 1
        %v8783 = vsel %vm2890, %v8778, %v8782
        %v8784 = vshrl.u32 %v8651, 16
        %v8786 = vor.u32 %v8784, %v8774
        %v8788 = vshll.u32 %v8653, 16
        %v8790 = vrot.slane %v8788, 1
        %v8791 = vsel %vm2890, %v8786, %v8790
        %v8792 = vshrl.u32 %v8652, 16
        %v8794 = vor.u32 %v8792, %v8782
        %v8796 = vshll.u32 %v8654, 16
        %v8798 = vrot.slane %v8796, 1
        %v8799 = vsel %vm2890, %v8794, %v8798
        %v8800 = vshrl.u32 %v8653, 16
        %v8802 = vor.u32 %v8800, %v8790
        %v8804 = vshll.u32 %v8655, 16
        %v8806 = vrot.slane %v8804, 1
        %v8807 = vsel %vm2890, %v8802, %v8806
        %v8808 = vshrl.u32 %v8654, 16
        %v8810 = vor.u32 %v8808, %v8798
        %v8812 = vshll.u32 %v8656, 16
        %v8814 = vrot.slane %v8812, 1
        %v8815 = vsel %vm2890, %v8810, %v8814
        %v8816 = vshrl.u32 %v8655, 16
        %v8818 = vor.u32 %v8816, %v8806
        %v8820 = vshll.u32 %v8657, 16
        %v8822 = vrot.slane %v8820, 1
        %v8823 = vsel %vm2890, %v8818, %v8822
        %v8824 = vshrl.u32 %v8656, 16
        %v8826 = vor.u32 %v8824, %v8814
        %v8828 = vshll.u32 %v8658, 16
        %v8830 = vrot.slane %v8828, 1
        %v8831 = vsel %vm2890, %v8826, %v8830
        %v8832 = vshrl.u32 %v8657, 16
        %v8834 = vor.u32 %v8832, %v8822
        %v8836 = vshll.u32 %v8659, 16
        %v8838 = vrot.slane %v8836, 1
        %v8839 = vsel %vm2890, %v8834, %v8838
        %v8840 = vshrl.u32 %v8658, 16
        %v8842 = vor.u32 %v8840, %v8830
        %v8844 = vshll.u32 %v8660, 16
        %v8846 = vrot.slane %v8844, 1
        %v8847 = vsel %vm2890, %v8842, %v8846
        %v8848 = vshrl.u32 %v8659, 16
        %v8850 = vor.u32 %v8848, %v8838
        %v8852 = vshll.u32 %v8661, 16
        %v8854 = vrot.slane %v8852, 1
        %v8855 = vsel %vm2890, %v8850, %v8854
        %v8856 = vshrl.u32 %v8660, 16
        %v8858 = vor.u32 %v8856, %v8846
        %v8860 = vshll.u32 %v8662, 16
        %v8862 = vrot.slane %v8860, 1
        %v8863 = vsel %vm2890, %v8858, %v8862
        %v8864 = vshrl.u32 %v8661, 16
        %v8866 = vor.u32 %v8864, %v8854
        %v8868 = vshll.u32 %v8663, 16
        %v8870 = vrot.slane %v8868, 1
        %v8871 = vsel %vm2890, %v8866, %v8870
        %v8872 = vshrl.u32 %v8662, 16
        %v8874 = vor.u32 %v8872, %v8862
        %v8876 = vshll.u32 %v8664, 16
        %v8878 = vrot.slane %v8876, 1
        %v8879 = vsel %vm2890, %v8874, %v8878
        %v8880 = vshrl.u32 %v8663, 16
        %v8882 = vor.u32 %v8880, %v8870
        %v8884 = vshll.u32 %v8665, 16
        %v8886 = vrot.slane %v8884, 1
        %v8887 = vsel %vm2890, %v8882, %v8886
        %v8888 = vshrl.u32 %v8664, 16
        %v8890 = vor.u32 %v8888, %v8878
        %v8892 = vshll.u32 %v8666, 16
        %v8894 = vrot.slane %v8892, 1
        %v8895 = vsel %vm2890, %v8890, %v8894
        %v8896 = vshrl.u32 %v8665, 16
        %v8898 = vor.u32 %v8896, %v8886
        %v8900 = vshll.u32 %v8667, 16
        %v8902 = vrot.slane %v8900, 1
        %v8903 = vsel %vm2890, %v8898, %v8902
        %v8904 = vshrl.u32 %v8666, 16
        %v8906 = vor.u32 %v8904, %v8894
        %v8908 = vshll.u32 %v8668, 16
        %v8910 = vrot.slane %v8908, 1
        %v8911 = vsel %vm2890, %v8906, %v8910
        %v8912 = vshrl.u32 %v8667, 16
        %v8914 = vor.u32 %v8912, %v8902
        %v8916 = vshll.u32 %v8669, 16
        %v8918 = vrot.slane %v8916, 1
        %v8919 = vsel %vm2890, %v8914, %v8918
        %v8920 = vshrl.u32 %v8668, 16
        %v8922 = vor.u32 %v8920, %v8910
        %v8924 = vshll.u32 %v8670, 16
        %v8926 = vrot.slane %v8924, 1
        %v8927 = vsel %vm2890, %v8922, %v8926
        %v8928 = vshrl.u32 %v8669, 16
        %v8930 = vor.u32 %v8928, %v8918
        %v8932 = vshll.u32 %v8671, 16
        %v8934 = vrot.slane %v8932, 1
        %v8935 = vsel %vm2890, %v8930, %v8934
        %v8936 = vshrl.u32 %v8670, 16
        %v8938 = vor.u32 %v8936, %v8926
        %v8940 = vshll.u32 %v8672, 16
        %v8942 = vrot.slane %v8940, 1
        %v8943 = vsel %vm2890, %v8938, %v8942
        %v8944 = vshrl.u32 %v8671, 16
        %v8946 = vor.u32 %v8944, %v8934
        %v8948 = vshll.u32 %v8673, 16
        %v8950 = vrot.slane %v8948, 1
        %v8951 = vsel %vm2890, %v8946, %v8950
        %v8952 = vshrl.u32 %v8672, 16
        %v8954 = vor.u32 %v8952, %v8942
        %v8956 = vshll.u32 %v8674, 16
        %v8958 = vrot.slane %v8956, 1
        %v8959 = vsel %vm2890, %v8954, %v8958
        %v8960 = vshrl.u32 %v8673, 16
        %v8962 = vor.u32 %v8960, %v8950
        %v8964 = vshll.u32 %v8675, 16
        %v8966 = vrot.slane %v8964, 1
        %v8967 = vsel %vm2890, %v8962, %v8966
        %v8968 = vshrl.u32 %v8674, 16
        %v8970 = vor.u32 %v8968, %v8958
        %v8972 = vshll.u32 %v8676, 16
        %v8974 = vrot.slane %v8972, 1
        %v8975 = vsel %vm2890, %v8970, %v8974
        %v8976 = vshrl.u32 %v8675, 16
        %v8978 = vor.u32 %v8976, %v8966
        %v8980 = vshll.u32 %v8677, 16
        %v8982 = vrot.slane %v8980, 1
        %v8983 = vsel %vm2890, %v8978, %v8982
        %v8984 = vshrl.u32 %v8676, 16
        %v8986 = vor.u32 %v8984, %v8974
        %v8988 = vshll.u32 %v8678, 16
        %v8990 = vrot.slane %v8988, 1
        %v8991 = vsel %vm2890, %v8986, %v8990
        %v8992 = vshrl.u32 %v8677, 16
        %v8994 = vor.u32 %v8992, %v8982
        %v8996 = vshll.u32 %v8679, 16
        %v8998 = vrot.slane %v8996, 1
        %v8999 = vsel %vm2890, %v8994, %v8998
        %v9000 = vshrl.u32 %v8678, 16
        %v9002 = vor.u32 %v9000, %v8990
        %v9004 = vshll.u32 %v8680, 16
        %v9006 = vrot.slane %v9004, 1
        %v9007 = vsel %vm2890, %v9002, %v9006
        %v9008 = vshrl.u32 %v8679, 16
        %v9010 = vor.u32 %v9008, %v8998
        %v9012 = vshll.u32 %v8681, 16
        %v9014 = vrot.slane %v9012, 1
        %v9015 = vsel %vm2890, %v9010, %v9014
        %v9016 = vshrl.u32 %v8680, 16
        %v9018 = vor.u32 %v9016, %v9006
        %v9019 = vshrl.u32 %v8681, 16
        %v9021 = vor.u32 %v9019, %v9014
        %v9063 = vunpack.c.l.b16 %v8683
        %v9064 = vunpack.c.h.b16 %v8683
        %v9065 = vunpack.c.l.b16 %v8684
        %v9066 = vunpack.c.h.b16 %v8684
        %v9067 = vunpack.c.l.b16 %v8685
        %v9068 = vunpack.c.h.b16 %v8685
        %v9069 = vunpack.c.l.b16 %v8686
        %v9070 = vunpack.c.h.b16 %v8686
        %v9071 = vunpack.c.l.b16 %v8687
        %v9072 = vunpack.c.h.b16 %v8687
        %v9073 = vunpack.c.l.b16 %v8688
        %v9074 = vunpack.c.h.b16 %v8688
        %v9075 = vunpack.c.l.b16 %v8689
        %v9076 = vunpack.c.h.b16 %v8689
        %v9077 = vunpack.c.l.b16 %v8690
        %v9078 = vunpack.c.h.b16 %v8690
        %v9079 = vunpack.c.l.b16 %v8691
        %v9080 = vunpack.c.h.b16 %v8691
        %v9081 = vunpack.c.l.b16 %v8692
        %v9082 = vunpack.c.h.b16 %v8692
        %v9083 = vunpack.c.l.b16 %v8693
        %v9084 = vunpack.c.h.b16 %v8693
        %v9085 = vunpack.c.l.b16 %v8694
        %v9086 = vunpack.c.h.b16 %v8694
        %v9087 = vunpack.c.l.b16 %v8695
        %v9088 = vunpack.c.h.b16 %v8695
        %v9089 = vunpack.c.l.b16 %v8696
        %v9090 = vunpack.c.h.b16 %v8696
        %v9091 = vunpack.c.l.b16 %v8697
        %v9092 = vunpack.c.h.b16 %v8697
        %v9093 = vunpack.c.l.b16 %v8698
        %v9094 = vunpack.c.h.b16 %v8698
        %v9095 = vunpack.c.l.b16 %v8699
        %v9096 = vunpack.c.h.b16 %v8699
        %v9097 = vunpack.c.l.b16 %v8700
        %v9098 = vunpack.c.h.b16 %v8700
        %v9099 = vunpack.c.l.b16 %v8701
        %v9100 = vunpack.c.h.b16 %v8701
        %v9101 = vunpack.c.l.b16 %v8702
        %v9102 = vunpack.c.h.b16 %v8702
        %v9103 = vunpack.c.l.b16 %v8703
        %v9104 = vunpack.c.h.b16 %v8703
        %v9105 = vpack.c.b16 %v9065, %v9063
        %v9106 = vpack.c.b16 %v9066, %v9064
        %v9107 = vpack.c.b16 %v9069, %v9067
        %v9108 = vpack.c.b16 %v9070, %v9068
        %v9109 = vpack.c.b16 %v9073, %v9071
        %v9110 = vpack.c.b16 %v9074, %v9072
        %v9111 = vpack.c.b16 %v9077, %v9075
        %v9112 = vpack.c.b16 %v9078, %v9076
        %v9113 = vpack.c.b16 %v9081, %v9079
        %v9114 = vpack.c.b16 %v9082, %v9080
        %v9115 = vpack.c.b16 %v9085, %v9083
        %v9116 = vpack.c.b16 %v9086, %v9084
        %v9117 = vpack.c.b16 %v9089, %v9087
        %v9118 = vpack.c.b16 %v9090, %v9088
        %v9119 = vpack.c.b16 %v9093, %v9091
        %v9120 = vpack.c.b16 %v9094, %v9092
        %v9121 = vpack.c.b16 %v9097, %v9095
        %v9122 = vpack.c.b16 %v9098, %v9096
        %v9123 = vpack.c.b16 %v9101, %v9099
        %v9124 = vpack.c.b16 %v9102, %v9100
        %v9125 = vpack.c.b16 %v9103, %v9103
        %v9126 = vpack.c.b16 %v9104, %v9104
        %v9148 = vsel %vm2639, %v8727, 0
        %v9151 = vsel %vm2639, %v8743, 0
        %v9154 = vsel %vm2639, %v8759, 0
        %v9157 = vsel %vm2639, %v8775, 0
        %v9160 = vsel %vm2639, %v8791, 0
        %v9163 = vsel %vm2639, %v8807, 0
        %v9166 = vsel %vm2639, %v8823, 0
        %v9169 = vsel %vm2639, %v8839, 0
        %v9172 = vsel %vm2639, %v8855, 0
        %v9175 = vsel %vm2639, %v8871, 0
        %v9178 = vsel %vm2639, %v8887, 0
        %v9181 = vsel %vm2639, %v8903, 0
        %v9184 = vsel %vm2639, %v8919, 0
        %v9187 = vsel %vm2639, %v8935, 0
        %v9190 = vsel %vm2639, %v8951, 0
        %v9193 = vsel %vm2639, %v8967, 0
        %v9196 = vsel %vm2639, %v8983, 0
        %v9199 = vsel %vm2639, %v8999, 0
        %v9202 = vsel %vm2639, %v9015, 0
        %v9205 = vsel %vm2639, %v9021, 0
        %v9208 = vsel %vm3394, %v9125, 0
        %v9211 = vsel %vm3394, %v9126, 0
        %9213 = vmatprep.subr.bf16.mxu0 %v9106
        %9214 = vmatpush1.bf16.msra.mxu0 %v9105
        %9215 = vmatprep.subr.bf16.mxu0 %v9108
        %9216 = vmatpush1.bf16.msra.mxu0 %v9107
        %9217 = vmatprep.subr.bf16.mxu0 %v9110
        %9218 = vmatpush1.bf16.msra.mxu0 %v9109
        %9219 = vmatprep.subr.bf16.mxu0 %v9112
        %9220 = vmatpush1.bf16.msra.mxu0 %v9111
        %9221 = vmatprep.subr.bf16.mxu0 %v9114
        %9222 = vmatpush1.bf16.msra.mxu0 %v9113
        %9223 = vmatprep.subr.bf16.mxu0 %v9116
        %9224 = vmatpush1.bf16.msra.mxu0 %v9115
        %9225 = vmatprep.subr.bf16.mxu0 %v9118
        %9226 = vmatpush1.bf16.msra.mxu0 %v9117
        %9227 = vmatprep.subr.bf16.mxu0 %v9120
        %9228 = vmatpush1.bf16.msra.mxu0 %v9119
        %9229 = vmatprep.subr.bf16.mxu0 %v9122
        %9230 = vmatpush1.bf16.msra.mxu0 %v9121
        %9231 = vmatprep.subr.bf16.mxu0 %v9124
        %9232 = vmatpush1.bf16.msra.mxu0 %v9123
        %9233 = vmatprep.subr.bf16.mxu0 %v9211
        %9234 = vmatpush1.bf16.msra.mxu0 %v9208
        %9235 = vmatprep.subr.bf16.mxu0 0
        %9236 = vmatpush1.bf16.msra.mxu0 0
        %9237 = vmatprep.subr.bf16.mxu0 0
        %9238 = vmatpush1.bf16.msra.mxu0 0
        %9239 = vmatprep.subr.bf16.mxu0 0
        %9240 = vmatpush1.bf16.msra.mxu0 0
        %9241 = vmatprep.subr.bf16.mxu0 0
        %9242 = vmatpush1.bf16.msra.mxu0 0
        %9243 = vmatprep.subr.bf16.mxu0 0
        %9244 = vmatpush1.bf16.msra.mxu0 0
        %9245 = vmatprep.mubr.bf16.mxu0 %v9148
        %9246 = vmatmul.mubr.bf16.gmra.mrb[0].mxu0 %v8715
        %v9247 = vpop.f32.mrb[0].mxu0
        %v9248 = vadd.f32 0.0, %v9247
        %v9249 = vpop.f32.mrb[0].mxu0
        %v9250 = vadd.f32 0.0, %v9249
        %v9251 = vpop.f32.mrb[0].mxu0
        %v9252 = vadd.f32 0.0, %v9251
        %v9253 = vpop.f32.mrb[0].mxu0
        %v9254 = vadd.f32 0.0, %v9253
        %9255 = vmatprep.mubr.bf16.mxu0 %v9151
        %9256 = vmatmul.mubr.bf16.gmra.mrb[0].mxu0 %v8735
        %v9257 = vpop.f32.mrb[0].mxu0
        %v9258 = vadd.f32 0.0, %v9257
        %v9259 = vpop.f32.mrb[0].mxu0
        %v9260 = vadd.f32 0.0, %v9259
        %v9261 = vpop.f32.mrb[0].mxu0
        %v9262 = vadd.f32 0.0, %v9261
        %v9263 = vpop.f32.mrb[0].mxu0
        %v9264 = vadd.f32 0.0, %v9263
        %9265 = vmatprep.mubr.bf16.mxu0 %v9154
        %9266 = vmatmul.mubr.bf16.gmra.mrb[0].mxu0 %v8751
        %v9267 = vpop.f32.mrb[0].mxu0
        %v9268 = vadd.f32 0.0, %v9267
        %v9269 = vpop.f32.mrb[0].mxu0
        %v9270 = vadd.f32 0.0, %v9269
        %v9271 = vpop.f32.mrb[0].mxu0
        %v9272 = vadd.f32 0.0, %v9271
        %v9273 = vpop.f32.mrb[0].mxu0
        %v9274 = vadd.f32 0.0, %v9273
        %9275 = vmatprep.mubr.bf16.mxu0 %v9157
        %9276 = vmatmul.mubr.bf16.gmra.mrb[0].mxu0 %v8767
        %v9277 = vpop.f32.mrb[0].mxu0
        %v9278 = vadd.f32 0.0, %v9277
        %v9279 = vpop.f32.mrb[0].mxu0
        %v9280 = vadd.f32 0.0, %v9279
        %v9281 = vpop.f32.mrb[0].mxu0
        %v9282 = vadd.f32 0.0, %v9281
        %v9283 = vpop.f32.mrb[0].mxu0
        %v9284 = vadd.f32 0.0, %v9283
        %9285 = vmatprep.mubr.bf16.mxu0 %v9160
        %9286 = vmatmul.mubr.bf16.gmra.mrb[0].mxu0 %v8783
        %v9287 = vpop.f32.mrb[0].mxu0
        %v9288 = vadd.f32 0.0, %v9287
        %v9289 = vpop.f32.mrb[0].mxu0
        %v9290 = vadd.f32 0.0, %v9289
        %v9291 = vpop.f32.mrb[0].mxu0
        %v9292 = vadd.f32 0.0, %v9291
        %v9293 = vpop.f32.mrb[0].mxu0
        %v9294 = vadd.f32 0.0, %v9293
        %9295 = vmatprep.mubr.bf16.mxu0 %v9163
        %9296 = vmatmul.mubr.bf16.gmra.mrb[0].mxu0 %v8799
        %v9297 = vpop.f32.mrb[0].mxu0
        %v9298 = vadd.f32 0.0, %v9297
        %v9299 = vpop.f32.mrb[0].mxu0
        %v9300 = vadd.f32 0.0, %v9299
        %v9301 = vpop.f32.mrb[0].mxu0
        %v9302 = vadd.f32 0.0, %v9301
        %v9303 = vpop.f32.mrb[0].mxu0
        %v9304 = vadd.f32 0.0, %v9303
        %9305 = vmatprep.mubr.bf16.mxu0 %v9166
        %9306 = vmatmul.mubr.bf16.gmra.mrb[0].mxu0 %v8815
        %v9307 = vpop.f32.mrb[0].mxu0
        %v9308 = vadd.f32 0.0, %v9307
        %v9309 = vpop.f32.mrb[0].mxu0
        %v9310 = vadd.f32 0.0, %v9309
        %v9311 = vpop.f32.mrb[0].mxu0
        %v9312 = vadd.f32 0.0, %v9311
        %v9313 = vpop.f32.mrb[0].mxu0
        %v9314 = vadd.f32 0.0, %v9313
        %9315 = vmatprep.mubr.bf16.mxu0 %v9169
        %9316 = vmatmul.mubr.bf16.gmra.mrb[0].mxu0 %v8831
        %v9317 = vpop.f32.mrb[0].mxu0
        %v9318 = vadd.f32 0.0, %v9317
        %v9319 = vpop.f32.mrb[0].mxu0
        %v9320 = vadd.f32 0.0, %v9319
        %v9321 = vpop.f32.mrb[0].mxu0
        %v9322 = vadd.f32 0.0, %v9321
        %v9323 = vpop.f32.mrb[0].mxu0
        %v9324 = vadd.f32 0.0, %v9323
        %9325 = vmatprep.mubr.bf16.mxu0 %v9172
        %9326 = vmatmul.mubr.bf16.gmra.mrb[0].mxu0 %v8847
        %v9327 = vpop.f32.mrb[0].mxu0
        %v9328 = vadd.f32 0.0, %v9327
        %v9329 = vpop.f32.mrb[0].mxu0
        %v9330 = vadd.f32 0.0, %v9329
        %v9331 = vpop.f32.mrb[0].mxu0
        %v9332 = vadd.f32 0.0, %v9331
        %v9333 = vpop.f32.mrb[0].mxu0
        %v9334 = vadd.f32 0.0, %v9333
        %9335 = vmatprep.mubr.bf16.mxu0 %v9175
        %9336 = vmatmul.mubr.bf16.gmra.mrb[0].mxu0 %v8863
        %v9337 = vpop.f32.mrb[0].mxu0
        %v9338 = vadd.f32 0.0, %v9337
        %v9339 = vpop.f32.mrb[0].mxu0
        %v9340 = vadd.f32 0.0, %v9339
        %v9341 = vpop.f32.mrb[0].mxu0
        %v9342 = vadd.f32 0.0, %v9341
        %v9343 = vpop.f32.mrb[0].mxu0
        %v9344 = vadd.f32 0.0, %v9343
        %9345 = vmatprep.mubr.bf16.mxu0 %v9178
        %9346 = vmatmul.mubr.bf16.gmra.mrb[0].mxu0 %v8879
        %v9347 = vpop.f32.mrb[0].mxu0
        %v9348 = vadd.f32 0.0, %v9347
        %v9349 = vpop.f32.mrb[0].mxu0
        %v9350 = vadd.f32 0.0, %v9349
        %v9351 = vpop.f32.mrb[0].mxu0
        %v9352 = vadd.f32 0.0, %v9351
        %v9353 = vpop.f32.mrb[0].mxu0
        %v9354 = vadd.f32 0.0, %v9353
        %9355 = vmatprep.mubr.bf16.mxu0 %v9181
        %9356 = vmatmul.mubr.bf16.gmra.mrb[0].mxu0 %v8895
        %v9357 = vpop.f32.mrb[0].mxu0
        %v9358 = vadd.f32 0.0, %v9357
        %v9359 = vpop.f32.mrb[0].mxu0
        %v9360 = vadd.f32 0.0, %v9359
        %v9361 = vpop.f32.mrb[0].mxu0
        %v9362 = vadd.f32 0.0, %v9361
        %v9363 = vpop.f32.mrb[0].mxu0
        %v9364 = vadd.f32 0.0, %v9363
        %9365 = vmatprep.mubr.bf16.mxu0 %v9184
        %9366 = vmatmul.mubr.bf16.gmra.mrb[0].mxu0 %v8911
        %v9367 = vpop.f32.mrb[0].mxu0
        %v9368 = vadd.f32 0.0, %v9367
        %v9369 = vpop.f32.mrb[0].mxu0
        %v9370 = vadd.f32 0.0, %v9369
        %v9371 = vpop.f32.mrb[0].mxu0
        %v9372 = vadd.f32 0.0, %v9371
        %v9373 = vpop.f32.mrb[0].mxu0
        %v9374 = vadd.f32 0.0, %v9373
        %9375 = vmatprep.mubr.bf16.mxu0 %v9187
        %9376 = vmatmul.mubr.bf16.gmra.mrb[0].mxu0 %v8927
        %v9377 = vpop.f32.mrb[0].mxu0
        %v9378 = vadd.f32 0.0, %v9377
        %v9379 = vpop.f32.mrb[0].mxu0
        %v9380 = vadd.f32 0.0, %v9379
        %v9381 = vpop.f32.mrb[0].mxu0
        %v9382 = vadd.f32 0.0, %v9381
        %v9383 = vpop.f32.mrb[0].mxu0
        %v9384 = vadd.f32 0.0, %v9383
        %9385 = vmatprep.mubr.bf16.mxu0 %v9190
        %9386 = vmatmul.mubr.bf16.gmra.mrb[0].mxu0 %v8943
        %v9387 = vpop.f32.mrb[0].mxu0
        %v9388 = vadd.f32 0.0, %v9387
        %v9389 = vpop.f32.mrb[0].mxu0
        %v9390 = vadd.f32 0.0, %v9389
        %v9391 = vpop.f32.mrb[0].mxu0
        %v9392 = vadd.f32 0.0, %v9391
        %v9393 = vpop.f32.mrb[0].mxu0
        %v9394 = vadd.f32 0.0, %v9393
        %9395 = vmatprep.mubr.bf16.mxu0 %v9193
        %9396 = vmatmul.mubr.bf16.gmra.mrb[0].mxu0 %v8959
        %v9397 = vpop.f32.mrb[0].mxu0
        %v9398 = vadd.f32 0.0, %v9397
        %v9399 = vpop.f32.mrb[0].mxu0
        %v9400 = vadd.f32 0.0, %v9399
        %v9401 = vpop.f32.mrb[0].mxu0
        %v9402 = vadd.f32 0.0, %v9401
        %v9403 = vpop.f32.mrb[0].mxu0
        %v9404 = vadd.f32 0.0, %v9403
        %9405 = vmatprep.mubr.bf16.mxu0 %v9196
        %9406 = vmatmul.mubr.bf16.gmra.mrb[0].mxu0 %v8975
        %v9407 = vpop.f32.mrb[0].mxu0
        %v9408 = vadd.f32 0.0, %v9407
        %v9409 = vpop.f32.mrb[0].mxu0
        %v9410 = vadd.f32 0.0, %v9409
        %v9411 = vpop.f32.mrb[0].mxu0
        %v9412 = vadd.f32 0.0, %v9411
        %v9413 = vpop.f32.mrb[0].mxu0
        %v9414 = vadd.f32 0.0, %v9413
        %9415 = vmatprep.mubr.bf16.mxu0 %v9199
        %9416 = vmatmul.mubr.bf16.gmra.mrb[0].mxu0 %v8991
        %v9417 = vpop.f32.mrb[0].mxu0
        %v9418 = vadd.f32 0.0, %v9417
        %v9419 = vpop.f32.mrb[0].mxu0
        %v9420 = vadd.f32 0.0, %v9419
        %v9421 = vpop.f32.mrb[0].mxu0
        %v9422 = vadd.f32 0.0, %v9421
        %v9423 = vpop.f32.mrb[0].mxu0
        %v9424 = vadd.f32 0.0, %v9423
        %9425 = vmatprep.mubr.bf16.mxu0 %v9202
        %9426 = vmatmul.mubr.bf16.gmra.mrb[0].mxu0 %v9007
        %v9427 = vpop.f32.mrb[0].mxu0
        %v9428 = vadd.f32 0.0, %v9427
        %v9429 = vpop.f32.mrb[0].mxu0
        %v9430 = vadd.f32 0.0, %v9429
        %v9431 = vpop.f32.mrb[0].mxu0
        %v9432 = vadd.f32 0.0, %v9431
        %v9433 = vpop.f32.mrb[0].mxu0
        %v9434 = vadd.f32 0.0, %v9433
        %9435 = vmatprep.mubr.bf16.mxu0 %v9205
        %9436 = vmatmul.mubr.bf16.gmra.mrb[0].mxu0 %v9018
        %v9437 = vpop.f32.mrb[0].mxu0
        %v9438 = vadd.f32 0.0, %v9437
        %v9439 = vpop.f32.mrb[0].mxu0
        %v9440 = vadd.f32 0.0, %v9439
        %v9441 = vpop.f32.mrb[0].mxu0
        %v9442 = vpop.f32.mrb[0].mxu0
        %9443 = vdwg.mxu0
        %v9444 = vadd.f32 %v8484, %v9248
        %v9445 = vadd.f32 %v8485, %v9250
        %v9446 = vadd.f32 %v8486, %v9252
        %v9447 = vadd.f32 %v8487, %v9254
        %v9448 = vadd.f32 %v8488, %v9258
        %v9449 = vadd.f32 %v8489, %v9260
        %v9450 = vadd.f32 %v8490, %v9262
        %v9451 = vadd.f32 %v8491, %v9264
        %v9452 = vadd.f32 %v8492, %v9268
        %v9453 = vadd.f32 %v8493, %v9270
        %v9454 = vadd.f32 %v8494, %v9272
        %v9455 = vadd.f32 %v8495, %v9274
        %v9456 = vadd.f32 %v8496, %v9278
        %v9457 = vadd.f32 %v8497, %v9280
        %v9458 = vadd.f32 %v8498, %v9282
        %v9459 = vadd.f32 %v8499, %v9284
        %v9460 = vadd.f32 %v8500, %v9288
        %v9461 = vadd.f32 %v8501, %v9290
        %v9462 = vadd.f32 %v8502, %v9292
        %v9463 = vadd.f32 %v8503, %v9294
        %v9464 = vadd.f32 %v8504, %v9298
        %v9465 = vadd.f32 %v8505, %v9300
        %v9466 = vadd.f32 %v8506, %v9302
        %v9467 = vadd.f32 %v8507, %v9304
        %v9468 = vadd.f32 %v8508, %v9308
        %v9469 = vadd.f32 %v8509, %v9310
        %v9470 = vadd.f32 %v8510, %v9312
        %v9471 = vadd.f32 %v8511, %v9314
        %v9472 = vadd.f32 %v8512, %v9318
        %v9473 = vadd.f32 %v8513, %v9320
        %v9474 = vadd.f32 %v8514, %v9322
        %v9475 = vadd.f32 %v8515, %v9324
        %v9476 = vadd.f32 %v8516, %v9328
        %v9477 = vadd.f32 %v8517, %v9330
        %v9478 = vadd.f32 %v8518, %v9332
        %v9479 = vadd.f32 %v8519, %v9334
        %v9480 = vadd.f32 %v8520, %v9338
        %v9481 = vadd.f32 %v8521, %v9340
        %v9482 = vadd.f32 %v8522, %v9342
        %v9483 = vadd.f32 %v8523, %v9344
        %v9484 = vadd.f32 %v8524, %v9348
        %v9485 = vadd.f32 %v8525, %v9350
        %v9486 = vadd.f32 %v8526, %v9352
        %v9487 = vadd.f32 %v8527, %v9354
        %v9488 = vadd.f32 %v8528, %v9358
        %v9489 = vadd.f32 %v8529, %v9360
        %v9490 = vadd.f32 %v8530, %v9362
        %v9491 = vadd.f32 %v8531, %v9364
        %v9492 = vadd.f32 %v8532, %v9368
        %v9493 = vadd.f32 %v8533, %v9370
        %v9494 = vadd.f32 %v8534, %v9372
        %v9495 = vadd.f32 %v8535, %v9374
        %v9496 = vadd.f32 %v8536, %v9378
        %v9497 = vadd.f32 %v8537, %v9380
        %v9498 = vadd.f32 %v8538, %v9382
        %v9499 = vadd.f32 %v8539, %v9384
        %v9500 = vadd.f32 %v8540, %v9388
        %v9501 = vadd.f32 %v8541, %v9390
        %v9502 = vadd.f32 %v8542, %v9392
        %v9503 = vadd.f32 %v8543, %v9394
        %v9504 = vadd.f32 %v8544, %v9398
        %v9505 = vadd.f32 %v8545, %v9400
        %v9506 = vadd.f32 %v8546, %v9402
        %v9507 = vadd.f32 %v8547, %v9404
        %v9508 = vadd.f32 %v8548, %v9408
        %v9509 = vadd.f32 %v8549, %v9410
        %v9510 = vadd.f32 %v8550, %v9412
        %v9511 = vadd.f32 %v8551, %v9414
        %v9512 = vadd.f32 %v8552, %v9418
        %v9513 = vadd.f32 %v8553, %v9420
        %v9514 = vadd.f32 %v8554, %v9422
        %v9515 = vadd.f32 %v8555, %v9424
        %v9516 = vadd.f32 %v8556, %v9428
        %v9517 = vadd.f32 %v8557, %v9430
        %v9518 = vadd.f32 %v8558, %v9432
        %v9519 = vadd.f32 %v8559, %v9434
        %v9520 = vadd.f32 %v8560, %v9438
        %v9521 = vadd.f32 %v8561, %v9440
        %v9522 = vld [vmem:[%s4] sm:$0x3]
        %v9524 = vlaneseq
        %v9525 = vshrl.u32 %v9524, 7
        %v9526 = vsub.s32 0, %v9525
        %v9527 = vrot.slane %v9522, %v9526
        %v9528 = vlaneseq
        %v9529 = vshrl.u32 %v9528, 7
        %v9530 = vsub.s32 1, %v9529
        %v9531 = vrot.slane %v9522, %v9530
        %v9534 = vadd.f32 %v9444, %v9527
        %v9535 = vadd.f32 %v9445, %v9531
        %v9536 = vadd.f32 %v9446, %v9527
        %v9537 = vadd.f32 %v9447, %v9531
        %v9538 = vadd.f32 %v9448, %v9527
        %v9539 = vadd.f32 %v9449, %v9531
        %v9540 = vadd.f32 %v9450, %v9527
        %v9541 = vadd.f32 %v9451, %v9531
        %v9542 = vadd.f32 %v9452, %v9527
        %v9543 = vadd.f32 %v9453, %v9531
        %v9544 = vadd.f32 %v9454, %v9527
        %v9545 = vadd.f32 %v9455, %v9531
        %v9546 = vadd.f32 %v9456, %v9527
        %v9547 = vadd.f32 %v9457, %v9531
        %v9548 = vadd.f32 %v9458, %v9527
        %v9549 = vadd.f32 %v9459, %v9531
        %v9550 = vadd.f32 %v9460, %v9527
        %v9551 = vadd.f32 %v9461, %v9531
        %v9552 = vadd.f32 %v9462, %v9527
        %v9553 = vadd.f32 %v9463, %v9531
        %v9554 = vadd.f32 %v9464, %v9527
        %v9555 = vadd.f32 %v9465, %v9531
        %v9556 = vadd.f32 %v9466, %v9527
        %v9557 = vadd.f32 %v9467, %v9531
        %v9558 = vadd.f32 %v9468, %v9527
        %v9559 = vadd.f32 %v9469, %v9531
        %v9560 = vadd.f32 %v9470, %v9527
        %v9561 = vadd.f32 %v9471, %v9531
        %v9562 = vadd.f32 %v9472, %v9527
        %v9563 = vadd.f32 %v9473, %v9531
        %v9564 = vadd.f32 %v9474, %v9527
        %v9565 = vadd.f32 %v9475, %v9531
        %v9566 = vadd.f32 %v9476, %v9527
        %v9567 = vadd.f32 %v9477, %v9531
        %v9568 = vadd.f32 %v9478, %v9527
        %v9569 = vadd.f32 %v9479, %v9531
        %v9570 = vadd.f32 %v9480, %v9527
        %v9571 = vadd.f32 %v9481, %v9531
        %v9572 = vadd.f32 %v9482, %v9527
        %v9573 = vadd.f32 %v9483, %v9531
        %v9574 = vadd.f32 %v9484, %v9527
        %v9575 = vadd.f32 %v9485, %v9531
        %v9576 = vadd.f32 %v9486, %v9527
        %v9577 = vadd.f32 %v9487, %v9531
        %v9578 = vadd.f32 %v9488, %v9527
        %v9579 = vadd.f32 %v9489, %v9531
        %v9580 = vadd.f32 %v9490, %v9527
        %v9581 = vadd.f32 %v9491, %v9531
        %v9582 = vadd.f32 %v9492, %v9527
        %v9583 = vadd.f32 %v9493, %v9531
        %v9584 = vadd.f32 %v9494, %v9527
        %v9585 = vadd.f32 %v9495, %v9531
        %v9586 = vadd.f32 %v9496, %v9527
        %v9587 = vadd.f32 %v9497, %v9531
        %v9588 = vadd.f32 %v9498, %v9527
        %v9589 = vadd.f32 %v9499, %v9531
        %v9590 = vadd.f32 %v9500, %v9527
        %v9591 = vadd.f32 %v9501, %v9531
        %v9592 = vadd.f32 %v9502, %v9527
        %v9593 = vadd.f32 %v9503, %v9531
        %v9594 = vadd.f32 %v9504, %v9527
        %v9595 = vadd.f32 %v9505, %v9531
        %v9596 = vadd.f32 %v9506, %v9527
        %v9597 = vadd.f32 %v9507, %v9531
        %v9598 = vadd.f32 %v9508, %v9527
        %v9599 = vadd.f32 %v9509, %v9531
        %v9600 = vadd.f32 %v9510, %v9527
        %v9601 = vadd.f32 %v9511, %v9531
        %v9602 = vadd.f32 %v9512, %v9527
        %v9603 = vadd.f32 %v9513, %v9531
        %v9604 = vadd.f32 %v9514, %v9527
        %v9605 = vadd.f32 %v9515, %v9531
        %v9606 = vadd.f32 %v9516, %v9527
        %v9607 = vadd.f32 %v9517, %v9531
        %v9608 = vadd.f32 %v9518, %v9527
        %v9609 = vadd.f32 %v9519, %v9531
        %v9610 = vadd.f32 %v9520, %v9527
        %v9611 = vadd.f32 %v9521, %v9531
        %v9612 = vtanh.pop %v9534
        %v9613 = vtanh.pop %v9535
        %v9614 = vtanh.pop %v9536
        %v9615 = vtanh.pop %v9537
        %v9616 = vtanh.pop %v9538
        %v9617 = vtanh.pop %v9539
        %v9618 = vtanh.pop %v9540
        %v9619 = vtanh.pop %v9541
        %v9620 = vtanh.pop %v9542
        %v9621 = vtanh.pop %v9543
        %v9622 = vtanh.pop %v9544
        %v9623 = vtanh.pop %v9545
        %v9624 = vtanh.pop %v9546
        %v9625 = vtanh.pop %v9547
        %v9626 = vtanh.pop %v9548
        %v9627 = vtanh.pop %v9549
        %v9628 = vtanh.pop %v9550
        %v9629 = vtanh.pop %v9551
        %v9630 = vtanh.pop %v9552
        %v9631 = vtanh.pop %v9553
        %v9632 = vtanh.pop %v9554
        %v9633 = vtanh.pop %v9555
        %v9634 = vtanh.pop %v9556
        %v9635 = vtanh.pop %v9557
        %v9636 = vtanh.pop %v9558
        %v9637 = vtanh.pop %v9559
        %v9638 = vtanh.pop %v9560
        %v9639 = vtanh.pop %v9561
        %v9640 = vtanh.pop %v9562
        %v9641 = vtanh.pop %v9563
        %v9642 = vtanh.pop %v9564
        %v9643 = vtanh.pop %v9565
        %v9644 = vtanh.pop %v9566
        %v9645 = vtanh.pop %v9567
        %v9646 = vtanh.pop %v9568
        %v9647 = vtanh.pop %v9569
        %v9648 = vtanh.pop %v9570
        %v9649 = vtanh.pop %v9571
        %v9650 = vtanh.pop %v9572
        %v9651 = vtanh.pop %v9573
        %v9652 = vtanh.pop %v9574
        %v9653 = vtanh.pop %v9575
        %v9654 = vtanh.pop %v9576
        %v9655 = vtanh.pop %v9577
        %v9656 = vtanh.pop %v9578
        %v9657 = vtanh.pop %v9579
        %v9658 = vtanh.pop %v9580
        %v9659 = vtanh.pop %v9581
        %v9660 = vtanh.pop %v9582
        %v9661 = vtanh.pop %v9583
        %v9662 = vtanh.pop %v9584
        %v9663 = vtanh.pop %v9585
        %v9664 = vtanh.pop %v9586
        %v9665 = vtanh.pop %v9587
        %v9666 = vtanh.pop %v9588
        %v9667 = vtanh.pop %v9589
        %v9668 = vtanh.pop %v9590
        %v9669 = vtanh.pop %v9591
        %v9670 = vtanh.pop %v9592
        %v9671 = vtanh.pop %v9593
        %v9672 = vtanh.pop %v9594
        %v9673 = vtanh.pop %v9595
        %v9674 = vtanh.pop %v9596
        %v9675 = vtanh.pop %v9597
        %v9676 = vtanh.pop %v9598
        %v9677 = vtanh.pop %v9599
        %v9678 = vtanh.pop %v9600
        %v9679 = vtanh.pop %v9601
        %v9680 = vtanh.pop %v9602
        %v9681 = vtanh.pop %v9603
        %v9682 = vtanh.pop %v9604
        %v9683 = vtanh.pop %v9605
        %v9684 = vtanh.pop %v9606
        %v9685 = vtanh.pop %v9607
        %v9686 = vtanh.pop %v9608
        %v9687 = vtanh.pop %v9609
        %v9688 = vtanh.pop %v9610
        %v9689 = vtanh.pop %v9611
        %vm9768 = vcmask 1045504
        %v9769 = vrot.slane %v9612, 2
        %v9770 = vrot.slane %v9614, 2
        %v9771 = vsel %vm9768, %v9769, %v9770
        %v9772 = vrot.slane %v9613, 2
        %v9773 = vrot.slane %v9615, 2
        %v9774 = vsel %vm9768, %v9772, %v9773
        %v9775 = vrot.slane %v9616, 2
        %v9776 = vsel %vm9768, %v9770, %v9775
        %v9777 = vrot.slane %v9617, 2
        %v9778 = vsel %vm9768, %v9773, %v9777
        %v9779 = vrot.slane %v9618, 2
        %v9780 = vsel %vm9768, %v9775, %v9779
        %v9781 = vrot.slane %v9619, 2
        %v9782 = vsel %vm9768, %v9777, %v9781
        %v9783 = vrot.slane %v9620, 2
        %v9784 = vsel %vm9768, %v9779, %v9783
        %v9785 = vrot.slane %v9621, 2
        %v9786 = vsel %vm9768, %v9781, %v9785
        %v9787 = vrot.slane %v9622, 2
        %v9788 = vsel %vm9768, %v9783, %v9787
        %v9789 = vrot.slane %v9623, 2
        %v9790 = vsel %vm9768, %v9785, %v9789
        %v9791 = vrot.slane %v9624, 2
        %v9792 = vsel %vm9768, %v9787, %v9791
        %v9793 = vrot.slane %v9625, 2
        %v9794 = vsel %vm9768, %v9789, %v9793
        %v9795 = vrot.slane %v9626, 2
        %v9796 = vsel %vm9768, %v9791, %v9795
        %v9797 = vrot.slane %v9627, 2
        %v9798 = vsel %vm9768, %v9793, %v9797
        %v9799 = vrot.slane %v9628, 2
        %v9800 = vsel %vm9768, %v9795, %v9799
        %v9801 = vrot.slane %v9629, 2
        %v9802 = vsel %vm9768, %v9797, %v9801
        %v9803 = vrot.slane %v9630, 2
        %v9804 = vsel %vm9768, %v9799, %v9803
        %v9805 = vrot.slane %v9631, 2
        %v9806 = vsel %vm9768, %v9801, %v9805
        %v9807 = vrot.slane %v9632, 2
        %v9808 = vsel %vm9768, %v9803, %v9807
        %v9809 = vrot.slane %v9633, 2
        %v9810 = vsel %vm9768, %v9805, %v9809
        %v9811 = vrot.slane %v9634, 2
        %v9812 = vsel %vm9768, %v9807, %v9811
        %v9813 = vrot.slane %v9635, 2
        %v9814 = vsel %vm9768, %v9809, %v9813
        %v9815 = vrot.slane %v9636, 2
        %v9816 = vsel %vm9768, %v9811, %v9815
        %v9817 = vrot.slane %v9637, 2
        %v9818 = vsel %vm9768, %v9813, %v9817
        %v9819 = vrot.slane %v9638, 2
        %v9820 = vsel %vm9768, %v9815, %v9819
        %v9821 = vrot.slane %v9639, 2
        %v9822 = vsel %vm9768, %v9817, %v9821
        %v9823 = vrot.slane %v9640, 2
        %v9824 = vsel %vm9768, %v9819, %v9823
        %v9825 = vrot.slane %v9641, 2
        %v9826 = vsel %vm9768, %v9821, %v9825
        %v9827 = vrot.slane %v9642, 2
        %v9828 = vsel %vm9768, %v9823, %v9827
        %v9829 = vrot.slane %v9643, 2
        %v9830 = vsel %vm9768, %v9825, %v9829
        %v9831 = vrot.slane %v9644, 2
        %v9832 = vsel %vm9768, %v9827, %v9831
        %v9833 = vrot.slane %v9645, 2
        %v9834 = vsel %vm9768, %v9829, %v9833
        %v9835 = vrot.slane %v9646, 2
        %v9836 = vsel %vm9768, %v9831, %v9835
        %v9837 = vrot.slane %v9647, 2
        %v9838 = vsel %vm9768, %v9833, %v9837
        %v9839 = vrot.slane %v9648, 2
        %v9840 = vsel %vm9768, %v9835, %v9839
        %v9841 = vrot.slane %v9649, 2
        %v9842 = vsel %vm9768, %v9837, %v9841
        %v9843 = vrot.slane %v9650, 2
        %v9844 = vsel %vm9768, %v9839, %v9843
        %v9845 = vrot.slane %v9651, 2
        %v9846 = vsel %vm9768, %v9841, %v9845
        %v9847 = vrot.slane %v9652, 2
        %v9848 = vsel %vm9768, %v9843, %v9847
        %v9849 = vrot.slane %v9653, 2
        %v9850 = vsel %vm9768, %v9845, %v9849
        %v9851 = vrot.slane %v9654, 2
        %v9852 = vsel %vm9768, %v9847, %v9851
        %v9853 = vrot.slane %v9655, 2
        %v9854 = vsel %vm9768, %v9849, %v9853
        %v9855 = vrot.slane %v9656, 2
        %v9856 = vsel %vm9768, %v9851, %v9855
        %v9857 = vrot.slane %v9657, 2
        %v9858 = vsel %vm9768, %v9853, %v9857
        %v9859 = vrot.slane %v9658, 2
        %v9860 = vsel %vm9768, %v9855, %v9859
        %v9861 = vrot.slane %v9659, 2
        %v9862 = vsel %vm9768, %v9857, %v9861
        %v9863 = vrot.slane %v9660, 2
        %v9864 = vsel %vm9768, %v9859, %v9863
        %v9865 = vrot.slane %v9661, 2
        %v9866 = vsel %vm9768, %v9861, %v9865
        %v9867 = vrot.slane %v9662, 2
        %v9868 = vsel %vm9768, %v9863, %v9867
        %v9869 = vrot.slane %v9663, 2
        %v9870 = vsel %vm9768, %v9865, %v9869
        %v9871 = vrot.slane %v9664, 2
        %v9872 = vsel %vm9768, %v9867, %v9871
        %v9873 = vrot.slane %v9665, 2
        %v9874 = vsel %vm9768, %v9869, %v9873
        %v9875 = vrot.slane %v9666, 2
        %v9876 = vsel %vm9768, %v9871, %v9875
        %v9877 = vrot.slane %v9667, 2
        %v9878 = vsel %vm9768, %v9873, %v9877
        %v9879 = vrot.slane %v9668, 2
        %v9880 = vsel %vm9768, %v9875, %v9879
        %v9881 = vrot.slane %v9669, 2
        %v9882 = vsel %vm9768, %v9877, %v9881
        %v9883 = vrot.slane %v9670, 2
        %v9884 = vsel %vm9768, %v9879, %v9883
        %v9885 = vrot.slane %v9671, 2
        %v9886 = vsel %vm9768, %v9881, %v9885
        %v9887 = vrot.slane %v9672, 2
        %v9888 = vsel %vm9768, %v9883, %v9887
        %v9889 = vrot.slane %v9673, 2
        %v9890 = vsel %vm9768, %v9885, %v9889
        %v9891 = vrot.slane %v9674, 2
        %v9892 = vsel %vm9768, %v9887, %v9891
        %v9893 = vrot.slane %v9675, 2
        %v9894 = vsel %vm9768, %v9889, %v9893
        %v9895 = vrot.slane %v9676, 2
        %v9896 = vsel %vm9768, %v9891, %v9895
        %v9897 = vrot.slane %v9677, 2
        %v9898 = vsel %vm9768, %v9893, %v9897
        %v9899 = vrot.slane %v9678, 2
        %v9900 = vsel %vm9768, %v9895, %v9899
        %v9901 = vrot.slane %v9679, 2
        %v9902 = vsel %vm9768, %v9897, %v9901
        %v9903 = vrot.slane %v9680, 2
        %v9904 = vsel %vm9768, %v9899, %v9903
        %v9905 = vrot.slane %v9681, 2
        %v9906 = vsel %vm9768, %v9901, %v9905
        %v9907 = vrot.slane %v9682, 2
        %v9908 = vsel %vm9768, %v9903, %v9907
        %v9909 = vrot.slane %v9683, 2
        %v9910 = vsel %vm9768, %v9905, %v9909
        %v9911 = vrot.slane %v9684, 2
        %v9912 = vsel %vm9768, %v9907, %v9911
        %v9913 = vrot.slane %v9685, 2
        %v9914 = vsel %vm9768, %v9909, %v9913
        %v9915 = vrot.slane %v9686, 2
        %v9916 = vsel %vm9768, %v9911, %v9915
        %v9917 = vrot.slane %v9687, 2
        %v9918 = vsel %vm9768, %v9913, %v9917
        %v9919 = vrot.slane %v9688, 2
        %v9920 = vsel %vm9768, %v9915, %v9919
        %v9921 = vrot.slane %v9689, 2
        %v9922 = vsel %vm9768, %v9917, %v9921
        %v9999 = vadd.f32 %v9612, %v9771
        %v10000 = vadd.f32 %v9613, %v9774
        %v10001 = vadd.f32 %v9614, %v9776
        %v10002 = vadd.f32 %v9615, %v9778
        %v10003 = vadd.f32 %v9616, %v9780
        %v10004 = vadd.f32 %v9617, %v9782
        %v10005 = vadd.f32 %v9618, %v9784
        %v10006 = vadd.f32 %v9619, %v9786
        %v10007 = vadd.f32 %v9620, %v9788
        %v10008 = vadd.f32 %v9621, %v9790
        %v10009 = vadd.f32 %v9622, %v9792
        %v10010 = vadd.f32 %v9623, %v9794
        %v10011 = vadd.f32 %v9624, %v9796
        %v10012 = vadd.f32 %v9625, %v9798
        %v10013 = vadd.f32 %v9626, %v9800
        %v10014 = vadd.f32 %v9627, %v9802
        %v10015 = vadd.f32 %v9628, %v9804
        %v10016 = vadd.f32 %v9629, %v9806
        %v10017 = vadd.f32 %v9630, %v9808
        %v10018 = vadd.f32 %v9631, %v9810
        %v10019 = vadd.f32 %v9632, %v9812
        %v10020 = vadd.f32 %v9633, %v9814
        %v10021 = vadd.f32 %v9634, %v9816
        %v10022 = vadd.f32 %v9635, %v9818
        %v10023 = vadd.f32 %v9636, %v9820
        %v10024 = vadd.f32 %v9637, %v9822
        %v10025 = vadd.f32 %v9638, %v9824
        %v10026 = vadd.f32 %v9639, %v9826
        %v10027 = vadd.f32 %v9640, %v9828
        %v10028 = vadd.f32 %v9641, %v9830
        %v10029 = vadd.f32 %v9642, %v9832
        %v10030 = vadd.f32 %v9643, %v9834
        %v10031 = vadd.f32 %v9644, %v9836
        %v10032 = vadd.f32 %v9645, %v9838
        %v10033 = vadd.f32 %v9646, %v9840
        %v10034 = vadd.f32 %v9647, %v9842
        %v10035 = vadd.f32 %v9648, %v9844
        %v10036 = vadd.f32 %v9649, %v9846
        %v10037 = vadd.f32 %v9650, %v9848
        %v10038 = vadd.f32 %v9651, %v9850
        %v10039 = vadd.f32 %v9652, %v9852
        %v10040 = vadd.f32 %v9653, %v9854
        %v10041 = vadd.f32 %v9654, %v9856
        %v10042 = vadd.f32 %v9655, %v9858
        %v10043 = vadd.f32 %v9656, %v9860
        %v10044 = vadd.f32 %v9657, %v9862
        %v10045 = vadd.f32 %v9658, %v9864
        %v10046 = vadd.f32 %v9659, %v9866
        %v10047 = vadd.f32 %v9660, %v9868
        %v10048 = vadd.f32 %v9661, %v9870
        %v10049 = vadd.f32 %v9662, %v9872
        %v10050 = vadd.f32 %v9663, %v9874
        %v10051 = vadd.f32 %v9664, %v9876
        %v10052 = vadd.f32 %v9665, %v9878
        %v10053 = vadd.f32 %v9666, %v9880
        %v10054 = vadd.f32 %v9667, %v9882
        %v10055 = vadd.f32 %v9668, %v9884
        %v10056 = vadd.f32 %v9669, %v9886
        %v10057 = vadd.f32 %v9670, %v9888
        %v10058 = vadd.f32 %v9671, %v9890
        %v10059 = vadd.f32 %v9672, %v9892
        %v10060 = vadd.f32 %v9673, %v9894
        %v10061 = vadd.f32 %v9674, %v9896
        %v10062 = vadd.f32 %v9675, %v9898
        %v10063 = vadd.f32 %v9676, %v9900
        %v10064 = vadd.f32 %v9677, %v9902
        %v10065 = vadd.f32 %v9678, %v9904
        %v10066 = vadd.f32 %v9679, %v9906
        %v10067 = vadd.f32 %v9680, %v9908
        %v10068 = vadd.f32 %v9681, %v9910
        %v10069 = vadd.f32 %v9682, %v9912
        %v10070 = vadd.f32 %v9683, %v9914
        %v10071 = vadd.f32 %v9684, %v9916
        %v10072 = vadd.f32 %v9685, %v9918
        %v10073 = vadd.f32 %v9686, %v9920
        %v10074 = vadd.f32 %v9687, %v9922
        %v10075 = vpack.c.bf16 %v10001, %v9999
        %v10076 = vpack.c.bf16 %v10002, %v10000
        %v10077 = vpack.c.bf16 %v10005, %v10003
        %v10078 = vpack.c.bf16 %v10006, %v10004
        %v10079 = vpack.c.bf16 %v10009, %v10007
        %v10080 = vpack.c.bf16 %v10010, %v10008
        %v10081 = vpack.c.bf16 %v10013, %v10011
        %v10082 = vpack.c.bf16 %v10014, %v10012
        %v10083 = vpack.c.bf16 %v10017, %v10015
        %v10084 = vpack.c.bf16 %v10018, %v10016
        %v10085 = vpack.c.bf16 %v10021, %v10019
        %v10086 = vpack.c.bf16 %v10022, %v10020
        %v10087 = vpack.c.bf16 %v10025, %v10023
        %v10088 = vpack.c.bf16 %v10026, %v10024
        %v10089 = vpack.c.bf16 %v10029, %v10027
        %v10090 = vpack.c.bf16 %v10030, %v10028
        %v10091 = vpack.c.bf16 %v10033, %v10031
        %v10092 = vpack.c.bf16 %v10034, %v10032
        %v10093 = vpack.c.bf16 %v10037, %v10035
        %v10094 = vpack.c.bf16 %v10038, %v10036
        %v10095 = vpack.c.bf16 %v10041, %v10039
        %v10096 = vpack.c.bf16 %v10042, %v10040
        %v10097 = vpack.c.bf16 %v10045, %v10043
        %v10098 = vpack.c.bf16 %v10046, %v10044
        %v10099 = vpack.c.bf16 %v10049, %v10047
        %v10100 = vpack.c.bf16 %v10050, %v10048
        %v10101 = vpack.c.bf16 %v10053, %v10051
        %v10102 = vpack.c.bf16 %v10054, %v10052
        %v10103 = vpack.c.bf16 %v10057, %v10055
        %v10104 = vpack.c.bf16 %v10058, %v10056
        %v10105 = vpack.c.bf16 %v10061, %v10059
        %v10106 = vpack.c.bf16 %v10062, %v10060
        %v10107 = vpack.c.bf16 %v10065, %v10063
        %v10108 = vpack.c.bf16 %v10066, %v10064
        %v10109 = vpack.c.bf16 %v10069, %v10067
        %v10110 = vpack.c.bf16 %v10070, %v10068
        %v10111 = vpack.c.bf16 %v10073, %v10071
        %v10112 = vpack.c.bf16 %v10074, %v10072
        %v10113 = vld [vmem:[%s5] sm:$0xf]
        %v10114 = vld [vmem:[%s5 + $0x4] sm:$0xf]
        %v10115 = vld [vmem:[%s5 + $0x8] sm:$0xf]
        %v10116 = vld [vmem:[%s5 + $0xc] sm:$0xf]
        %v10117 = vld [vmem:[%s5 + $0x10] sm:$0xf]
        %v10118 = vld [vmem:[%s5 + $0x14] sm:$0xf]
        %v10119 = vld [vmem:[%s5 + $0x18] sm:$0xf]
        %v10120 = vld [vmem:[%s5 + $0x1c] sm:$0xf]
        %v10121 = vld [vmem:[%s5 + $0x20] sm:$0xf]
        %v10122 = vld [vmem:[%s5 + $0x24] sm:$0xf]
        %v10123 = vld [vmem:[%s5 + $0x28] sm:$0xf]
        %v10124 = vld [vmem:[%s5 + $0x2c] sm:$0xf]
        %v10125 = vld [vmem:[%s5 + $0x30] sm:$0xf]
        %v10126 = vld [vmem:[%s5 + $0x34] sm:$0xf]
        %v10127 = vld [vmem:[%s5 + $0x38] sm:$0xf]
        %v10128 = vld [vmem:[%s5 + $0x3c] sm:$0xf]
        %v10129 = vld [vmem:[%s5 + $0x40] sm:$0xf]
        %v10130 = vld [vmem:[%s5 + $0x44] sm:$0xf]
        %v10131 = vld [vmem:[%s5 + $0x48] sm:$0xf]
        %v10132 = vld [vmem:[%s5 + $0x4c] sm:$0xf]
        %v10153 = vunpack.c.l.b16 %v10113
        %v10154 = vunpack.c.l.b16 %v10114
        %v10155 = vunpack.c.l.b16 %v10115
        %v10156 = vunpack.c.l.b16 %v10116
        %v10157 = vunpack.c.l.b16 %v10117
        %v10158 = vunpack.c.l.b16 %v10118
        %v10159 = vunpack.c.l.b16 %v10119
        %v10160 = vunpack.c.l.b16 %v10120
        %v10161 = vunpack.c.l.b16 %v10121
        %v10162 = vunpack.c.l.b16 %v10122
        %v10163 = vunpack.c.l.b16 %v10123
        %v10164 = vunpack.c.l.b16 %v10124
        %v10165 = vunpack.c.l.b16 %v10125
        %v10166 = vunpack.c.l.b16 %v10126
        %v10167 = vunpack.c.l.b16 %v10127
        %v10168 = vunpack.c.l.b16 %v10128
        %v10169 = vunpack.c.l.b16 %v10129
        %v10170 = vunpack.c.l.b16 %v10130
        %v10171 = vunpack.c.l.b16 %v10131
        %v10172 = vunpack.c.l.b16 %v10132
        %v10173 = vpack.c.b16 %v10154, %v10153
        %v10174 = vpack.c.b16 %v10156, %v10155
        %v10175 = vpack.c.b16 %v10158, %v10157
        %v10176 = vpack.c.b16 %v10160, %v10159
        %v10177 = vpack.c.b16 %v10162, %v10161
        %v10178 = vpack.c.b16 %v10164, %v10163
        %v10179 = vpack.c.b16 %v10166, %v10165
        %v10180 = vpack.c.b16 %v10168, %v10167
        %v10181 = vpack.c.b16 %v10170, %v10169
        %v10182 = vpack.c.b16 %v10172, %v10171
        %v10194 = vsel %vm508, %v10076, 0
        %v10197 = vsel %vm508, %v10078, 0
        %v10200 = vsel %vm508, %v10080, 0
        %v10203 = vsel %vm508, %v10082, 0
        %v10206 = vsel %vm508, %v10084, 0
        %v10209 = vsel %vm508, %v10086, 0
        %v10212 = vsel %vm508, %v10088, 0
        %v10215 = vsel %vm508, %v10090, 0
        %v10218 = vsel %vm508, %v10092, 0
        %v10221 = vsel %vm508, %v10094, 0
        %v10224 = vsel %vm508, %v10096, 0
        %v10227 = vsel %vm508, %v10098, 0
        %v10230 = vsel %vm508, %v10100, 0
        %v10233 = vsel %vm508, %v10102, 0
        %v10236 = vsel %vm508, %v10104, 0
        %v10239 = vsel %vm508, %v10106, 0
        %v10242 = vsel %vm508, %v10108, 0
        %v10245 = vsel %vm508, %v10110, 0
        %v10248 = vsel %vm508, %v10112, 0
        %10250 = vmatprep.subr.bf16.mxu0 0
        %10251 = vmatpush1.bf16.msra.mxu0 %v10173
        %10252 = vmatprep.subr.bf16.mxu0 0
        %10253 = vmatpush1.bf16.msra.mxu0 %v10174
        %10254 = vmatprep.subr.bf16.mxu0 0
        %10255 = vmatpush1.bf16.msra.mxu0 %v10175
        %10256 = vmatprep.subr.bf16.mxu0 0
        %10257 = vmatpush1.bf16.msra.mxu0 %v10176
        %10258 = vmatprep.subr.bf16.mxu0 0
        %10259 = vmatpush1.bf16.msra.mxu0 %v10177
        %10260 = vmatprep.subr.bf16.mxu0 0
        %10261 = vmatpush1.bf16.msra.mxu0 %v10178
        %10262 = vmatprep.subr.bf16.mxu0 0
        %10263 = vmatpush1.bf16.msra.mxu0 %v10179
        %10264 = vmatprep.subr.bf16.mxu0 0
        %10265 = vmatpush1.bf16.msra.mxu0 %v10180
        %10266 = vmatprep.subr.bf16.mxu0 0
        %10267 = vmatpush1.bf16.msra.mxu0 %v10181
        %10268 = vmatprep.subr.bf16.mxu0 0
        %10269 = vmatpush1.bf16.msra.mxu0 %v10182
        %10270 = vmatprep.subr.bf16.mxu0 0
        %10271 = vmatpush1.bf16.msra.mxu0 0
        %10272 = vmatprep.subr.bf16.mxu0 0
        %10273 = vmatpush1.bf16.msra.mxu0 0
        %10274 = vmatprep.subr.bf16.mxu0 0
        %10275 = vmatpush1.bf16.msra.mxu0 0
        %10276 = vmatprep.subr.bf16.mxu0 0
        %10277 = vmatpush1.bf16.msra.mxu0 0
        %10278 = vmatprep.subr.bf16.mxu0 0
        %10279 = vmatpush1.bf16.msra.mxu0 0
        %10280 = vmatprep.subr.bf16.mxu0 0
        %10281 = vmatpush1.bf16.msra.mxu0 0
        %10282 = vmatprep.mubr.bf16.mxu0 %v10194
        %10283 = vmatmul.mubr.bf16.gmra.mrb[0].mxu0 %v10075
        %v10284 = vpop.f32.mrb[0].mxu0
        %v10285 = vadd.f32 0.0, %v10284
        %v10286 = vpop.f32.mrb[0].mxu0
        %v10287 = vpop.f32.mrb[0].mxu0
        %v10288 = vadd.f32 0.0, %v10287
        %v10289 = vpop.f32.mrb[0].mxu0
        %10290 = vmatprep.mubr.bf16.mxu0 %v10197
        %10291 = vmatmul.mubr.bf16.gmra.mrb[0].mxu0 %v10077
        %v10292 = vpop.f32.mrb[0].mxu0
        %v10293 = vadd.f32 0.0, %v10292
        %v10294 = vpop.f32.mrb[0].mxu0
        %v10295 = vpop.f32.mrb[0].mxu0
        %v10296 = vadd.f32 0.0, %v10295
        %v10297 = vpop.f32.mrb[0].mxu0
        %10298 = vmatprep.mubr.bf16.mxu0 %v10200
        %10299 = vmatmul.mubr.bf16.gmra.mrb[0].mxu0 %v10079
        %v10300 = vpop.f32.mrb[0].mxu0
        %v10301 = vadd.f32 0.0, %v10300
        %v10302 = vpop.f32.mrb[0].mxu0
        %v10303 = vpop.f32.mrb[0].mxu0
        %v10304 = vadd.f32 0.0, %v10303
        %v10305 = vpop.f32.mrb[0].mxu0
        %10306 = vmatprep.mubr.bf16.mxu0 %v10203
        %10307 = vmatmul.mubr.bf16.gmra.mrb[0].mxu0 %v10081
        %v10308 = vpop.f32.mrb[0].mxu0
        %v10309 = vadd.f32 0.0, %v10308
        %v10310 = vpop.f32.mrb[0].mxu0
        %v10311 = vpop.f32.mrb[0].mxu0
        %v10312 = vadd.f32 0.0, %v10311
        %v10313 = vpop.f32.mrb[0].mxu0
        %10314 = vmatprep.mubr.bf16.mxu0 %v10206
        %10315 = vmatmul.mubr.bf16.gmra.mrb[0].mxu0 %v10083
        %v10316 = vpop.f32.mrb[0].mxu0
        %v10317 = vadd.f32 0.0, %v10316
        %v10318 = vpop.f32.mrb[0].mxu0
        %v10319 = vpop.f32.mrb[0].mxu0
        %v10320 = vadd.f32 0.0, %v10319
        %v10321 = vpop.f32.mrb[0].mxu0
        %10322 = vmatprep.mubr.bf16.mxu0 %v10209
        %10323 = vmatmul.mubr.bf16.gmra.mrb[0].mxu0 %v10085
        %v10324 = vpop.f32.mrb[0].mxu0
        %v10325 = vadd.f32 0.0, %v10324
        %v10326 = vpop.f32.mrb[0].mxu0
        %v10327 = vpop.f32.mrb[0].mxu0
        %v10328 = vadd.f32 0.0, %v10327
        %v10329 = vpop.f32.mrb[0].mxu0
        %10330 = vmatprep.mubr.bf16.mxu0 %v10212
        %10331 = vmatmul.mubr.bf16.gmra.mrb[0].mxu0 %v10087
        %v10332 = vpop.f32.mrb[0].mxu0
        %v10333 = vadd.f32 0.0, %v10332
        %v10334 = vpop.f32.mrb[0].mxu0
        %v10335 = vpop.f32.mrb[0].mxu0
        %v10336 = vadd.f32 0.0, %v10335
        %v10337 = vpop.f32.mrb[0].mxu0
        %10338 = vmatprep.mubr.bf16.mxu0 %v10215
        %10339 = vmatmul.mubr.bf16.gmra.mrb[0].mxu0 %v10089
        %v10340 = vpop.f32.mrb[0].mxu0
        %v10341 = vadd.f32 0.0, %v10340
        %v10342 = vpop.f32.mrb[0].mxu0
        %v10343 = vpop.f32.mrb[0].mxu0
        %v10344 = vadd.f32 0.0, %v10343
        %v10345 = vpop.f32.mrb[0].mxu0
        %10346 = vmatprep.mubr.bf16.mxu0 %v10218
        %10347 = vmatmul.mubr.bf16.gmra.mrb[0].mxu0 %v10091
        %v10348 = vpop.f32.mrb[0].mxu0
        %v10349 = vadd.f32 0.0, %v10348
        %v10350 = vpop.f32.mrb[0].mxu0
        %v10351 = vpop.f32.mrb[0].mxu0
        %v10352 = vadd.f32 0.0, %v10351
        %v10353 = vpop.f32.mrb[0].mxu0
        %10354 = vmatprep.mubr.bf16.mxu0 %v10221
        %10355 = vmatmul.mubr.bf16.gmra.mrb[0].mxu0 %v10093
        %v10356 = vpop.f32.mrb[0].mxu0
        %v10357 = vadd.f32 0.0, %v10356
        %v10358 = vpop.f32.mrb[0].mxu0
        %v10359 = vpop.f32.mrb[0].mxu0
        %v10360 = vadd.f32 0.0, %v10359
        %v10361 = vpop.f32.mrb[0].mxu0
        %10362 = vmatprep.mubr.bf16.mxu0 %v10224
        %10363 = vmatmul.mubr.bf16.gmra.mrb[0].mxu0 %v10095
        %v10364 = vpop.f32.mrb[0].mxu0
        %v10365 = vadd.f32 0.0, %v10364
        %v10366 = vpop.f32.mrb[0].mxu0
        %v10367 = vpop.f32.mrb[0].mxu0
        %v10368 = vadd.f32 0.0, %v10367
        %v10369 = vpop.f32.mrb[0].mxu0
        %10370 = vmatprep.mubr.bf16.mxu0 %v10227
        %10371 = vmatmul.mubr.bf16.gmra.mrb[0].mxu0 %v10097
        %v10372 = vpop.f32.mrb[0].mxu0
        %v10373 = vadd.f32 0.0, %v10372
        %v10374 = vpop.f32.mrb[0].mxu0
        %v10375 = vpop.f32.mrb[0].mxu0
        %v10376 = vadd.f32 0.0, %v10375
        %v10377 = vpop.f32.mrb[0].mxu0
        %10378 = vmatprep.mubr.bf16.mxu0 %v10230
        %10379 = vmatmul.mubr.bf16.gmra.mrb[0].mxu0 %v10099
        %v10380 = vpop.f32.mrb[0].mxu0
        %v10381 = vadd.f32 0.0, %v10380
        %v10382 = vpop.f32.mrb[0].mxu0
        %v10383 = vpop.f32.mrb[0].mxu0
        %v10384 = vadd.f32 0.0, %v10383
        %v10385 = vpop.f32.mrb[0].mxu0
        %10386 = vmatprep.mubr.bf16.mxu0 %v10233
        %10387 = vmatmul.mubr.bf16.gmra.mrb[0].mxu0 %v10101
        %v10388 = vpop.f32.mrb[0].mxu0
        %v10389 = vadd.f32 0.0, %v10388
        %v10390 = vpop.f32.mrb[0].mxu0
        %v10391 = vpop.f32.mrb[0].mxu0
        %v10392 = vadd.f32 0.0, %v10391
        %v10393 = vpop.f32.mrb[0].mxu0
        %10394 = vmatprep.mubr.bf16.mxu0 %v10236
        %10395 = vmatmul.mubr.bf16.gmra.mrb[0].mxu0 %v10103
        %v10396 = vpop.f32.mrb[0].mxu0
        %v10397 = vadd.f32 0.0, %v10396
        %v10398 = vpop.f32.mrb[0].mxu0
        %v10399 = vpop.f32.mrb[0].mxu0
        %v10400 = vadd.f32 0.0, %v10399
        %v10401 = vpop.f32.mrb[0].mxu0
        %10402 = vmatprep.mubr.bf16.mxu0 %v10239
        %10403 = vmatmul.mubr.bf16.gmra.mrb[0].mxu0 %v10105
        %v10404 = vpop.f32.mrb[0].mxu0
        %v10405 = vadd.f32 0.0, %v10404
        %v10406 = vpop.f32.mrb[0].mxu0
        %v10407 = vpop.f32.mrb[0].mxu0
        %v10408 = vadd.f32 0.0, %v10407
        %v10409 = vpop.f32.mrb[0].mxu0
        %10410 = vmatprep.mubr.bf16.mxu0 %v10242
        %10411 = vmatmul.mubr.bf16.gmra.mrb[0].mxu0 %v10107
        %v10412 = vpop.f32.mrb[0].mxu0
        %v10413 = vadd.f32 0.0, %v10412
        %v10414 = vpop.f32.mrb[0].mxu0
        %v10415 = vpop.f32.mrb[0].mxu0
        %v10416 = vadd.f32 0.0, %v10415
        %v10417 = vpop.f32.mrb[0].mxu0
        %10418 = vmatprep.mubr.bf16.mxu0 %v10245
        %10419 = vmatmul.mubr.bf16.gmra.mrb[0].mxu0 %v10109
        %v10420 = vpop.f32.mrb[0].mxu0
        %v10421 = vadd.f32 0.0, %v10420
        %v10422 = vpop.f32.mrb[0].mxu0
        %v10423 = vpop.f32.mrb[0].mxu0
        %v10424 = vadd.f32 0.0, %v10423
        %v10425 = vpop.f32.mrb[0].mxu0
        %10426 = vmatprep.mubr.bf16.mxu0 %v10248
        %10427 = vmatmul.mubr.bf16.gmra.mrb[0].mxu0 %v10111
        %v10428 = vpop.f32.mrb[0].mxu0
        %v10429 = vadd.f32 0.0, %v10428
        %v10430 = vpop.f32.mrb[0].mxu0
        %v10431 = vpop.f32.mrb[0].mxu0
        %v10432 = vadd.f32 0.0, %v10431
        %v10433 = vpop.f32.mrb[0].mxu0
        %10434 = vdwg.mxu0
        %v10435 = vpack.c.bf16 %v10288, %v10285
        %v10436 = vpack.c.bf16 %v10296, %v10293
        %v10437 = vpack.c.bf16 %v10304, %v10301
        %v10438 = vpack.c.bf16 %v10312, %v10309
        %v10439 = vpack.c.bf16 %v10320, %v10317
        %v10440 = vpack.c.bf16 %v10328, %v10325
        %v10441 = vpack.c.bf16 %v10336, %v10333
        %v10442 = vpack.c.bf16 %v10344, %v10341
        %v10443 = vpack.c.bf16 %v10352, %v10349
        %v10444 = vpack.c.bf16 %v10360, %v10357
        %v10445 = vpack.c.bf16 %v10368, %v10365
        %v10446 = vpack.c.bf16 %v10376, %v10373
        %v10447 = vpack.c.bf16 %v10384, %v10381
        %v10448 = vpack.c.bf16 %v10392, %v10389
        %v10449 = vpack.c.bf16 %v10400, %v10397
        %v10450 = vpack.c.bf16 %v10408, %v10405
        %v10451 = vpack.c.bf16 %v10416, %v10413
        %v10452 = vpack.c.bf16 %v10424, %v10421
        %v10453 = vld [vmem:[%s6] sm:$0xf]
        %v10454 = vld [vmem:[%s6 + $0x4] sm:$0xf]
        %v10455 = vld [vmem:[%s6 + $0x8] sm:$0xf]
        %v10456 = vld [vmem:[%s6 + $0xc] sm:$0xf]
        %v10457 = vld [vmem:[%s6 + $0x10] sm:$0xf]
        %v10458 = vld [vmem:[%s6 + $0x14] sm:$0xf]
        %v10459 = vld [vmem:[%s6 + $0x18] sm:$0xf]
        %v10460 = vld [vmem:[%s6 + $0x1c] sm:$0xf]
        %v10461 = vld [vmem:[%s6 + $0x20] sm:$0xf]
        %v10462 = vld [vmem:[%s6 + $0x24] sm:$0xf]
        %v10463 = vpack.c.bf16 %v10429, %v10429
        %s10464 = scalar_lea.vmem %s6, 40
        %v10465 = vld [vmem:[%s10464] sm:$0xf]
        %v10466 = vld [vmem:[%s10464 + $0x4] sm:$0xf]
        %v10467 = vld [vmem:[%s10464 + $0x8] sm:$0xf]
        %v10468 = vld [vmem:[%s10464 + $0xc] sm:$0xf]
        %v10469 = vld [vmem:[%s10464 + $0x10] sm:$0xf]
        %v10470 = vld [vmem:[%s10464 + $0x14] sm:$0xf]
        %v10471 = vld [vmem:[%s10464 + $0x18] sm:$0xf]
        %v10472 = vld [vmem:[%s10464 + $0x1c] sm:$0xf]
        %v10473 = vld [vmem:[%s10464 + $0x20] sm:$0xf]
        %v10474 = vld [vmem:[%s10464 + $0x24] sm:$0xf]
        %v10494 = vrot.slane %v10435, 2
        %v10495 = vrot.slane %v10436, 2
        %v10496 = vsel %vm5408, %v10494, %v10495
        %v10497 = vrot.slane %v10437, 2
        %v10498 = vsel %vm5408, %v10495, %v10497
        %v10499 = vrot.slane %v10438, 2
        %v10500 = vsel %vm5408, %v10497, %v10499
        %v10501 = vrot.slane %v10439, 2
        %v10502 = vsel %vm5408, %v10499, %v10501
        %v10503 = vrot.slane %v10440, 2
        %v10504 = vsel %vm5408, %v10501, %v10503
        %v10505 = vrot.slane %v10441, 2
        %v10506 = vsel %vm5408, %v10503, %v10505
        %v10507 = vrot.slane %v10442, 2
        %v10508 = vsel %vm5408, %v10505, %v10507
        %v10509 = vrot.slane %v10443, 2
        %v10510 = vsel %vm5408, %v10507, %v10509
        %v10511 = vrot.slane %v10444, 2
        %v10512 = vsel %vm5408, %v10509, %v10511
        %v10513 = vrot.slane %v10445, 2
        %v10514 = vsel %vm5408, %v10511, %v10513
        %v10515 = vrot.slane %v10446, 2
        %v10516 = vsel %vm5408, %v10513, %v10515
        %v10517 = vrot.slane %v10447, 2
        %v10518 = vsel %vm5408, %v10515, %v10517
        %v10519 = vrot.slane %v10448, 2
        %v10520 = vsel %vm5408, %v10517, %v10519
        %v10521 = vrot.slane %v10449, 2
        %v10522 = vsel %vm5408, %v10519, %v10521
        %v10523 = vrot.slane %v10450, 2
        %v10524 = vsel %vm5408, %v10521, %v10523
        %v10525 = vrot.slane %v10451, 2
        %v10526 = vsel %vm5408, %v10523, %v10525
        %v10527 = vrot.slane %v10452, 2
        %v10528 = vsel %vm5408, %v10525, %v10527
        %v10529 = vrot.slane %v10463, 2
        %v10530 = vsel %vm5408, %v10527, %v10529
        %v10541 = vunpack.c.l.b16 %v10465
        %v10542 = vunpack.c.l.b16 %v10466
        %v10543 = vunpack.c.l.b16 %v10467
        %v10544 = vunpack.c.l.b16 %v10468
        %v10545 = vunpack.c.l.b16 %v10469
        %v10546 = vunpack.c.l.b16 %v10470
        %v10547 = vunpack.c.l.b16 %v10471
        %v10548 = vunpack.c.l.b16 %v10472
        %v10549 = vunpack.c.l.b16 %v10473
        %v10550 = vunpack.c.l.b16 %v10474
        %v10551 = vpack.c.b16 %v10542, %v10541
        %v10552 = vpack.c.b16 %v10544, %v10543
        %v10553 = vpack.c.b16 %v10546, %v10545
        %v10554 = vpack.c.b16 %v10548, %v10547
        %v10555 = vpack.c.b16 %v10550, %v10549
        %vm10561 = vcmask 654336
        %v10563 = vsel %vm10561, %v10496, 0
        %v10566 = vsel %vm10561, %v10498, 0
        %v10569 = vsel %vm10561, %v10500, 0
        %v10572 = vsel %vm10561, %v10502, 0
        %v10575 = vsel %vm10561, %v10504, 0
        %v10578 = vsel %vm10561, %v10506, 0
        %v10581 = vsel %vm10561, %v10508, 0
        %v10584 = vsel %vm10561, %v10510, 0
        %v10587 = vsel %vm10561, %v10512, 0
        %v10590 = vsel %vm10561, %v10514, 0
        %v10593 = vsel %vm10561, %v10516, 0
        %v10596 = vsel %vm10561, %v10518, 0
        %v10599 = vsel %vm10561, %v10520, 0
        %v10602 = vsel %vm10561, %v10522, 0
        %v10605 = vsel %vm10561, %v10524, 0
        %v10608 = vsel %vm10561, %v10526, 0
        %v10611 = vsel %vm10561, %v10528, 0
        %v10614 = vsel %vm10561, %v10530, 0
        %10616 = vmatprep.subr.bf16.mxu0 0
        %10617 = vmatpush1.bf16.msra.mxu0 %v10551
        %10618 = vmatprep.subr.bf16.mxu0 0
        %10619 = vmatpush1.bf16.msra.mxu0 %v10552
        %10620 = vmatprep.subr.bf16.mxu0 0
        %10621 = vmatpush1.bf16.msra.mxu0 %v10553
        %10622 = vmatprep.subr.bf16.mxu0 0
        %10623 = vmatpush1.bf16.msra.mxu0 %v10554
        %10624 = vmatprep.subr.bf16.mxu0 0
        %10625 = vmatpush1.bf16.msra.mxu0 %v10555
        %10626 = vmatprep.subr.bf16.mxu0 0
        %10627 = vmatpush1.bf16.msra.mxu0 0
        %10628 = vmatprep.subr.bf16.mxu0 0
        %10629 = vmatpush1.bf16.msra.mxu0 0
        %10630 = vmatprep.subr.bf16.mxu0 0
        %10631 = vmatpush1.bf16.msra.mxu0 0
        %10632 = vmatprep.subr.bf16.mxu0 0
        %10633 = vmatpush1.bf16.msra.mxu0 0
        %10634 = vmatprep.subr.bf16.mxu0 0
        %10635 = vmatpush1.bf16.msra.mxu0 0
        %10636 = vmatprep.subr.bf16.mxu0 0
        %10637 = vmatpush1.bf16.msra.mxu0 0
        %10638 = vmatprep.subr.bf16.mxu0 0
        %10639 = vmatpush1.bf16.msra.mxu0 0
        %10640 = vmatprep.subr.bf16.mxu0 0
        %10641 = vmatpush1.bf16.msra.mxu0 0
        %10642 = vmatprep.subr.bf16.mxu0 0
        %10643 = vmatpush1.bf16.msra.mxu0 0
        %10644 = vmatprep.subr.bf16.mxu0 0
        %10645 = vmatpush1.bf16.msra.mxu0 0
        %10646 = vmatprep.subr.bf16.mxu0 0
        %10647 = vmatpush1.bf16.msra.mxu0 0
        %10648 = vmatprep.mubr.bf16.mxu0 0
        %10649 = vmatmul.mubr.bf16.gmra.mrb[0].mxu0 %v10563
        %v10650 = vpop.f32.mrb[0].mxu0
        %v10651 = vadd.f32 0.0, %v10650
        %v10652 = vpop.f32.mrb[0].mxu0
        %v10653 = vpop.f32.mrb[0].mxu0
        %v10654 = vpop.f32.mrb[0].mxu0
        %10655 = vmatprep.mubr.bf16.mxu0 0
        %10656 = vmatmul.mubr.bf16.gmra.mrb[0].mxu0 %v10566
        %v10657 = vpop.f32.mrb[0].mxu0
        %v10658 = vpop.f32.mrb[0].mxu0
        %v10659 = vpop.f32.mrb[0].mxu0
        %v10660 = vpop.f32.mrb[0].mxu0
        %10661 = vmatprep.mubr.bf16.mxu0 0
        %10662 = vmatmul.mubr.bf16.gmra.mrb[0].mxu0 %v10569
        %v10663 = vpop.f32.mrb[0].mxu0
        %v10664 = vpop.f32.mrb[0].mxu0
        %v10665 = vpop.f32.mrb[0].mxu0
        %v10666 = vadd.f32 0.0, %v10665
        %v10667 = vpop.f32.mrb[0].mxu0
        %10668 = vmatprep.mubr.bf16.mxu0 0
        %10669 = vmatmul.mubr.bf16.gmra.mrb[0].mxu0 %v10572
        %v10670 = vpop.f32.mrb[0].mxu0
        %v10671 = vpop.f32.mrb[0].mxu0
        %v10672 = vpop.f32.mrb[0].mxu0
        %v10673 = vpop.f32.mrb[0].mxu0
        %10674 = vmatprep.mubr.bf16.mxu0 0
        %10675 = vmatmul.mubr.bf16.gmra.mrb[0].mxu0 %v10575
        %v10676 = vpop.f32.mrb[0].mxu0
        %v10677 = vpop.f32.mrb[0].mxu0
        %v10678 = vpop.f32.mrb[0].mxu0
        %v10679 = vpop.f32.mrb[0].mxu0
        %10680 = vmatprep.mubr.bf16.mxu0 0
        %10681 = vmatmul.mubr.bf16.gmra.mrb[0].mxu0 %v10578
        %v10682 = vpop.f32.mrb[0].mxu0
        %v10683 = vadd.f32 0.0, %v10682
        %v10684 = vpop.f32.mrb[0].mxu0
        %v10685 = vpop.f32.mrb[0].mxu0
        %v10686 = vpop.f32.mrb[0].mxu0
        %10687 = vmatprep.mubr.bf16.mxu0 0
        %10688 = vmatmul.mubr.bf16.gmra.mrb[0].mxu0 %v10581
        %v10689 = vpop.f32.mrb[0].mxu0
        %v10690 = vpop.f32.mrb[0].mxu0
        %v10691 = vpop.f32.mrb[0].mxu0
        %v10692 = vpop.f32.mrb[0].mxu0
        %10693 = vmatprep.mubr.bf16.mxu0 0
        %10694 = vmatmul.mubr.bf16.gmra.mrb[0].mxu0 %v10584
        %v10695 = vpop.f32.mrb[0].mxu0
        %v10696 = vpop.f32.mrb[0].mxu0
        %v10697 = vpop.f32.mrb[0].mxu0
        %v10698 = vadd.f32 0.0, %v10697
        %v10699 = vpop.f32.mrb[0].mxu0
        %10700 = vmatprep.mubr.bf16.mxu0 0
        %10701 = vmatmul.mubr.bf16.gmra.mrb[0].mxu0 %v10587
        %v10702 = vpop.f32.mrb[0].mxu0
        %v10703 = vpop.f32.mrb[0].mxu0
        %v10704 = vpop.f32.mrb[0].mxu0
        %v10705 = vpop.f32.mrb[0].mxu0
        %10706 = vmatprep.mubr.bf16.mxu0 0
        %10707 = vmatmul.mubr.bf16.gmra.mrb[0].mxu0 %v10590
        %v10708 = vpop.f32.mrb[0].mxu0
        %v10709 = vpop.f32.mrb[0].mxu0
        %v10710 = vpop.f32.mrb[0].mxu0
        %v10711 = vpop.f32.mrb[0].mxu0
        %10712 = vmatprep.mubr.bf16.mxu0 0
        %10713 = vmatmul.mubr.bf16.gmra.mrb[0].mxu0 %v10593
        %v10714 = vpop.f32.mrb[0].mxu0
        %v10715 = vadd.f32 0.0, %v10714
        %v10716 = vpop.f32.mrb[0].mxu0
        %v10717 = vpop.f32.mrb[0].mxu0
        %v10718 = vpop.f32.mrb[0].mxu0
        %10719 = vmatprep.mubr.bf16.mxu0 0
        %10720 = vmatmul.mubr.bf16.gmra.mrb[0].mxu0 %v10596
        %v10721 = vpop.f32.mrb[0].mxu0
        %v10722 = vpop.f32.mrb[0].mxu0
        %v10723 = vpop.f32.mrb[0].mxu0
        %v10724 = vpop.f32.mrb[0].mxu0
        %10725 = vmatprep.mubr.bf16.mxu0 0
        %10726 = vmatmul.mubr.bf16.gmra.mrb[0].mxu0 %v10599
        %v10727 = vpop.f32.mrb[0].mxu0
        %v10728 = vpop.f32.mrb[0].mxu0
        %v10729 = vpop.f32.mrb[0].mxu0
        %v10730 = vadd.f32 0.0, %v10729
        %v10731 = vpop.f32.mrb[0].mxu0
        %10732 = vmatprep.mubr.bf16.mxu0 0
        %10733 = vmatmul.mubr.bf16.gmra.mrb[0].mxu0 %v10602
        %v10734 = vpop.f32.mrb[0].mxu0
        %v10735 = vpop.f32.mrb[0].mxu0
        %v10736 = vpop.f32.mrb[0].mxu0
        %v10737 = vpop.f32.mrb[0].mxu0
        %10738 = vmatprep.mubr.bf16.mxu0 0
        %10739 = vmatmul.mubr.bf16.gmra.mrb[0].mxu0 %v10605
        %v10740 = vpop.f32.mrb[0].mxu0
        %v10741 = vpop.f32.mrb[0].mxu0
        %v10742 = vpop.f32.mrb[0].mxu0
        %v10743 = vpop.f32.mrb[0].mxu0
        %10744 = vmatprep.mubr.bf16.mxu0 0
        %10745 = vmatmul.mubr.bf16.gmra.mrb[0].mxu0 %v10608
        %v10746 = vpop.f32.mrb[0].mxu0
        %v10747 = vadd.f32 0.0, %v10746
        %v10748 = vpop.f32.mrb[0].mxu0
        %v10749 = vpop.f32.mrb[0].mxu0
        %v10750 = vpop.f32.mrb[0].mxu0
        %10751 = vmatprep.mubr.bf16.mxu0 0
        %10752 = vmatmul.mubr.bf16.gmra.mrb[0].mxu0 %v10611
        %v10753 = vpop.f32.mrb[0].mxu0
        %v10754 = vpop.f32.mrb[0].mxu0
        %v10755 = vpop.f32.mrb[0].mxu0
        %v10756 = vpop.f32.mrb[0].mxu0
        %10757 = vmatprep.mubr.bf16.mxu0 0
        %10758 = vmatmul.mubr.bf16.gmra.mrb[0].mxu0 %v10614
        %v10759 = vpop.f32.mrb[0].mxu0
        %v10760 = vpop.f32.mrb[0].mxu0
        %v10761 = vpop.f32.mrb[0].mxu0
        %v10762 = vadd.f32 0.0, %v10761
        %v10763 = vpop.f32.mrb[0].mxu0
        %10764 = vdwg.mxu0
        %v10775 = vunpack.c.l.b16 %v10453
        %v10776 = vunpack.c.l.b16 %v10454
        %v10777 = vunpack.c.l.b16 %v10455
        %v10778 = vunpack.c.l.b16 %v10456
        %v10779 = vunpack.c.l.b16 %v10457
        %v10780 = vunpack.c.l.b16 %v10458
        %v10781 = vunpack.c.l.b16 %v10459
        %v10782 = vunpack.c.l.b16 %v10460
        %v10783 = vunpack.c.l.b16 %v10461
        %v10784 = vunpack.c.l.b16 %v10462
        %v10785 = vpack.c.b16 %v10776, %v10775
        %v10786 = vpack.c.b16 %v10778, %v10777
        %v10787 = vpack.c.b16 %v10780, %v10779
        %v10788 = vpack.c.b16 %v10782, %v10781
        %v10789 = vpack.c.b16 %v10784, %v10783
        %v10796 = vsel %vm10561, %v10435, 0
        %v10799 = vsel %vm10561, %v10436, 0
        %v10802 = vsel %vm10561, %v10437, 0
        %v10805 = vsel %vm10561, %v10438, 0
        %v10808 = vsel %vm10561, %v10439, 0
        %v10811 = vsel %vm10561, %v10440, 0
        %v10814 = vsel %vm10561, %v10441, 0
        %v10817 = vsel %vm10561, %v10442, 0
        %v10820 = vsel %vm10561, %v10443, 0
        %v10823 = vsel %vm10561, %v10444, 0
        %v10826 = vsel %vm10561, %v10445, 0
        %v10829 = vsel %vm10561, %v10446, 0
        %v10832 = vsel %vm10561, %v10447, 0
        %v10835 = vsel %vm10561, %v10448, 0
        %v10838 = vsel %vm10561, %v10449, 0
        %v10841 = vsel %vm10561, %v10450, 0
        %v10844 = vsel %vm10561, %v10451, 0
        %v10847 = vsel %vm10561, %v10452, 0
        %10849 = vmatprep.subr.bf16.mxu0 0
        %10850 = vmatpush1.bf16.msra.mxu0 %v10785
        %10851 = vmatprep.subr.bf16.mxu0 0
        %10852 = vmatpush1.bf16.msra.mxu0 %v10786
        %10853 = vmatprep.subr.bf16.mxu0 0
        %10854 = vmatpush1.bf16.msra.mxu0 %v10787
        %10855 = vmatprep.subr.bf16.mxu0 0
        %10856 = vmatpush1.bf16.msra.mxu0 %v10788
        %10857 = vmatprep.subr.bf16.mxu0 0
        %10858 = vmatpush1.bf16.msra.mxu0 %v10789
        %10859 = vmatprep.subr.bf16.mxu0 0
        %10860 = vmatpush1.bf16.msra.mxu0 0
        %10861 = vmatprep.subr.bf16.mxu0 0
        %10862 = vmatpush1.bf16.msra.mxu0 0
        %10863 = vmatprep.subr.bf16.mxu0 0
        %10864 = vmatpush1.bf16.msra.mxu0 0
        %10865 = vmatprep.subr.bf16.mxu0 0
        %10866 = vmatpush1.bf16.msra.mxu0 0
        %10867 = vmatprep.subr.bf16.mxu0 0
        %10868 = vmatpush1.bf16.msra.mxu0 0
        %10869 = vmatprep.subr.bf16.mxu0 0
        %10870 = vmatpush1.bf16.msra.mxu0 0
        %10871 = vmatprep.subr.bf16.mxu0 0
        %10872 = vmatpush1.bf16.msra.mxu0 0
        %10873 = vmatprep.subr.bf16.mxu0 0
        %10874 = vmatpush1.bf16.msra.mxu0 0
        %10875 = vmatprep.subr.bf16.mxu0 0
        %10876 = vmatpush1.bf16.msra.mxu0 0
        %10877 = vmatprep.subr.bf16.mxu0 0
        %10878 = vmatpush1.bf16.msra.mxu0 0
        %10879 = vmatprep.subr.bf16.mxu0 0
        %10880 = vmatpush1.bf16.msra.mxu0 0
        %10881 = vmatprep.mubr.bf16.mxu0 0
        %10882 = vmatmul.mubr.bf16.gmra.mrb[0].mxu0 %v10796
        %v10883 = vpop.f32.mrb[0].mxu0
        %v10884 = vadd.f32 %v10651, %v10883
        %v10885 = vpop.f32.mrb[0].mxu0
        %v10886 = vpop.f32.mrb[0].mxu0
        %v10887 = vpop.f32.mrb[0].mxu0
        %10888 = vmatprep.mubr.bf16.mxu0 0
        %10889 = vmatmul.mubr.bf16.gmra.mrb[0].mxu0 %v10799
        %v10890 = vpop.f32.mrb[0].mxu0
        %v10891 = vpop.f32.mrb[0].mxu0
        %v10892 = vpop.f32.mrb[0].mxu0
        %v10893 = vpop.f32.mrb[0].mxu0
        %10894 = vmatprep.mubr.bf16.mxu0 0
        %10895 = vmatmul.mubr.bf16.gmra.mrb[0].mxu0 %v10802
        %v10896 = vpop.f32.mrb[0].mxu0
        %v10897 = vpop.f32.mrb[0].mxu0
        %v10898 = vpop.f32.mrb[0].mxu0
        %v10899 = vadd.f32 %v10666, %v10898
        %v10900 = vpop.f32.mrb[0].mxu0
        %10901 = vmatprep.mubr.bf16.mxu0 0
        %10902 = vmatmul.mubr.bf16.gmra.mrb[0].mxu0 %v10805
        %v10903 = vpop.f32.mrb[0].mxu0
        %v10904 = vpop.f32.mrb[0].mxu0
        %v10905 = vpop.f32.mrb[0].mxu0
        %v10906 = vpop.f32.mrb[0].mxu0
        %10907 = vmatprep.mubr.bf16.mxu0 0
        %10908 = vmatmul.mubr.bf16.gmra.mrb[0].mxu0 %v10808
        %v10909 = vpop.f32.mrb[0].mxu0
        %v10910 = vpop.f32.mrb[0].mxu0
        %v10911 = vpop.f32.mrb[0].mxu0
        %v10912 = vpop.f32.mrb[0].mxu0
        %10913 = vmatprep.mubr.bf16.mxu0 0
        %10914 = vmatmul.mubr.bf16.gmra.mrb[0].mxu0 %v10811
        %v10915 = vpop.f32.mrb[0].mxu0
        %v10916 = vadd.f32 %v10683, %v10915
        %v10917 = vpop.f32.mrb[0].mxu0
        %v10918 = vpop.f32.mrb[0].mxu0
        %v10919 = vpop.f32.mrb[0].mxu0
        %10920 = vmatprep.mubr.bf16.mxu0 0
        %10921 = vmatmul.mubr.bf16.gmra.mrb[0].mxu0 %v10814
        %v10922 = vpop.f32.mrb[0].mxu0
        %v10923 = vpop.f32.mrb[0].mxu0
        %v10924 = vpop.f32.mrb[0].mxu0
        %v10925 = vpop.f32.mrb[0].mxu0
        %10926 = vmatprep.mubr.bf16.mxu0 0
        %10927 = vmatmul.mubr.bf16.gmra.mrb[0].mxu0 %v10817
        %v10928 = vpop.f32.mrb[0].mxu0
        %v10929 = vpop.f32.mrb[0].mxu0
        %v10930 = vpop.f32.mrb[0].mxu0
        %v10931 = vadd.f32 %v10698, %v10930
        %v10932 = vpop.f32.mrb[0].mxu0
        %10933 = vmatprep.mubr.bf16.mxu0 0
        %10934 = vmatmul.mubr.bf16.gmra.mrb[0].mxu0 %v10820
        %v10935 = vpop.f32.mrb[0].mxu0
        %v10936 = vpop.f32.mrb[0].mxu0
        %v10937 = vpop.f32.mrb[0].mxu0
        %v10938 = vpop.f32.mrb[0].mxu0
        %10939 = vmatprep.mubr.bf16.mxu0 0
        %10940 = vmatmul.mubr.bf16.gmra.mrb[0].mxu0 %v10823
        %v10941 = vpop.f32.mrb[0].mxu0
        %v10942 = vpop.f32.mrb[0].mxu0
        %v10943 = vpop.f32.mrb[0].mxu0
        %v10944 = vpop.f32.mrb[0].mxu0
        %10945 = vmatprep.mubr.bf16.mxu0 0
        %10946 = vmatmul.mubr.bf16.gmra.mrb[0].mxu0 %v10826
        %v10947 = vpop.f32.mrb[0].mxu0
        %v10948 = vadd.f32 %v10715, %v10947
        %v10949 = vpop.f32.mrb[0].mxu0
        %v10950 = vpop.f32.mrb[0].mxu0
        %v10951 = vpop.f32.mrb[0].mxu0
        %10952 = vmatprep.mubr.bf16.mxu0 0
        %10953 = vmatmul.mubr.bf16.gmra.mrb[0].mxu0 %v10829
        %v10954 = vpop.f32.mrb[0].mxu0
        %v10955 = vpop.f32.mrb[0].mxu0
        %v10956 = vpop.f32.mrb[0].mxu0
        %v10957 = vpop.f32.mrb[0].mxu0
        %10958 = vmatprep.mubr.bf16.mxu0 0
        %10959 = vmatmul.mubr.bf16.gmra.mrb[0].mxu0 %v10832
        %v10960 = vpop.f32.mrb[0].mxu0
        %v10961 = vpop.f32.mrb[0].mxu0
        %v10962 = vpop.f32.mrb[0].mxu0
        %v10963 = vadd.f32 %v10730, %v10962
        %v10964 = vpop.f32.mrb[0].mxu0
        %10965 = vmatprep.mubr.bf16.mxu0 0
        %10966 = vmatmul.mubr.bf16.gmra.mrb[0].mxu0 %v10835
        %v10967 = vpop.f32.mrb[0].mxu0
        %v10968 = vpop.f32.mrb[0].mxu0
        %v10969 = vpop.f32.mrb[0].mxu0
        %v10970 = vpop.f32.mrb[0].mxu0
        %10971 = vmatprep.mubr.bf16.mxu0 0
        %10972 = vmatmul.mubr.bf16.gmra.mrb[0].mxu0 %v10838
        %v10973 = vpop.f32.mrb[0].mxu0
        %v10974 = vpop.f32.mrb[0].mxu0
        %v10975 = vpop.f32.mrb[0].mxu0
        %v10976 = vpop.f32.mrb[0].mxu0
        %10977 = vmatprep.mubr.bf16.mxu0 0
        %10978 = vmatmul.mubr.bf16.gmra.mrb[0].mxu0 %v10841
        %v10979 = vpop.f32.mrb[0].mxu0
        %v10980 = vadd.f32 %v10747, %v10979
        %v10981 = vpop.f32.mrb[0].mxu0
        %v10982 = vpop.f32.mrb[0].mxu0
        %v10983 = vpop.f32.mrb[0].mxu0
        %10984 = vmatprep.mubr.bf16.mxu0 0
        %10985 = vmatmul.mubr.bf16.gmra.mrb[0].mxu0 %v10844
        %v10986 = vpop.f32.mrb[0].mxu0
        %v10987 = vpop.f32.mrb[0].mxu0
        %v10988 = vpop.f32.mrb[0].mxu0
        %v10989 = vpop.f32.mrb[0].mxu0
        %10990 = vmatprep.mubr.bf16.mxu0 0
        %10991 = vmatmul.mubr.bf16.gmra.mrb[0].mxu0 %v10847
        %v10992 = vpop.f32.mrb[0].mxu0
        %v10993 = vpop.f32.mrb[0].mxu0
        %v10994 = vpop.f32.mrb[0].mxu0
        %v10995 = vadd.f32 %v10762, %v10994
        %v10996 = vpop.f32.mrb[0].mxu0
        %10997 = vdwg.mxu0
        %v10998 = vpack.c.bf16 %v10293, %v10288
        %v10999 = vpack.c.bf16 %v10301, %v10296
        %v11000 = vpack.c.bf16 %v10309, %v10304
        %v11001 = vpack.c.bf16 %v10317, %v10312
        %v11002 = vpack.c.bf16 %v10325, %v10320
        %v11003 = vpack.c.bf16 %v10333, %v10328
        %v11004 = vpack.c.bf16 %v10341, %v10336
        %v11005 = vpack.c.bf16 %v10349, %v10344
        %v11006 = vpack.c.bf16 %v10357, %v10352
        %v11007 = vpack.c.bf16 %v10365, %v10360
        %v11008 = vpack.c.bf16 %v10373, %v10368
        %v11009 = vpack.c.bf16 %v10381, %v10376
        %v11010 = vpack.c.bf16 %v10389, %v10384
        %v11011 = vpack.c.bf16 %v10397, %v10392
        %v11012 = vpack.c.bf16 %v10405, %v10400
        %v11013 = vpack.c.bf16 %v10413, %v10408
        %v11014 = vpack.c.bf16 %v10421, %v10416
        %v11015 = vpack.c.bf16 %v10429, %v10424
        %s11016 = scalar_lea.vmem %s6, 80
        %v11017 = vld [vmem:[%s11016] sm:$0xf]
        %v11018 = vld [vmem:[%s11016 + $0x4] sm:$0xf]
        %v11019 = vld [vmem:[%s11016 + $0x8] sm:$0xf]
        %v11020 = vld [vmem:[%s11016 + $0xc] sm:$0xf]
        %v11021 = vld [vmem:[%s11016 + $0x10] sm:$0xf]
        %v11022 = vld [vmem:[%s11016 + $0x14] sm:$0xf]
        %v11023 = vld [vmem:[%s11016 + $0x18] sm:$0xf]
        %v11024 = vld [vmem:[%s11016 + $0x1c] sm:$0xf]
        %v11025 = vld [vmem:[%s11016 + $0x20] sm:$0xf]
        %v11026 = vld [vmem:[%s11016 + $0x24] sm:$0xf]
        %v11037 = vunpack.c.l.b16 %v11017
        %v11038 = vunpack.c.l.b16 %v11018
        %v11039 = vunpack.c.l.b16 %v11019
        %v11040 = vunpack.c.l.b16 %v11020
        %v11041 = vunpack.c.l.b16 %v11021
        %v11042 = vunpack.c.l.b16 %v11022
        %v11043 = vunpack.c.l.b16 %v11023
        %v11044 = vunpack.c.l.b16 %v11024
        %v11045 = vunpack.c.l.b16 %v11025
        %v11046 = vunpack.c.l.b16 %v11026
        %v11047 = vpack.c.b16 %v11038, %v11037
        %v11048 = vpack.c.b16 %v11040, %v11039
        %v11049 = vpack.c.b16 %v11042, %v11041
        %v11050 = vpack.c.b16 %v11044, %v11043
        %v11051 = vpack.c.b16 %v11046, %v11045
        %v11058 = vsel %vm10561, %v10998, 0
        %v11061 = vsel %vm10561, %v10999, 0
        %v11064 = vsel %vm10561, %v11000, 0
        %v11067 = vsel %vm10561, %v11001, 0
        %v11070 = vsel %vm10561, %v11002, 0
        %v11073 = vsel %vm10561, %v11003, 0
        %v11076 = vsel %vm10561, %v11004, 0
        %v11079 = vsel %vm10561, %v11005, 0
        %v11082 = vsel %vm10561, %v11006, 0
        %v11085 = vsel %vm10561, %v11007, 0
        %v11088 = vsel %vm10561, %v11008, 0
        %v11091 = vsel %vm10561, %v11009, 0
        %v11094 = vsel %vm10561, %v11010, 0
        %v11097 = vsel %vm10561, %v11011, 0
        %v11100 = vsel %vm10561, %v11012, 0
        %v11103 = vsel %vm10561, %v11013, 0
        %v11106 = vsel %vm10561, %v11014, 0
        %v11109 = vsel %vm10561, %v11015, 0
        %11111 = vmatprep.subr.bf16.mxu0 0
        %11112 = vmatpush1.bf16.msra.mxu0 %v11047
        %11113 = vmatprep.subr.bf16.mxu0 0
        %11114 = vmatpush1.bf16.msra.mxu0 %v11048
        %11115 = vmatprep.subr.bf16.mxu0 0
        %11116 = vmatpush1.bf16.msra.mxu0 %v11049
        %11117 = vmatprep.subr.bf16.mxu0 0
        %11118 = vmatpush1.bf16.msra.mxu0 %v11050
        %11119 = vmatprep.subr.bf16.mxu0 0
        %11120 = vmatpush1.bf16.msra.mxu0 %v11051
        %11121 = vmatprep.subr.bf16.mxu0 0
        %11122 = vmatpush1.bf16.msra.mxu0 0
        %11123 = vmatprep.subr.bf16.mxu0 0
        %11124 = vmatpush1.bf16.msra.mxu0 0
        %11125 = vmatprep.subr.bf16.mxu0 0
        %11126 = vmatpush1.bf16.msra.mxu0 0
        %11127 = vmatprep.subr.bf16.mxu0 0
        %11128 = vmatpush1.bf16.msra.mxu0 0
        %11129 = vmatprep.subr.bf16.mxu0 0
        %11130 = vmatpush1.bf16.msra.mxu0 0
        %11131 = vmatprep.subr.bf16.mxu0 0
        %11132 = vmatpush1.bf16.msra.mxu0 0
        %11133 = vmatprep.subr.bf16.mxu0 0
        %11134 = vmatpush1.bf16.msra.mxu0 0
        %11135 = vmatprep.subr.bf16.mxu0 0
        %11136 = vmatpush1.bf16.msra.mxu0 0
        %11137 = vmatprep.subr.bf16.mxu0 0
        %11138 = vmatpush1.bf16.msra.mxu0 0
        %11139 = vmatprep.subr.bf16.mxu0 0
        %11140 = vmatpush1.bf16.msra.mxu0 0
        %11141 = vmatprep.subr.bf16.mxu0 0
        %11142 = vmatpush1.bf16.msra.mxu0 0
        %11143 = vmatprep.mubr.bf16.mxu0 0
        %11144 = vmatmul.mubr.bf16.gmra.mrb[0].mxu0 %v11058
        %v11145 = vpop.f32.mrb[0].mxu0
        %v11146 = vadd.f32 0.0, %v11145
        %v11147 = vpop.f32.mrb[0].mxu0
        %v11148 = vpop.f32.mrb[0].mxu0
        %v11149 = vpop.f32.mrb[0].mxu0
        %11150 = vmatprep.mubr.bf16.mxu0 0
        %11151 = vmatmul.mubr.bf16.gmra.mrb[0].mxu0 %v11061
        %v11152 = vpop.f32.mrb[0].mxu0
        %v11153 = vpop.f32.mrb[0].mxu0
        %v11154 = vpop.f32.mrb[0].mxu0
        %v11155 = vpop.f32.mrb[0].mxu0
        %11156 = vmatprep.mubr.bf16.mxu0 0
        %11157 = vmatmul.mubr.bf16.gmra.mrb[0].mxu0 %v11064
        %v11158 = vpop.f32.mrb[0].mxu0
        %v11159 = vpop.f32.mrb[0].mxu0
        %v11160 = vpop.f32.mrb[0].mxu0
        %v11161 = vadd.f32 0.0, %v11160
        %v11162 = vpop.f32.mrb[0].mxu0
        %11163 = vmatprep.mubr.bf16.mxu0 0
        %11164 = vmatmul.mubr.bf16.gmra.mrb[0].mxu0 %v11067
        %v11165 = vpop.f32.mrb[0].mxu0
        %v11166 = vpop.f32.mrb[0].mxu0
        %v11167 = vpop.f32.mrb[0].mxu0
        %v11168 = vpop.f32.mrb[0].mxu0
        %11169 = vmatprep.mubr.bf16.mxu0 0
        %11170 = vmatmul.mubr.bf16.gmra.mrb[0].mxu0 %v11070
        %v11171 = vpop.f32.mrb[0].mxu0
        %v11172 = vpop.f32.mrb[0].mxu0
        %v11173 = vpop.f32.mrb[0].mxu0
        %v11174 = vpop.f32.mrb[0].mxu0
        %11175 = vmatprep.mubr.bf16.mxu0 0
        %11176 = vmatmul.mubr.bf16.gmra.mrb[0].mxu0 %v11073
        %v11177 = vpop.f32.mrb[0].mxu0
        %v11178 = vadd.f32 0.0, %v11177
        %v11179 = vpop.f32.mrb[0].mxu0
        %v11180 = vpop.f32.mrb[0].mxu0
        %v11181 = vpop.f32.mrb[0].mxu0
        %11182 = vmatprep.mubr.bf16.mxu0 0
        %11183 = vmatmul.mubr.bf16.gmra.mrb[0].mxu0 %v11076
        %v11184 = vpop.f32.mrb[0].mxu0
        %v11185 = vpop.f32.mrb[0].mxu0
        %v11186 = vpop.f32.mrb[0].mxu0
        %v11187 = vpop.f32.mrb[0].mxu0
        %11188 = vmatprep.mubr.bf16.mxu0 0
        %11189 = vmatmul.mubr.bf16.gmra.mrb[0].mxu0 %v11079
        %v11190 = vpop.f32.mrb[0].mxu0
        %v11191 = vpop.f32.mrb[0].mxu0
        %v11192 = vpop.f32.mrb[0].mxu0
        %v11193 = vadd.f32 0.0, %v11192
        %v11194 = vpop.f32.mrb[0].mxu0
        %11195 = vmatprep.mubr.bf16.mxu0 0
        %11196 = vmatmul.mubr.bf16.gmra.mrb[0].mxu0 %v11082
        %v11197 = vpop.f32.mrb[0].mxu0
        %v11198 = vpop.f32.mrb[0].mxu0
        %v11199 = vpop.f32.mrb[0].mxu0
        %v11200 = vpop.f32.mrb[0].mxu0
        %11201 = vmatprep.mubr.bf16.mxu0 0
        %11202 = vmatmul.mubr.bf16.gmra.mrb[0].mxu0 %v11085
        %v11203 = vpop.f32.mrb[0].mxu0
        %v11204 = vpop.f32.mrb[0].mxu0
        %v11205 = vpop.f32.mrb[0].mxu0
        %v11206 = vpop.f32.mrb[0].mxu0
        %11207 = vmatprep.mubr.bf16.mxu0 0
        %11208 = vmatmul.mubr.bf16.gmra.mrb[0].mxu0 %v11088
        %v11209 = vpop.f32.mrb[0].mxu0
        %v11210 = vadd.f32 0.0, %v11209
        %v11211 = vpop.f32.mrb[0].mxu0
        %v11212 = vpop.f32.mrb[0].mxu0
        %v11213 = vpop.f32.mrb[0].mxu0
        %11214 = vmatprep.mubr.bf16.mxu0 0
        %11215 = vmatmul.mubr.bf16.gmra.mrb[0].mxu0 %v11091
        %v11216 = vpop.f32.mrb[0].mxu0
        %v11217 = vpop.f32.mrb[0].mxu0
        %v11218 = vpop.f32.mrb[0].mxu0
        %v11219 = vpop.f32.mrb[0].mxu0
        %11220 = vmatprep.mubr.bf16.mxu0 0
        %11221 = vmatmul.mubr.bf16.gmra.mrb[0].mxu0 %v11094
        %v11222 = vpop.f32.mrb[0].mxu0
        %v11223 = vpop.f32.mrb[0].mxu0
        %v11224 = vpop.f32.mrb[0].mxu0
        %v11225 = vadd.f32 0.0, %v11224
        %v11226 = vpop.f32.mrb[0].mxu0
        %11227 = vmatprep.mubr.bf16.mxu0 0
        %11228 = vmatmul.mubr.bf16.gmra.mrb[0].mxu0 %v11097
        %v11229 = vpop.f32.mrb[0].mxu0
        %v11230 = vpop.f32.mrb[0].mxu0
        %v11231 = vpop.f32.mrb[0].mxu0
        %v11232 = vpop.f32.mrb[0].mxu0
        %11233 = vmatprep.mubr.bf16.mxu0 0
        %11234 = vmatmul.mubr.bf16.gmra.mrb[0].mxu0 %v11100
        %v11235 = vpop.f32.mrb[0].mxu0
        %v11236 = vpop.f32.mrb[0].mxu0
        %v11237 = vpop.f32.mrb[0].mxu0
        %v11238 = vpop.f32.mrb[0].mxu0
        %11239 = vmatprep.mubr.bf16.mxu0 0
        %11240 = vmatmul.mubr.bf16.gmra.mrb[0].mxu0 %v11103
        %v11241 = vpop.f32.mrb[0].mxu0
        %v11242 = vadd.f32 0.0, %v11241
        %v11243 = vpop.f32.mrb[0].mxu0
        %v11244 = vpop.f32.mrb[0].mxu0
        %v11245 = vpop.f32.mrb[0].mxu0
        %11246 = vmatprep.mubr.bf16.mxu0 0
        %11247 = vmatmul.mubr.bf16.gmra.mrb[0].mxu0 %v11106
        %v11248 = vpop.f32.mrb[0].mxu0
        %v11249 = vpop.f32.mrb[0].mxu0
        %v11250 = vpop.f32.mrb[0].mxu0
        %v11251 = vpop.f32.mrb[0].mxu0
        %11252 = vmatprep.mubr.bf16.mxu0 0
        %11253 = vmatmul.mubr.bf16.gmra.mrb[0].mxu0 %v11109
        %v11254 = vpop.f32.mrb[0].mxu0
        %v11255 = vpop.f32.mrb[0].mxu0
        %v11256 = vpop.f32.mrb[0].mxu0
        %v11257 = vadd.f32 0.0, %v11256
        %v11258 = vpop.f32.mrb[0].mxu0
        %11259 = vdwg.mxu0
        %v11260 = vadd.f32 %v10884, %v11146
        %v11261 = vadd.f32 %v10899, %v11161
        %v11262 = vadd.f32 %v10916, %v11178
        %v11263 = vadd.f32 %v10931, %v11193
        %v11264 = vadd.f32 %v10948, %v11210
        %v11265 = vadd.f32 %v10963, %v11225
        %v11266 = vadd.f32 %v10980, %v11242
        %v11267 = vadd.f32 %v10995, %v11257
        %v11268 = vpack.c.bf16 %v10432, %v10432
        %s11269 = scalar_lea.vmem %s6, 120
        %v11270 = vld [vmem:[%s11269] sm:$0xf]
        %v11271 = vld [vmem:[%s11269 + $0x4] sm:$0xf]
        %v11272 = vld [vmem:[%s11269 + $0x8] sm:$0xf]
        %v11273 = vld [vmem:[%s11269 + $0xc] sm:$0xf]
        %v11274 = vld [vmem:[%s11269 + $0x10] sm:$0xf]
        %v11275 = vld [vmem:[%s11269 + $0x14] sm:$0xf]
        %v11276 = vld [vmem:[%s11269 + $0x18] sm:$0xf]
        %v11277 = vld [vmem:[%s11269 + $0x1c] sm:$0xf]
        %v11278 = vld [vmem:[%s11269 + $0x20] sm:$0xf]
        %v11279 = vld [vmem:[%s11269 + $0x24] sm:$0xf]
        %v11299 = vrot.slane %v10998, 2
        %v11300 = vrot.slane %v10999, 2
        %v11301 = vsel %vm5408, %v11299, %v11300
        %v11302 = vrot.slane %v11000, 2
        %v11303 = vsel %vm5408, %v11300, %v11302
        %v11304 = vrot.slane %v11001, 2
        %v11305 = vsel %vm5408, %v11302, %v11304
        %v11306 = vrot.slane %v11002, 2
        %v11307 = vsel %vm5408, %v11304, %v11306
        %v11308 = vrot.slane %v11003, 2
        %v11309 = vsel %vm5408, %v11306, %v11308
        %v11310 = vrot.slane %v11004, 2
        %v11311 = vsel %vm5408, %v11308, %v11310
        %v11312 = vrot.slane %v11005, 2
        %v11313 = vsel %vm5408, %v11310, %v11312
        %v11314 = vrot.slane %v11006, 2
        %v11315 = vsel %vm5408, %v11312, %v11314
        %v11316 = vrot.slane %v11007, 2
        %v11317 = vsel %vm5408, %v11314, %v11316
        %v11318 = vrot.slane %v11008, 2
        %v11319 = vsel %vm5408, %v11316, %v11318
        %v11320 = vrot.slane %v11009, 2
        %v11321 = vsel %vm5408, %v11318, %v11320
        %v11322 = vrot.slane %v11010, 2
        %v11323 = vsel %vm5408, %v11320, %v11322
        %v11324 = vrot.slane %v11011, 2
        %v11325 = vsel %vm5408, %v11322, %v11324
        %v11326 = vrot.slane %v11012, 2
        %v11327 = vsel %vm5408, %v11324, %v11326
        %v11328 = vrot.slane %v11013, 2
        %v11329 = vsel %vm5408, %v11326, %v11328
        %v11330 = vrot.slane %v11014, 2
        %v11331 = vsel %vm5408, %v11328, %v11330
        %v11332 = vrot.slane %v11015, 2
        %v11333 = vsel %vm5408, %v11330, %v11332
        %v11334 = vrot.slane %v11268, 2
        %v11335 = vsel %vm5408, %v11332, %v11334
        %v11346 = vunpack.c.l.b16 %v11270
        %v11347 = vunpack.c.l.b16 %v11271
        %v11348 = vunpack.c.l.b16 %v11272
        %v11349 = vunpack.c.l.b16 %v11273
        %v11350 = vunpack.c.l.b16 %v11274
        %v11351 = vunpack.c.l.b16 %v11275
        %v11352 = vunpack.c.l.b16 %v11276
        %v11353 = vunpack.c.l.b16 %v11277
        %v11354 = vunpack.c.l.b16 %v11278
        %v11355 = vunpack.c.l.b16 %v11279
        %v11356 = vpack.c.b16 %v11347, %v11346
        %v11357 = vpack.c.b16 %v11349, %v11348
        %v11358 = vpack.c.b16 %v11351, %v11350
        %v11359 = vpack.c.b16 %v11353, %v11352
        %v11360 = vpack.c.b16 %v11355, %v11354
        %v11367 = vsel %vm10561, %v11301, 0
        %v11370 = vsel %vm10561, %v11303, 0
        %v11373 = vsel %vm10561, %v11305, 0
        %v11376 = vsel %vm10561, %v11307, 0
        %v11379 = vsel %vm10561, %v11309, 0
        %v11382 = vsel %vm10561, %v11311, 0
        %v11385 = vsel %vm10561, %v11313, 0
        %v11388 = vsel %vm10561, %v11315, 0
        %v11391 = vsel %vm10561, %v11317, 0
        %v11394 = vsel %vm10561, %v11319, 0
        %v11397 = vsel %vm10561, %v11321, 0
        %v11400 = vsel %vm10561, %v11323, 0
        %v11403 = vsel %vm10561, %v11325, 0
        %v11406 = vsel %vm10561, %v11327, 0
        %v11409 = vsel %vm10561, %v11329, 0
        %v11412 = vsel %vm10561, %v11331, 0
        %v11415 = vsel %vm10561, %v11333, 0
        %v11418 = vsel %vm10561, %v11335, 0
        %11420 = vmatprep.subr.bf16.mxu0 0
        %11421 = vmatpush1.bf16.msra.mxu0 %v11356
        %11422 = vmatprep.subr.bf16.mxu0 0
        %11423 = vmatpush1.bf16.msra.mxu0 %v11357
        %11424 = vmatprep.subr.bf16.mxu0 0
        %11425 = vmatpush1.bf16.msra.mxu0 %v11358
        %11426 = vmatprep.subr.bf16.mxu0 0
        %11427 = vmatpush1.bf16.msra.mxu0 %v11359
        %11428 = vmatprep.subr.bf16.mxu0 0
        %11429 = vmatpush1.bf16.msra.mxu0 %v11360
        %11430 = vmatprep.subr.bf16.mxu0 0
        %11431 = vmatpush1.bf16.msra.mxu0 0
        %11432 = vmatprep.subr.bf16.mxu0 0
        %11433 = vmatpush1.bf16.msra.mxu0 0
        %11434 = vmatprep.subr.bf16.mxu0 0
        %11435 = vmatpush1.bf16.msra.mxu0 0
        %11436 = vmatprep.subr.bf16.mxu0 0
        %11437 = vmatpush1.bf16.msra.mxu0 0
        %11438 = vmatprep.subr.bf16.mxu0 0
        %11439 = vmatpush1.bf16.msra.mxu0 0
        %11440 = vmatprep.subr.bf16.mxu0 0
        %11441 = vmatpush1.bf16.msra.mxu0 0
        %11442 = vmatprep.subr.bf16.mxu0 0
        %11443 = vmatpush1.bf16.msra.mxu0 0
        %11444 = vmatprep.subr.bf16.mxu0 0
        %11445 = vmatpush1.bf16.msra.mxu0 0
        %11446 = vmatprep.subr.bf16.mxu0 0
        %11447 = vmatpush1.bf16.msra.mxu0 0
        %11448 = vmatprep.subr.bf16.mxu0 0
        %11449 = vmatpush1.bf16.msra.mxu0 0
        %11450 = vmatprep.subr.bf16.mxu0 0
        %11451 = vmatpush1.bf16.msra.mxu0 0
        %11452 = vmatprep.mubr.bf16.mxu0 0
        %11453 = vmatmul.mubr.bf16.gmra.mrb[0].mxu0 %v11367
        %v11454 = vpop.f32.mrb[0].mxu0
        %v11455 = vadd.f32 0.0, %v11454
        %v11456 = vpop.f32.mrb[0].mxu0
        %v11457 = vpop.f32.mrb[0].mxu0
        %v11458 = vpop.f32.mrb[0].mxu0
        %11459 = vmatprep.mubr.bf16.mxu0 0
        %11460 = vmatmul.mubr.bf16.gmra.mrb[0].mxu0 %v11370
        %v11461 = vpop.f32.mrb[0].mxu0
        %v11462 = vpop.f32.mrb[0].mxu0
        %v11463 = vpop.f32.mrb[0].mxu0
        %v11464 = vpop.f32.mrb[0].mxu0
        %11465 = vmatprep.mubr.bf16.mxu0 0
        %11466 = vmatmul.mubr.bf16.gmra.mrb[0].mxu0 %v11373
        %v11467 = vpop.f32.mrb[0].mxu0
        %v11468 = vpop.f32.mrb[0].mxu0
        %v11469 = vpop.f32.mrb[0].mxu0
        %v11470 = vadd.f32 0.0, %v11469
        %v11471 = vpop.f32.mrb[0].mxu0
        %11472 = vmatprep.mubr.bf16.mxu0 0
        %11473 = vmatmul.mubr.bf16.gmra.mrb[0].mxu0 %v11376
        %v11474 = vpop.f32.mrb[0].mxu0
        %v11475 = vpop.f32.mrb[0].mxu0
        %v11476 = vpop.f32.mrb[0].mxu0
        %v11477 = vpop.f32.mrb[0].mxu0
        %11478 = vmatprep.mubr.bf16.mxu0 0
        %11479 = vmatmul.mubr.bf16.gmra.mrb[0].mxu0 %v11379
        %v11480 = vpop.f32.mrb[0].mxu0
        %v11481 = vpop.f32.mrb[0].mxu0
        %v11482 = vpop.f32.mrb[0].mxu0
        %v11483 = vpop.f32.mrb[0].mxu0
        %11484 = vmatprep.mubr.bf16.mxu0 0
        %11485 = vmatmul.mubr.bf16.gmra.mrb[0].mxu0 %v11382
        %v11486 = vpop.f32.mrb[0].mxu0
        %v11487 = vadd.f32 0.0, %v11486
        %v11488 = vpop.f32.mrb[0].mxu0
        %v11489 = vpop.f32.mrb[0].mxu0
        %v11490 = vpop.f32.mrb[0].mxu0
        %11491 = vmatprep.mubr.bf16.mxu0 0
        %11492 = vmatmul.mubr.bf16.gmra.mrb[0].mxu0 %v11385
        %v11493 = vpop.f32.mrb[0].mxu0
        %v11494 = vpop.f32.mrb[0].mxu0
        %v11495 = vpop.f32.mrb[0].mxu0
        %v11496 = vpop.f32.mrb[0].mxu0
        %11497 = vmatprep.mubr.bf16.mxu0 0
        %11498 = vmatmul.mubr.bf16.gmra.mrb[0].mxu0 %v11388
        %v11499 = vpop.f32.mrb[0].mxu0
        %v11500 = vpop.f32.mrb[0].mxu0
        %v11501 = vpop.f32.mrb[0].mxu0
        %v11502 = vadd.f32 0.0, %v11501
        %v11503 = vpop.f32.mrb[0].mxu0
        %11504 = vmatprep.mubr.bf16.mxu0 0
        %11505 = vmatmul.mubr.bf16.gmra.mrb[0].mxu0 %v11391
        %v11506 = vpop.f32.mrb[0].mxu0
        %v11507 = vpop.f32.mrb[0].mxu0
        %v11508 = vpop.f32.mrb[0].mxu0
        %v11509 = vpop.f32.mrb[0].mxu0
        %11510 = vmatprep.mubr.bf16.mxu0 0
        %11511 = vmatmul.mubr.bf16.gmra.mrb[0].mxu0 %v11394
        %v11512 = vpop.f32.mrb[0].mxu0
        %v11513 = vpop.f32.mrb[0].mxu0
        %v11514 = vpop.f32.mrb[0].mxu0
        %v11515 = vpop.f32.mrb[0].mxu0
        %11516 = vmatprep.mubr.bf16.mxu0 0
        %11517 = vmatmul.mubr.bf16.gmra.mrb[0].mxu0 %v11397
        %v11518 = vpop.f32.mrb[0].mxu0
        %v11519 = vadd.f32 0.0, %v11518
        %v11520 = vpop.f32.mrb[0].mxu0
        %v11521 = vpop.f32.mrb[0].mxu0
        %v11522 = vpop.f32.mrb[0].mxu0
        %11523 = vmatprep.mubr.bf16.mxu0 0
        %11524 = vmatmul.mubr.bf16.gmra.mrb[0].mxu0 %v11400
        %v11525 = vpop.f32.mrb[0].mxu0
        %v11526 = vpop.f32.mrb[0].mxu0
        %v11527 = vpop.f32.mrb[0].mxu0
        %v11528 = vpop.f32.mrb[0].mxu0
        %11529 = vmatprep.mubr.bf16.mxu0 0
        %11530 = vmatmul.mubr.bf16.gmra.mrb[0].mxu0 %v11403
        %v11531 = vpop.f32.mrb[0].mxu0
        %v11532 = vpop.f32.mrb[0].mxu0
        %v11533 = vpop.f32.mrb[0].mxu0
        %v11534 = vadd.f32 0.0, %v11533
        %v11535 = vpop.f32.mrb[0].mxu0
        %11536 = vmatprep.mubr.bf16.mxu0 0
        %11537 = vmatmul.mubr.bf16.gmra.mrb[0].mxu0 %v11406
        %v11538 = vpop.f32.mrb[0].mxu0
        %v11539 = vpop.f32.mrb[0].mxu0
        %v11540 = vpop.f32.mrb[0].mxu0
        %v11541 = vpop.f32.mrb[0].mxu0
        %11542 = vmatprep.mubr.bf16.mxu0 0
        %11543 = vmatmul.mubr.bf16.gmra.mrb[0].mxu0 %v11409
        %v11544 = vpop.f32.mrb[0].mxu0
        %v11545 = vpop.f32.mrb[0].mxu0
        %v11546 = vpop.f32.mrb[0].mxu0
        %v11547 = vpop.f32.mrb[0].mxu0
        %11548 = vmatprep.mubr.bf16.mxu0 0
        %11549 = vmatmul.mubr.bf16.gmra.mrb[0].mxu0 %v11412
        %v11550 = vpop.f32.mrb[0].mxu0
        %v11551 = vadd.f32 0.0, %v11550
        %v11552 = vpop.f32.mrb[0].mxu0
        %v11553 = vpop.f32.mrb[0].mxu0
        %v11554 = vpop.f32.mrb[0].mxu0
        %11555 = vmatprep.mubr.bf16.mxu0 0
        %11556 = vmatmul.mubr.bf16.gmra.mrb[0].mxu0 %v11415
        %v11557 = vpop.f32.mrb[0].mxu0
        %v11558 = vpop.f32.mrb[0].mxu0
        %v11559 = vpop.f32.mrb[0].mxu0
        %v11560 = vpop.f32.mrb[0].mxu0
        %11561 = vmatprep.mubr.bf16.mxu0 0
        %11562 = vmatmul.mubr.bf16.gmra.mrb[0].mxu0 %v11418
        %v11563 = vpop.f32.mrb[0].mxu0
        %v11564 = vpop.f32.mrb[0].mxu0
        %v11565 = vpop.f32.mrb[0].mxu0
        %v11566 = vadd.f32 0.0, %v11565
        %v11567 = vpop.f32.mrb[0].mxu0
        %11568 = vdwg.mxu0
        %v11569 = vadd.f32 %v11260, %v11455
        %v11570 = vadd.f32 %v11261, %v11470
        %v11571 = vadd.f32 %v11262, %v11487
        %v11572 = vadd.f32 %v11263, %v11502
        %v11573 = vadd.f32 %v11264, %v11519
        %v11574 = vadd.f32 %v11265, %v11534
        %v11575 = vadd.f32 %v11266, %v11551
        %v11576 = vadd.f32 %v11267, %v11566
        %v11577 = vpack.c.bf16 %v10432, %v10429
        %s11578 = scalar_lea.vmem %s6, 160
        %v11579 = vld [vmem:[%s11578] sm:$0xf]
        %v11580 = vld [vmem:[%s11578 + $0x4] sm:$0xf]
        %v11581 = vld [vmem:[%s11578 + $0x8] sm:$0xf]
        %v11582 = vld [vmem:[%s11578 + $0xc] sm:$0xf]
        %v11583 = vld [vmem:[%s11578 + $0x10] sm:$0xf]
        %v11584 = vld [vmem:[%s11578 + $0x14] sm:$0xf]
        %v11585 = vld [vmem:[%s11578 + $0x18] sm:$0xf]
        %v11586 = vld [vmem:[%s11578 + $0x1c] sm:$0xf]
        %v11587 = vld [vmem:[%s11578 + $0x20] sm:$0xf]
        %v11588 = vld [vmem:[%s11578 + $0x24] sm:$0xf]
        %v11599 = vunpack.c.l.b16 %v11579
        %v11600 = vunpack.c.l.b16 %v11580
        %v11601 = vunpack.c.l.b16 %v11581
        %v11602 = vunpack.c.l.b16 %v11582
        %v11603 = vunpack.c.l.b16 %v11583
        %v11604 = vunpack.c.l.b16 %v11584
        %v11605 = vunpack.c.l.b16 %v11585
        %v11606 = vunpack.c.l.b16 %v11586
        %v11607 = vunpack.c.l.b16 %v11587
        %v11608 = vunpack.c.l.b16 %v11588
        %v11609 = vpack.c.b16 %v11600, %v11599
        %v11610 = vpack.c.b16 %v11602, %v11601
        %v11611 = vpack.c.b16 %v11604, %v11603
        %v11612 = vpack.c.b16 %v11606, %v11605
        %v11613 = vpack.c.b16 %v11608, %v11607
        %v11620 = vsel %vm10561, %v11577, 0
        %11622 = vmatprep.subr.bf16.mxu0 0
        %11623 = vmatpush1.bf16.msra.mxu0 %v11609
        %11624 = vmatprep.subr.bf16.mxu0 0
        %11625 = vmatpush1.bf16.msra.mxu0 %v11610
        %11626 = vmatprep.subr.bf16.mxu0 0
        %11627 = vmatpush1.bf16.msra.mxu0 %v11611
        %11628 = vmatprep.subr.bf16.mxu0 0
        %11629 = vmatpush1.bf16.msra.mxu0 %v11612
        %11630 = vmatprep.subr.bf16.mxu0 0
        %11631 = vmatpush1.bf16.msra.mxu0 %v11613
        %11632 = vmatprep.subr.bf16.mxu0 0
        %11633 = vmatpush1.bf16.msra.mxu0 0
        %11634 = vmatprep.subr.bf16.mxu0 0
        %11635 = vmatpush1.bf16.msra.mxu0 0
        %11636 = vmatprep.subr.bf16.mxu0 0
        %11637 = vmatpush1.bf16.msra.mxu0 0
        %11638 = vmatprep.subr.bf16.mxu0 0
        %11639 = vmatpush1.bf16.msra.mxu0 0
        %11640 = vmatprep.subr.bf16.mxu0 0
        %11641 = vmatpush1.bf16.msra.mxu0 0
        %11642 = vmatprep.subr.bf16.mxu0 0
        %11643 = vmatpush1.bf16.msra.mxu0 0
        %11644 = vmatprep.subr.bf16.mxu0 0
        %11645 = vmatpush1.bf16.msra.mxu0 0
        %11646 = vmatprep.subr.bf16.mxu0 0
        %11647 = vmatpush1.bf16.msra.mxu0 0
        %11648 = vmatprep.subr.bf16.mxu0 0
        %11649 = vmatpush1.bf16.msra.mxu0 0
        %11650 = vmatprep.subr.bf16.mxu0 0
        %11651 = vmatpush1.bf16.msra.mxu0 0
        %11652 = vmatprep.subr.bf16.mxu0 0
        %11653 = vmatpush1.bf16.msra.mxu0 0
        %11654 = vmatprep.mubr.bf16.mxu0 0
        %11655 = vmatmul.mubr.bf16.gmra.mrb[0].mxu0 %v10799
        %v11656 = vpop.f32.mrb[0].mxu0
        %v11657 = vadd.f32 0.0, %v11656
        %v11658 = vpop.f32.mrb[0].mxu0
        %v11659 = vpop.f32.mrb[0].mxu0
        %v11660 = vpop.f32.mrb[0].mxu0
        %11661 = vmatprep.mubr.bf16.mxu0 0
        %11662 = vmatmul.mubr.bf16.gmra.mrb[0].mxu0 %v10802
        %v11663 = vpop.f32.mrb[0].mxu0
        %v11664 = vpop.f32.mrb[0].mxu0
        %v11665 = vpop.f32.mrb[0].mxu0
        %v11666 = vpop.f32.mrb[0].mxu0
        %11667 = vmatprep.mubr.bf16.mxu0 0
        %11668 = vmatmul.mubr.bf16.gmra.mrb[0].mxu0 %v10805
        %v11669 = vpop.f32.mrb[0].mxu0
        %v11670 = vpop.f32.mrb[0].mxu0
        %v11671 = vpop.f32.mrb[0].mxu0
        %v11672 = vadd.f32 0.0, %v11671
        %v11673 = vpop.f32.mrb[0].mxu0
        %11674 = vmatprep.mubr.bf16.mxu0 0
        %11675 = vmatmul.mubr.bf16.gmra.mrb[0].mxu0 %v10808
        %v11676 = vpop.f32.mrb[0].mxu0
        %v11677 = vpop.f32.mrb[0].mxu0
        %v11678 = vpop.f32.mrb[0].mxu0
        %v11679 = vpop.f32.mrb[0].mxu0
        %11680 = vmatprep.mubr.bf16.mxu0 0
        %11681 = vmatmul.mubr.bf16.gmra.mrb[0].mxu0 %v10811
        %v11682 = vpop.f32.mrb[0].mxu0
        %v11683 = vpop.f32.mrb[0].mxu0
        %v11684 = vpop.f32.mrb[0].mxu0
        %v11685 = vpop.f32.mrb[0].mxu0
        %11686 = vmatprep.mubr.bf16.mxu0 0
        %11687 = vmatmul.mubr.bf16.gmra.mrb[0].mxu0 %v10814
        %v11688 = vpop.f32.mrb[0].mxu0
        %v11689 = vadd.f32 0.0, %v11688
        %v11690 = vpop.f32.mrb[0].mxu0
        %v11691 = vpop.f32.mrb[0].mxu0
        %v11692 = vpop.f32.mrb[0].mxu0
        %11693 = vmatprep.mubr.bf16.mxu0 0
        %11694 = vmatmul.mubr.bf16.gmra.mrb[0].mxu0 %v10817
        %v11695 = vpop.f32.mrb[0].mxu0
        %v11696 = vpop.f32.mrb[0].mxu0
        %v11697 = vpop.f32.mrb[0].mxu0
        %v11698 = vpop.f32.mrb[0].mxu0
        %11699 = vmatprep.mubr.bf16.mxu0 0
        %11700 = vmatmul.mubr.bf16.gmra.mrb[0].mxu0 %v10820
        %v11701 = vpop.f32.mrb[0].mxu0
        %v11702 = vpop.f32.mrb[0].mxu0
        %v11703 = vpop.f32.mrb[0].mxu0
        %v11704 = vadd.f32 0.0, %v11703
        %v11705 = vpop.f32.mrb[0].mxu0
        %11706 = vmatprep.mubr.bf16.mxu0 0
        %11707 = vmatmul.mubr.bf16.gmra.mrb[0].mxu0 %v10823
        %v11708 = vpop.f32.mrb[0].mxu0
        %v11709 = vpop.f32.mrb[0].mxu0
        %v11710 = vpop.f32.mrb[0].mxu0
        %v11711 = vpop.f32.mrb[0].mxu0
        %11712 = vmatprep.mubr.bf16.mxu0 0
        %11713 = vmatmul.mubr.bf16.gmra.mrb[0].mxu0 %v10826
        %v11714 = vpop.f32.mrb[0].mxu0
        %v11715 = vpop.f32.mrb[0].mxu0
        %v11716 = vpop.f32.mrb[0].mxu0
        %v11717 = vpop.f32.mrb[0].mxu0
        %11718 = vmatprep.mubr.bf16.mxu0 0
        %11719 = vmatmul.mubr.bf16.gmra.mrb[0].mxu0 %v10829
        %v11720 = vpop.f32.mrb[0].mxu0
        %v11721 = vadd.f32 0.0, %v11720
        %v11722 = vpop.f32.mrb[0].mxu0
        %v11723 = vpop.f32.mrb[0].mxu0
        %v11724 = vpop.f32.mrb[0].mxu0
        %11725 = vmatprep.mubr.bf16.mxu0 0
        %11726 = vmatmul.mubr.bf16.gmra.mrb[0].mxu0 %v10832
        %v11727 = vpop.f32.mrb[0].mxu0
        %v11728 = vpop.f32.mrb[0].mxu0
        %v11729 = vpop.f32.mrb[0].mxu0
        %v11730 = vpop.f32.mrb[0].mxu0
        %11731 = vmatprep.mubr.bf16.mxu0 0
        %11732 = vmatmul.mubr.bf16.gmra.mrb[0].mxu0 %v10835
        %v11733 = vpop.f32.mrb[0].mxu0
        %v11734 = vpop.f32.mrb[0].mxu0
        %v11735 = vpop.f32.mrb[0].mxu0
        %v11736 = vadd.f32 0.0, %v11735
        %v11737 = vpop.f32.mrb[0].mxu0
        %11738 = vmatprep.mubr.bf16.mxu0 0
        %11739 = vmatmul.mubr.bf16.gmra.mrb[0].mxu0 %v10838
        %v11740 = vpop.f32.mrb[0].mxu0
        %v11741 = vpop.f32.mrb[0].mxu0
        %v11742 = vpop.f32.mrb[0].mxu0
        %v11743 = vpop.f32.mrb[0].mxu0
        %11744 = vmatprep.mubr.bf16.mxu0 0
        %11745 = vmatmul.mubr.bf16.gmra.mrb[0].mxu0 %v10841
        %v11746 = vpop.f32.mrb[0].mxu0
        %v11747 = vpop.f32.mrb[0].mxu0
        %v11748 = vpop.f32.mrb[0].mxu0
        %v11749 = vpop.f32.mrb[0].mxu0
        %11750 = vmatprep.mubr.bf16.mxu0 0
        %11751 = vmatmul.mubr.bf16.gmra.mrb[0].mxu0 %v10844
        %v11752 = vpop.f32.mrb[0].mxu0
        %v11753 = vadd.f32 0.0, %v11752
        %v11754 = vpop.f32.mrb[0].mxu0
        %v11755 = vpop.f32.mrb[0].mxu0
        %v11756 = vpop.f32.mrb[0].mxu0
        %11757 = vmatprep.mubr.bf16.mxu0 0
        %11758 = vmatmul.mubr.bf16.gmra.mrb[0].mxu0 %v10847
        %v11759 = vpop.f32.mrb[0].mxu0
        %v11760 = vpop.f32.mrb[0].mxu0
        %v11761 = vpop.f32.mrb[0].mxu0
        %v11762 = vpop.f32.mrb[0].mxu0
        %11763 = vmatprep.mubr.bf16.mxu0 0
        %11764 = vmatmul.mubr.bf16.gmra.mrb[0].mxu0 %v11620
        %v11765 = vpop.f32.mrb[0].mxu0
        %v11766 = vpop.f32.mrb[0].mxu0
        %v11767 = vpop.f32.mrb[0].mxu0
        %v11768 = vadd.f32 0.0, %v11767
        %v11769 = vpop.f32.mrb[0].mxu0
        %11770 = vdwg.mxu0
        %v11771 = vadd.f32 %v11569, %v11657
        %v11772 = vadd.f32 %v11570, %v11672
        %v11773 = vadd.f32 %v11571, %v11689
        %v11774 = vadd.f32 %v11572, %v11704
        %v11775 = vadd.f32 %v11573, %v11721
        %v11776 = vadd.f32 %v11574, %v11736
        %v11777 = vadd.f32 %v11575, %v11753
        %v11778 = vadd.f32 %v11576, %v11768
        %vm11779 = vcmask 974848
        %11780 = vst.msk [vmem:[#allocation3] sm:$0x1] %vm11779, %v11771
        %11781 = vst.msk [vmem:[#allocation3 + $0x1] sm:$0x1] %vm11779, %v11772
        %11782 = vst.msk [vmem:[#allocation3 + $0x2] sm:$0x1] %vm11779, %v11773
        %11783 = vst.msk [vmem:[#allocation3 + $0x3] sm:$0x1] %vm11779, %v11774
        %11784 = vst.msk [vmem:[#allocation3 + $0x4] sm:$0x1] %vm11779, %v11775
        %11785 = vst.msk [vmem:[#allocation3 + $0x5] sm:$0x1] %vm11779, %v11776
        %11786 = vst.msk [vmem:[#allocation3 + $0x6] sm:$0x1] %vm11779, %v11777
        %11787 = vst.msk [vmem:[#allocation3 + $0x7] sm:$0x1] %vm11779, %v11778
        %v11788 = vld [vmem:[#allocation3] sm:$0xff]
        %v11789 = vld [vmem:[%s7] sm:$0x1]
        %v11791 = vlaneseq
        %v11792 = vshrl.u32 %v11791, 7
        %v11793 = vsub.s32 0, %v11792
        %v11794 = vrot.slane %v11789, %v11793
        %v11796 = vadd.f32 %v11788, %v11794
        %v11797 = vtanh.pop %v11796
        %v11798 = vpack.c.bf16 %v11797, %v11797
        %v11799 = vld [vmem:[%s8] sm:$0xf]
        %v11800 = vld [vmem:[%s8 + $0x4] sm:$0xf]
        %v11801 = vld [vmem:[%s8 + $0x8] sm:$0xf]
        %v11802 = vld [vmem:[%s8 + $0xc] sm:$0xf]
        %v11803 = vld [vmem:[%s8 + $0x10] sm:$0xf]
        %v11804 = vld [vmem:[%s8 + $0x14] sm:$0xf]
        %v11805 = vld [vmem:[%s8 + $0x18] sm:$0xf]
        %v11806 = vld [vmem:[%s8 + $0x1c] sm:$0xf]
        %v11807 = vld [vmem:[%s8 + $0x20] sm:$0xf]
        %v11808 = vld [vmem:[%s8 + $0x24] sm:$0xf]
        %v11809 = vld [vmem:[%s8 + $0x28] sm:$0xf]
        %v11810 = vld [vmem:[%s8 + $0x2c] sm:$0xf]
        %v11811 = vld [vmem:[%s8 + $0x30] sm:$0xf]
        %v11812 = vld [vmem:[%s8 + $0x34] sm:$0xf]
        %v11813 = vld [vmem:[%s8 + $0x38] sm:$0xf]
        %v11814 = vld [vmem:[%s9] sm:$0x1]
        %v11816 = vlaneseq
        %v11817 = vshrl.u32 %v11816, 7
        %v11818 = vsub.s32 0, %v11817
        %v11819 = vrot.slane %v11814, %v11818
        %v11836 = vunpack.c.l.b16 %v11799
        %v11837 = vunpack.c.l.b16 %v11800
        %v11838 = vunpack.c.l.b16 %v11801
        %v11839 = vunpack.c.l.b16 %v11802
        %v11840 = vunpack.c.l.b16 %v11803
        %v11841 = vunpack.c.l.b16 %v11804
        %v11842 = vunpack.c.l.b16 %v11805
        %v11843 = vunpack.c.l.b16 %v11806
        %v11844 = vunpack.c.l.b16 %v11807
        %v11845 = vunpack.c.l.b16 %v11808
        %v11846 = vunpack.c.l.b16 %v11809
        %v11847 = vunpack.c.l.b16 %v11810
        %v11848 = vunpack.c.l.b16 %v11811
        %v11849 = vunpack.c.l.b16 %v11812
        %v11850 = vunpack.c.l.b16 %v11813
        %v11851 = vpack.c.b16 %v11837, %v11836
        %v11852 = vpack.c.b16 %v11839, %v11838
        %v11853 = vpack.c.b16 %v11841, %v11840
        %v11854 = vpack.c.b16 %v11843, %v11842
        %v11855 = vpack.c.b16 %v11845, %v11844
        %v11856 = vpack.c.b16 %v11847, %v11846
        %v11857 = vpack.c.b16 %v11849, %v11848
        %v11858 = vpack.c.b16 %v11850, %v11850
        %vm11866 = vcmask 982016
        %v11868 = vsel %vm11866, %v11798, 0
        %v11871 = vsel %vm3394, %v11858, 0
        %11873 = vmatprep.subr.bf16.mxu0 0
        %11874 = vmatpush1.bf16.msra.mxu0 %v11851
        %11875 = vmatprep.subr.bf16.mxu0 0
        %11876 = vmatpush1.bf16.msra.mxu0 %v11852
        %11877 = vmatprep.subr.bf16.mxu0 0
        %11878 = vmatpush1.bf16.msra.mxu0 %v11853
        %11879 = vmatprep.subr.bf16.mxu0 0
        %11880 = vmatpush1.bf16.msra.mxu0 %v11854
        %11881 = vmatprep.subr.bf16.mxu0 0
        %11882 = vmatpush1.bf16.msra.mxu0 %v11855
        %11883 = vmatprep.subr.bf16.mxu0 0
        %11884 = vmatpush1.bf16.msra.mxu0 %v11856
        %11885 = vmatprep.subr.bf16.mxu0 0
        %11886 = vmatpush1.bf16.msra.mxu0 %v11857
        %11887 = vmatprep.subr.bf16.mxu0 0
        %11888 = vmatpush1.bf16.msra.mxu0 %v11871
        %11889 = vmatprep.subr.bf16.mxu0 0
        %11890 = vmatpush1.bf16.msra.mxu0 0
        %11891 = vmatprep.subr.bf16.mxu0 0
        %11892 = vmatpush1.bf16.msra.mxu0 0
        %11893 = vmatprep.subr.bf16.mxu0 0
        %11894 = vmatpush1.bf16.msra.mxu0 0
        %11895 = vmatprep.subr.bf16.mxu0 0
        %11896 = vmatpush1.bf16.msra.mxu0 0
        %11897 = vmatprep.subr.bf16.mxu0 0
        %11898 = vmatpush1.bf16.msra.mxu0 0
        %11899 = vmatprep.subr.bf16.mxu0 0
        %11900 = vmatpush1.bf16.msra.mxu0 0
        %11901 = vmatprep.subr.bf16.mxu0 0
        %11902 = vmatpush1.bf16.msra.mxu0 0
        %11903 = vmatprep.subr.bf16.mxu0 0
        %11904 = vmatpush1.bf16.msra.mxu0 0
        %11905 = vmatprep.mubr.bf16.mxu0 0
        %11906 = vmatmul.mubr.bf16.gmra.mrb[0].mxu0 %v11868
        %v11907 = vpop.f32.mrb[0].mxu0
        %v11908 = vadd.f32 %v11819, %v11907
        %v11909 = vpop.f32.mrb[0].mxu0
        %v11910 = vpop.f32.mrb[0].mxu0
        %v11911 = vpop.f32.mrb[0].mxu0
        %11912 = vdwg.mxu0
        %11913 = vmax.xlane.f32.xlu0 %v11908
        %v11914 = vpop.xlane.xlu0 %11913
        %v11915 = vsub.f32 %v11908, %v11914
        %v11916 = vmul.f32 %v11915, 1.442695
        %v11917 = vpow.pop %v11916
        %11918 = vadd.xlane.f32.xlu0 %v11917
        %v11919 = vpop.xlane.xlu0 %11918
        %v11920 = vrcp.pop %v11919
        %v11921 = vmul.f32 %v11917, %v11920
        %11922 = vst [vmem:[%s353] sm:$0xff] %v11921
        %s11923 = sand.u32 %s247, 1
        %s11924 = scalar_lea.sflag [#allocation5], %s11923
        %s11925 = sand.u32 %s247, 1
        %s11926 = smul.addr %s11925, 8
        %s11927 = scalar_lea.vmem [#allocation4], %s11926
        // Predicated region
        $region61: #{lenet5_forward.1} parent=59 // pred_check
          %p11928 = pneg %p257
        $region62: #{lenet5_forward.1} parent=59 // pred_check_branch
          %11930 = sbr.rel (%p11928) target = $region64
        $region63: #{lenet5_forward.1} parent=59 // pred_region
          %s11932 = ssub.s32 128, 128
          %11933 = vsyncadd %s11924, %s11932
          %s11934 = smul.addr %s24, 128
          %s11935 = scalar_lea.hbm %s10, %s11934
          %s11937 = sshll.u32 %s11927, 4
          %s11938 = int_to_ptr.vmem [resolvable:$true] %s11937
          %11940 = dma.vmem_to_hbm [thread:$0]  %s11938, 128, %s11935, %s11924
        $region64: #{lenet5_forward.1} parent=59 // pred_fallthru
          _
      $region60: #{lenet5_forward.1} parent=5 // pred_fallthru
        _
      %p11941 = scmp.le.s32.totalorder 2, %s19
      // Predicated region
      $region65: #{lenet5_forward.1} parent=5 // pred_check
        %p11942 = pneg %p11941
      $region66: #{lenet5_forward.1} parent=5 // pred_check_branch
        %11944 = sbr.rel (%p11942) target = $region68
      $region67: #{lenet5_forward.1} parent=5 // pred_region
        %s11945 = ssub.s32 %s19, 2
        // Predicated region
        $region69: #{lenet5_forward.1} parent=67 // pred_check
          %p11946 = pneg %p263
        $region70: #{lenet5_forward.1} parent=67 // pred_check_branch
          %11948 = sbr.rel (%p11946) target = $region72
        $region71: #{lenet5_forward.1} parent=67 // pred_region
          %s11949 = sand.u32 %s248, 1
          %s11950 = scalar_lea.sflag [#allocation5], %s11949
          %s11951 = sand.u32 %s248, 1
          %s11952 = smul.addr %s11951, 8
          %s11953 = scalar_lea.vmem [#allocation4], %s11952
          %11954 = dma.done %s11950, 128
        $region72: #{lenet5_forward.1} parent=67 // pred_fallthru
          _
      $region68: #{lenet5_forward.1} parent=5 // pred_fallthru
        _
    $region6: #{lenet5_forward.1} parent=1 // loop_footer
      %s23 = sadd.s32 1, %s19
    $region7: #{lenet5_forward.1} parent=1 // loop_footer_branch
      %18 = sbr.rel target = $region3
    $region8: #{lenet5_forward.1} parent=1 // loop_exit
      _
    %11955 = vsyncpa [#allocation5], 1
    %s11956 = scalar_lea.sflag [#allocation5], 1
    %11957 = vsyncpa %s11956, 1

</llo_original>
